<compile_context>
chip_gen: v7x
topology: tpu7x:2x2x1
jax: 0.10.0
libtpu: 0.0.40
codegen_flags: <defaults>
</compile_context>

<pallas_src>
import functools

import numpy as np
import jax
import jax.numpy as jnp
from jax.experimental import pallas as pl
from jax.experimental.pallas import tpu as pltpu

NEG_SLOPE = 0.01   # nn.LeakyReLU default
BN_EPS = 1e-5      # nn.BatchNorm2d default

LAYER_CHANNELS = [(128, 128), (128, 128), (128, 128),
                  (128, 64), (64, 64), (64, 64), (64, 64)]
N_SPATIAL_LAYERS = 4   # convs with input spatial > 1  (16->8->4->2->1)
N_CENTER_LAYERS = 2    # convs 5-6: 1x1 input, LeakyReLU + BN after
# conv 7: 1x1 input, no act/BN; last_stage: LeakyReLU -> 1x1 conv -> Sigmoid


# ----------------------------- fused Pallas kernel ---------------------------

def _make_fused_kernel(active_taps):
    """active_taps: tuple (per spatial layer) of tuples of non-zero tap ids."""
    n_sp = len(active_taps)

    def _lrelu_bn(h, b_ref, g_ref, beta_ref):
        # bias + LeakyReLU + training-mode BatchNorm (batch stats, biased var)
        h = h + b_ref[...]
        h = jnp.where(h >= 0, h, NEG_SLOPE * h)
        mean = jnp.mean(h, axis=0, keepdims=True)
        var = jnp.mean(jnp.square(h - mean), axis=0, keepdims=True)
        h = (h - mean) * jax.lax.rsqrt(var + BN_EPS)
        return h * g_ref[...] + beta_ref[...]

    def kernel(*refs):
        feat_ref, y_ref = refs[-2], refs[-1]
        h = refs[0][...]                       # (N*H*W, 128) bf16, rows = (n,h,w)
        idx = 1

        # --- convs 1-4 (spatial): selection-matmul gather + 9-tap accumulation
        for l in range(n_sp):
            s_ref, w_ref, b_ref, g_ref, beta_ref = refs[idx:idx + 5]
            idx += 5
            acc = None
            for t in active_taps[l]:
                gath = jnp.dot(s_ref[t], h, preferred_element_type=jnp.float32)
                gath = gath.astype(jnp.bfloat16)      # lossless: 0/1 gather of bf16
                part = jnp.dot(gath, w_ref[t], preferred_element_type=jnp.float32)
                acc = part if acc is None else acc + part
            h = _lrelu_bn(acc, b_ref, g_ref, beta_ref).astype(jnp.bfloat16)

        # --- convs 5-6 (1x1 spatial): centre tap only
        for _ in range(N_CENTER_LAYERS):
            w_ref, b_ref, g_ref, beta_ref = refs[idx:idx + 4]
            idx += 4
            acc = jnp.dot(h, w_ref[...], preferred_element_type=jnp.float32)
            h = _lrelu_bn(acc, b_ref, g_ref, beta_ref).astype(jnp.bfloat16)

        # --- conv 7 (no act / BN) -> returned feature map
        w7_ref, b7_ref = refs[idx:idx + 2]
        idx += 2
        x7 = jnp.dot(h, w7_ref[...], preferred_element_type=jnp.float32) + b7_ref[...]
        feat_ref[...] = x7

        # --- last_stage: LeakyReLU -> 1x1 conv (lane-padded to 128) -> Sigmoid
        w8_ref, b8_ref = refs[idx:idx + 2]
        h8 = jnp.where(x7 >= 0, x7, NEG_SLOPE * x7).astype(jnp.bfloat16)
        y = jnp.dot(h8, w8_ref[...], preferred_element_type=jnp.float32) + b8_ref[...]
        y_ref[...] = jax.nn.sigmoid(y)

    return kernel


# ----------------------------- host-side constants ---------------------------

def _selection_matrices(n, hi, wi):
    """0/1 gather matrices (one per 3x3 tap) for a stride-2, pad-1 conv."""
    ho, wo = (hi - 1) // 2 + 1, (wi - 1) // 2 + 1
    s = np.zeros((9, n * ho * wo, n * hi * wi), np.float32)
    for b in range(n):
        for oh in range(ho):
            for ow in range(wo):
                mo = (b * ho + oh) * wo + ow
                for kh in range(3):
                    for kw in range(3):
                        ih, iw = 2 * oh - 1 + kh, 2 * ow - 1 + kw
                        if 0 <= ih < hi and 0 <= iw < wi:
                            s[kh * 3 + kw, mo, (b * hi + ih) * wi + iw] = 1.0
    return s, (ho, wo)


@functools.lru_cache(maxsize=None)
def _build_gather_constants(n, h, w):
    sels, active = [], []
    hi, wi = h, w
    for _ in range(N_SPATIAL_LAYERS):
        s, (hi, wi) = _selection_matrices(n, hi, wi)
        active.append(tuple(t for t in range(9) if s[t].any()))
        sels.append(jnp.asarray(s, jnp.bfloat16))
    assert hi == 1 and wi == 1, "expected 1x1 spatial after 4 stride-2 convs"
    return tuple(sels), tuple(active)


def _vmem_spec(a):
    nd = a.ndim
    return pl.BlockSpec(a.shape, lambda i, _nd=nd: (0,) * _nd)


# ----------------------------- parameters & forward ---------------------------

def init_params(key):
    """Synthetic parameters; conv weights stored as (9 taps, Cin, Cout)."""
    params = []
    for cin, cout in LAYER_CHANNELS:
        key, kw_, kb_ = jax.random.split(key, 3)
        fan_in = 9 * cin
        wgt = jax.random.normal(kw_, (9, cin, cout), jnp.float32) / jnp.sqrt(float(fan_in))
        b = jax.random.normal(kb_, (1, cout), jnp.float32) * 0.01
        g = jnp.ones((1, cout), jnp.float32)       # BatchNorm weight
        beta = jnp.zeros((1, cout), jnp.float32)   # BatchNorm bias
        params.append((wgt, b, g, beta))
    key, kw_, kb_ = jax.random.split(key, 3)
    w8 = jax.random.normal(kw_, (64, 1), jnp.float32) / jnp.sqrt(64.0)
    b8 = jax.random.normal(kb_, (1, 1), jnp.float32) * 0.01
    params.append((w8, b8))
    return params


def discriminator_sdf_forward(x_nchw, params):
    """Returns (y, feat) exactly like the PyTorch module's forward (NCHW)."""
    n, c, h, w = x_nchw.shape
    sels, active = _build_gather_constants(n, h, w)

    x = jnp.transpose(x_nchw, (0, 2, 3, 1)).reshape(n * h * w, c)
    x = x.astype(jnp.bfloat16)

    inputs, in_specs = [], []

    def add(a):
        inputs.append(a)
        in_specs.append(_vmem_spec(a))

    add(x)
    # convs 1-4 (spatial gather layers)
    for l in range(N_SPATIAL_LAYERS):
        wgt, b, g, beta = params[l]
        add(sels[l])
        add(wgt.astype(jnp.bfloat16))
        add(b); add(g); add(beta)
    # convs 5-6: 1x1 spatial -> centre tap only (other taps hit zero padding)
    for l in range(N_SPATIAL_LAYERS, N_SPATIAL_LAYERS + N_CENTER_LAYERS):
        wgt, b, g, beta = params[l]
        add(wgt[4].astype(jnp.bfloat16))
        add(b); add(g); add(beta)
    # conv 7 (no act / BN)
    w7, b7, _, _ = params[6]
    add(w7[4].astype(jnp.bfloat16))
    add(b7)
    # last_stage 1x1 conv: pad to 128 lanes so the y store is lane-dense
    w8, b8 = params[7]
    add(jnp.pad(w8, ((0, 0), (0, 127))).astype(jnp.bfloat16))
    add(jnp.pad(b8, ((0, 0), (0, 127))))

    out_shape = (jax.ShapeDtypeStruct((n, 64), jnp.float32),
                 jax.ShapeDtypeStruct((n, 128), jnp.float32))
    out_specs = (pl.BlockSpec((n, 64), lambda i: (0, 0)),
                 pl.BlockSpec((n, 128), lambda i: (0, 0)))

    feat, y_wide = pl.pallas_call(
        _make_fused_kernel(active),
        out_shape=out_shape,
        grid=(1,),
        in_specs=in_specs,
        out_specs=out_specs,
        compiler_params=pltpu.CompilerParams(
            dimension_semantics=("arbitrary",),
            vmem_limit_bytes=32 * 1024 * 1024),
    )(*inputs)

    feat = feat.reshape(n, 64, 1, 1)          # final spatial is 1x1
    y = y_wide[:, :1].reshape(n, 1, 1, 1)
    return y, feat


# ------------------------------------ main ------------------------------------

if __name__ == "__main__":
    key = jax.random.PRNGKey(0)
    # channels fixed at 128 by the module; small batch / spatial
    x = jax.random.normal(key, (2, 128, 16, 16), dtype=jnp.float32)
    params = init_params(jax.random.PRNGKey(1))

    y, feat = discriminator_sdf_forward(x, params)
    jax.block_until_ready((y, feat))

    # 16 -> 8 -> 4 -> 2 -> 1 -> 1 -> 1 -> 1 spatial; feat has 64 ch, y has 1 ch
    assert y.shape == (2, 1, 1, 1), y.shape
    assert feat.shape == (2, 64, 1, 1), feat.shape
    assert bool(jnp.all(jnp.isfinite(y))) and bool(jnp.all(jnp.isfinite(feat)))
    assert bool(jnp.all((y >= 0) & (y <= 1)))
    print("KERNEL_OK")
</pallas_src>

<mosaic_0001>
module attributes {stable_mosaic.version = 11 : i64} {
  func.func @kernel(%arg0: i32, %arg1: memref<512x128xbf16, #tpu.memory_space<vmem>>, %arg2: memref<9x128x512xbf16, #tpu.memory_space<vmem>>, %arg3: memref<9x128x128xbf16, #tpu.memory_space<vmem>>, %arg4: memref<1x128xf32, #tpu.memory_space<vmem>>, %arg5: memref<1x128xf32, #tpu.memory_space<vmem>>, %arg6: memref<1x128xf32, #tpu.memory_space<vmem>>, %arg7: memref<9x32x128xbf16, #tpu.memory_space<vmem>>, %arg8: memref<9x128x128xbf16, #tpu.memory_space<vmem>>, %arg9: memref<1x128xf32, #tpu.memory_space<vmem>>, %arg10: memref<1x128xf32, #tpu.memory_space<vmem>>, %arg11: memref<1x128xf32, #tpu.memory_space<vmem>>, %arg12: memref<9x8x32xbf16, #tpu.memory_space<vmem>>, %arg13: memref<9x128x128xbf16, #tpu.memory_space<vmem>>, %arg14: memref<1x128xf32, #tpu.memory_space<vmem>>, %arg15: memref<1x128xf32, #tpu.memory_space<vmem>>, %arg16: memref<1x128xf32, #tpu.memory_space<vmem>>, %arg17: memref<9x2x8xbf16, #tpu.memory_space<vmem>>, %arg18: memref<9x128x64xbf16, #tpu.memory_space<vmem>>, %arg19: memref<1x64xf32, #tpu.memory_space<vmem>>, %arg20: memref<1x64xf32, #tpu.memory_space<vmem>>, %arg21: memref<1x64xf32, #tpu.memory_space<vmem>>, %arg22: memref<64x64xbf16, #tpu.memory_space<vmem>>, %arg23: memref<1x64xf32, #tpu.memory_space<vmem>>, %arg24: memref<1x64xf32, #tpu.memory_space<vmem>>, %arg25: memref<1x64xf32, #tpu.memory_space<vmem>>, %arg26: memref<64x64xbf16, #tpu.memory_space<vmem>>, %arg27: memref<1x64xf32, #tpu.memory_space<vmem>>, %arg28: memref<1x64xf32, #tpu.memory_space<vmem>>, %arg29: memref<1x64xf32, #tpu.memory_space<vmem>>, %arg30: memref<64x64xbf16, #tpu.memory_space<vmem>>, %arg31: memref<1x64xf32, #tpu.memory_space<vmem>>, %arg32: memref<64x128xbf16, #tpu.memory_space<vmem>>, %arg33: memref<1x128xf32, #tpu.memory_space<vmem>>, %arg34: memref<2x64xf32, #tpu.memory_space<vmem>>, %arg35: memref<2x128xf32, #tpu.memory_space<vmem>>) attributes {dimension_semantics = [#tpu.dimension_semantics<arbitrary>], iteration_bounds = array<i64: 1>, scalar_prefetch = 0 : i64, scratch_operands = 0 : i64, tpu.core_type = #tpu.core_type<tc>, window_params = [{pipeline_mode = #tpu.pipeline_mode<synchronous>, transform_indices = @transform_0, window_bounds = array<i64: 512, 128>}, {pipeline_mode = #tpu.pipeline_mode<synchronous>, transform_indices = @transform_1, window_bounds = array<i64: 9, 128, 512>}, {pipeline_mode = #tpu.pipeline_mode<synchronous>, transform_indices = @transform_2, window_bounds = array<i64: 9, 128, 128>}, {pipeline_mode = #tpu.pipeline_mode<synchronous>, transform_indices = @transform_3, window_bounds = array<i64: 1, 128>}, {pipeline_mode = #tpu.pipeline_mode<synchronous>, transform_indices = @transform_4, window_bounds = array<i64: 1, 128>}, {pipeline_mode = #tpu.pipeline_mode<synchronous>, transform_indices = @transform_5, window_bounds = array<i64: 1, 128>}, {pipeline_mode = #tpu.pipeline_mode<synchronous>, transform_indices = @transform_6, window_bounds = array<i64: 9, 32, 128>}, {pipeline_mode = #tpu.pipeline_mode<synchronous>, transform_indices = @transform_7, window_bounds = array<i64: 9, 128, 128>}, {pipeline_mode = #tpu.pipeline_mode<synchronous>, transform_indices = @transform_8, window_bounds = array<i64: 1, 128>}, {pipeline_mode = #tpu.pipeline_mode<synchronous>, transform_indices = @transform_9, window_bounds = array<i64: 1, 128>}, {pipeline_mode = #tpu.pipeline_mode<synchronous>, transform_indices = @transform_10, window_bounds = array<i64: 1, 128>}, {pipeline_mode = #tpu.pipeline_mode<synchronous>, transform_indices = @transform_11, window_bounds = array<i64: 9, 8, 32>}, {pipeline_mode = #tpu.pipeline_mode<synchronous>, transform_indices = @transform_12, window_bounds = array<i64: 9, 128, 128>}, {pipeline_mode = #tpu.pipeline_mode<synchronous>, transform_indices = @transform_13, window_bounds = array<i64: 1, 128>}, {pipeline_mode = #tpu.pipeline_mode<synchronous>, transform_indices = @transform_14, window_bounds = array<i64: 1, 128>}, {pipeline_mode = #tpu.pipeline_mode<synchronous>, transform_indices = @transform_15, window_bounds = array<i64: 1, 128>}, {pipeline_mode = #tpu.pipeline_mode<synchronous>, transform_indices = @transform_16, window_bounds = array<i64: 9, 2, 8>}, {pipeline_mode = #tpu.pipeline_mode<synchronous>, transform_indices = @transform_17, window_bounds = array<i64: 9, 128, 64>}, {pipeline_mode = #tpu.pipeline_mode<synchronous>, transform_indices = @transform_18, window_bounds = array<i64: 1, 64>}, {pipeline_mode = #tpu.pipeline_mode<synchronous>, transform_indices = @transform_19, window_bounds = array<i64: 1, 64>}, {pipeline_mode = #tpu.pipeline_mode<synchronous>, transform_indices = @transform_20, window_bounds = array<i64: 1, 64>}, {pipeline_mode = #tpu.pipeline_mode<synchronous>, transform_indices = @transform_21, window_bounds = array<i64: 64, 64>}, {pipeline_mode = #tpu.pipeline_mode<synchronous>, transform_indices = @transform_22, window_bounds = array<i64: 1, 64>}, {pipeline_mode = #tpu.pipeline_mode<synchronous>, transform_indices = @transform_23, window_bounds = array<i64: 1, 64>}, {pipeline_mode = #tpu.pipeline_mode<synchronous>, transform_indices = @transform_24, window_bounds = array<i64: 1, 64>}, {pipeline_mode = #tpu.pipeline_mode<synchronous>, transform_indices = @transform_25, window_bounds = array<i64: 64, 64>}, {pipeline_mode = #tpu.pipeline_mode<synchronous>, transform_indices = @transform_26, window_bounds = array<i64: 1, 64>}, {pipeline_mode = #tpu.pipeline_mode<synchronous>, transform_indices = @transform_27, window_bounds = array<i64: 1, 64>}, {pipeline_mode = #tpu.pipeline_mode<synchronous>, transform_indices = @transform_28, window_bounds = array<i64: 1, 64>}, {pipeline_mode = #tpu.pipeline_mode<synchronous>, transform_indices = @transform_29, window_bounds = array<i64: 64, 64>}, {pipeline_mode = #tpu.pipeline_mode<synchronous>, transform_indices = @transform_30, window_bounds = array<i64: 1, 64>}, {pipeline_mode = #tpu.pipeline_mode<synchronous>, transform_indices = @transform_31, window_bounds = array<i64: 64, 128>}, {pipeline_mode = #tpu.pipeline_mode<synchronous>, transform_indices = @transform_32, window_bounds = array<i64: 1, 128>}, {pipeline_mode = #tpu.pipeline_mode<synchronous>, transform_indices = @transform_33, window_bounds = array<i64: 2, 64>}, {pipeline_mode = #tpu.pipeline_mode<synchronous>, transform_indices = @transform_34, window_bounds = array<i64: 2, 128>}]} {
    %c0 = arith.constant 0 : index
    %c0_0 = arith.constant 0 : index
    %0 = vector.load %arg1[%c0, %c0_0] : memref<512x128xbf16, #tpu.memory_space<vmem>>, vector<512x128xbf16>
    %c0_1 = arith.constant 0 : index
    %c0_2 = arith.constant 0 : index
    %c0_3 = arith.constant 0 : index
    %1 = vector.load %arg2[%c0_1, %c0_2, %c0_3] : memref<9x128x512xbf16, #tpu.memory_space<vmem>>, vector<1x128x512xbf16>
    %2 = vector.shape_cast %1 : vector<1x128x512xbf16> to vector<128x512xbf16>
    %cst = arith.constant dense<0.000000e+00> : vector<128x128xf32>
    %3 = tpu.matmul %2, %0, %cst {dimension_numbers = #tpu.dot_dimension_numbers<[1], [0], [0], [1], [0, 0, 1, 1], [], []>} : vector<128x512xbf16>, vector<512x128xbf16>, vector<128x128xf32> -> vector<128x128xf32>
    %4 = arith.truncf %3 : vector<128x128xf32> to vector<128x128xbf16>
    %c0_4 = arith.constant 0 : index
    %c0_5 = arith.constant 0 : index
    %c0_6 = arith.constant 0 : index
    %5 = vector.load %arg3[%c0_4, %c0_5, %c0_6] : memref<9x128x128xbf16, #tpu.memory_space<vmem>>, vector<1x128x128xbf16>
    %6 = vector.shape_cast %5 : vector<1x128x128xbf16> to vector<128x128xbf16>
    %cst_7 = arith.constant dense<0.000000e+00> : vector<128x128xf32>
    %7 = tpu.matmul %4, %6, %cst_7 {dimension_numbers = #tpu.dot_dimension_numbers<[1], [0], [0], [1], [0, 0, 1, 1], [], []>} : vector<128x128xbf16>, vector<128x128xbf16>, vector<128x128xf32> -> vector<128x128xf32>
    %c1 = arith.constant 1 : index
    %c0_8 = arith.constant 0 : index
    %c0_9 = arith.constant 0 : index
    %8 = vector.load %arg2[%c1, %c0_8, %c0_9] : memref<9x128x512xbf16, #tpu.memory_space<vmem>>, vector<1x128x512xbf16>
    %9 = vector.shape_cast %8 : vector<1x128x512xbf16> to vector<128x512xbf16>
    %cst_10 = arith.constant dense<0.000000e+00> : vector<128x128xf32>
    %10 = tpu.matmul %9, %0, %cst_10 {dimension_numbers = #tpu.dot_dimension_numbers<[1], [0], [0], [1], [0, 0, 1, 1], [], []>} : vector<128x512xbf16>, vector<512x128xbf16>, vector<128x128xf32> -> vector<128x128xf32>
    %11 = arith.truncf %10 : vector<128x128xf32> to vector<128x128xbf16>
    %c1_11 = arith.constant 1 : index
    %c0_12 = arith.constant 0 : index
    %c0_13 = arith.constant 0 : index
    %12 = vector.load %arg3[%c1_11, %c0_12, %c0_13] : memref<9x128x128xbf16, #tpu.memory_space<vmem>>, vector<1x128x128xbf16>
    %13 = vector.shape_cast %12 : vector<1x128x128xbf16> to vector<128x128xbf16>
    %cst_14 = arith.constant dense<0.000000e+00> : vector<128x128xf32>
    %14 = tpu.matmul %11, %13, %cst_14 {dimension_numbers = #tpu.dot_dimension_numbers<[1], [0], [0], [1], [0, 0, 1, 1], [], []>} : vector<128x128xbf16>, vector<128x128xbf16>, vector<128x128xf32> -> vector<128x128xf32>
    %15 = arith.addf %7, %14 : vector<128x128xf32>
    %c2 = arith.constant 2 : index
    %c0_15 = arith.constant 0 : index
    %c0_16 = arith.constant 0 : index
    %16 = vector.load %arg2[%c2, %c0_15, %c0_16] : memref<9x128x512xbf16, #tpu.memory_space<vmem>>, vector<1x128x512xbf16>
    %17 = vector.shape_cast %16 : vector<1x128x512xbf16> to vector<128x512xbf16>
    %cst_17 = arith.constant dense<0.000000e+00> : vector<128x128xf32>
    %18 = tpu.matmul %17, %0, %cst_17 {dimension_numbers = #tpu.dot_dimension_numbers<[1], [0], [0], [1], [0, 0, 1, 1], [], []>} : vector<128x512xbf16>, vector<512x128xbf16>, vector<128x128xf32> -> vector<128x128xf32>
    %19 = arith.truncf %18 : vector<128x128xf32> to vector<128x128xbf16>
    %c2_18 = arith.constant 2 : index
    %c0_19 = arith.constant 0 : index
    %c0_20 = arith.constant 0 : index
    %20 = vector.load %arg3[%c2_18, %c0_19, %c0_20] : memref<9x128x128xbf16, #tpu.memory_space<vmem>>, vector<1x128x128xbf16>
    %21 = vector.shape_cast %20 : vector<1x128x128xbf16> to vector<128x128xbf16>
    %cst_21 = arith.constant dense<0.000000e+00> : vector<128x128xf32>
    %22 = tpu.matmul %19, %21, %cst_21 {dimension_numbers = #tpu.dot_dimension_numbers<[1], [0], [0], [1], [0, 0, 1, 1], [], []>} : vector<128x128xbf16>, vector<128x128xbf16>, vector<128x128xf32> -> vector<128x128xf32>
    %23 = arith.addf %15, %22 : vector<128x128xf32>
    %c3 = arith.constant 3 : index
    %c0_22 = arith.constant 0 : index
    %c0_23 = arith.constant 0 : index
    %24 = vector.load %arg2[%c3, %c0_22, %c0_23] : memref<9x128x512xbf16, #tpu.memory_space<vmem>>, vector<1x128x512xbf16>
    %25 = vector.shape_cast %24 : vector<1x128x512xbf16> to vector<128x512xbf16>
    %cst_24 = arith.constant dense<0.000000e+00> : vector<128x128xf32>
    %26 = tpu.matmul %25, %0, %cst_24 {dimension_numbers = #tpu.dot_dimension_numbers<[1], [0], [0], [1], [0, 0, 1, 1], [], []>} : vector<128x512xbf16>, vector<512x128xbf16>, vector<128x128xf32> -> vector<128x128xf32>
    %27 = arith.truncf %26 : vector<128x128xf32> to vector<128x128xbf16>
    %c3_25 = arith.constant 3 : index
    %c0_26 = arith.constant 0 : index
    %c0_27 = arith.constant 0 : index
    %28 = vector.load %arg3[%c3_25, %c0_26, %c0_27] : memref<9x128x128xbf16, #tpu.memory_space<vmem>>, vector<1x128x128xbf16>
    %29 = vector.shape_cast %28 : vector<1x128x128xbf16> to vector<128x128xbf16>
    %cst_28 = arith.constant dense<0.000000e+00> : vector<128x128xf32>
    %30 = tpu.matmul %27, %29, %cst_28 {dimension_numbers = #tpu.dot_dimension_numbers<[1], [0], [0], [1], [0, 0, 1, 1], [], []>} : vector<128x128xbf16>, vector<128x128xbf16>, vector<128x128xf32> -> vector<128x128xf32>
    %31 = arith.addf %23, %30 : vector<128x128xf32>
    %c4 = arith.constant 4 : index
    %c0_29 = arith.constant 0 : index
    %c0_30 = arith.constant 0 : index
    %32 = vector.load %arg2[%c4, %c0_29, %c0_30] : memref<9x128x512xbf16, #tpu.memory_space<vmem>>, vector<1x128x512xbf16>
    %33 = vector.shape_cast %32 : vector<1x128x512xbf16> to vector<128x512xbf16>
    %cst_31 = arith.constant dense<0.000000e+00> : vector<128x128xf32>
    %34 = tpu.matmul %33, %0, %cst_31 {dimension_numbers = #tpu.dot_dimension_numbers<[1], [0], [0], [1], [0, 0, 1, 1], [], []>} : vector<128x512xbf16>, vector<512x128xbf16>, vector<128x128xf32> -> vector<128x128xf32>
    %35 = arith.truncf %34 : vector<128x128xf32> to vector<128x128xbf16>
    %c4_32 = arith.constant 4 : index
    %c0_33 = arith.constant 0 : index
    %c0_34 = arith.constant 0 : index
    %36 = vector.load %arg3[%c4_32, %c0_33, %c0_34] : memref<9x128x128xbf16, #tpu.memory_space<vmem>>, vector<1x128x128xbf16>
    %37 = vector.shape_cast %36 : vector<1x128x128xbf16> to vector<128x128xbf16>
    %cst_35 = arith.constant dense<0.000000e+00> : vector<128x128xf32>
    %38 = tpu.matmul %35, %37, %cst_35 {dimension_numbers = #tpu.dot_dimension_numbers<[1], [0], [0], [1], [0, 0, 1, 1], [], []>} : vector<128x128xbf16>, vector<128x128xbf16>, vector<128x128xf32> -> vector<128x128xf32>
    %39 = arith.addf %31, %38 : vector<128x128xf32>
    %c5 = arith.constant 5 : index
    %c0_36 = arith.constant 0 : index
    %c0_37 = arith.constant 0 : index
    %40 = vector.load %arg2[%c5, %c0_36, %c0_37] : memref<9x128x512xbf16, #tpu.memory_space<vmem>>, vector<1x128x512xbf16>
    %41 = vector.shape_cast %40 : vector<1x128x512xbf16> to vector<128x512xbf16>
    %cst_38 = arith.constant dense<0.000000e+00> : vector<128x128xf32>
    %42 = tpu.matmul %41, %0, %cst_38 {dimension_numbers = #tpu.dot_dimension_numbers<[1], [0], [0], [1], [0, 0, 1, 1], [], []>} : vector<128x512xbf16>, vector<512x128xbf16>, vector<128x128xf32> -> vector<128x128xf32>
    %43 = arith.truncf %42 : vector<128x128xf32> to vector<128x128xbf16>
    %c5_39 = arith.constant 5 : index
    %c0_40 = arith.constant 0 : index
    %c0_41 = arith.constant 0 : index
    %44 = vector.load %arg3[%c5_39, %c0_40, %c0_41] : memref<9x128x128xbf16, #tpu.memory_space<vmem>>, vector<1x128x128xbf16>
    %45 = vector.shape_cast %44 : vector<1x128x128xbf16> to vector<128x128xbf16>
    %cst_42 = arith.constant dense<0.000000e+00> : vector<128x128xf32>
    %46 = tpu.matmul %43, %45, %cst_42 {dimension_numbers = #tpu.dot_dimension_numbers<[1], [0], [0], [1], [0, 0, 1, 1], [], []>} : vector<128x128xbf16>, vector<128x128xbf16>, vector<128x128xf32> -> vector<128x128xf32>
    %47 = arith.addf %39, %46 : vector<128x128xf32>
    %c6 = arith.constant 6 : index
    %c0_43 = arith.constant 0 : index
    %c0_44 = arith.constant 0 : index
    %48 = vector.load %arg2[%c6, %c0_43, %c0_44] : memref<9x128x512xbf16, #tpu.memory_space<vmem>>, vector<1x128x512xbf16>
    %49 = vector.shape_cast %48 : vector<1x128x512xbf16> to vector<128x512xbf16>
    %cst_45 = arith.constant dense<0.000000e+00> : vector<128x128xf32>
    %50 = tpu.matmul %49, %0, %cst_45 {dimension_numbers = #tpu.dot_dimension_numbers<[1], [0], [0], [1], [0, 0, 1, 1], [], []>} : vector<128x512xbf16>, vector<512x128xbf16>, vector<128x128xf32> -> vector<128x128xf32>
    %51 = arith.truncf %50 : vector<128x128xf32> to vector<128x128xbf16>
    %c6_46 = arith.constant 6 : index
    %c0_47 = arith.constant 0 : index
    %c0_48 = arith.constant 0 : index
    %52 = vector.load %arg3[%c6_46, %c0_47, %c0_48] : memref<9x128x128xbf16, #tpu.memory_space<vmem>>, vector<1x128x128xbf16>
    %53 = vector.shape_cast %52 : vector<1x128x128xbf16> to vector<128x128xbf16>
    %cst_49 = arith.constant dense<0.000000e+00> : vector<128x128xf32>
    %54 = tpu.matmul %51, %53, %cst_49 {dimension_numbers = #tpu.dot_dimension_numbers<[1], [0], [0], [1], [0, 0, 1, 1], [], []>} : vector<128x128xbf16>, vector<128x128xbf16>, vector<128x128xf32> -> vector<128x128xf32>
    %55 = arith.addf %47, %54 : vector<128x128xf32>
    %c7 = arith.constant 7 : index
    %c0_50 = arith.constant 0 : index
    %c0_51 = arith.constant 0 : index
    %56 = vector.load %arg2[%c7, %c0_50, %c0_51] : memref<9x128x512xbf16, #tpu.memory_space<vmem>>, vector<1x128x512xbf16>
    %57 = vector.shape_cast %56 : vector<1x128x512xbf16> to vector<128x512xbf16>
    %cst_52 = arith.constant dense<0.000000e+00> : vector<128x128xf32>
    %58 = tpu.matmul %57, %0, %cst_52 {dimension_numbers = #tpu.dot_dimension_numbers<[1], [0], [0], [1], [0, 0, 1, 1], [], []>} : vector<128x512xbf16>, vector<512x128xbf16>, vector<128x128xf32> -> vector<128x128xf32>
    %59 = arith.truncf %58 : vector<128x128xf32> to vector<128x128xbf16>
    %c7_53 = arith.constant 7 : index
    %c0_54 = arith.constant 0 : index
    %c0_55 = arith.constant 0 : index
    %60 = vector.load %arg3[%c7_53, %c0_54, %c0_55] : memref<9x128x128xbf16, #tpu.memory_space<vmem>>, vector<1x128x128xbf16>
    %61 = vector.shape_cast %60 : vector<1x128x128xbf16> to vector<128x128xbf16>
    %cst_56 = arith.constant dense<0.000000e+00> : vector<128x128xf32>
    %62 = tpu.matmul %59, %61, %cst_56 {dimension_numbers = #tpu.dot_dimension_numbers<[1], [0], [0], [1], [0, 0, 1, 1], [], []>} : vector<128x128xbf16>, vector<128x128xbf16>, vector<128x128xf32> -> vector<128x128xf32>
    %63 = arith.addf %55, %62 : vector<128x128xf32>
    %c8 = arith.constant 8 : index
    %c0_57 = arith.constant 0 : index
    %c0_58 = arith.constant 0 : index
    %64 = vector.load %arg2[%c8, %c0_57, %c0_58] : memref<9x128x512xbf16, #tpu.memory_space<vmem>>, vector<1x128x512xbf16>
    %65 = vector.shape_cast %64 : vector<1x128x512xbf16> to vector<128x512xbf16>
    %cst_59 = arith.constant dense<0.000000e+00> : vector<128x128xf32>
    %66 = tpu.matmul %65, %0, %cst_59 {dimension_numbers = #tpu.dot_dimension_numbers<[1], [0], [0], [1], [0, 0, 1, 1], [], []>} : vector<128x512xbf16>, vector<512x128xbf16>, vector<128x128xf32> -> vector<128x128xf32>
    %67 = arith.truncf %66 : vector<128x128xf32> to vector<128x128xbf16>
    %c8_60 = arith.constant 8 : index
    %c0_61 = arith.constant 0 : index
    %c0_62 = arith.constant 0 : index
    %68 = vector.load %arg3[%c8_60, %c0_61, %c0_62] : memref<9x128x128xbf16, #tpu.memory_space<vmem>>, vector<1x128x128xbf16>
    %69 = vector.shape_cast %68 : vector<1x128x128xbf16> to vector<128x128xbf16>
    %cst_63 = arith.constant dense<0.000000e+00> : vector<128x128xf32>
    %70 = tpu.matmul %67, %69, %cst_63 {dimension_numbers = #tpu.dot_dimension_numbers<[1], [0], [0], [1], [0, 0, 1, 1], [], []>} : vector<128x128xbf16>, vector<128x128xbf16>, vector<128x128xf32> -> vector<128x128xf32>
    %71 = arith.addf %63, %70 : vector<128x128xf32>
    %c0_64 = arith.constant 0 : index
    %c0_65 = arith.constant 0 : index
    %72 = vector.load %arg4[%c0_64, %c0_65] : memref<1x128xf32, #tpu.memory_space<vmem>>, vector<1x128xf32>
    %73 = vector.broadcast %72 : vector<1x128xf32> to vector<128x128xf32>
    %74 = arith.addf %71, %73 : vector<128x128xf32>
    %cst_66 = arith.constant 0.000000e+00 : f32
    %75 = vector.broadcast %cst_66 : f32 to vector<128x128xf32>
    %76 = arith.cmpf oge, %74, %75 : vector<128x128xf32>
    %cst_67 = arith.constant 0.00999999977 : f32
    %77 = vector.broadcast %cst_67 : f32 to vector<128x128xf32>
    %78 = arith.mulf %77, %74 : vector<128x128xf32>
    %79 = arith.select %76, %74, %78 : vector<128x128xi1>, vector<128x128xf32>
    %cst_68 = arith.constant dense<0.000000e+00> : vector<128xf32>
    %80 = vector.multi_reduction <add>, %79, %cst_68 [0] : vector<128x128xf32> to vector<128xf32>
    %81 = vector.shape_cast %80 : vector<128xf32> to vector<1x128xf32>
    %cst_69 = arith.constant 1.280000e+02 : f32
    %82 = vector.broadcast %cst_69 : f32 to vector<1x128xf32>
    %83 = arith.divf %81, %82 : vector<1x128xf32>
    %84 = vector.broadcast %83 : vector<1x128xf32> to vector<128x128xf32>
    %85 = arith.subf %79, %84 : vector<128x128xf32>
    %86 = arith.mulf %85, %85 : vector<128x128xf32>
    %cst_70 = arith.constant dense<0.000000e+00> : vector<128xf32>
    %87 = vector.multi_reduction <add>, %86, %cst_70 [0] : vector<128x128xf32> to vector<128xf32>
    %88 = vector.shape_cast %87 : vector<128xf32> to vector<1x128xf32>
    %cst_71 = arith.constant 1.280000e+02 : f32
    %89 = vector.broadcast %cst_71 : f32 to vector<1x128xf32>
    %90 = arith.divf %88, %89 : vector<1x128xf32>
    %91 = vector.broadcast %83 : vector<1x128xf32> to vector<128x128xf32>
    %92 = arith.subf %79, %91 : vector<128x128xf32>
    %cst_72 = arith.constant 9.99999974E-6 : f32
    %93 = vector.broadcast %cst_72 : f32 to vector<1x128xf32>
    %94 = arith.addf %90, %93 : vector<1x128xf32>
    %95 = math.rsqrt %94 : vector<1x128xf32>
    %96 = vector.broadcast %95 : vector<1x128xf32> to vector<128x128xf32>
    %97 = arith.mulf %92, %96 : vector<128x128xf32>
    %c0_73 = arith.constant 0 : index
    %c0_74 = arith.constant 0 : index
    %98 = vector.load %arg5[%c0_73, %c0_74] : memref<1x128xf32, #tpu.memory_space<vmem>>, vector<1x128xf32>
    %99 = vector.broadcast %98 : vector<1x128xf32> to vector<128x128xf32>
    %100 = arith.mulf %97, %99 : vector<128x128xf32>
    %c0_75 = arith.constant 0 : index
    %c0_76 = arith.constant 0 : index
    %101 = vector.load %arg6[%c0_75, %c0_76] : memref<1x128xf32, #tpu.memory_space<vmem>>, vector<1x128xf32>
    %102 = vector.broadcast %101 : vector<1x128xf32> to vector<128x128xf32>
    %103 = arith.addf %100, %102 : vector<128x128xf32>
    %104 = arith.truncf %103 : vector<128x128xf32> to vector<128x128xbf16>
    %c0_77 = arith.constant 0 : index
    %c0_78 = arith.constant 0 : index
    %c0_79 = arith.constant 0 : index
    %105 = vector.load %arg7[%c0_77, %c0_78, %c0_79] : memref<9x32x128xbf16, #tpu.memory_space<vmem>>, vector<1x32x128xbf16>
    %106 = vector.shape_cast %105 : vector<1x32x128xbf16> to vector<32x128xbf16>
    %cst_80 = arith.constant dense<0.000000e+00> : vector<32x128xf32>
    %107 = tpu.matmul %106, %104, %cst_80 {dimension_numbers = #tpu.dot_dimension_numbers<[1], [0], [0], [1], [0, 0, 1, 1], [], []>} : vector<32x128xbf16>, vector<128x128xbf16>, vector<32x128xf32> -> vector<32x128xf32>
    %108 = arith.truncf %107 : vector<32x128xf32> to vector<32x128xbf16>
    %c0_81 = arith.constant 0 : index
    %c0_82 = arith.constant 0 : index
    %c0_83 = arith.constant 0 : index
    %109 = vector.load %arg8[%c0_81, %c0_82, %c0_83] : memref<9x128x128xbf16, #tpu.memory_space<vmem>>, vector<1x128x128xbf16>
    %110 = vector.shape_cast %109 : vector<1x128x128xbf16> to vector<128x128xbf16>
    %cst_84 = arith.constant dense<0.000000e+00> : vector<32x128xf32>
    %111 = tpu.matmul %108, %110, %cst_84 {dimension_numbers = #tpu.dot_dimension_numbers<[1], [0], [0], [1], [0, 0, 1, 1], [], []>} : vector<32x128xbf16>, vector<128x128xbf16>, vector<32x128xf32> -> vector<32x128xf32>
    %c1_85 = arith.constant 1 : index
    %c0_86 = arith.constant 0 : index
    %c0_87 = arith.constant 0 : index
    %112 = vector.load %arg7[%c1_85, %c0_86, %c0_87] : memref<9x32x128xbf16, #tpu.memory_space<vmem>>, vector<1x32x128xbf16>
    %113 = vector.shape_cast %112 : vector<1x32x128xbf16> to vector<32x128xbf16>
    %cst_88 = arith.constant dense<0.000000e+00> : vector<32x128xf32>
    %114 = tpu.matmul %113, %104, %cst_88 {dimension_numbers = #tpu.dot_dimension_numbers<[1], [0], [0], [1], [0, 0, 1, 1], [], []>} : vector<32x128xbf16>, vector<128x128xbf16>, vector<32x128xf32> -> vector<32x128xf32>
    %115 = arith.truncf %114 : vector<32x128xf32> to vector<32x128xbf16>
    %c1_89 = arith.constant 1 : index
    %c0_90 = arith.constant 0 : index
    %c0_91 = arith.constant 0 : index
    %116 = vector.load %arg8[%c1_89, %c0_90, %c0_91] : memref<9x128x128xbf16, #tpu.memory_space<vmem>>, vector<1x128x128xbf16>
    %117 = vector.shape_cast %116 : vector<1x128x128xbf16> to vector<128x128xbf16>
    %cst_92 = arith.constant dense<0.000000e+00> : vector<32x128xf32>
    %118 = tpu.matmul %115, %117, %cst_92 {dimension_numbers = #tpu.dot_dimension_numbers<[1], [0], [0], [1], [0, 0, 1, 1], [], []>} : vector<32x128xbf16>, vector<128x128xbf16>, vector<32x128xf32> -> vector<32x128xf32>
    %119 = arith.addf %111, %118 : vector<32x128xf32>
    %c2_93 = arith.constant 2 : index
    %c0_94 = arith.constant 0 : index
    %c0_95 = arith.constant 0 : index
    %120 = vector.load %arg7[%c2_93, %c0_94, %c0_95] : memref<9x32x128xbf16, #tpu.memory_space<vmem>>, vector<1x32x128xbf16>
    %121 = vector.shape_cast %120 : vector<1x32x128xbf16> to vector<32x128xbf16>
    %cst_96 = arith.constant dense<0.000000e+00> : vector<32x128xf32>
    %122 = tpu.matmul %121, %104, %cst_96 {dimension_numbers = #tpu.dot_dimension_numbers<[1], [0], [0], [1], [0, 0, 1, 1], [], []>} : vector<32x128xbf16>, vector<128x128xbf16>, vector<32x128xf32> -> vector<32x128xf32>
    %123 = arith.truncf %122 : vector<32x128xf32> to vector<32x128xbf16>
    %c2_97 = arith.constant 2 : index
    %c0_98 = arith.constant 0 : index
    %c0_99 = arith.constant 0 : index
    %124 = vector.load %arg8[%c2_97, %c0_98, %c0_99] : memref<9x128x128xbf16, #tpu.memory_space<vmem>>, vector<1x128x128xbf16>
    %125 = vector.shape_cast %124 : vector<1x128x128xbf16> to vector<128x128xbf16>
    %cst_100 = arith.constant dense<0.000000e+00> : vector<32x128xf32>
    %126 = tpu.matmul %123, %125, %cst_100 {dimension_numbers = #tpu.dot_dimension_numbers<[1], [0], [0], [1], [0, 0, 1, 1], [], []>} : vector<32x128xbf16>, vector<128x128xbf16>, vector<32x128xf32> -> vector<32x128xf32>
    %127 = arith.addf %119, %126 : vector<32x128xf32>
    %c3_101 = arith.constant 3 : index
    %c0_102 = arith.constant 0 : index
    %c0_103 = arith.constant 0 : index
    %128 = vector.load %arg7[%c3_101, %c0_102, %c0_103] : memref<9x32x128xbf16, #tpu.memory_space<vmem>>, vector<1x32x128xbf16>
    %129 = vector.shape_cast %128 : vector<1x32x128xbf16> to vector<32x128xbf16>
    %cst_104 = arith.constant dense<0.000000e+00> : vector<32x128xf32>
    %130 = tpu.matmul %129, %104, %cst_104 {dimension_numbers = #tpu.dot_dimension_numbers<[1], [0], [0], [1], [0, 0, 1, 1], [], []>} : vector<32x128xbf16>, vector<128x128xbf16>, vector<32x128xf32> -> vector<32x128xf32>
    %131 = arith.truncf %130 : vector<32x128xf32> to vector<32x128xbf16>
    %c3_105 = arith.constant 3 : index
    %c0_106 = arith.constant 0 : index
    %c0_107 = arith.constant 0 : index
    %132 = vector.load %arg8[%c3_105, %c0_106, %c0_107] : memref<9x128x128xbf16, #tpu.memory_space<vmem>>, vector<1x128x128xbf16>
    %133 = vector.shape_cast %132 : vector<1x128x128xbf16> to vector<128x128xbf16>
    %cst_108 = arith.constant dense<0.000000e+00> : vector<32x128xf32>
    %134 = tpu.matmul %131, %133, %cst_108 {dimension_numbers = #tpu.dot_dimension_numbers<[1], [0], [0], [1], [0, 0, 1, 1], [], []>} : vector<32x128xbf16>, vector<128x128xbf16>, vector<32x128xf32> -> vector<32x128xf32>
    %135 = arith.addf %127, %134 : vector<32x128xf32>
    %c4_109 = arith.constant 4 : index
    %c0_110 = arith.constant 0 : index
    %c0_111 = arith.constant 0 : index
    %136 = vector.load %arg7[%c4_109, %c0_110, %c0_111] : memref<9x32x128xbf16, #tpu.memory_space<vmem>>, vector<1x32x128xbf16>
    %137 = vector.shape_cast %136 : vector<1x32x128xbf16> to vector<32x128xbf16>
    %cst_112 = arith.constant dense<0.000000e+00> : vector<32x128xf32>
    %138 = tpu.matmul %137, %104, %cst_112 {dimension_numbers = #tpu.dot_dimension_numbers<[1], [0], [0], [1], [0, 0, 1, 1], [], []>} : vector<32x128xbf16>, vector<128x128xbf16>, vector<32x128xf32> -> vector<32x128xf32>
    %139 = arith.truncf %138 : vector<32x128xf32> to vector<32x128xbf16>
    %c4_113 = arith.constant 4 : index
    %c0_114 = arith.constant 0 : index
    %c0_115 = arith.constant 0 : index
    %140 = vector.load %arg8[%c4_113, %c0_114, %c0_115] : memref<9x128x128xbf16, #tpu.memory_space<vmem>>, vector<1x128x128xbf16>
    %141 = vector.shape_cast %140 : vector<1x128x128xbf16> to vector<128x128xbf16>
    %cst_116 = arith.constant dense<0.000000e+00> : vector<32x128xf32>
    %142 = tpu.matmul %139, %141, %cst_116 {dimension_numbers = #tpu.dot_dimension_numbers<[1], [0], [0], [1], [0, 0, 1, 1], [], []>} : vector<32x128xbf16>, vector<128x128xbf16>, vector<32x128xf32> -> vector<32x128xf32>
    %143 = arith.addf %135, %142 : vector<32x128xf32>
    %c5_117 = arith.constant 5 : index
    %c0_118 = arith.constant 0 : index
    %c0_119 = arith.constant 0 : index
    %144 = vector.load %arg7[%c5_117, %c0_118, %c0_119] : memref<9x32x128xbf16, #tpu.memory_space<vmem>>, vector<1x32x128xbf16>
    %145 = vector.shape_cast %144 : vector<1x32x128xbf16> to vector<32x128xbf16>
    %cst_120 = arith.constant dense<0.000000e+00> : vector<32x128xf32>
    %146 = tpu.matmul %145, %104, %cst_120 {dimension_numbers = #tpu.dot_dimension_numbers<[1], [0], [0], [1], [0, 0, 1, 1], [], []>} : vector<32x128xbf16>, vector<128x128xbf16>, vector<32x128xf32> -> vector<32x128xf32>
    %147 = arith.truncf %146 : vector<32x128xf32> to vector<32x128xbf16>
    %c5_121 = arith.constant 5 : index
    %c0_122 = arith.constant 0 : index
    %c0_123 = arith.constant 0 : index
    %148 = vector.load %arg8[%c5_121, %c0_122, %c0_123] : memref<9x128x128xbf16, #tpu.memory_space<vmem>>, vector<1x128x128xbf16>
    %149 = vector.shape_cast %148 : vector<1x128x128xbf16> to vector<128x128xbf16>
    %cst_124 = arith.constant dense<0.000000e+00> : vector<32x128xf32>
    %150 = tpu.matmul %147, %149, %cst_124 {dimension_numbers = #tpu.dot_dimension_numbers<[1], [0], [0], [1], [0, 0, 1, 1], [], []>} : vector<32x128xbf16>, vector<128x128xbf16>, vector<32x128xf32> -> vector<32x128xf32>
    %151 = arith.addf %143, %150 : vector<32x128xf32>
    %c6_125 = arith.constant 6 : index
    %c0_126 = arith.constant 0 : index
    %c0_127 = arith.constant 0 : index
    %152 = vector.load %arg7[%c6_125, %c0_126, %c0_127] : memref<9x32x128xbf16, #tpu.memory_space<vmem>>, vector<1x32x128xbf16>
    %153 = vector.shape_cast %152 : vector<1x32x128xbf16> to vector<32x128xbf16>
    %cst_128 = arith.constant dense<0.000000e+00> : vector<32x128xf32>
    %154 = tpu.matmul %153, %104, %cst_128 {dimension_numbers = #tpu.dot_dimension_numbers<[1], [0], [0], [1], [0, 0, 1, 1], [], []>} : vector<32x128xbf16>, vector<128x128xbf16>, vector<32x128xf32> -> vector<32x128xf32>
    %155 = arith.truncf %154 : vector<32x128xf32> to vector<32x128xbf16>
    %c6_129 = arith.constant 6 : index
    %c0_130 = arith.constant 0 : index
    %c0_131 = arith.constant 0 : index
    %156 = vector.load %arg8[%c6_129, %c0_130, %c0_131] : memref<9x128x128xbf16, #tpu.memory_space<vmem>>, vector<1x128x128xbf16>
    %157 = vector.shape_cast %156 : vector<1x128x128xbf16> to vector<128x128xbf16>
    %cst_132 = arith.constant dense<0.000000e+00> : vector<32x128xf32>
    %158 = tpu.matmul %155, %157, %cst_132 {dimension_numbers = #tpu.dot_dimension_numbers<[1], [0], [0], [1], [0, 0, 1, 1], [], []>} : vector<32x128xbf16>, vector<128x128xbf16>, vector<32x128xf32> -> vector<32x128xf32>
    %159 = arith.addf %151, %158 : vector<32x128xf32>
    %c7_133 = arith.constant 7 : index
    %c0_134 = arith.constant 0 : index
    %c0_135 = arith.constant 0 : index
    %160 = vector.load %arg7[%c7_133, %c0_134, %c0_135] : memref<9x32x128xbf16, #tpu.memory_space<vmem>>, vector<1x32x128xbf16>
    %161 = vector.shape_cast %160 : vector<1x32x128xbf16> to vector<32x128xbf16>
    %cst_136 = arith.constant dense<0.000000e+00> : vector<32x128xf32>
    %162 = tpu.matmul %161, %104, %cst_136 {dimension_numbers = #tpu.dot_dimension_numbers<[1], [0], [0], [1], [0, 0, 1, 1], [], []>} : vector<32x128xbf16>, vector<128x128xbf16>, vector<32x128xf32> -> vector<32x128xf32>
    %163 = arith.truncf %162 : vector<32x128xf32> to vector<32x128xbf16>
    %c7_137 = arith.constant 7 : index
    %c0_138 = arith.constant 0 : index
    %c0_139 = arith.constant 0 : index
    %164 = vector.load %arg8[%c7_137, %c0_138, %c0_139] : memref<9x128x128xbf16, #tpu.memory_space<vmem>>, vector<1x128x128xbf16>
    %165 = vector.shape_cast %164 : vector<1x128x128xbf16> to vector<128x128xbf16>
    %cst_140 = arith.constant dense<0.000000e+00> : vector<32x128xf32>
    %166 = tpu.matmul %163, %165, %cst_140 {dimension_numbers = #tpu.dot_dimension_numbers<[1], [0], [0], [1], [0, 0, 1, 1], [], []>} : vector<32x128xbf16>, vector<128x128xbf16>, vector<32x128xf32> -> vector<32x128xf32>
    %167 = arith.addf %159, %166 : vector<32x128xf32>
    %c8_141 = arith.constant 8 : index
    %c0_142 = arith.constant 0 : index
    %c0_143 = arith.constant 0 : index
    %168 = vector.load %arg7[%c8_141, %c0_142, %c0_143] : memref<9x32x128xbf16, #tpu.memory_space<vmem>>, vector<1x32x128xbf16>
    %169 = vector.shape_cast %168 : vector<1x32x128xbf16> to vector<32x128xbf16>
    %cst_144 = arith.constant dense<0.000000e+00> : vector<32x128xf32>
    %170 = tpu.matmul %169, %104, %cst_144 {dimension_numbers = #tpu.dot_dimension_numbers<[1], [0], [0], [1], [0, 0, 1, 1], [], []>} : vector<32x128xbf16>, vector<128x128xbf16>, vector<32x128xf32> -> vector<32x128xf32>
    %171 = arith.truncf %170 : vector<32x128xf32> to vector<32x128xbf16>
    %c8_145 = arith.constant 8 : index
    %c0_146 = arith.constant 0 : index
    %c0_147 = arith.constant 0 : index
    %172 = vector.load %arg8[%c8_145, %c0_146, %c0_147] : memref<9x128x128xbf16, #tpu.memory_space<vmem>>, vector<1x128x128xbf16>
    %173 = vector.shape_cast %172 : vector<1x128x128xbf16> to vector<128x128xbf16>
    %cst_148 = arith.constant dense<0.000000e+00> : vector<32x128xf32>
    %174 = tpu.matmul %171, %173, %cst_148 {dimension_numbers = #tpu.dot_dimension_numbers<[1], [0], [0], [1], [0, 0, 1, 1], [], []>} : vector<32x128xbf16>, vector<128x128xbf16>, vector<32x128xf32> -> vector<32x128xf32>
    %175 = arith.addf %167, %174 : vector<32x128xf32>
    %c0_149 = arith.constant 0 : index
    %c0_150 = arith.constant 0 : index
    %176 = vector.load %arg9[%c0_149, %c0_150] : memref<1x128xf32, #tpu.memory_space<vmem>>, vector<1x128xf32>
    %177 = vector.broadcast %176 : vector<1x128xf32> to vector<32x128xf32>
    %178 = arith.addf %175, %177 : vector<32x128xf32>
    %cst_151 = arith.constant 0.000000e+00 : f32
    %179 = vector.broadcast %cst_151 : f32 to vector<32x128xf32>
    %180 = arith.cmpf oge, %178, %179 : vector<32x128xf32>
    %cst_152 = arith.constant 0.00999999977 : f32
    %181 = vector.broadcast %cst_152 : f32 to vector<32x128xf32>
    %182 = arith.mulf %181, %178 : vector<32x128xf32>
    %183 = arith.select %180, %178, %182 : vector<32x128xi1>, vector<32x128xf32>
    %cst_153 = arith.constant dense<0.000000e+00> : vector<128xf32>
    %184 = vector.multi_reduction <add>, %183, %cst_153 [0] : vector<32x128xf32> to vector<128xf32>
    %185 = vector.shape_cast %184 : vector<128xf32> to vector<1x128xf32>
    %cst_154 = arith.constant 3.200000e+01 : f32
    %186 = vector.broadcast %cst_154 : f32 to vector<1x128xf32>
    %187 = arith.divf %185, %186 : vector<1x128xf32>
    %188 = vector.broadcast %187 : vector<1x128xf32> to vector<32x128xf32>
    %189 = arith.subf %183, %188 : vector<32x128xf32>
    %190 = arith.mulf %189, %189 : vector<32x128xf32>
    %cst_155 = arith.constant dense<0.000000e+00> : vector<128xf32>
    %191 = vector.multi_reduction <add>, %190, %cst_155 [0] : vector<32x128xf32> to vector<128xf32>
    %192 = vector.shape_cast %191 : vector<128xf32> to vector<1x128xf32>
    %cst_156 = arith.constant 3.200000e+01 : f32
    %193 = vector.broadcast %cst_156 : f32 to vector<1x128xf32>
    %194 = arith.divf %192, %193 : vector<1x128xf32>
    %195 = vector.broadcast %187 : vector<1x128xf32> to vector<32x128xf32>
    %196 = arith.subf %183, %195 : vector<32x128xf32>
    %cst_157 = arith.constant 9.99999974E-6 : f32
    %197 = vector.broadcast %cst_157 : f32 to vector<1x128xf32>
    %198 = arith.addf %194, %197 : vector<1x128xf32>
    %199 = math.rsqrt %198 : vector<1x128xf32>
    %200 = vector.broadcast %199 : vector<1x128xf32> to vector<32x128xf32>
    %201 = arith.mulf %196, %200 : vector<32x128xf32>
    %c0_158 = arith.constant 0 : index
    %c0_159 = arith.constant 0 : index
    %202 = vector.load %arg10[%c0_158, %c0_159] : memref<1x128xf32, #tpu.memory_space<vmem>>, vector<1x128xf32>
    %203 = vector.broadcast %202 : vector<1x128xf32> to vector<32x128xf32>
    %204 = arith.mulf %201, %203 : vector<32x128xf32>
    %c0_160 = arith.constant 0 : index
    %c0_161 = arith.constant 0 : index
    %205 = vector.load %arg11[%c0_160, %c0_161] : memref<1x128xf32, #tpu.memory_space<vmem>>, vector<1x128xf32>
    %206 = vector.broadcast %205 : vector<1x128xf32> to vector<32x128xf32>
    %207 = arith.addf %204, %206 : vector<32x128xf32>
    %208 = arith.truncf %207 : vector<32x128xf32> to vector<32x128xbf16>
    %c0_162 = arith.constant 0 : index
    %c0_163 = arith.constant 0 : index
    %c0_164 = arith.constant 0 : index
    %209 = vector.load %arg12[%c0_162, %c0_163, %c0_164] : memref<9x8x32xbf16, #tpu.memory_space<vmem>>, vector<1x8x32xbf16>
    %210 = vector.shape_cast %209 : vector<1x8x32xbf16> to vector<8x32xbf16>
    %cst_165 = arith.constant dense<0.000000e+00> : vector<8x128xf32>
    %211 = tpu.matmul %210, %208, %cst_165 {dimension_numbers = #tpu.dot_dimension_numbers<[1], [0], [0], [1], [0, 0, 1, 1], [], []>} : vector<8x32xbf16>, vector<32x128xbf16>, vector<8x128xf32> -> vector<8x128xf32>
    %212 = arith.truncf %211 : vector<8x128xf32> to vector<8x128xbf16>
    %c0_166 = arith.constant 0 : index
    %c0_167 = arith.constant 0 : index
    %c0_168 = arith.constant 0 : index
    %213 = vector.load %arg13[%c0_166, %c0_167, %c0_168] : memref<9x128x128xbf16, #tpu.memory_space<vmem>>, vector<1x128x128xbf16>
    %214 = vector.shape_cast %213 : vector<1x128x128xbf16> to vector<128x128xbf16>
    %cst_169 = arith.constant dense<0.000000e+00> : vector<8x128xf32>
    %215 = tpu.matmul %212, %214, %cst_169 {dimension_numbers = #tpu.dot_dimension_numbers<[1], [0], [0], [1], [0, 0, 1, 1], [], []>} : vector<8x128xbf16>, vector<128x128xbf16>, vector<8x128xf32> -> vector<8x128xf32>
    %c1_170 = arith.constant 1 : index
    %c0_171 = arith.constant 0 : index
    %c0_172 = arith.constant 0 : index
    %216 = vector.load %arg12[%c1_170, %c0_171, %c0_172] : memref<9x8x32xbf16, #tpu.memory_space<vmem>>, vector<1x8x32xbf16>
    %217 = vector.shape_cast %216 : vector<1x8x32xbf16> to vector<8x32xbf16>
    %cst_173 = arith.constant dense<0.000000e+00> : vector<8x128xf32>
    %218 = tpu.matmul %217, %208, %cst_173 {dimension_numbers = #tpu.dot_dimension_numbers<[1], [0], [0], [1], [0, 0, 1, 1], [], []>} : vector<8x32xbf16>, vector<32x128xbf16>, vector<8x128xf32> -> vector<8x128xf32>
    %219 = arith.truncf %218 : vector<8x128xf32> to vector<8x128xbf16>
    %c1_174 = arith.constant 1 : index
    %c0_175 = arith.constant 0 : index
    %c0_176 = arith.constant 0 : index
    %220 = vector.load %arg13[%c1_174, %c0_175, %c0_176] : memref<9x128x128xbf16, #tpu.memory_space<vmem>>, vector<1x128x128xbf16>
    %221 = vector.shape_cast %220 : vector<1x128x128xbf16> to vector<128x128xbf16>
    %cst_177 = arith.constant dense<0.000000e+00> : vector<8x128xf32>
    %222 = tpu.matmul %219, %221, %cst_177 {dimension_numbers = #tpu.dot_dimension_numbers<[1], [0], [0], [1], [0, 0, 1, 1], [], []>} : vector<8x128xbf16>, vector<128x128xbf16>, vector<8x128xf32> -> vector<8x128xf32>
    %223 = arith.addf %215, %222 : vector<8x128xf32>
    %c2_178 = arith.constant 2 : index
    %c0_179 = arith.constant 0 : index
    %c0_180 = arith.constant 0 : index
    %224 = vector.load %arg12[%c2_178, %c0_179, %c0_180] : memref<9x8x32xbf16, #tpu.memory_space<vmem>>, vector<1x8x32xbf16>
    %225 = vector.shape_cast %224 : vector<1x8x32xbf16> to vector<8x32xbf16>
    %cst_181 = arith.constant dense<0.000000e+00> : vector<8x128xf32>
    %226 = tpu.matmul %225, %208, %cst_181 {dimension_numbers = #tpu.dot_dimension_numbers<[1], [0], [0], [1], [0, 0, 1, 1], [], []>} : vector<8x32xbf16>, vector<32x128xbf16>, vector<8x128xf32> -> vector<8x128xf32>
    %227 = arith.truncf %226 : vector<8x128xf32> to vector<8x128xbf16>
    %c2_182 = arith.constant 2 : index
    %c0_183 = arith.constant 0 : index
    %c0_184 = arith.constant 0 : index
    %228 = vector.load %arg13[%c2_182, %c0_183, %c0_184] : memref<9x128x128xbf16, #tpu.memory_space<vmem>>, vector<1x128x128xbf16>
    %229 = vector.shape_cast %228 : vector<1x128x128xbf16> to vector<128x128xbf16>
    %cst_185 = arith.constant dense<0.000000e+00> : vector<8x128xf32>
    %230 = tpu.matmul %227, %229, %cst_185 {dimension_numbers = #tpu.dot_dimension_numbers<[1], [0], [0], [1], [0, 0, 1, 1], [], []>} : vector<8x128xbf16>, vector<128x128xbf16>, vector<8x128xf32> -> vector<8x128xf32>
    %231 = arith.addf %223, %230 : vector<8x128xf32>
    %c3_186 = arith.constant 3 : index
    %c0_187 = arith.constant 0 : index
    %c0_188 = arith.constant 0 : index
    %232 = vector.load %arg12[%c3_186, %c0_187, %c0_188] : memref<9x8x32xbf16, #tpu.memory_space<vmem>>, vector<1x8x32xbf16>
    %233 = vector.shape_cast %232 : vector<1x8x32xbf16> to vector<8x32xbf16>
    %cst_189 = arith.constant dense<0.000000e+00> : vector<8x128xf32>
    %234 = tpu.matmul %233, %208, %cst_189 {dimension_numbers = #tpu.dot_dimension_numbers<[1], [0], [0], [1], [0, 0, 1, 1], [], []>} : vector<8x32xbf16>, vector<32x128xbf16>, vector<8x128xf32> -> vector<8x128xf32>
    %235 = arith.truncf %234 : vector<8x128xf32> to vector<8x128xbf16>
    %c3_190 = arith.constant 3 : index
    %c0_191 = arith.constant 0 : index
    %c0_192 = arith.constant 0 : index
    %236 = vector.load %arg13[%c3_190, %c0_191, %c0_192] : memref<9x128x128xbf16, #tpu.memory_space<vmem>>, vector<1x128x128xbf16>
    %237 = vector.shape_cast %236 : vector<1x128x128xbf16> to vector<128x128xbf16>
    %cst_193 = arith.constant dense<0.000000e+00> : vector<8x128xf32>
    %238 = tpu.matmul %235, %237, %cst_193 {dimension_numbers = #tpu.dot_dimension_numbers<[1], [0], [0], [1], [0, 0, 1, 1], [], []>} : vector<8x128xbf16>, vector<128x128xbf16>, vector<8x128xf32> -> vector<8x128xf32>
    %239 = arith.addf %231, %238 : vector<8x128xf32>
    %c4_194 = arith.constant 4 : index
    %c0_195 = arith.constant 0 : index
    %c0_196 = arith.constant 0 : index
    %240 = vector.load %arg12[%c4_194, %c0_195, %c0_196] : memref<9x8x32xbf16, #tpu.memory_space<vmem>>, vector<1x8x32xbf16>
    %241 = vector.shape_cast %240 : vector<1x8x32xbf16> to vector<8x32xbf16>
    %cst_197 = arith.constant dense<0.000000e+00> : vector<8x128xf32>
    %242 = tpu.matmul %241, %208, %cst_197 {dimension_numbers = #tpu.dot_dimension_numbers<[1], [0], [0], [1], [0, 0, 1, 1], [], []>} : vector<8x32xbf16>, vector<32x128xbf16>, vector<8x128xf32> -> vector<8x128xf32>
    %243 = arith.truncf %242 : vector<8x128xf32> to vector<8x128xbf16>
    %c4_198 = arith.constant 4 : index
    %c0_199 = arith.constant 0 : index
    %c0_200 = arith.constant 0 : index
    %244 = vector.load %arg13[%c4_198, %c0_199, %c0_200] : memref<9x128x128xbf16, #tpu.memory_space<vmem>>, vector<1x128x128xbf16>
    %245 = vector.shape_cast %244 : vector<1x128x128xbf16> to vector<128x128xbf16>
    %cst_201 = arith.constant dense<0.000000e+00> : vector<8x128xf32>
    %246 = tpu.matmul %243, %245, %cst_201 {dimension_numbers = #tpu.dot_dimension_numbers<[1], [0], [0], [1], [0, 0, 1, 1], [], []>} : vector<8x128xbf16>, vector<128x128xbf16>, vector<8x128xf32> -> vector<8x128xf32>
    %247 = arith.addf %239, %246 : vector<8x128xf32>
    %c5_202 = arith.constant 5 : index
    %c0_203 = arith.constant 0 : index
    %c0_204 = arith.constant 0 : index
    %248 = vector.load %arg12[%c5_202, %c0_203, %c0_204] : memref<9x8x32xbf16, #tpu.memory_space<vmem>>, vector<1x8x32xbf16>
    %249 = vector.shape_cast %248 : vector<1x8x32xbf16> to vector<8x32xbf16>
    %cst_205 = arith.constant dense<0.000000e+00> : vector<8x128xf32>
    %250 = tpu.matmul %249, %208, %cst_205 {dimension_numbers = #tpu.dot_dimension_numbers<[1], [0], [0], [1], [0, 0, 1, 1], [], []>} : vector<8x32xbf16>, vector<32x128xbf16>, vector<8x128xf32> -> vector<8x128xf32>
    %251 = arith.truncf %250 : vector<8x128xf32> to vector<8x128xbf16>
    %c5_206 = arith.constant 5 : index
    %c0_207 = arith.constant 0 : index
    %c0_208 = arith.constant 0 : index
    %252 = vector.load %arg13[%c5_206, %c0_207, %c0_208] : memref<9x128x128xbf16, #tpu.memory_space<vmem>>, vector<1x128x128xbf16>
    %253 = vector.shape_cast %252 : vector<1x128x128xbf16> to vector<128x128xbf16>
    %cst_209 = arith.constant dense<0.000000e+00> : vector<8x128xf32>
    %254 = tpu.matmul %251, %253, %cst_209 {dimension_numbers = #tpu.dot_dimension_numbers<[1], [0], [0], [1], [0, 0, 1, 1], [], []>} : vector<8x128xbf16>, vector<128x128xbf16>, vector<8x128xf32> -> vector<8x128xf32>
    %255 = arith.addf %247, %254 : vector<8x128xf32>
    %c6_210 = arith.constant 6 : index
    %c0_211 = arith.constant 0 : index
    %c0_212 = arith.constant 0 : index
    %256 = vector.load %arg12[%c6_210, %c0_211, %c0_212] : memref<9x8x32xbf16, #tpu.memory_space<vmem>>, vector<1x8x32xbf16>
    %257 = vector.shape_cast %256 : vector<1x8x32xbf16> to vector<8x32xbf16>
    %cst_213 = arith.constant dense<0.000000e+00> : vector<8x128xf32>
    %258 = tpu.matmul %257, %208, %cst_213 {dimension_numbers = #tpu.dot_dimension_numbers<[1], [0], [0], [1], [0, 0, 1, 1], [], []>} : vector<8x32xbf16>, vector<32x128xbf16>, vector<8x128xf32> -> vector<8x128xf32>
    %259 = arith.truncf %258 : vector<8x128xf32> to vector<8x128xbf16>
    %c6_214 = arith.constant 6 : index
    %c0_215 = arith.constant 0 : index
    %c0_216 = arith.constant 0 : index
    %260 = vector.load %arg13[%c6_214, %c0_215, %c0_216] : memref<9x128x128xbf16, #tpu.memory_space<vmem>>, vector<1x128x128xbf16>
    %261 = vector.shape_cast %260 : vector<1x128x128xbf16> to vector<128x128xbf16>
    %cst_217 = arith.constant dense<0.000000e+00> : vector<8x128xf32>
    %262 = tpu.matmul %259, %261, %cst_217 {dimension_numbers = #tpu.dot_dimension_numbers<[1], [0], [0], [1], [0, 0, 1, 1], [], []>} : vector<8x128xbf16>, vector<128x128xbf16>, vector<8x128xf32> -> vector<8x128xf32>
    %263 = arith.addf %255, %262 : vector<8x128xf32>
    %c7_218 = arith.constant 7 : index
    %c0_219 = arith.constant 0 : index
    %c0_220 = arith.constant 0 : index
    %264 = vector.load %arg12[%c7_218, %c0_219, %c0_220] : memref<9x8x32xbf16, #tpu.memory_space<vmem>>, vector<1x8x32xbf16>
    %265 = vector.shape_cast %264 : vector<1x8x32xbf16> to vector<8x32xbf16>
    %cst_221 = arith.constant dense<0.000000e+00> : vector<8x128xf32>
    %266 = tpu.matmul %265, %208, %cst_221 {dimension_numbers = #tpu.dot_dimension_numbers<[1], [0], [0], [1], [0, 0, 1, 1], [], []>} : vector<8x32xbf16>, vector<32x128xbf16>, vector<8x128xf32> -> vector<8x128xf32>
    %267 = arith.truncf %266 : vector<8x128xf32> to vector<8x128xbf16>
    %c7_222 = arith.constant 7 : index
    %c0_223 = arith.constant 0 : index
    %c0_224 = arith.constant 0 : index
    %268 = vector.load %arg13[%c7_222, %c0_223, %c0_224] : memref<9x128x128xbf16, #tpu.memory_space<vmem>>, vector<1x128x128xbf16>
    %269 = vector.shape_cast %268 : vector<1x128x128xbf16> to vector<128x128xbf16>
    %cst_225 = arith.constant dense<0.000000e+00> : vector<8x128xf32>
    %270 = tpu.matmul %267, %269, %cst_225 {dimension_numbers = #tpu.dot_dimension_numbers<[1], [0], [0], [1], [0, 0, 1, 1], [], []>} : vector<8x128xbf16>, vector<128x128xbf16>, vector<8x128xf32> -> vector<8x128xf32>
    %271 = arith.addf %263, %270 : vector<8x128xf32>
    %c8_226 = arith.constant 8 : index
    %c0_227 = arith.constant 0 : index
    %c0_228 = arith.constant 0 : index
    %272 = vector.load %arg12[%c8_226, %c0_227, %c0_228] : memref<9x8x32xbf16, #tpu.memory_space<vmem>>, vector<1x8x32xbf16>
    %273 = vector.shape_cast %272 : vector<1x8x32xbf16> to vector<8x32xbf16>
    %cst_229 = arith.constant dense<0.000000e+00> : vector<8x128xf32>
    %274 = tpu.matmul %273, %208, %cst_229 {dimension_numbers = #tpu.dot_dimension_numbers<[1], [0], [0], [1], [0, 0, 1, 1], [], []>} : vector<8x32xbf16>, vector<32x128xbf16>, vector<8x128xf32> -> vector<8x128xf32>
    %275 = arith.truncf %274 : vector<8x128xf32> to vector<8x128xbf16>
    %c8_230 = arith.constant 8 : index
    %c0_231 = arith.constant 0 : index
    %c0_232 = arith.constant 0 : index
    %276 = vector.load %arg13[%c8_230, %c0_231, %c0_232] : memref<9x128x128xbf16, #tpu.memory_space<vmem>>, vector<1x128x128xbf16>
    %277 = vector.shape_cast %276 : vector<1x128x128xbf16> to vector<128x128xbf16>
    %cst_233 = arith.constant dense<0.000000e+00> : vector<8x128xf32>
    %278 = tpu.matmul %275, %277, %cst_233 {dimension_numbers = #tpu.dot_dimension_numbers<[1], [0], [0], [1], [0, 0, 1, 1], [], []>} : vector<8x128xbf16>, vector<128x128xbf16>, vector<8x128xf32> -> vector<8x128xf32>
    %279 = arith.addf %271, %278 : vector<8x128xf32>
    %c0_234 = arith.constant 0 : index
    %c0_235 = arith.constant 0 : index
    %280 = vector.load %arg14[%c0_234, %c0_235] : memref<1x128xf32, #tpu.memory_space<vmem>>, vector<1x128xf32>
    %281 = vector.broadcast %280 : vector<1x128xf32> to vector<8x128xf32>
    %282 = arith.addf %279, %281 : vector<8x128xf32>
    %cst_236 = arith.constant 0.000000e+00 : f32
    %283 = vector.broadcast %cst_236 : f32 to vector<8x128xf32>
    %284 = arith.cmpf oge, %282, %283 : vector<8x128xf32>
    %cst_237 = arith.constant 0.00999999977 : f32
    %285 = vector.broadcast %cst_237 : f32 to vector<8x128xf32>
    %286 = arith.mulf %285, %282 : vector<8x128xf32>
    %287 = arith.select %284, %282, %286 : vector<8x128xi1>, vector<8x128xf32>
    %cst_238 = arith.constant dense<0.000000e+00> : vector<128xf32>
    %288 = vector.multi_reduction <add>, %287, %cst_238 [0] : vector<8x128xf32> to vector<128xf32>
    %289 = vector.shape_cast %288 : vector<128xf32> to vector<1x128xf32>
    %cst_239 = arith.constant 8.000000e+00 : f32
    %290 = vector.broadcast %cst_239 : f32 to vector<1x128xf32>
    %291 = arith.divf %289, %290 : vector<1x128xf32>
    %292 = vector.broadcast %291 : vector<1x128xf32> to vector<8x128xf32>
    %293 = arith.subf %287, %292 : vector<8x128xf32>
    %294 = arith.mulf %293, %293 : vector<8x128xf32>
    %cst_240 = arith.constant dense<0.000000e+00> : vector<128xf32>
    %295 = vector.multi_reduction <add>, %294, %cst_240 [0] : vector<8x128xf32> to vector<128xf32>
    %296 = vector.shape_cast %295 : vector<128xf32> to vector<1x128xf32>
    %cst_241 = arith.constant 8.000000e+00 : f32
    %297 = vector.broadcast %cst_241 : f32 to vector<1x128xf32>
    %298 = arith.divf %296, %297 : vector<1x128xf32>
    %299 = vector.broadcast %291 : vector<1x128xf32> to vector<8x128xf32>
    %300 = arith.subf %287, %299 : vector<8x128xf32>
    %cst_242 = arith.constant 9.99999974E-6 : f32
    %301 = vector.broadcast %cst_242 : f32 to vector<1x128xf32>
    %302 = arith.addf %298, %301 : vector<1x128xf32>
    %303 = math.rsqrt %302 : vector<1x128xf32>
    %304 = vector.broadcast %303 : vector<1x128xf32> to vector<8x128xf32>
    %305 = arith.mulf %300, %304 : vector<8x128xf32>
    %c0_243 = arith.constant 0 : index
    %c0_244 = arith.constant 0 : index
    %306 = vector.load %arg15[%c0_243, %c0_244] : memref<1x128xf32, #tpu.memory_space<vmem>>, vector<1x128xf32>
    %307 = vector.broadcast %306 : vector<1x128xf32> to vector<8x128xf32>
    %308 = arith.mulf %305, %307 : vector<8x128xf32>
    %c0_245 = arith.constant 0 : index
    %c0_246 = arith.constant 0 : index
    %309 = vector.load %arg16[%c0_245, %c0_246] : memref<1x128xf32, #tpu.memory_space<vmem>>, vector<1x128xf32>
    %310 = vector.broadcast %309 : vector<1x128xf32> to vector<8x128xf32>
    %311 = arith.addf %308, %310 : vector<8x128xf32>
    %312 = arith.truncf %311 : vector<8x128xf32> to vector<8x128xbf16>
    %c4_247 = arith.constant 4 : index
    %c0_248 = arith.constant 0 : index
    %c0_249 = arith.constant 0 : index
    %313 = vector.load %arg17[%c4_247, %c0_248, %c0_249] : memref<9x2x8xbf16, #tpu.memory_space<vmem>>, vector<1x2x8xbf16>
    %314 = vector.shape_cast %313 : vector<1x2x8xbf16> to vector<2x8xbf16>
    %cst_250 = arith.constant dense<0.000000e+00> : vector<2x128xf32>
    %315 = tpu.matmul %314, %312, %cst_250 {dimension_numbers = #tpu.dot_dimension_numbers<[1], [0], [0], [1], [0, 0, 1, 1], [], []>} : vector<2x8xbf16>, vector<8x128xbf16>, vector<2x128xf32> -> vector<2x128xf32>
    %316 = arith.truncf %315 : vector<2x128xf32> to vector<2x128xbf16>
    %c4_251 = arith.constant 4 : index
    %c0_252 = arith.constant 0 : index
    %c0_253 = arith.constant 0 : index
    %317 = vector.load %arg18[%c4_251, %c0_252, %c0_253] : memref<9x128x64xbf16, #tpu.memory_space<vmem>>, vector<1x128x64xbf16>
    %318 = vector.shape_cast %317 : vector<1x128x64xbf16> to vector<128x64xbf16>
    %cst_254 = arith.constant dense<0.000000e+00> : vector<2x64xf32>
    %319 = tpu.matmul %316, %318, %cst_254 {dimension_numbers = #tpu.dot_dimension_numbers<[1], [0], [0], [1], [0, 0, 1, 1], [], []>} : vector<2x128xbf16>, vector<128x64xbf16>, vector<2x64xf32> -> vector<2x64xf32>
    %c5_255 = arith.constant 5 : index
    %c0_256 = arith.constant 0 : index
    %c0_257 = arith.constant 0 : index
    %320 = vector.load %arg17[%c5_255, %c0_256, %c0_257] : memref<9x2x8xbf16, #tpu.memory_space<vmem>>, vector<1x2x8xbf16>
    %321 = vector.shape_cast %320 : vector<1x2x8xbf16> to vector<2x8xbf16>
    %cst_258 = arith.constant dense<0.000000e+00> : vector<2x128xf32>
    %322 = tpu.matmul %321, %312, %cst_258 {dimension_numbers = #tpu.dot_dimension_numbers<[1], [0], [0], [1], [0, 0, 1, 1], [], []>} : vector<2x8xbf16>, vector<8x128xbf16>, vector<2x128xf32> -> vector<2x128xf32>
    %323 = arith.truncf %322 : vector<2x128xf32> to vector<2x128xbf16>
    %c5_259 = arith.constant 5 : index
    %c0_260 = arith.constant 0 : index
    %c0_261 = arith.constant 0 : index
    %324 = vector.load %arg18[%c5_259, %c0_260, %c0_261] : memref<9x128x64xbf16, #tpu.memory_space<vmem>>, vector<1x128x64xbf16>
    %325 = vector.shape_cast %324 : vector<1x128x64xbf16> to vector<128x64xbf16>
    %cst_262 = arith.constant dense<0.000000e+00> : vector<2x64xf32>
    %326 = tpu.matmul %323, %325, %cst_262 {dimension_numbers = #tpu.dot_dimension_numbers<[1], [0], [0], [1], [0, 0, 1, 1], [], []>} : vector<2x128xbf16>, vector<128x64xbf16>, vector<2x64xf32> -> vector<2x64xf32>
    %327 = arith.addf %319, %326 : vector<2x64xf32>
    %c7_263 = arith.constant 7 : index
    %c0_264 = arith.constant 0 : index
    %c0_265 = arith.constant 0 : index
    %328 = vector.load %arg17[%c7_263, %c0_264, %c0_265] : memref<9x2x8xbf16, #tpu.memory_space<vmem>>, vector<1x2x8xbf16>
    %329 = vector.shape_cast %328 : vector<1x2x8xbf16> to vector<2x8xbf16>
    %cst_266 = arith.constant dense<0.000000e+00> : vector<2x128xf32>
    %330 = tpu.matmul %329, %312, %cst_266 {dimension_numbers = #tpu.dot_dimension_numbers<[1], [0], [0], [1], [0, 0, 1, 1], [], []>} : vector<2x8xbf16>, vector<8x128xbf16>, vector<2x128xf32> -> vector<2x128xf32>
    %331 = arith.truncf %330 : vector<2x128xf32> to vector<2x128xbf16>
    %c7_267 = arith.constant 7 : index
    %c0_268 = arith.constant 0 : index
    %c0_269 = arith.constant 0 : index
    %332 = vector.load %arg18[%c7_267, %c0_268, %c0_269] : memref<9x128x64xbf16, #tpu.memory_space<vmem>>, vector<1x128x64xbf16>
    %333 = vector.shape_cast %332 : vector<1x128x64xbf16> to vector<128x64xbf16>
    %cst_270 = arith.constant dense<0.000000e+00> : vector<2x64xf32>
    %334 = tpu.matmul %331, %333, %cst_270 {dimension_numbers = #tpu.dot_dimension_numbers<[1], [0], [0], [1], [0, 0, 1, 1], [], []>} : vector<2x128xbf16>, vector<128x64xbf16>, vector<2x64xf32> -> vector<2x64xf32>
    %335 = arith.addf %327, %334 : vector<2x64xf32>
    %c8_271 = arith.constant 8 : index
    %c0_272 = arith.constant 0 : index
    %c0_273 = arith.constant 0 : index
    %336 = vector.load %arg17[%c8_271, %c0_272, %c0_273] : memref<9x2x8xbf16, #tpu.memory_space<vmem>>, vector<1x2x8xbf16>
    %337 = vector.shape_cast %336 : vector<1x2x8xbf16> to vector<2x8xbf16>
    %cst_274 = arith.constant dense<0.000000e+00> : vector<2x128xf32>
    %338 = tpu.matmul %337, %312, %cst_274 {dimension_numbers = #tpu.dot_dimension_numbers<[1], [0], [0], [1], [0, 0, 1, 1], [], []>} : vector<2x8xbf16>, vector<8x128xbf16>, vector<2x128xf32> -> vector<2x128xf32>
    %339 = arith.truncf %338 : vector<2x128xf32> to vector<2x128xbf16>
    %c8_275 = arith.constant 8 : index
    %c0_276 = arith.constant 0 : index
    %c0_277 = arith.constant 0 : index
    %340 = vector.load %arg18[%c8_275, %c0_276, %c0_277] : memref<9x128x64xbf16, #tpu.memory_space<vmem>>, vector<1x128x64xbf16>
    %341 = vector.shape_cast %340 : vector<1x128x64xbf16> to vector<128x64xbf16>
    %cst_278 = arith.constant dense<0.000000e+00> : vector<2x64xf32>
    %342 = tpu.matmul %339, %341, %cst_278 {dimension_numbers = #tpu.dot_dimension_numbers<[1], [0], [0], [1], [0, 0, 1, 1], [], []>} : vector<2x128xbf16>, vector<128x64xbf16>, vector<2x64xf32> -> vector<2x64xf32>
    %343 = arith.addf %335, %342 : vector<2x64xf32>
    %c0_279 = arith.constant 0 : index
    %c0_280 = arith.constant 0 : index
    %344 = vector.load %arg19[%c0_279, %c0_280] : memref<1x64xf32, #tpu.memory_space<vmem>>, vector<1x64xf32>
    %345 = vector.broadcast %344 : vector<1x64xf32> to vector<2x64xf32>
    %346 = arith.addf %343, %345 : vector<2x64xf32>
    %cst_281 = arith.constant 0.000000e+00 : f32
    %347 = vector.broadcast %cst_281 : f32 to vector<2x64xf32>
    %348 = arith.cmpf oge, %346, %347 : vector<2x64xf32>
    %cst_282 = arith.constant 0.00999999977 : f32
    %349 = vector.broadcast %cst_282 : f32 to vector<2x64xf32>
    %350 = arith.mulf %349, %346 : vector<2x64xf32>
    %351 = arith.select %348, %346, %350 : vector<2x64xi1>, vector<2x64xf32>
    %cst_283 = arith.constant dense<0.000000e+00> : vector<64xf32>
    %352 = vector.multi_reduction <add>, %351, %cst_283 [0] : vector<2x64xf32> to vector<64xf32>
    %353 = vector.shape_cast %352 : vector<64xf32> to vector<1x64xf32>
    %cst_284 = arith.constant 2.000000e+00 : f32
    %354 = vector.broadcast %cst_284 : f32 to vector<1x64xf32>
    %355 = arith.divf %353, %354 : vector<1x64xf32>
    %356 = vector.broadcast %355 : vector<1x64xf32> to vector<2x64xf32>
    %357 = arith.subf %351, %356 : vector<2x64xf32>
    %358 = arith.mulf %357, %357 : vector<2x64xf32>
    %cst_285 = arith.constant dense<0.000000e+00> : vector<64xf32>
    %359 = vector.multi_reduction <add>, %358, %cst_285 [0] : vector<2x64xf32> to vector<64xf32>
    %360 = vector.shape_cast %359 : vector<64xf32> to vector<1x64xf32>
    %cst_286 = arith.constant 2.000000e+00 : f32
    %361 = vector.broadcast %cst_286 : f32 to vector<1x64xf32>
    %362 = arith.divf %360, %361 : vector<1x64xf32>
    %363 = vector.broadcast %355 : vector<1x64xf32> to vector<2x64xf32>
    %364 = arith.subf %351, %363 : vector<2x64xf32>
    %cst_287 = arith.constant 9.99999974E-6 : f32
    %365 = vector.broadcast %cst_287 : f32 to vector<1x64xf32>
    %366 = arith.addf %362, %365 : vector<1x64xf32>
    %367 = math.rsqrt %366 : vector<1x64xf32>
    %368 = vector.broadcast %367 : vector<1x64xf32> to vector<2x64xf32>
    %369 = arith.mulf %364, %368 : vector<2x64xf32>
    %c0_288 = arith.constant 0 : index
    %c0_289 = arith.constant 0 : index
    %370 = vector.load %arg20[%c0_288, %c0_289] : memref<1x64xf32, #tpu.memory_space<vmem>>, vector<1x64xf32>
    %371 = vector.broadcast %370 : vector<1x64xf32> to vector<2x64xf32>
    %372 = arith.mulf %369, %371 : vector<2x64xf32>
    %c0_290 = arith.constant 0 : index
    %c0_291 = arith.constant 0 : index
    %373 = vector.load %arg21[%c0_290, %c0_291] : memref<1x64xf32, #tpu.memory_space<vmem>>, vector<1x64xf32>
    %374 = vector.broadcast %373 : vector<1x64xf32> to vector<2x64xf32>
    %375 = arith.addf %372, %374 : vector<2x64xf32>
    %376 = arith.truncf %375 : vector<2x64xf32> to vector<2x64xbf16>
    %c0_292 = arith.constant 0 : index
    %c0_293 = arith.constant 0 : index
    %377 = vector.load %arg22[%c0_292, %c0_293] : memref<64x64xbf16, #tpu.memory_space<vmem>>, vector<64x64xbf16>
    %cst_294 = arith.constant dense<0.000000e+00> : vector<2x64xf32>
    %378 = tpu.matmul %376, %377, %cst_294 {dimension_numbers = #tpu.dot_dimension_numbers<[1], [0], [0], [1], [0, 0, 1, 1], [], []>} : vector<2x64xbf16>, vector<64x64xbf16>, vector<2x64xf32> -> vector<2x64xf32>
    %c0_295 = arith.constant 0 : index
    %c0_296 = arith.constant 0 : index
    %379 = vector.load %arg23[%c0_295, %c0_296] : memref<1x64xf32, #tpu.memory_space<vmem>>, vector<1x64xf32>
    %380 = vector.broadcast %379 : vector<1x64xf32> to vector<2x64xf32>
    %381 = arith.addf %378, %380 : vector<2x64xf32>
    %cst_297 = arith.constant 0.000000e+00 : f32
    %382 = vector.broadcast %cst_297 : f32 to vector<2x64xf32>
    %383 = arith.cmpf oge, %381, %382 : vector<2x64xf32>
    %cst_298 = arith.constant 0.00999999977 : f32
    %384 = vector.broadcast %cst_298 : f32 to vector<2x64xf32>
    %385 = arith.mulf %384, %381 : vector<2x64xf32>
    %386 = arith.select %383, %381, %385 : vector<2x64xi1>, vector<2x64xf32>
    %cst_299 = arith.constant dense<0.000000e+00> : vector<64xf32>
    %387 = vector.multi_reduction <add>, %386, %cst_299 [0] : vector<2x64xf32> to vector<64xf32>
    %388 = vector.shape_cast %387 : vector<64xf32> to vector<1x64xf32>
    %cst_300 = arith.constant 2.000000e+00 : f32
    %389 = vector.broadcast %cst_300 : f32 to vector<1x64xf32>
    %390 = arith.divf %388, %389 : vector<1x64xf32>
    %391 = vector.broadcast %390 : vector<1x64xf32> to vector<2x64xf32>
    %392 = arith.subf %386, %391 : vector<2x64xf32>
    %393 = arith.mulf %392, %392 : vector<2x64xf32>
    %cst_301 = arith.constant dense<0.000000e+00> : vector<64xf32>
    %394 = vector.multi_reduction <add>, %393, %cst_301 [0] : vector<2x64xf32> to vector<64xf32>
    %395 = vector.shape_cast %394 : vector<64xf32> to vector<1x64xf32>
    %cst_302 = arith.constant 2.000000e+00 : f32
    %396 = vector.broadcast %cst_302 : f32 to vector<1x64xf32>
    %397 = arith.divf %395, %396 : vector<1x64xf32>
    %398 = vector.broadcast %390 : vector<1x64xf32> to vector<2x64xf32>
    %399 = arith.subf %386, %398 : vector<2x64xf32>
    %cst_303 = arith.constant 9.99999974E-6 : f32
    %400 = vector.broadcast %cst_303 : f32 to vector<1x64xf32>
    %401 = arith.addf %397, %400 : vector<1x64xf32>
    %402 = math.rsqrt %401 : vector<1x64xf32>
    %403 = vector.broadcast %402 : vector<1x64xf32> to vector<2x64xf32>
    %404 = arith.mulf %399, %403 : vector<2x64xf32>
    %c0_304 = arith.constant 0 : index
    %c0_305 = arith.constant 0 : index
    %405 = vector.load %arg24[%c0_304, %c0_305] : memref<1x64xf32, #tpu.memory_space<vmem>>, vector<1x64xf32>
    %406 = vector.broadcast %405 : vector<1x64xf32> to vector<2x64xf32>
    %407 = arith.mulf %404, %406 : vector<2x64xf32>
    %c0_306 = arith.constant 0 : index
    %c0_307 = arith.constant 0 : index
    %408 = vector.load %arg25[%c0_306, %c0_307] : memref<1x64xf32, #tpu.memory_space<vmem>>, vector<1x64xf32>
    %409 = vector.broadcast %408 : vector<1x64xf32> to vector<2x64xf32>
    %410 = arith.addf %407, %409 : vector<2x64xf32>
    %411 = arith.truncf %410 : vector<2x64xf32> to vector<2x64xbf16>
    %c0_308 = arith.constant 0 : index
    %c0_309 = arith.constant 0 : index
    %412 = vector.load %arg26[%c0_308, %c0_309] : memref<64x64xbf16, #tpu.memory_space<vmem>>, vector<64x64xbf16>
    %cst_310 = arith.constant dense<0.000000e+00> : vector<2x64xf32>
    %413 = tpu.matmul %411, %412, %cst_310 {dimension_numbers = #tpu.dot_dimension_numbers<[1], [0], [0], [1], [0, 0, 1, 1], [], []>} : vector<2x64xbf16>, vector<64x64xbf16>, vector<2x64xf32> -> vector<2x64xf32>
    %c0_311 = arith.constant 0 : index
    %c0_312 = arith.constant 0 : index
    %414 = vector.load %arg27[%c0_311, %c0_312] : memref<1x64xf32, #tpu.memory_space<vmem>>, vector<1x64xf32>
    %415 = vector.broadcast %414 : vector<1x64xf32> to vector<2x64xf32>
    %416 = arith.addf %413, %415 : vector<2x64xf32>
    %cst_313 = arith.constant 0.000000e+00 : f32
    %417 = vector.broadcast %cst_313 : f32 to vector<2x64xf32>
    %418 = arith.cmpf oge, %416, %417 : vector<2x64xf32>
    %cst_314 = arith.constant 0.00999999977 : f32
    %419 = vector.broadcast %cst_314 : f32 to vector<2x64xf32>
    %420 = arith.mulf %419, %416 : vector<2x64xf32>
    %421 = arith.select %418, %416, %420 : vector<2x64xi1>, vector<2x64xf32>
    %cst_315 = arith.constant dense<0.000000e+00> : vector<64xf32>
    %422 = vector.multi_reduction <add>, %421, %cst_315 [0] : vector<2x64xf32> to vector<64xf32>
    %423 = vector.shape_cast %422 : vector<64xf32> to vector<1x64xf32>
    %cst_316 = arith.constant 2.000000e+00 : f32
    %424 = vector.broadcast %cst_316 : f32 to vector<1x64xf32>
    %425 = arith.divf %423, %424 : vector<1x64xf32>
    %426 = vector.broadcast %425 : vector<1x64xf32> to vector<2x64xf32>
    %427 = arith.subf %421, %426 : vector<2x64xf32>
    %428 = arith.mulf %427, %427 : vector<2x64xf32>
    %cst_317 = arith.constant dense<0.000000e+00> : vector<64xf32>
    %429 = vector.multi_reduction <add>, %428, %cst_317 [0] : vector<2x64xf32> to vector<64xf32>
    %430 = vector.shape_cast %429 : vector<64xf32> to vector<1x64xf32>
    %cst_318 = arith.constant 2.000000e+00 : f32
    %431 = vector.broadcast %cst_318 : f32 to vector<1x64xf32>
    %432 = arith.divf %430, %431 : vector<1x64xf32>
    %433 = vector.broadcast %425 : vector<1x64xf32> to vector<2x64xf32>
    %434 = arith.subf %421, %433 : vector<2x64xf32>
    %cst_319 = arith.constant 9.99999974E-6 : f32
    %435 = vector.broadcast %cst_319 : f32 to vector<1x64xf32>
    %436 = arith.addf %432, %435 : vector<1x64xf32>
    %437 = math.rsqrt %436 : vector<1x64xf32>
    %438 = vector.broadcast %437 : vector<1x64xf32> to vector<2x64xf32>
    %439 = arith.mulf %434, %438 : vector<2x64xf32>
    %c0_320 = arith.constant 0 : index
    %c0_321 = arith.constant 0 : index
    %440 = vector.load %arg28[%c0_320, %c0_321] : memref<1x64xf32, #tpu.memory_space<vmem>>, vector<1x64xf32>
    %441 = vector.broadcast %440 : vector<1x64xf32> to vector<2x64xf32>
    %442 = arith.mulf %439, %441 : vector<2x64xf32>
    %c0_322 = arith.constant 0 : index
    %c0_323 = arith.constant 0 : index
    %443 = vector.load %arg29[%c0_322, %c0_323] : memref<1x64xf32, #tpu.memory_space<vmem>>, vector<1x64xf32>
    %444 = vector.broadcast %443 : vector<1x64xf32> to vector<2x64xf32>
    %445 = arith.addf %442, %444 : vector<2x64xf32>
    %446 = arith.truncf %445 : vector<2x64xf32> to vector<2x64xbf16>
    %c0_324 = arith.constant 0 : index
    %c0_325 = arith.constant 0 : index
    %447 = vector.load %arg30[%c0_324, %c0_325] : memref<64x64xbf16, #tpu.memory_space<vmem>>, vector<64x64xbf16>
    %cst_326 = arith.constant dense<0.000000e+00> : vector<2x64xf32>
    %448 = tpu.matmul %446, %447, %cst_326 {dimension_numbers = #tpu.dot_dimension_numbers<[1], [0], [0], [1], [0, 0, 1, 1], [], []>} : vector<2x64xbf16>, vector<64x64xbf16>, vector<2x64xf32> -> vector<2x64xf32>
    %c0_327 = arith.constant 0 : index
    %c0_328 = arith.constant 0 : index
    %449 = vector.load %arg31[%c0_327, %c0_328] : memref<1x64xf32, #tpu.memory_space<vmem>>, vector<1x64xf32>
    %450 = vector.broadcast %449 : vector<1x64xf32> to vector<2x64xf32>
    %451 = arith.addf %448, %450 : vector<2x64xf32>
    %c0_329 = arith.constant 0 : index
    %c0_330 = arith.constant 0 : index
    %452 = vector.load %arg34[%c0_329, %c0_330] : memref<2x64xf32, #tpu.memory_space<vmem>>, vector<2x64xf32>
    tpu.vector_store %arg34[%c0_329, %c0_330], %451 {strides = array<i32>} : memref<2x64xf32, #tpu.memory_space<vmem>>, vector<2x64xf32>,
    %cst_331 = arith.constant 0.000000e+00 : f32
    %453 = vector.broadcast %cst_331 : f32 to vector<2x64xf32>
    %454 = arith.cmpf oge, %451, %453 : vector<2x64xf32>
    %cst_332 = arith.constant 0.00999999977 : f32
    %455 = vector.broadcast %cst_332 : f32 to vector<2x64xf32>
    %456 = arith.mulf %455, %451 : vector<2x64xf32>
    %457 = arith.select %454, %451, %456 : vector<2x64xi1>, vector<2x64xf32>
    %458 = arith.truncf %457 : vector<2x64xf32> to vector<2x64xbf16>
    %c0_333 = arith.constant 0 : index
    %c0_334 = arith.constant 0 : index
    %459 = vector.load %arg32[%c0_333, %c0_334] : memref<64x128xbf16, #tpu.memory_space<vmem>>, vector<64x128xbf16>
    %cst_335 = arith.constant dense<0.000000e+00> : vector<2x128xf32>
    %460 = tpu.matmul %458, %459, %cst_335 {dimension_numbers = #tpu.dot_dimension_numbers<[1], [0], [0], [1], [0, 0, 1, 1], [], []>} : vector<2x64xbf16>, vector<64x128xbf16>, vector<2x128xf32> -> vector<2x128xf32>
    %c0_336 = arith.constant 0 : index
    %c0_337 = arith.constant 0 : index
    %461 = vector.load %arg33[%c0_336, %c0_337] : memref<1x128xf32, #tpu.memory_space<vmem>>, vector<1x128xf32>
    %462 = vector.broadcast %461 : vector<1x128xf32> to vector<2x128xf32>
    %463 = arith.addf %460, %462 : vector<2x128xf32>
    %464 = arith.negf %463 : vector<2x128xf32>
    %465 = math.exp %464 : vector<2x128xf32>
    %cst_338 = arith.constant 1.000000e+00 : f32
    %466 = vector.broadcast %cst_338 : f32 to vector<2x128xf32>
    %467 = arith.addf %466, %465 : vector<2x128xf32>
    %468 = arith.divf %466, %467 : vector<2x128xf32>
    %c0_339 = arith.constant 0 : index
    %c0_340 = arith.constant 0 : index
    %469 = vector.load %arg35[%c0_339, %c0_340] : memref<2x128xf32, #tpu.memory_space<vmem>>, vector<2x128xf32>
    tpu.vector_store %arg35[%c0_339, %c0_340], %468 {strides = array<i32>} : memref<2x128xf32, #tpu.memory_space<vmem>>, vector<2x128xf32>,
    return
  }
  func.func @transform_0(%arg0: i32) -> (i32, i32) {
    %c0_i32 = arith.constant 0 : i32
    %c0_i32_0 = arith.constant 0 : i32
    %c0_i32_1 = arith.constant 0 : i32
    return %c0_i32, %c0_i32_0 : i32, i32
  }
  func.func @transform_1(%arg0: i32) -> (i32, i32, i32) {
    %c0_i32 = arith.constant 0 : i32
    %c0_i32_0 = arith.constant 0 : i32
    %c0_i32_1 = arith.constant 0 : i32
    %c0_i32_2 = arith.constant 0 : i32
    return %c0_i32, %c0_i32_0, %c0_i32_1 : i32, i32, i32
  }
  func.func @transform_2(%arg0: i32) -> (i32, i32, i32) {
    %c0_i32 = arith.constant 0 : i32
    %c0_i32_0 = arith.constant 0 : i32
    %c0_i32_1 = arith.constant 0 : i32
    %c0_i32_2 = arith.constant 0 : i32
    return %c0_i32, %c0_i32_0, %c0_i32_1 : i32, i32, i32
  }
  func.func @transform_3(%arg0: i32) -> (i32, i32) {
    %c0_i32 = arith.constant 0 : i32
    %c0_i32_0 = arith.constant 0 : i32
    %c0_i32_1 = arith.constant 0 : i32
    return %c0_i32, %c0_i32_0 : i32, i32
  }
  func.func @transform_4(%arg0: i32) -> (i32, i32) {
    %c0_i32 = arith.constant 0 : i32
    %c0_i32_0 = arith.constant 0 : i32
    %c0_i32_1 = arith.constant 0 : i32
    return %c0_i32, %c0_i32_0 : i32, i32
  }
  func.func @transform_5(%arg0: i32) -> (i32, i32) {
    %c0_i32 = arith.constant 0 : i32
    %c0_i32_0 = arith.constant 0 : i32
    %c0_i32_1 = arith.constant 0 : i32
    return %c0_i32, %c0_i32_0 : i32, i32
  }
  func.func @transform_6(%arg0: i32) -> (i32, i32, i32) {
    %c0_i32 = arith.constant 0 : i32
    %c0_i32_0 = arith.constant 0 : i32
    %c0_i32_1 = arith.constant 0 : i32
    %c0_i32_2 = arith.constant 0 : i32
    return %c0_i32, %c0_i32_0, %c0_i32_1 : i32, i32, i32
  }
  func.func @transform_7(%arg0: i32) -> (i32, i32, i32) {
    %c0_i32 = arith.constant 0 : i32
    %c0_i32_0 = arith.constant 0 : i32
    %c0_i32_1 = arith.constant 0 : i32
    %c0_i32_2 = arith.constant 0 : i32
    return %c0_i32, %c0_i32_0, %c0_i32_1 : i32, i32, i32
  }
  func.func @transform_8(%arg0: i32) -> (i32, i32) {
    %c0_i32 = arith.constant 0 : i32
    %c0_i32_0 = arith.constant 0 : i32
    %c0_i32_1 = arith.constant 0 : i32
    return %c0_i32, %c0_i32_0 : i32, i32
  }
  func.func @transform_9(%arg0: i32) -> (i32, i32) {
    %c0_i32 = arith.constant 0 : i32
    %c0_i32_0 = arith.constant 0 : i32
    %c0_i32_1 = arith.constant 0 : i32
    return %c0_i32, %c0_i32_0 : i32, i32
  }
  func.func @transform_10(%arg0: i32) -> (i32, i32) {
    %c0_i32 = arith.constant 0 : i32
    %c0_i32_0 = arith.constant 0 : i32
    %c0_i32_1 = arith.constant 0 : i32
    return %c0_i32, %c0_i32_0 : i32, i32
  }
  func.func @transform_11(%arg0: i32) -> (i32, i32, i32) {
    %c0_i32 = arith.constant 0 : i32
    %c0_i32_0 = arith.constant 0 : i32
    %c0_i32_1 = arith.constant 0 : i32
    %c0_i32_2 = arith.constant 0 : i32
    return %c0_i32, %c0_i32_0, %c0_i32_1 : i32, i32, i32
  }
  func.func @transform_12(%arg0: i32) -> (i32, i32, i32) {
    %c0_i32 = arith.constant 0 : i32
    %c0_i32_0 = arith.constant 0 : i32
    %c0_i32_1 = arith.constant 0 : i32
    %c0_i32_2 = arith.constant 0 : i32
    return %c0_i32, %c0_i32_0, %c0_i32_1 : i32, i32, i32
  }
  func.func @transform_13(%arg0: i32) -> (i32, i32) {
    %c0_i32 = arith.constant 0 : i32
    %c0_i32_0 = arith.constant 0 : i32
    %c0_i32_1 = arith.constant 0 : i32
    return %c0_i32, %c0_i32_0 : i32, i32
  }
  func.func @transform_14(%arg0: i32) -> (i32, i32) {
    %c0_i32 = arith.constant 0 : i32
    %c0_i32_0 = arith.constant 0 : i32
    %c0_i32_1 = arith.constant 0 : i32
    return %c0_i32, %c0_i32_0 : i32, i32
  }
  func.func @transform_15(%arg0: i32) -> (i32, i32) {
    %c0_i32 = arith.constant 0 : i32
    %c0_i32_0 = arith.constant 0 : i32
    %c0_i32_1 = arith.constant 0 : i32
    return %c0_i32, %c0_i32_0 : i32, i32
  }
  func.func @transform_16(%arg0: i32) -> (i32, i32, i32) {
    %c0_i32 = arith.constant 0 : i32
    %c0_i32_0 = arith.constant 0 : i32
    %c0_i32_1 = arith.constant 0 : i32
    %c0_i32_2 = arith.constant 0 : i32
    return %c0_i32, %c0_i32_0, %c0_i32_1 : i32, i32, i32
  }
  func.func @transform_17(%arg0: i32) -> (i32, i32, i32) {
    %c0_i32 = arith.constant 0 : i32
    %c0_i32_0 = arith.constant 0 : i32
    %c0_i32_1 = arith.constant 0 : i32
    %c0_i32_2 = arith.constant 0 : i32
    return %c0_i32, %c0_i32_0, %c0_i32_1 : i32, i32, i32
  }
  func.func @transform_18(%arg0: i32) -> (i32, i32) {
    %c0_i32 = arith.constant 0 : i32
    %c0_i32_0 = arith.constant 0 : i32
    %c0_i32_1 = arith.constant 0 : i32
    return %c0_i32, %c0_i32_0 : i32, i32
  }
  func.func @transform_19(%arg0: i32) -> (i32, i32) {
    %c0_i32 = arith.constant 0 : i32
    %c0_i32_0 = arith.constant 0 : i32
    %c0_i32_1 = arith.constant 0 : i32
    return %c0_i32, %c0_i32_0 : i32, i32
  }
  func.func @transform_20(%arg0: i32) -> (i32, i32) {
    %c0_i32 = arith.constant 0 : i32
    %c0_i32_0 = arith.constant 0 : i32
    %c0_i32_1 = arith.constant 0 : i32
    return %c0_i32, %c0_i32_0 : i32, i32
  }
  func.func @transform_21(%arg0: i32) -> (i32, i32) {
    %c0_i32 = arith.constant 0 : i32
    %c0_i32_0 = arith.constant 0 : i32
    %c0_i32_1 = arith.constant 0 : i32
    return %c0_i32, %c0_i32_0 : i32, i32
  }
  func.func @transform_22(%arg0: i32) -> (i32, i32) {
    %c0_i32 = arith.constant 0 : i32
    %c0_i32_0 = arith.constant 0 : i32
    %c0_i32_1 = arith.constant 0 : i32
    return %c0_i32, %c0_i32_0 : i32, i32
  }
  func.func @transform_23(%arg0: i32) -> (i32, i32) {
    %c0_i32 = arith.constant 0 : i32
    %c0_i32_0 = arith.constant 0 : i32
    %c0_i32_1 = arith.constant 0 : i32
    return %c0_i32, %c0_i32_0 : i32, i32
  }
  func.func @transform_24(%arg0: i32) -> (i32, i32) {
    %c0_i32 = arith.constant 0 : i32
    %c0_i32_0 = arith.constant 0 : i32
    %c0_i32_1 = arith.constant 0 : i32
    return %c0_i32, %c0_i32_0 : i32, i32
  }
  func.func @transform_25(%arg0: i32) -> (i32, i32) {
    %c0_i32 = arith.constant 0 : i32
    %c0_i32_0 = arith.constant 0 : i32
    %c0_i32_1 = arith.constant 0 : i32
    return %c0_i32, %c0_i32_0 : i32, i32
  }
  func.func @transform_26(%arg0: i32) -> (i32, i32) {
    %c0_i32 = arith.constant 0 : i32
    %c0_i32_0 = arith.constant 0 : i32
    %c0_i32_1 = arith.constant 0 : i32
    return %c0_i32, %c0_i32_0 : i32, i32
  }
  func.func @transform_27(%arg0: i32) -> (i32, i32) {
    %c0_i32 = arith.constant 0 : i32
    %c0_i32_0 = arith.constant 0 : i32
    %c0_i32_1 = arith.constant 0 : i32
    return %c0_i32, %c0_i32_0 : i32, i32
  }
  func.func @transform_28(%arg0: i32) -> (i32, i32) {
    %c0_i32 = arith.constant 0 : i32
    %c0_i32_0 = arith.constant 0 : i32
    %c0_i32_1 = arith.constant 0 : i32
    return %c0_i32, %c0_i32_0 : i32, i32
  }
  func.func @transform_29(%arg0: i32) -> (i32, i32) {
    %c0_i32 = arith.constant 0 : i32
    %c0_i32_0 = arith.constant 0 : i32
    %c0_i32_1 = arith.constant 0 : i32
    return %c0_i32, %c0_i32_0 : i32, i32
  }
  func.func @transform_30(%arg0: i32) -> (i32, i32) {
    %c0_i32 = arith.constant 0 : i32
    %c0_i32_0 = arith.constant 0 : i32
    %c0_i32_1 = arith.constant 0 : i32
    return %c0_i32, %c0_i32_0 : i32, i32
  }
  func.func @transform_31(%arg0: i32) -> (i32, i32) {
    %c0_i32 = arith.constant 0 : i32
    %c0_i32_0 = arith.constant 0 : i32
    %c0_i32_1 = arith.constant 0 : i32
    return %c0_i32, %c0_i32_0 : i32, i32
  }
  func.func @transform_32(%arg0: i32) -> (i32, i32) {
    %c0_i32 = arith.constant 0 : i32
    %c0_i32_0 = arith.constant 0 : i32
    %c0_i32_1 = arith.constant 0 : i32
    return %c0_i32, %c0_i32_0 : i32, i32
  }
  func.func @transform_33(%arg0: i32) -> (i32, i32) {
    %c0_i32 = arith.constant 0 : i32
    %c0_i32_0 = arith.constant 0 : i32
    %c0_i32_1 = arith.constant 0 : i32
    return %c0_i32, %c0_i32_0 : i32, i32
  }
  func.func @transform_34(%arg0: i32) -> (i32, i32) {
    %c0_i32 = arith.constant 0 : i32
    %c0_i32_0 = arith.constant 0 : i32
    %c0_i32_1 = arith.constant 0 : i32
    return %c0_i32, %c0_i32_0 : i32, i32
  }
}

</mosaic_0001>

<llo_original>
// kernel: tpu_custom_call.1
$region0: #{tpu_custom_call.1}
  #allocation0 [shape = 'u32[]', space=smem, size = 0x4, offset = 0x4, fixed_abs, tag = 'smem constant byte address 0x4 - core index']
  #allocation1 [shape = 'u32[144,128]{1,0:T(1,128)}', space=vmem, size = 0x12000, scoped, tag = 'internal scratch']
  %s0 = inlined_call_operand.smem [shape: u32[35], index: -1, kind: input, shape index: {}]
  %s1 = sld [smem:[%s0]]
  %s2 = scalar_lea.smem %s0, 1
  %s3 = sld [smem:[%s2]]
  %s4 = scalar_lea.smem %s0, 2
  %s5 = sld [smem:[%s4]]
  %s6 = scalar_lea.smem %s0, 3
  %s7 = sld [smem:[%s6]]
  %s8 = scalar_lea.smem %s0, 4
  %s9 = sld [smem:[%s8]]
  %s10 = scalar_lea.smem %s0, 5
  %s11 = sld [smem:[%s10]]
  %s12 = scalar_lea.smem %s0, 6
  %s13 = sld [smem:[%s12]]
  %s14 = scalar_lea.smem %s0, 7
  %s15 = sld [smem:[%s14]]
  %s16 = scalar_lea.smem %s0, 8
  %s17 = sld [smem:[%s16]]
  %s18 = scalar_lea.smem %s0, 9
  %s19 = sld [smem:[%s18]]
  %s20 = scalar_lea.smem %s0, 10
  %s21 = sld [smem:[%s20]]
  %s22 = scalar_lea.smem %s0, 11
  %s23 = sld [smem:[%s22]]
  %s24 = scalar_lea.smem %s0, 12
  %s25 = sld [smem:[%s24]]
  %s26 = scalar_lea.smem %s0, 13
  %s27 = sld [smem:[%s26]]
  %s28 = scalar_lea.smem %s0, 14
  %s29 = sld [smem:[%s28]]
  %s30 = scalar_lea.smem %s0, 15
  %s31 = sld [smem:[%s30]]
  %s32 = scalar_lea.smem %s0, 16
  %s33 = sld [smem:[%s32]]
  %s34 = scalar_lea.smem %s0, 17
  %s35 = sld [smem:[%s34]]
  %s36 = scalar_lea.smem %s0, 18
  %s37 = sld [smem:[%s36]]
  %s38 = scalar_lea.smem %s0, 19
  %s39 = sld [smem:[%s38]]
  %s40 = scalar_lea.smem %s0, 20
  %s41 = sld [smem:[%s40]]
  %s42 = scalar_lea.smem %s0, 21
  %s43 = sld [smem:[%s42]]
  %s44 = scalar_lea.smem %s0, 22
  %s45 = sld [smem:[%s44]]
  %s46 = scalar_lea.smem %s0, 23
  %s47 = sld [smem:[%s46]]
  %s48 = scalar_lea.smem %s0, 24
  %s49 = sld [smem:[%s48]]
  %s50 = scalar_lea.smem %s0, 25
  %s51 = sld [smem:[%s50]]
  %s52 = scalar_lea.smem %s0, 26
  %s53 = sld [smem:[%s52]]
  %s54 = scalar_lea.smem %s0, 27
  %s55 = sld [smem:[%s54]]
  %s56 = scalar_lea.smem %s0, 28
  %s57 = sld [smem:[%s56]]
  %s58 = scalar_lea.smem %s0, 29
  %s59 = sld [smem:[%s58]]
  %s60 = scalar_lea.smem %s0, 30
  %s61 = sld [smem:[%s60]]
  %s62 = scalar_lea.smem %s0, 31
  %s63 = sld [smem:[%s62]]
  %s64 = scalar_lea.smem %s0, 32
  %s65 = sld [smem:[%s64]]
  %s66 = scalar_lea.smem %s0, 33
  %s67 = sld [smem:[%s66]]
  %s68 = scalar_lea.smem %s0, 34
  %s69 = sld [smem:[%s68]]
  %70 = xla_tuple %s67, %s69
  %s71 = sld [smem:[#allocation0]]
  $region274: #{tpu_custom_call.1} parent=0
    _
  %s73 = ssub.s32 1, %s71
  %s74 = scalar_select 0, %s73, %s71
  $region1: #{tpu_custom_call.1} parent=0
    #allocation2 [shape = 'u8[131072]{0}', space=vmem, size = 0x20000, scoped, tag = 'input window, operand 0, single buffered']
    #allocation3 [shape = 's32[1]{0}', space=sflag, size = 0x4, scoped, tag = 'scoped memory for tpu_custom_call.1']
    #allocation4 [shape = 's32[1]{0}', space=sflag, size = 0x4, scoped, tag = 'scoped memory for tpu_custom_call.1']
    #allocation5 [shape = 'u8[1179648]{0}', space=vmem, size = 0x120000, scoped, tag = 'input window, operand 1, single buffered']
    #allocation6 [shape = 's32[1]{0}', space=sflag, size = 0x4, scoped, tag = 'scoped memory for tpu_custom_call.1']
    #allocation7 [shape = 'u8[294912]{0}', space=vmem, size = 0x48000, scoped, tag = 'input window, operand 2, single buffered']
    #allocation8 [shape = 'u8[512]{0}', space=vmem, size = 0x400, scoped, tag = 'input window, operand 3, single buffered']
    #allocation9 [shape = 's32[1]{0}', space=sflag, size = 0x4, scoped, tag = 'scoped memory for tpu_custom_call.1']
    #allocation10 [shape = 'u8[512]{0}', space=vmem, size = 0x400, scoped, tag = 'input window, operand 4, single buffered']
    #allocation11 [shape = 'u8[512]{0}', space=vmem, size = 0x400, scoped, tag = 'input window, operand 5, single buffered']
    #allocation12 [shape = 's32[1]{0}', space=sflag, size = 0x4, scoped, tag = 'scoped memory for tpu_custom_call.1']
    #allocation13 [shape = 'u8[73728]{0}', space=vmem, size = 0x12000, scoped, tag = 'input window, operand 6, single buffered']
    #allocation14 [shape = 'u8[294912]{0}', space=vmem, size = 0x48000, scoped, tag = 'input window, operand 7, single buffered']
    #allocation15 [shape = 's32[1]{0}', space=sflag, size = 0x4, scoped, tag = 'scoped memory for tpu_custom_call.1']
    #allocation16 [shape = 'u8[512]{0}', space=vmem, size = 0x400, scoped, tag = 'input window, operand 8, single buffered']
    #allocation17 [shape = 'u8[512]{0}', space=vmem, size = 0x400, scoped, tag = 'input window, operand 9, single buffered']
    #allocation18 [shape = 's32[1]{0}', space=sflag, size = 0x4, scoped, tag = 'scoped memory for tpu_custom_call.1']
    #allocation19 [shape = 'u8[512]{0}', space=vmem, size = 0x400, scoped, tag = 'input window, operand 10, single buffered']
    #allocation20 [shape = 'u8[18432]{0}', space=vmem, size = 0x4800, scoped, tag = 'input window, operand 11, single buffered']
    #allocation21 [shape = 's32[1]{0}', space=sflag, size = 0x4, scoped, tag = 'scoped memory for tpu_custom_call.1']
    #allocation22 [shape = 'u8[294912]{0}', space=vmem, size = 0x48000, scoped, tag = 'input window, operand 12, single buffered']
    #allocation23 [shape = 'u8[512]{0}', space=vmem, size = 0x400, scoped, tag = 'input window, operand 13, single buffered']
    #allocation24 [shape = 's32[1]{0}', space=sflag, size = 0x4, scoped, tag = 'scoped memory for tpu_custom_call.1']
    #allocation25 [shape = 'u8[512]{0}', space=vmem, size = 0x400, scoped, tag = 'input window, operand 14, single buffered']
    #allocation26 [shape = 'u8[512]{0}', space=vmem, size = 0x400, scoped, tag = 'input window, operand 15, single buffered']
    #allocation27 [shape = 's32[1]{0}', space=sflag, size = 0x4, scoped, tag = 'scoped memory for tpu_custom_call.1']
    #allocation28 [shape = 'u8[512]{0}', space=vmem, size = 0x400, scoped, tag = 'input window, operand 18, single buffered']
    #allocation29 [shape = 'u8[512]{0}', space=vmem, size = 0x400, scoped, tag = 'input window, operand 19, single buffered']
    #allocation30 [shape = 's32[1]{0}', space=sflag, size = 0x4, scoped, tag = 'scoped memory for tpu_custom_call.1']
    #allocation31 [shape = 'u8[512]{0}', space=vmem, size = 0x400, scoped, tag = 'input window, operand 20, single buffered']
    #allocation32 [shape = 'u8[16384]{0}', space=vmem, size = 0x4000, scoped, tag = 'input window, operand 21, single buffered']
    #allocation33 [shape = 's32[1]{0}', space=sflag, size = 0x4, scoped, tag = 'scoped memory for tpu_custom_call.1']
    #allocation34 [shape = 'u8[512]{0}', space=vmem, size = 0x400, scoped, tag = 'input window, operand 22, single buffered']
    #allocation35 [shape = 'u8[512]{0}', space=vmem, size = 0x400, scoped, tag = 'input window, operand 23, single buffered']
    #allocation36 [shape = 's32[1]{0}', space=sflag, size = 0x4, scoped, tag = 'scoped memory for tpu_custom_call.1']
    #allocation37 [shape = 'u8[512]{0}', space=vmem, size = 0x400, scoped, tag = 'input window, operand 24, single buffered']
    #allocation38 [shape = 'u8[16384]{0}', space=vmem, size = 0x4000, scoped, tag = 'input window, operand 25, single buffered']
    #allocation39 [shape = 's32[1]{0}', space=sflag, size = 0x4, scoped, tag = 'scoped memory for tpu_custom_call.1']
    #allocation40 [shape = 'u8[512]{0}', space=vmem, size = 0x400, scoped, tag = 'input window, operand 26, single buffered']
    #allocation41 [shape = 'u8[512]{0}', space=vmem, size = 0x400, scoped, tag = 'input window, operand 27, single buffered']
    #allocation42 [shape = 's32[1]{0}', space=sflag, size = 0x4, scoped, tag = 'scoped memory for tpu_custom_call.1']
    #allocation43 [shape = 'u8[512]{0}', space=vmem, size = 0x400, scoped, tag = 'input window, operand 28, single buffered']
    #allocation44 [shape = 'u8[16384]{0}', space=vmem, size = 0x4000, scoped, tag = 'input window, operand 29, single buffered']
    #allocation45 [shape = 's32[1]{0}', space=sflag, size = 0x4, scoped, tag = 'scoped memory for tpu_custom_call.1']
    #allocation46 [shape = 'u8[512]{0}', space=vmem, size = 0x400, scoped, tag = 'input window, operand 30, single buffered']
    #allocation47 [shape = 'u8[16384]{0}', space=vmem, size = 0x4000, scoped, tag = 'input window, operand 31, single buffered']
    #allocation48 [shape = 's32[1]{0}', space=sflag, size = 0x4, scoped, tag = 'scoped memory for tpu_custom_call.1']
    #allocation49 [shape = 'u8[512]{0}', space=vmem, size = 0x400, scoped, tag = 'input window, operand 32, single buffered']
    #allocation50 [shape = 'u8[1024]{0}', space=vmem, size = 0x400, scoped, tag = 'output window, operand 0, single buffered']
    #allocation51 [shape = 'u8[1024]{0}', space=vmem, size = 0x400, scoped, tag = 'output window, operand 1, single buffered']
    #allocation52 [shape = 's32[1]{0}', space=sflag, size = 0x4, scoped, tag = 'scoped memory for tpu_custom_call.1']
    %75 = vsyncpa [#allocation3], 0
    %76 = vsyncpa [#allocation6], 0
    %77 = vsyncpa [#allocation9], 0
    %78 = vsyncpa [#allocation12], 0
    %79 = vsyncpa [#allocation15], 0
    %80 = vsyncpa [#allocation18], 0
    %81 = vsyncpa [#allocation21], 0
    %82 = vsyncpa [#allocation24], 0
    %83 = vsyncpa [#allocation27], 0
    %84 = vsyncpa [#allocation30], 0
    %85 = vsyncpa [#allocation33], 0
    %86 = vsyncpa [#allocation36], 0
    %87 = vsyncpa [#allocation39], 0
    %88 = vsyncpa [#allocation42], 0
    %89 = vsyncpa [#allocation45], 0
    %90 = vsyncpa [#allocation48], 0
    %91 = vsyncpa [#allocation4], 0
    %92 = vsyncpa [#allocation52], 0
    // Predicated region
    $region2: #{tpu_custom_call.1} parent=1 // pred_check
      _
    $region3: #{tpu_custom_call.1} parent=1 // pred_check_branch
      %94 = sbr.rel (0) target = $region5
    $region4: #{tpu_custom_call.1} parent=1 // pred_region
      %s96 = ssub.s32 4096, 4096
      %97 = vsyncadd [#allocation3], %s96
      %s98 = sshll.u32 [#allocation2], 4
      %s99 = int_to_ptr.vmem [resolvable:$true] %s98
      %104 = dma.hbm_to_vmem [thread:$0]  %s1, 4096, %s99, [#allocation3], 64, 64, 4
    $region5: #{tpu_custom_call.1} parent=1 // pred_fallthru
      _
    // Predicated region
    $region6: #{tpu_custom_call.1} parent=1 // pred_check
      _
    $region7: #{tpu_custom_call.1} parent=1 // pred_check_branch
      %106 = sbr.rel (0) target = $region9
    $region8: #{tpu_custom_call.1} parent=1 // pred_region
      %s108 = ssub.s32 36864, 36864
      %109 = vsyncadd [#allocation6], %s108
      %s110 = sshll.u32 [#allocation5], 4
      %s111 = int_to_ptr.vmem [resolvable:$true] %s110
      %116 = dma.hbm_to_vmem [thread:$0]  %s3, 36864, %s111, [#allocation6], 256, 256, 16
    $region9: #{tpu_custom_call.1} parent=1 // pred_fallthru
      _
    // Predicated region
    $region10: #{tpu_custom_call.1} parent=1 // pred_check
      _
    $region11: #{tpu_custom_call.1} parent=1 // pred_check_branch
      %118 = sbr.rel (0) target = $region13
    $region12: #{tpu_custom_call.1} parent=1 // pred_region
      %s120 = ssub.s32 9216, 9216
      %121 = vsyncadd [#allocation6], %s120
      %s122 = sshll.u32 [#allocation7], 4
      %s123 = int_to_ptr.vmem [resolvable:$true] %s122
      %128 = dma.hbm_to_vmem [thread:$0]  %s5, 9216, %s123, [#allocation6], 64, 64, 4
    $region13: #{tpu_custom_call.1} parent=1 // pred_fallthru
      _
    // Predicated region
    $region14: #{tpu_custom_call.1} parent=1 // pred_check
      _
    $region15: #{tpu_custom_call.1} parent=1 // pred_check_branch
      %130 = sbr.rel (0) target = $region17
    $region16: #{tpu_custom_call.1} parent=1 // pred_region
      %s132 = ssub.s32 16, 16
      %133 = vsyncadd [#allocation9], %s132
      %s135 = sshll.u32 [#allocation8], 4
      %s136 = int_to_ptr.vmem [resolvable:$true] %s135
      %138 = dma.hbm_to_vmem [thread:$0]  %s7, 16, %s136, [#allocation9]
    $region17: #{tpu_custom_call.1} parent=1 // pred_fallthru
      _
    // Predicated region
    $region18: #{tpu_custom_call.1} parent=1 // pred_check
      _
    $region19: #{tpu_custom_call.1} parent=1 // pred_check_branch
      %140 = sbr.rel (0) target = $region21
    $region20: #{tpu_custom_call.1} parent=1 // pred_region
      %s142 = ssub.s32 16, 16
      %143 = vsyncadd [#allocation9], %s142
      %s145 = sshll.u32 [#allocation10], 4
      %s146 = int_to_ptr.vmem [resolvable:$true] %s145
      %148 = dma.hbm_to_vmem [thread:$0]  %s9, 16, %s146, [#allocation9]
    $region21: #{tpu_custom_call.1} parent=1 // pred_fallthru
      _
    // Predicated region
    $region22: #{tpu_custom_call.1} parent=1 // pred_check
      _
    $region23: #{tpu_custom_call.1} parent=1 // pred_check_branch
      %150 = sbr.rel (0) target = $region25
    $region24: #{tpu_custom_call.1} parent=1 // pred_region
      %s152 = ssub.s32 16, 16
      %153 = vsyncadd [#allocation12], %s152
      %s155 = sshll.u32 [#allocation11], 4
      %s156 = int_to_ptr.vmem [resolvable:$true] %s155
      %158 = dma.hbm_to_vmem [thread:$0]  %s11, 16, %s156, [#allocation12]
    $region25: #{tpu_custom_call.1} parent=1 // pred_fallthru
      _
    // Predicated region
    $region26: #{tpu_custom_call.1} parent=1 // pred_check
      _
    $region27: #{tpu_custom_call.1} parent=1 // pred_check_branch
      %160 = sbr.rel (0) target = $region29
    $region28: #{tpu_custom_call.1} parent=1 // pred_region
      %s162 = ssub.s32 2304, 2304
      %163 = vsyncadd [#allocation12], %s162
      %s164 = sshll.u32 [#allocation13], 4
      %s165 = int_to_ptr.vmem [resolvable:$true] %s164
      %170 = dma.hbm_to_vmem [thread:$0]  %s13, 2304, %s165, [#allocation12], 64, 64, 4
    $region29: #{tpu_custom_call.1} parent=1 // pred_fallthru
      _
    // Predicated region
    $region30: #{tpu_custom_call.1} parent=1 // pred_check
      _
    $region31: #{tpu_custom_call.1} parent=1 // pred_check_branch
      %172 = sbr.rel (0) target = $region33
    $region32: #{tpu_custom_call.1} parent=1 // pred_region
      %s174 = ssub.s32 9216, 9216
      %175 = vsyncadd [#allocation15], %s174
      %s176 = sshll.u32 [#allocation14], 4
      %s177 = int_to_ptr.vmem [resolvable:$true] %s176
      %182 = dma.hbm_to_vmem [thread:$0]  %s15, 9216, %s177, [#allocation15], 64, 64, 4
    $region33: #{tpu_custom_call.1} parent=1 // pred_fallthru
      _
    // Predicated region
    $region34: #{tpu_custom_call.1} parent=1 // pred_check
      _
    $region35: #{tpu_custom_call.1} parent=1 // pred_check_branch
      %184 = sbr.rel (0) target = $region37
    $region36: #{tpu_custom_call.1} parent=1 // pred_region
      %s186 = ssub.s32 16, 16
      %187 = vsyncadd [#allocation15], %s186
      %s189 = sshll.u32 [#allocation16], 4
      %s190 = int_to_ptr.vmem [resolvable:$true] %s189
      %192 = dma.hbm_to_vmem [thread:$0]  %s17, 16, %s190, [#allocation15]
    $region37: #{tpu_custom_call.1} parent=1 // pred_fallthru
      _
    // Predicated region
    $region38: #{tpu_custom_call.1} parent=1 // pred_check
      _
    $region39: #{tpu_custom_call.1} parent=1 // pred_check_branch
      %194 = sbr.rel (0) target = $region41
    $region40: #{tpu_custom_call.1} parent=1 // pred_region
      %s196 = ssub.s32 16, 16
      %197 = vsyncadd [#allocation18], %s196
      %s199 = sshll.u32 [#allocation17], 4
      %s200 = int_to_ptr.vmem [resolvable:$true] %s199
      %202 = dma.hbm_to_vmem [thread:$0]  %s19, 16, %s200, [#allocation18]
    $region41: #{tpu_custom_call.1} parent=1 // pred_fallthru
      _
    // Predicated region
    $region42: #{tpu_custom_call.1} parent=1 // pred_check
      _
    $region43: #{tpu_custom_call.1} parent=1 // pred_check_branch
      %204 = sbr.rel (0) target = $region45
    $region44: #{tpu_custom_call.1} parent=1 // pred_region
      %s206 = ssub.s32 16, 16
      %207 = vsyncadd [#allocation18], %s206
      %s209 = sshll.u32 [#allocation19], 4
      %s210 = int_to_ptr.vmem [resolvable:$true] %s209
      %212 = dma.hbm_to_vmem [thread:$0]  %s21, 16, %s210, [#allocation18]
    $region45: #{tpu_custom_call.1} parent=1 // pred_fallthru
      _
    // Predicated region
    $region46: #{tpu_custom_call.1} parent=1 // pred_check
      _
    $region47: #{tpu_custom_call.1} parent=1 // pred_check_branch
      %214 = sbr.rel (0) target = $region49
    $region48: #{tpu_custom_call.1} parent=1 // pred_region
      %s216 = ssub.s32 576, 576
      %217 = vsyncadd [#allocation21], %s216
      %s218 = sshll.u32 [#allocation20], 4
      %s219 = int_to_ptr.vmem [resolvable:$true] %s218
      %224 = dma.hbm_to_vmem [thread:$0]  %s23, 576, %s219, [#allocation21], 64, 64, 4
    $region49: #{tpu_custom_call.1} parent=1 // pred_fallthru
      _
    // Predicated region
    $region50: #{tpu_custom_call.1} parent=1 // pred_check
      _
    $region51: #{tpu_custom_call.1} parent=1 // pred_check_branch
      %226 = sbr.rel (0) target = $region53
    $region52: #{tpu_custom_call.1} parent=1 // pred_region
      %s228 = ssub.s32 9216, 9216
      %229 = vsyncadd [#allocation21], %s228
      %s230 = sshll.u32 [#allocation22], 4
      %s231 = int_to_ptr.vmem [resolvable:$true] %s230
      %236 = dma.hbm_to_vmem [thread:$0]  %s25, 9216, %s231, [#allocation21], 64, 64, 4
    $region53: #{tpu_custom_call.1} parent=1 // pred_fallthru
      _
    // Predicated region
    $region54: #{tpu_custom_call.1} parent=1 // pred_check
      _
    $region55: #{tpu_custom_call.1} parent=1 // pred_check_branch
      %238 = sbr.rel (0) target = $region57
    $region56: #{tpu_custom_call.1} parent=1 // pred_region
      %s240 = ssub.s32 16, 16
      %241 = vsyncadd [#allocation24], %s240
      %s243 = sshll.u32 [#allocation23], 4
      %s244 = int_to_ptr.vmem [resolvable:$true] %s243
      %246 = dma.hbm_to_vmem [thread:$0]  %s27, 16, %s244, [#allocation24]
    $region57: #{tpu_custom_call.1} parent=1 // pred_fallthru
      _
    // Predicated region
    $region58: #{tpu_custom_call.1} parent=1 // pred_check
      _
    $region59: #{tpu_custom_call.1} parent=1 // pred_check_branch
      %248 = sbr.rel (0) target = $region61
    $region60: #{tpu_custom_call.1} parent=1 // pred_region
      %s250 = ssub.s32 16, 16
      %251 = vsyncadd [#allocation24], %s250
      %s253 = sshll.u32 [#allocation25], 4
      %s254 = int_to_ptr.vmem [resolvable:$true] %s253
      %256 = dma.hbm_to_vmem [thread:$0]  %s29, 16, %s254, [#allocation24]
    $region61: #{tpu_custom_call.1} parent=1 // pred_fallthru
      _
    // Predicated region
    $region62: #{tpu_custom_call.1} parent=1 // pred_check
      _
    $region63: #{tpu_custom_call.1} parent=1 // pred_check_branch
      %258 = sbr.rel (0) target = $region65
    $region64: #{tpu_custom_call.1} parent=1 // pred_region
      %s260 = ssub.s32 16, 16
      %261 = vsyncadd [#allocation27], %s260
      %s263 = sshll.u32 [#allocation26], 4
      %s264 = int_to_ptr.vmem [resolvable:$true] %s263
      %266 = dma.hbm_to_vmem [thread:$0]  %s31, 16, %s264, [#allocation27]
    $region65: #{tpu_custom_call.1} parent=1 // pred_fallthru
      _
    // Predicated region
    $region66: #{tpu_custom_call.1} parent=1 // pred_check
      _
    $region67: #{tpu_custom_call.1} parent=1 // pred_check_branch
      %268 = sbr.rel (0) target = $region69
    $region68: #{tpu_custom_call.1} parent=1 // pred_region
      _
    $region69: #{tpu_custom_call.1} parent=1 // pred_fallthru
      _
    // Predicated region
    $region70: #{tpu_custom_call.1} parent=1 // pred_check
      _
    $region71: #{tpu_custom_call.1} parent=1 // pred_check_branch
      %270 = sbr.rel (0) target = $region73
    $region72: #{tpu_custom_call.1} parent=1 // pred_region
      _
    $region73: #{tpu_custom_call.1} parent=1 // pred_fallthru
      _
    // Predicated region
    $region74: #{tpu_custom_call.1} parent=1 // pred_check
      _
    $region75: #{tpu_custom_call.1} parent=1 // pred_check_branch
      %272 = sbr.rel (0) target = $region77
    $region76: #{tpu_custom_call.1} parent=1 // pred_region
      %s274 = ssub.s32 16, 16
      %275 = vsyncadd [#allocation27], %s274
      %s277 = sshll.u32 [#allocation28], 4
      %s278 = int_to_ptr.vmem [resolvable:$true] %s277
      %280 = dma.hbm_to_vmem [thread:$0]  %s37, 16, %s278, [#allocation27]
    $region77: #{tpu_custom_call.1} parent=1 // pred_fallthru
      _
    // Predicated region
    $region78: #{tpu_custom_call.1} parent=1 // pred_check
      _
    $region79: #{tpu_custom_call.1} parent=1 // pred_check_branch
      %282 = sbr.rel (0) target = $region81
    $region80: #{tpu_custom_call.1} parent=1 // pred_region
      %s284 = ssub.s32 16, 16
      %285 = vsyncadd [#allocation30], %s284
      %s287 = sshll.u32 [#allocation29], 4
      %s288 = int_to_ptr.vmem [resolvable:$true] %s287
      %290 = dma.hbm_to_vmem [thread:$0]  %s39, 16, %s288, [#allocation30]
    $region81: #{tpu_custom_call.1} parent=1 // pred_fallthru
      _
    // Predicated region
    $region82: #{tpu_custom_call.1} parent=1 // pred_check
      _
    $region83: #{tpu_custom_call.1} parent=1 // pred_check_branch
      %292 = sbr.rel (0) target = $region85
    $region84: #{tpu_custom_call.1} parent=1 // pred_region
      %s294 = ssub.s32 16, 16
      %295 = vsyncadd [#allocation30], %s294
      %s297 = sshll.u32 [#allocation31], 4
      %s298 = int_to_ptr.vmem [resolvable:$true] %s297
      %300 = dma.hbm_to_vmem [thread:$0]  %s41, 16, %s298, [#allocation30]
    $region85: #{tpu_custom_call.1} parent=1 // pred_fallthru
      _
    // Predicated region
    $region86: #{tpu_custom_call.1} parent=1 // pred_check
      _
    $region87: #{tpu_custom_call.1} parent=1 // pred_check_branch
      %302 = sbr.rel (0) target = $region89
    $region88: #{tpu_custom_call.1} parent=1 // pred_region
      %s304 = ssub.s32 512, 512
      %305 = vsyncadd [#allocation33], %s304
      %s306 = sshll.u32 [#allocation32], 4
      %s307 = int_to_ptr.vmem [resolvable:$true] %s306
      %312 = dma.hbm_to_vmem [thread:$0]  %s43, 512, %s307, [#allocation33], 64, 64, 4
    $region89: #{tpu_custom_call.1} parent=1 // pred_fallthru
      _
    // Predicated region
    $region90: #{tpu_custom_call.1} parent=1 // pred_check
      _
    $region91: #{tpu_custom_call.1} parent=1 // pred_check_branch
      %314 = sbr.rel (0) target = $region93
    $region92: #{tpu_custom_call.1} parent=1 // pred_region
      %s316 = ssub.s32 16, 16
      %317 = vsyncadd [#allocation33], %s316
      %s319 = sshll.u32 [#allocation34], 4
      %s320 = int_to_ptr.vmem [resolvable:$true] %s319
      %322 = dma.hbm_to_vmem [thread:$0]  %s45, 16, %s320, [#allocation33]
    $region93: #{tpu_custom_call.1} parent=1 // pred_fallthru
      _
    // Predicated region
    $region94: #{tpu_custom_call.1} parent=1 // pred_check
      _
    $region95: #{tpu_custom_call.1} parent=1 // pred_check_branch
      %324 = sbr.rel (0) target = $region97
    $region96: #{tpu_custom_call.1} parent=1 // pred_region
      %s326 = ssub.s32 16, 16
      %327 = vsyncadd [#allocation36], %s326
      %s329 = sshll.u32 [#allocation35], 4
      %s330 = int_to_ptr.vmem [resolvable:$true] %s329
      %332 = dma.hbm_to_vmem [thread:$0]  %s47, 16, %s330, [#allocation36]
    $region97: #{tpu_custom_call.1} parent=1 // pred_fallthru
      _
    // Predicated region
    $region98: #{tpu_custom_call.1} parent=1 // pred_check
      _
    $region99: #{tpu_custom_call.1} parent=1 // pred_check_branch
      %334 = sbr.rel (0) target = $region101
    $region100: #{tpu_custom_call.1} parent=1 // pred_region
      %s336 = ssub.s32 16, 16
      %337 = vsyncadd [#allocation36], %s336
      %s339 = sshll.u32 [#allocation37], 4
      %s340 = int_to_ptr.vmem [resolvable:$true] %s339
      %342 = dma.hbm_to_vmem [thread:$0]  %s49, 16, %s340, [#allocation36]
    $region101: #{tpu_custom_call.1} parent=1 // pred_fallthru
      _
    // Predicated region
    $region102: #{tpu_custom_call.1} parent=1 // pred_check
      _
    $region103: #{tpu_custom_call.1} parent=1 // pred_check_branch
      %344 = sbr.rel (0) target = $region105
    $region104: #{tpu_custom_call.1} parent=1 // pred_region
      %s346 = ssub.s32 512, 512
      %347 = vsyncadd [#allocation39], %s346
      %s348 = sshll.u32 [#allocation38], 4
      %s349 = int_to_ptr.vmem [resolvable:$true] %s348
      %354 = dma.hbm_to_vmem [thread:$0]  %s51, 512, %s349, [#allocation39], 64, 64, 4
    $region105: #{tpu_custom_call.1} parent=1 // pred_fallthru
      _
    // Predicated region
    $region106: #{tpu_custom_call.1} parent=1 // pred_check
      _
    $region107: #{tpu_custom_call.1} parent=1 // pred_check_branch
      %356 = sbr.rel (0) target = $region109
    $region108: #{tpu_custom_call.1} parent=1 // pred_region
      %s358 = ssub.s32 16, 16
      %359 = vsyncadd [#allocation39], %s358
      %s361 = sshll.u32 [#allocation40], 4
      %s362 = int_to_ptr.vmem [resolvable:$true] %s361
      %364 = dma.hbm_to_vmem [thread:$0]  %s53, 16, %s362, [#allocation39]
    $region109: #{tpu_custom_call.1} parent=1 // pred_fallthru
      _
    // Predicated region
    $region110: #{tpu_custom_call.1} parent=1 // pred_check
      _
    $region111: #{tpu_custom_call.1} parent=1 // pred_check_branch
      %366 = sbr.rel (0) target = $region113
    $region112: #{tpu_custom_call.1} parent=1 // pred_region
      %s368 = ssub.s32 16, 16
      %369 = vsyncadd [#allocation42], %s368
      %s371 = sshll.u32 [#allocation41], 4
      %s372 = int_to_ptr.vmem [resolvable:$true] %s371
      %374 = dma.hbm_to_vmem [thread:$0]  %s55, 16, %s372, [#allocation42]
    $region113: #{tpu_custom_call.1} parent=1 // pred_fallthru
      _
    // Predicated region
    $region114: #{tpu_custom_call.1} parent=1 // pred_check
      _
    $region115: #{tpu_custom_call.1} parent=1 // pred_check_branch
      %376 = sbr.rel (0) target = $region117
    $region116: #{tpu_custom_call.1} parent=1 // pred_region
      %s378 = ssub.s32 16, 16
      %379 = vsyncadd [#allocation42], %s378
      %s381 = sshll.u32 [#allocation43], 4
      %s382 = int_to_ptr.vmem [resolvable:$true] %s381
      %384 = dma.hbm_to_vmem [thread:$0]  %s57, 16, %s382, [#allocation42]
    $region117: #{tpu_custom_call.1} parent=1 // pred_fallthru
      _
    // Predicated region
    $region118: #{tpu_custom_call.1} parent=1 // pred_check
      _
    $region119: #{tpu_custom_call.1} parent=1 // pred_check_branch
      %386 = sbr.rel (0) target = $region121
    $region120: #{tpu_custom_call.1} parent=1 // pred_region
      %s388 = ssub.s32 512, 512
      %389 = vsyncadd [#allocation45], %s388
      %s390 = sshll.u32 [#allocation44], 4
      %s391 = int_to_ptr.vmem [resolvable:$true] %s390
      %396 = dma.hbm_to_vmem [thread:$0]  %s59, 512, %s391, [#allocation45], 64, 64, 4
    $region121: #{tpu_custom_call.1} parent=1 // pred_fallthru
      _
    // Predicated region
    $region122: #{tpu_custom_call.1} parent=1 // pred_check
      _
    $region123: #{tpu_custom_call.1} parent=1 // pred_check_branch
      %398 = sbr.rel (0) target = $region125
    $region124: #{tpu_custom_call.1} parent=1 // pred_region
      %s400 = ssub.s32 16, 16
      %401 = vsyncadd [#allocation45], %s400
      %s403 = sshll.u32 [#allocation46], 4
      %s404 = int_to_ptr.vmem [resolvable:$true] %s403
      %406 = dma.hbm_to_vmem [thread:$0]  %s61, 16, %s404, [#allocation45]
    $region125: #{tpu_custom_call.1} parent=1 // pred_fallthru
      _
    // Predicated region
    $region126: #{tpu_custom_call.1} parent=1 // pred_check
      _
    $region127: #{tpu_custom_call.1} parent=1 // pred_check_branch
      %408 = sbr.rel (0) target = $region129
    $region128: #{tpu_custom_call.1} parent=1 // pred_region
      %s410 = ssub.s32 512, 512
      %411 = vsyncadd [#allocation48], %s410
      %s412 = sshll.u32 [#allocation47], 4
      %s413 = int_to_ptr.vmem [resolvable:$true] %s412
      %418 = dma.hbm_to_vmem [thread:$0]  %s63, 512, %s413, [#allocation48], 64, 64, 4
    $region129: #{tpu_custom_call.1} parent=1 // pred_fallthru
      _
    // Predicated region
    $region130: #{tpu_custom_call.1} parent=1 // pred_check
      _
    $region131: #{tpu_custom_call.1} parent=1 // pred_check_branch
      %420 = sbr.rel (0) target = $region133
    $region132: #{tpu_custom_call.1} parent=1 // pred_region
      %s422 = ssub.s32 16, 16
      %423 = vsyncadd [#allocation48], %s422
      %s425 = sshll.u32 [#allocation49], 4
      %s426 = int_to_ptr.vmem [resolvable:$true] %s425
      %428 = dma.hbm_to_vmem [thread:$0]  %s65, 16, %s426, [#allocation48]
    $region133: #{tpu_custom_call.1} parent=1 // pred_fallthru
      _
    // Predicated region
    $region134: #{tpu_custom_call.1} parent=1 // pred_check
      _
    $region135: #{tpu_custom_call.1} parent=1 // pred_check_branch
      %430 = sbr.rel (0) target = $region137
    $region136: #{tpu_custom_call.1} parent=1 // pred_region
      %431 = dma.done [#allocation3], 4096
    $region137: #{tpu_custom_call.1} parent=1 // pred_fallthru
      _
    // Predicated region
    $region138: #{tpu_custom_call.1} parent=1 // pred_check
      _
    $region139: #{tpu_custom_call.1} parent=1 // pred_check_branch
      %433 = sbr.rel (0) target = $region141
    $region140: #{tpu_custom_call.1} parent=1 // pred_region
      %434 = dma.done [#allocation6], 36864
    $region141: #{tpu_custom_call.1} parent=1 // pred_fallthru
      _
    // Predicated region
    $region142: #{tpu_custom_call.1} parent=1 // pred_check
      _
    $region143: #{tpu_custom_call.1} parent=1 // pred_check_branch
      %436 = sbr.rel (0) target = $region145
    $region144: #{tpu_custom_call.1} parent=1 // pred_region
      %437 = dma.done [#allocation6], 9216
    $region145: #{tpu_custom_call.1} parent=1 // pred_fallthru
      _
    // Predicated region
    $region146: #{tpu_custom_call.1} parent=1 // pred_check
      _
    $region147: #{tpu_custom_call.1} parent=1 // pred_check_branch
      %439 = sbr.rel (0) target = $region149
    $region148: #{tpu_custom_call.1} parent=1 // pred_region
      %440 = dma.done [#allocation9], 16
    $region149: #{tpu_custom_call.1} parent=1 // pred_fallthru
      _
    // Predicated region
    $region150: #{tpu_custom_call.1} parent=1 // pred_check
      _
    $region151: #{tpu_custom_call.1} parent=1 // pred_check_branch
      %442 = sbr.rel (0) target = $region153
    $region152: #{tpu_custom_call.1} parent=1 // pred_region
      %443 = dma.done [#allocation9], 16
    $region153: #{tpu_custom_call.1} parent=1 // pred_fallthru
      _
    // Predicated region
    $region154: #{tpu_custom_call.1} parent=1 // pred_check
      _
    $region155: #{tpu_custom_call.1} parent=1 // pred_check_branch
      %445 = sbr.rel (0) target = $region157
    $region156: #{tpu_custom_call.1} parent=1 // pred_region
      %446 = dma.done [#allocation12], 16
    $region157: #{tpu_custom_call.1} parent=1 // pred_fallthru
      _
    // Predicated region
    $region158: #{tpu_custom_call.1} parent=1 // pred_check
      _
    $region159: #{tpu_custom_call.1} parent=1 // pred_check_branch
      %448 = sbr.rel (0) target = $region161
    $region160: #{tpu_custom_call.1} parent=1 // pred_region
      %449 = dma.done [#allocation12], 2304
    $region161: #{tpu_custom_call.1} parent=1 // pred_fallthru
      _
    // Predicated region
    $region162: #{tpu_custom_call.1} parent=1 // pred_check
      _
    $region163: #{tpu_custom_call.1} parent=1 // pred_check_branch
      %451 = sbr.rel (0) target = $region165
    $region164: #{tpu_custom_call.1} parent=1 // pred_region
      %452 = dma.done [#allocation15], 9216
    $region165: #{tpu_custom_call.1} parent=1 // pred_fallthru
      _
    // Predicated region
    $region166: #{tpu_custom_call.1} parent=1 // pred_check
      _
    $region167: #{tpu_custom_call.1} parent=1 // pred_check_branch
      %454 = sbr.rel (0) target = $region169
    $region168: #{tpu_custom_call.1} parent=1 // pred_region
      %455 = dma.done [#allocation15], 16
    $region169: #{tpu_custom_call.1} parent=1 // pred_fallthru
      _
    // Predicated region
    $region170: #{tpu_custom_call.1} parent=1 // pred_check
      _
    $region171: #{tpu_custom_call.1} parent=1 // pred_check_branch
      %457 = sbr.rel (0) target = $region173
    $region172: #{tpu_custom_call.1} parent=1 // pred_region
      %458 = dma.done [#allocation18], 16
    $region173: #{tpu_custom_call.1} parent=1 // pred_fallthru
      _
    // Predicated region
    $region174: #{tpu_custom_call.1} parent=1 // pred_check
      _
    $region175: #{tpu_custom_call.1} parent=1 // pred_check_branch
      %460 = sbr.rel (0) target = $region177
    $region176: #{tpu_custom_call.1} parent=1 // pred_region
      %461 = dma.done [#allocation18], 16
    $region177: #{tpu_custom_call.1} parent=1 // pred_fallthru
      _
    // Predicated region
    $region178: #{tpu_custom_call.1} parent=1 // pred_check
      _
    $region179: #{tpu_custom_call.1} parent=1 // pred_check_branch
      %463 = sbr.rel (0) target = $region181
    $region180: #{tpu_custom_call.1} parent=1 // pred_region
      %464 = dma.done [#allocation21], 576
    $region181: #{tpu_custom_call.1} parent=1 // pred_fallthru
      _
    // Predicated region
    $region182: #{tpu_custom_call.1} parent=1 // pred_check
      _
    $region183: #{tpu_custom_call.1} parent=1 // pred_check_branch
      %466 = sbr.rel (0) target = $region185
    $region184: #{tpu_custom_call.1} parent=1 // pred_region
      %467 = dma.done [#allocation21], 9216
    $region185: #{tpu_custom_call.1} parent=1 // pred_fallthru
      _
    // Predicated region
    $region186: #{tpu_custom_call.1} parent=1 // pred_check
      _
    $region187: #{tpu_custom_call.1} parent=1 // pred_check_branch
      %469 = sbr.rel (0) target = $region189
    $region188: #{tpu_custom_call.1} parent=1 // pred_region
      %470 = dma.done [#allocation24], 16
    $region189: #{tpu_custom_call.1} parent=1 // pred_fallthru
      _
    // Predicated region
    $region190: #{tpu_custom_call.1} parent=1 // pred_check
      _
    $region191: #{tpu_custom_call.1} parent=1 // pred_check_branch
      %472 = sbr.rel (0) target = $region193
    $region192: #{tpu_custom_call.1} parent=1 // pred_region
      %473 = dma.done [#allocation24], 16
    $region193: #{tpu_custom_call.1} parent=1 // pred_fallthru
      _
    // Predicated region
    $region194: #{tpu_custom_call.1} parent=1 // pred_check
      _
    $region195: #{tpu_custom_call.1} parent=1 // pred_check_branch
      %475 = sbr.rel (0) target = $region197
    $region196: #{tpu_custom_call.1} parent=1 // pred_region
      %476 = dma.done [#allocation27], 16
    $region197: #{tpu_custom_call.1} parent=1 // pred_fallthru
      _
    // Predicated region
    $region198: #{tpu_custom_call.1} parent=1 // pred_check
      _
    $region199: #{tpu_custom_call.1} parent=1 // pred_check_branch
      %478 = sbr.rel (0) target = $region201
    $region200: #{tpu_custom_call.1} parent=1 // pred_region
      %479 = dma.done [#allocation27], 16
    $region201: #{tpu_custom_call.1} parent=1 // pred_fallthru
      _
    // Predicated region
    $region202: #{tpu_custom_call.1} parent=1 // pred_check
      _
    $region203: #{tpu_custom_call.1} parent=1 // pred_check_branch
      %481 = sbr.rel (0) target = $region205
    $region204: #{tpu_custom_call.1} parent=1 // pred_region
      %482 = dma.done [#allocation30], 16
    $region205: #{tpu_custom_call.1} parent=1 // pred_fallthru
      _
    // Predicated region
    $region206: #{tpu_custom_call.1} parent=1 // pred_check
      _
    $region207: #{tpu_custom_call.1} parent=1 // pred_check_branch
      %484 = sbr.rel (0) target = $region209
    $region208: #{tpu_custom_call.1} parent=1 // pred_region
      %485 = dma.done [#allocation30], 16
    $region209: #{tpu_custom_call.1} parent=1 // pred_fallthru
      _
    // Predicated region
    $region210: #{tpu_custom_call.1} parent=1 // pred_check
      _
    $region211: #{tpu_custom_call.1} parent=1 // pred_check_branch
      %487 = sbr.rel (0) target = $region213
    $region212: #{tpu_custom_call.1} parent=1 // pred_region
      %488 = dma.done [#allocation33], 512
    $region213: #{tpu_custom_call.1} parent=1 // pred_fallthru
      _
    // Predicated region
    $region214: #{tpu_custom_call.1} parent=1 // pred_check
      _
    $region215: #{tpu_custom_call.1} parent=1 // pred_check_branch
      %490 = sbr.rel (0) target = $region217
    $region216: #{tpu_custom_call.1} parent=1 // pred_region
      %491 = dma.done [#allocation33], 16
    $region217: #{tpu_custom_call.1} parent=1 // pred_fallthru
      _
    // Predicated region
    $region218: #{tpu_custom_call.1} parent=1 // pred_check
      _
    $region219: #{tpu_custom_call.1} parent=1 // pred_check_branch
      %493 = sbr.rel (0) target = $region221
    $region220: #{tpu_custom_call.1} parent=1 // pred_region
      %494 = dma.done [#allocation36], 16
    $region221: #{tpu_custom_call.1} parent=1 // pred_fallthru
      _
    // Predicated region
    $region222: #{tpu_custom_call.1} parent=1 // pred_check
      _
    $region223: #{tpu_custom_call.1} parent=1 // pred_check_branch
      %496 = sbr.rel (0) target = $region225
    $region224: #{tpu_custom_call.1} parent=1 // pred_region
      %497 = dma.done [#allocation36], 16
    $region225: #{tpu_custom_call.1} parent=1 // pred_fallthru
      _
    // Predicated region
    $region226: #{tpu_custom_call.1} parent=1 // pred_check
      _
    $region227: #{tpu_custom_call.1} parent=1 // pred_check_branch
      %499 = sbr.rel (0) target = $region229
    $region228: #{tpu_custom_call.1} parent=1 // pred_region
      %500 = dma.done [#allocation39], 512
    $region229: #{tpu_custom_call.1} parent=1 // pred_fallthru
      _
    // Predicated region
    $region230: #{tpu_custom_call.1} parent=1 // pred_check
      _
    $region231: #{tpu_custom_call.1} parent=1 // pred_check_branch
      %502 = sbr.rel (0) target = $region233
    $region232: #{tpu_custom_call.1} parent=1 // pred_region
      %503 = dma.done [#allocation39], 16
    $region233: #{tpu_custom_call.1} parent=1 // pred_fallthru
      _
    // Predicated region
    $region234: #{tpu_custom_call.1} parent=1 // pred_check
      _
    $region235: #{tpu_custom_call.1} parent=1 // pred_check_branch
      %505 = sbr.rel (0) target = $region237
    $region236: #{tpu_custom_call.1} parent=1 // pred_region
      %506 = dma.done [#allocation42], 16
    $region237: #{tpu_custom_call.1} parent=1 // pred_fallthru
      _
    // Predicated region
    $region238: #{tpu_custom_call.1} parent=1 // pred_check
      _
    $region239: #{tpu_custom_call.1} parent=1 // pred_check_branch
      %508 = sbr.rel (0) target = $region241
    $region240: #{tpu_custom_call.1} parent=1 // pred_region
      %509 = dma.done [#allocation42], 16
    $region241: #{tpu_custom_call.1} parent=1 // pred_fallthru
      _
    // Predicated region
    $region242: #{tpu_custom_call.1} parent=1 // pred_check
      _
    $region243: #{tpu_custom_call.1} parent=1 // pred_check_branch
      %511 = sbr.rel (0) target = $region245
    $region244: #{tpu_custom_call.1} parent=1 // pred_region
      %512 = dma.done [#allocation45], 512
    $region245: #{tpu_custom_call.1} parent=1 // pred_fallthru
      _
    // Predicated region
    $region246: #{tpu_custom_call.1} parent=1 // pred_check
      _
    $region247: #{tpu_custom_call.1} parent=1 // pred_check_branch
      %514 = sbr.rel (0) target = $region249
    $region248: #{tpu_custom_call.1} parent=1 // pred_region
      %515 = dma.done [#allocation45], 16
    $region249: #{tpu_custom_call.1} parent=1 // pred_fallthru
      _
    // Predicated region
    $region250: #{tpu_custom_call.1} parent=1 // pred_check
      _
    $region251: #{tpu_custom_call.1} parent=1 // pred_check_branch
      %517 = sbr.rel (0) target = $region253
    $region252: #{tpu_custom_call.1} parent=1 // pred_region
      %518 = dma.done [#allocation48], 512
    $region253: #{tpu_custom_call.1} parent=1 // pred_fallthru
      _
    // Predicated region
    $region254: #{tpu_custom_call.1} parent=1 // pred_check
      _
    $region255: #{tpu_custom_call.1} parent=1 // pred_check_branch
      %520 = sbr.rel (0) target = $region257
    $region256: #{tpu_custom_call.1} parent=1 // pred_region
      %521 = dma.done [#allocation48], 16
    $region257: #{tpu_custom_call.1} parent=1 // pred_fallthru
      _
    %v523 = vld [vmem:[#allocation2] sm:$0xf]
    %v524 = vld [vmem:[#allocation2 + $0x4] sm:$0xf]
    %v525 = vld [vmem:[#allocation2 + $0x8] sm:$0xf]
    %v526 = vld [vmem:[#allocation2 + $0xc] sm:$0xf]
    %v527 = vld [vmem:[#allocation2 + $0x10] sm:$0xf]
    %v528 = vld [vmem:[#allocation2 + $0x14] sm:$0xf]
    %v529 = vld [vmem:[#allocation2 + $0x18] sm:$0xf]
    %v530 = vld [vmem:[#allocation2 + $0x1c] sm:$0xf]
    %v531 = vld [vmem:[#allocation2 + $0x20] sm:$0xf]
    %v532 = vld [vmem:[#allocation2 + $0x24] sm:$0xf]
    %v533 = vld [vmem:[#allocation2 + $0x28] sm:$0xf]
    %v534 = vld [vmem:[#allocation2 + $0x2c] sm:$0xf]
    %v535 = vld [vmem:[#allocation2 + $0x30] sm:$0xf]
    %v536 = vld [vmem:[#allocation2 + $0x34] sm:$0xf]
    %v537 = vld [vmem:[#allocation2 + $0x38] sm:$0xf]
    %v538 = vld [vmem:[#allocation2 + $0x3c] sm:$0xf]
    %v539 = vld [vmem:[#allocation2 + $0x40] sm:$0xf]
    %v540 = vld [vmem:[#allocation2 + $0x44] sm:$0xf]
    %v541 = vld [vmem:[#allocation2 + $0x48] sm:$0xf]
    %v542 = vld [vmem:[#allocation2 + $0x4c] sm:$0xf]
    %v543 = vld [vmem:[#allocation2 + $0x50] sm:$0xf]
    %v544 = vld [vmem:[#allocation2 + $0x54] sm:$0xf]
    %v545 = vld [vmem:[#allocation2 + $0x58] sm:$0xf]
    %v546 = vld [vmem:[#allocation2 + $0x5c] sm:$0xf]
    %v547 = vld [vmem:[#allocation2 + $0x60] sm:$0xf]
    %v548 = vld [vmem:[#allocation2 + $0x64] sm:$0xf]
    %v549 = vld [vmem:[#allocation2 + $0x68] sm:$0xf]
    %v550 = vld [vmem:[#allocation2 + $0x6c] sm:$0xf]
    %v551 = vld [vmem:[#allocation2 + $0x70] sm:$0xf]
    %v552 = vld [vmem:[#allocation2 + $0x74] sm:$0xf]
    %v553 = vld [vmem:[#allocation2 + $0x78] sm:$0xf]
    %v554 = vld [vmem:[#allocation2 + $0x7c] sm:$0xf]
    %v555 = vld [vmem:[#allocation2 + $0x80] sm:$0xf]
    %v556 = vld [vmem:[#allocation2 + $0x84] sm:$0xf]
    %v557 = vld [vmem:[#allocation2 + $0x88] sm:$0xf]
    %v558 = vld [vmem:[#allocation2 + $0x8c] sm:$0xf]
    %v559 = vld [vmem:[#allocation2 + $0x90] sm:$0xf]
    %v560 = vld [vmem:[#allocation2 + $0x94] sm:$0xf]
    %v561 = vld [vmem:[#allocation2 + $0x98] sm:$0xf]
    %v562 = vld [vmem:[#allocation2 + $0x9c] sm:$0xf]
    %v563 = vld [vmem:[#allocation2 + $0xa0] sm:$0xf]
    %v564 = vld [vmem:[#allocation2 + $0xa4] sm:$0xf]
    %v565 = vld [vmem:[#allocation2 + $0xa8] sm:$0xf]
    %v566 = vld [vmem:[#allocation2 + $0xac] sm:$0xf]
    %v567 = vld [vmem:[#allocation2 + $0xb0] sm:$0xf]
    %v568 = vld [vmem:[#allocation2 + $0xb4] sm:$0xf]
    %v569 = vld [vmem:[#allocation2 + $0xb8] sm:$0xf]
    %v570 = vld [vmem:[#allocation2 + $0xbc] sm:$0xf]
    %v571 = vld [vmem:[#allocation2 + $0xc0] sm:$0xf]
    %v572 = vld [vmem:[#allocation2 + $0xc4] sm:$0xf]
    %v573 = vld [vmem:[#allocation2 + $0xc8] sm:$0xf]
    %v574 = vld [vmem:[#allocation2 + $0xcc] sm:$0xf]
    %v575 = vld [vmem:[#allocation2 + $0xd0] sm:$0xf]
    %v576 = vld [vmem:[#allocation2 + $0xd4] sm:$0xf]
    %v577 = vld [vmem:[#allocation2 + $0xd8] sm:$0xf]
    %v578 = vld [vmem:[#allocation2 + $0xdc] sm:$0xf]
    %v579 = vld [vmem:[#allocation2 + $0xe0] sm:$0xf]
    %v580 = vld [vmem:[#allocation2 + $0xe4] sm:$0xf]
    %v581 = vld [vmem:[#allocation2 + $0xe8] sm:$0xf]
    %v582 = vld [vmem:[#allocation2 + $0xec] sm:$0xf]
    %v583 = vld [vmem:[#allocation2 + $0xf0] sm:$0xf]
    %v584 = vld [vmem:[#allocation2 + $0xf4] sm:$0xf]
    %v585 = vld [vmem:[#allocation2 + $0xf8] sm:$0xf]
    %v586 = vld [vmem:[#allocation2 + $0xfc] sm:$0xf]
    %v587 = vld [vmem:[#allocation5] sm:$0xff]
    %v588 = vld [vmem:[#allocation5 + $0x8] sm:$0xff]
    %v589 = vld [vmem:[#allocation5 + $0x10] sm:$0xff]
    %v590 = vld [vmem:[#allocation5 + $0x18] sm:$0xff]
    %v591 = vld [vmem:[#allocation5 + $0x20] sm:$0xff]
    %v592 = vld [vmem:[#allocation5 + $0x28] sm:$0xff]
    %v593 = vld [vmem:[#allocation5 + $0x30] sm:$0xff]
    %v594 = vld [vmem:[#allocation5 + $0x38] sm:$0xff]
    %v595 = vld [vmem:[#allocation5 + $0x40] sm:$0xff]
    %v596 = vld [vmem:[#allocation5 + $0x48] sm:$0xff]
    %v597 = vld [vmem:[#allocation5 + $0x50] sm:$0xff]
    %v598 = vld [vmem:[#allocation5 + $0x58] sm:$0xff]
    %v599 = vld [vmem:[#allocation5 + $0x60] sm:$0xff]
    %v600 = vld [vmem:[#allocation5 + $0x68] sm:$0xff]
    %v601 = vld [vmem:[#allocation5 + $0x70] sm:$0xff]
    %v602 = vld [vmem:[#allocation5 + $0x78] sm:$0xff]
    %v603 = vld [vmem:[#allocation5 + $0x80] sm:$0xff]
    %v604 = vld [vmem:[#allocation5 + $0x88] sm:$0xff]
    %v605 = vld [vmem:[#allocation5 + $0x90] sm:$0xff]
    %v606 = vld [vmem:[#allocation5 + $0x98] sm:$0xff]
    %v607 = vld [vmem:[#allocation5 + $0xa0] sm:$0xff]
    %v608 = vld [vmem:[#allocation5 + $0xa8] sm:$0xff]
    %v609 = vld [vmem:[#allocation5 + $0xb0] sm:$0xff]
    %v610 = vld [vmem:[#allocation5 + $0xb8] sm:$0xff]
    %v611 = vld [vmem:[#allocation5 + $0xc0] sm:$0xff]
    %v612 = vld [vmem:[#allocation5 + $0xc8] sm:$0xff]
    %v613 = vld [vmem:[#allocation5 + $0xd0] sm:$0xff]
    %v614 = vld [vmem:[#allocation5 + $0xd8] sm:$0xff]
    %v615 = vld [vmem:[#allocation5 + $0xe0] sm:$0xff]
    %v616 = vld [vmem:[#allocation5 + $0xe8] sm:$0xff]
    %v617 = vld [vmem:[#allocation5 + $0xf0] sm:$0xff]
    %v618 = vld [vmem:[#allocation5 + $0xf8] sm:$0xff]
    %v651 = vunpack.c.l.b16 %v587
    %v652 = vunpack.c.h.b16 %v587
    %v653 = vunpack.c.l.b16 %v588
    %v654 = vunpack.c.h.b16 %v588
    %v655 = vunpack.c.l.b16 %v589
    %v656 = vunpack.c.h.b16 %v589
    %v657 = vunpack.c.l.b16 %v590
    %v658 = vunpack.c.h.b16 %v590
    %v659 = vunpack.c.l.b16 %v591
    %v660 = vunpack.c.h.b16 %v591
    %v661 = vunpack.c.l.b16 %v592
    %v662 = vunpack.c.h.b16 %v592
    %v663 = vunpack.c.l.b16 %v593
    %v664 = vunpack.c.h.b16 %v593
    %v665 = vunpack.c.l.b16 %v594
    %v666 = vunpack.c.h.b16 %v594
    %v667 = vunpack.c.l.b16 %v595
    %v668 = vunpack.c.h.b16 %v595
    %v669 = vunpack.c.l.b16 %v596
    %v670 = vunpack.c.h.b16 %v596
    %v671 = vunpack.c.l.b16 %v597
    %v672 = vunpack.c.h.b16 %v597
    %v673 = vunpack.c.l.b16 %v598
    %v674 = vunpack.c.h.b16 %v598
    %v675 = vunpack.c.l.b16 %v599
    %v676 = vunpack.c.h.b16 %v599
    %v677 = vunpack.c.l.b16 %v600
    %v678 = vunpack.c.h.b16 %v600
    %v679 = vunpack.c.l.b16 %v601
    %v680 = vunpack.c.h.b16 %v601
    %v681 = vunpack.c.l.b16 %v602
    %v682 = vunpack.c.h.b16 %v602
    %v683 = vunpack.c.l.b16 %v603
    %v684 = vunpack.c.h.b16 %v603
    %v685 = vunpack.c.l.b16 %v604
    %v686 = vunpack.c.h.b16 %v604
    %v687 = vunpack.c.l.b16 %v605
    %v688 = vunpack.c.h.b16 %v605
    %v689 = vunpack.c.l.b16 %v606
    %v690 = vunpack.c.h.b16 %v606
    %v691 = vunpack.c.l.b16 %v607
    %v692 = vunpack.c.h.b16 %v607
    %v693 = vunpack.c.l.b16 %v608
    %v694 = vunpack.c.h.b16 %v608
    %v695 = vunpack.c.l.b16 %v609
    %v696 = vunpack.c.h.b16 %v609
    %v697 = vunpack.c.l.b16 %v610
    %v698 = vunpack.c.h.b16 %v610
    %v699 = vunpack.c.l.b16 %v611
    %v700 = vunpack.c.h.b16 %v611
    %v701 = vunpack.c.l.b16 %v612
    %v702 = vunpack.c.h.b16 %v612
    %v703 = vunpack.c.l.b16 %v613
    %v704 = vunpack.c.h.b16 %v613
    %v705 = vunpack.c.l.b16 %v614
    %v706 = vunpack.c.h.b16 %v614
    %v707 = vunpack.c.l.b16 %v615
    %v708 = vunpack.c.h.b16 %v615
    %v709 = vunpack.c.l.b16 %v616
    %v710 = vunpack.c.h.b16 %v616
    %v711 = vunpack.c.l.b16 %v617
    %v712 = vunpack.c.h.b16 %v617
    %v713 = vunpack.c.l.b16 %v618
    %v714 = vunpack.c.h.b16 %v618
    %v715 = vpack.c.b16 %v655, %v651
    %v716 = vpack.c.b16 %v656, %v652
    %v717 = vpack.c.b16 %v657, %v653
    %v718 = vpack.c.b16 %v658, %v654
    %v719 = vpack.c.b16 %v663, %v659
    %v720 = vpack.c.b16 %v664, %v660
    %v721 = vpack.c.b16 %v665, %v661
    %v722 = vpack.c.b16 %v666, %v662
    %v723 = vpack.c.b16 %v671, %v667
    %v724 = vpack.c.b16 %v672, %v668
    %v725 = vpack.c.b16 %v673, %v669
    %v726 = vpack.c.b16 %v674, %v670
    %v727 = vpack.c.b16 %v679, %v675
    %v728 = vpack.c.b16 %v680, %v676
    %v729 = vpack.c.b16 %v681, %v677
    %v730 = vpack.c.b16 %v682, %v678
    %v731 = vpack.c.b16 %v687, %v683
    %v732 = vpack.c.b16 %v688, %v684
    %v733 = vpack.c.b16 %v689, %v685
    %v734 = vpack.c.b16 %v690, %v686
    %v735 = vpack.c.b16 %v695, %v691
    %v736 = vpack.c.b16 %v696, %v692
    %v737 = vpack.c.b16 %v697, %v693
    %v738 = vpack.c.b16 %v698, %v694
    %v739 = vpack.c.b16 %v703, %v699
    %v740 = vpack.c.b16 %v704, %v700
    %v741 = vpack.c.b16 %v705, %v701
    %v742 = vpack.c.b16 %v706, %v702
    %v743 = vpack.c.b16 %v711, %v707
    %v744 = vpack.c.b16 %v712, %v708
    %v745 = vpack.c.b16 %v713, %v709
    %v746 = vpack.c.b16 %v714, %v710
    %v843 = vunpack.c.l.b16 %v523
    %v844 = vunpack.c.l.b16 %v524
    %v845 = vunpack.c.l.b16 %v525
    %v846 = vunpack.c.l.b16 %v526
    %v847 = vunpack.c.l.b16 %v527
    %v848 = vunpack.c.l.b16 %v528
    %v849 = vunpack.c.l.b16 %v529
    %v850 = vunpack.c.l.b16 %v530
    %v851 = vunpack.c.l.b16 %v531
    %v852 = vunpack.c.l.b16 %v532
    %v853 = vunpack.c.l.b16 %v533
    %v854 = vunpack.c.l.b16 %v534
    %v855 = vunpack.c.l.b16 %v535
    %v856 = vunpack.c.l.b16 %v536
    %v857 = vunpack.c.l.b16 %v537
    %v858 = vunpack.c.l.b16 %v538
    %v859 = vunpack.c.l.b16 %v539
    %v860 = vunpack.c.l.b16 %v540
    %v861 = vunpack.c.l.b16 %v541
    %v862 = vunpack.c.l.b16 %v542
    %v863 = vunpack.c.l.b16 %v543
    %v864 = vunpack.c.l.b16 %v544
    %v865 = vunpack.c.l.b16 %v545
    %v866 = vunpack.c.l.b16 %v546
    %v867 = vunpack.c.l.b16 %v547
    %v868 = vunpack.c.l.b16 %v548
    %v869 = vunpack.c.l.b16 %v549
    %v870 = vunpack.c.l.b16 %v550
    %v871 = vunpack.c.l.b16 %v551
    %v872 = vunpack.c.l.b16 %v552
    %v873 = vunpack.c.l.b16 %v553
    %v874 = vunpack.c.l.b16 %v554
    %v875 = vunpack.c.l.b16 %v555
    %v876 = vunpack.c.l.b16 %v556
    %v877 = vunpack.c.l.b16 %v557
    %v878 = vunpack.c.l.b16 %v558
    %v879 = vunpack.c.l.b16 %v559
    %v880 = vunpack.c.l.b16 %v560
    %v881 = vunpack.c.l.b16 %v561
    %v882 = vunpack.c.l.b16 %v562
    %v883 = vunpack.c.l.b16 %v563
    %v884 = vunpack.c.l.b16 %v564
    %v885 = vunpack.c.l.b16 %v565
    %v886 = vunpack.c.l.b16 %v566
    %v887 = vunpack.c.l.b16 %v567
    %v888 = vunpack.c.l.b16 %v568
    %v889 = vunpack.c.l.b16 %v569
    %v890 = vunpack.c.l.b16 %v570
    %v891 = vunpack.c.l.b16 %v571
    %v892 = vunpack.c.l.b16 %v572
    %v893 = vunpack.c.l.b16 %v573
    %v894 = vunpack.c.l.b16 %v574
    %v895 = vunpack.c.l.b16 %v575
    %v896 = vunpack.c.l.b16 %v576
    %v897 = vunpack.c.l.b16 %v577
    %v898 = vunpack.c.l.b16 %v578
    %v899 = vunpack.c.l.b16 %v579
    %v900 = vunpack.c.l.b16 %v580
    %v901 = vunpack.c.l.b16 %v581
    %v902 = vunpack.c.l.b16 %v582
    %v903 = vunpack.c.l.b16 %v583
    %v904 = vunpack.c.l.b16 %v584
    %v905 = vunpack.c.l.b16 %v585
    %v906 = vunpack.c.l.b16 %v586
    %v907 = vpack.c.b16 %v844, %v843
    %v908 = vpack.c.b16 %v846, %v845
    %v909 = vpack.c.b16 %v848, %v847
    %v910 = vpack.c.b16 %v850, %v849
    %v911 = vpack.c.b16 %v852, %v851
    %v912 = vpack.c.b16 %v854, %v853
    %v913 = vpack.c.b16 %v856, %v855
    %v914 = vpack.c.b16 %v858, %v857
    %v915 = vpack.c.b16 %v860, %v859
    %v916 = vpack.c.b16 %v862, %v861
    %v917 = vpack.c.b16 %v864, %v863
    %v918 = vpack.c.b16 %v866, %v865
    %v919 = vpack.c.b16 %v868, %v867
    %v920 = vpack.c.b16 %v870, %v869
    %v921 = vpack.c.b16 %v872, %v871
    %v922 = vpack.c.b16 %v874, %v873
    %v923 = vpack.c.b16 %v876, %v875
    %v924 = vpack.c.b16 %v878, %v877
    %v925 = vpack.c.b16 %v880, %v879
    %v926 = vpack.c.b16 %v882, %v881
    %v927 = vpack.c.b16 %v884, %v883
    %v928 = vpack.c.b16 %v886, %v885
    %v929 = vpack.c.b16 %v888, %v887
    %v930 = vpack.c.b16 %v890, %v889
    %v931 = vpack.c.b16 %v892, %v891
    %v932 = vpack.c.b16 %v894, %v893
    %v933 = vpack.c.b16 %v896, %v895
    %v934 = vpack.c.b16 %v898, %v897
    %v935 = vpack.c.b16 %v900, %v899
    %v936 = vpack.c.b16 %v902, %v901
    %v937 = vpack.c.b16 %v904, %v903
    %v938 = vpack.c.b16 %v906, %v905
    %971 = vmatprep.subr.bf16.mxu0 0
    %972 = vmatpush1.bf16.msra.mxu0 %v907
    %973 = vmatprep.subr.bf16.mxu0 0
    %974 = vmatpush1.bf16.msra.mxu0 %v908
    %975 = vmatprep.subr.bf16.mxu0 0
    %976 = vmatpush1.bf16.msra.mxu0 %v909
    %977 = vmatprep.subr.bf16.mxu0 0
    %978 = vmatpush1.bf16.msra.mxu0 %v910
    %979 = vmatprep.subr.bf16.mxu0 0
    %980 = vmatpush1.bf16.msra.mxu0 %v911
    %981 = vmatprep.subr.bf16.mxu0 0
    %982 = vmatpush1.bf16.msra.mxu0 %v912
    %983 = vmatprep.subr.bf16.mxu0 0
    %984 = vmatpush1.bf16.msra.mxu0 %v913
    %985 = vmatprep.subr.bf16.mxu0 0
    %986 = vmatpush1.bf16.msra.mxu0 %v914
    %987 = vmatprep.subr.bf16.mxu0 0
    %988 = vmatpush1.bf16.msra.mxu0 %v915
    %989 = vmatprep.subr.bf16.mxu0 0
    %990 = vmatpush1.bf16.msra.mxu0 %v916
    %991 = vmatprep.subr.bf16.mxu0 0
    %992 = vmatpush1.bf16.msra.mxu0 %v917
    %993 = vmatprep.subr.bf16.mxu0 0
    %994 = vmatpush1.bf16.msra.mxu0 %v918
    %995 = vmatprep.subr.bf16.mxu0 0
    %996 = vmatpush1.bf16.msra.mxu0 %v919
    %997 = vmatprep.subr.bf16.mxu0 0
    %998 = vmatpush1.bf16.msra.mxu0 %v920
    %999 = vmatprep.subr.bf16.mxu0 0
    %1000 = vmatpush1.bf16.msra.mxu0 %v921
    %1001 = vmatprep.subr.bf16.mxu0 0
    %1002 = vmatpush1.bf16.msra.mxu0 %v922
    %1003 = vmatprep.mubr.bf16.mxu0 %v716
    %1004 = vmatmul.mubr.bf16.gmra.mrb[0].mxu0 %v715
    %v1005 = vpop.f32.mrb[0].mxu0
    %v1006 = vadd.f32 0.0, %v1005
    %v1007 = vpop.f32.mrb[0].mxu0
    %v1008 = vpop.f32.mrb[0].mxu0
    %v1009 = vadd.f32 0.0, %v1008
    %v1010 = vpop.f32.mrb[0].mxu0
    %1011 = vmatprep.mubr.bf16.mxu0 %v720
    %1012 = vmatmul.mubr.bf16.gmra.mrb[0].mxu0 %v719
    %v1013 = vpop.f32.mrb[0].mxu0
    %v1014 = vadd.f32 0.0, %v1013
    %v1015 = vpop.f32.mrb[0].mxu0
    %v1016 = vpop.f32.mrb[0].mxu0
    %v1017 = vadd.f32 0.0, %v1016
    %v1018 = vpop.f32.mrb[0].mxu0
    %1019 = vmatprep.mubr.bf16.mxu0 %v724
    %1020 = vmatmul.mubr.bf16.gmra.mrb[0].mxu0 %v723
    %v1021 = vpop.f32.mrb[0].mxu0
    %v1022 = vadd.f32 0.0, %v1021
    %v1023 = vpop.f32.mrb[0].mxu0
    %v1024 = vpop.f32.mrb[0].mxu0
    %v1025 = vadd.f32 0.0, %v1024
    %v1026 = vpop.f32.mrb[0].mxu0
    %1027 = vmatprep.mubr.bf16.mxu0 %v728
    %1028 = vmatmul.mubr.bf16.gmra.mrb[0].mxu0 %v727
    %v1029 = vpop.f32.mrb[0].mxu0
    %v1030 = vadd.f32 0.0, %v1029
    %v1031 = vpop.f32.mrb[0].mxu0
    %v1032 = vpop.f32.mrb[0].mxu0
    %v1033 = vadd.f32 0.0, %v1032
    %v1034 = vpop.f32.mrb[0].mxu0
    %1035 = vmatprep.mubr.bf16.mxu0 %v732
    %1036 = vmatmul.mubr.bf16.gmra.mrb[0].mxu0 %v731
    %v1037 = vpop.f32.mrb[0].mxu0
    %v1038 = vadd.f32 0.0, %v1037
    %v1039 = vpop.f32.mrb[0].mxu0
    %v1040 = vpop.f32.mrb[0].mxu0
    %v1041 = vadd.f32 0.0, %v1040
    %v1042 = vpop.f32.mrb[0].mxu0
    %1043 = vmatprep.mubr.bf16.mxu0 %v736
    %1044 = vmatmul.mubr.bf16.gmra.mrb[0].mxu0 %v735
    %v1045 = vpop.f32.mrb[0].mxu0
    %v1046 = vadd.f32 0.0, %v1045
    %v1047 = vpop.f32.mrb[0].mxu0
    %v1048 = vpop.f32.mrb[0].mxu0
    %v1049 = vadd.f32 0.0, %v1048
    %v1050 = vpop.f32.mrb[0].mxu0
    %1051 = vmatprep.mubr.bf16.mxu0 %v740
    %1052 = vmatmul.mubr.bf16.gmra.mrb[0].mxu0 %v739
    %v1053 = vpop.f32.mrb[0].mxu0
    %v1054 = vadd.f32 0.0, %v1053
    %v1055 = vpop.f32.mrb[0].mxu0
    %v1056 = vpop.f32.mrb[0].mxu0
    %v1057 = vadd.f32 0.0, %v1056
    %v1058 = vpop.f32.mrb[0].mxu0
    %1059 = vmatprep.mubr.bf16.mxu0 %v744
    %1060 = vmatmul.mubr.bf16.gmra.mrb[0].mxu0 %v743
    %v1061 = vpop.f32.mrb[0].mxu0
    %v1062 = vadd.f32 0.0, %v1061
    %v1063 = vpop.f32.mrb[0].mxu0
    %v1064 = vpop.f32.mrb[0].mxu0
    %v1065 = vadd.f32 0.0, %v1064
    %v1066 = vpop.f32.mrb[0].mxu0
    %1067 = vdwg.mxu0
    %1068 = vmatprep.subr.bf16.mxu0 0
    %1069 = vmatpush1.bf16.msra.mxu0 %v923
    %1070 = vmatprep.subr.bf16.mxu0 0
    %1071 = vmatpush1.bf16.msra.mxu0 %v924
    %1072 = vmatprep.subr.bf16.mxu0 0
    %1073 = vmatpush1.bf16.msra.mxu0 %v925
    %1074 = vmatprep.subr.bf16.mxu0 0
    %1075 = vmatpush1.bf16.msra.mxu0 %v926
    %1076 = vmatprep.subr.bf16.mxu0 0
    %1077 = vmatpush1.bf16.msra.mxu0 %v927
    %1078 = vmatprep.subr.bf16.mxu0 0
    %1079 = vmatpush1.bf16.msra.mxu0 %v928
    %1080 = vmatprep.subr.bf16.mxu0 0
    %1081 = vmatpush1.bf16.msra.mxu0 %v929
    %1082 = vmatprep.subr.bf16.mxu0 0
    %1083 = vmatpush1.bf16.msra.mxu0 %v930
    %1084 = vmatprep.subr.bf16.mxu0 0
    %1085 = vmatpush1.bf16.msra.mxu0 %v931
    %1086 = vmatprep.subr.bf16.mxu0 0
    %1087 = vmatpush1.bf16.msra.mxu0 %v932
    %1088 = vmatprep.subr.bf16.mxu0 0
    %1089 = vmatpush1.bf16.msra.mxu0 %v933
    %1090 = vmatprep.subr.bf16.mxu0 0
    %1091 = vmatpush1.bf16.msra.mxu0 %v934
    %1092 = vmatprep.subr.bf16.mxu0 0
    %1093 = vmatpush1.bf16.msra.mxu0 %v935
    %1094 = vmatprep.subr.bf16.mxu0 0
    %1095 = vmatpush1.bf16.msra.mxu0 %v936
    %1096 = vmatprep.subr.bf16.mxu0 0
    %1097 = vmatpush1.bf16.msra.mxu0 %v937
    %1098 = vmatprep.subr.bf16.mxu0 0
    %1099 = vmatpush1.bf16.msra.mxu0 %v938
    %1100 = vmatprep.mubr.bf16.mxu0 %v718
    %1101 = vmatmul.mubr.bf16.gmra.mrb[0].mxu0 %v717
    %v1102 = vpop.f32.mrb[0].mxu0
    %v1103 = vadd.f32 %v1006, %v1102
    %v1104 = vpop.f32.mrb[0].mxu0
    %v1105 = vpop.f32.mrb[0].mxu0
    %v1106 = vadd.f32 %v1009, %v1105
    %v1107 = vpop.f32.mrb[0].mxu0
    %1108 = vmatprep.mubr.bf16.mxu0 %v722
    %1109 = vmatmul.mubr.bf16.gmra.mrb[0].mxu0 %v721
    %v1110 = vpop.f32.mrb[0].mxu0
    %v1111 = vadd.f32 %v1014, %v1110
    %v1112 = vpop.f32.mrb[0].mxu0
    %v1113 = vpop.f32.mrb[0].mxu0
    %v1114 = vadd.f32 %v1017, %v1113
    %v1115 = vpop.f32.mrb[0].mxu0
    %1116 = vmatprep.mubr.bf16.mxu0 %v726
    %1117 = vmatmul.mubr.bf16.gmra.mrb[0].mxu0 %v725
    %v1118 = vpop.f32.mrb[0].mxu0
    %v1119 = vadd.f32 %v1022, %v1118
    %v1120 = vpop.f32.mrb[0].mxu0
    %v1121 = vpop.f32.mrb[0].mxu0
    %v1122 = vadd.f32 %v1025, %v1121
    %v1123 = vpop.f32.mrb[0].mxu0
    %1124 = vmatprep.mubr.bf16.mxu0 %v730
    %1125 = vmatmul.mubr.bf16.gmra.mrb[0].mxu0 %v729
    %v1126 = vpop.f32.mrb[0].mxu0
    %v1127 = vadd.f32 %v1030, %v1126
    %v1128 = vpop.f32.mrb[0].mxu0
    %v1129 = vpop.f32.mrb[0].mxu0
    %v1130 = vadd.f32 %v1033, %v1129
    %v1131 = vpop.f32.mrb[0].mxu0
    %1132 = vmatprep.mubr.bf16.mxu0 %v734
    %1133 = vmatmul.mubr.bf16.gmra.mrb[0].mxu0 %v733
    %v1134 = vpop.f32.mrb[0].mxu0
    %v1135 = vadd.f32 %v1038, %v1134
    %v1136 = vpop.f32.mrb[0].mxu0
    %v1137 = vpop.f32.mrb[0].mxu0
    %v1138 = vadd.f32 %v1041, %v1137
    %v1139 = vpop.f32.mrb[0].mxu0
    %1140 = vmatprep.mubr.bf16.mxu0 %v738
    %1141 = vmatmul.mubr.bf16.gmra.mrb[0].mxu0 %v737
    %v1142 = vpop.f32.mrb[0].mxu0
    %v1143 = vadd.f32 %v1046, %v1142
    %v1144 = vpop.f32.mrb[0].mxu0
    %v1145 = vpop.f32.mrb[0].mxu0
    %v1146 = vadd.f32 %v1049, %v1145
    %v1147 = vpop.f32.mrb[0].mxu0
    %1148 = vmatprep.mubr.bf16.mxu0 %v742
    %1149 = vmatmul.mubr.bf16.gmra.mrb[0].mxu0 %v741
    %v1150 = vpop.f32.mrb[0].mxu0
    %v1151 = vadd.f32 %v1054, %v1150
    %v1152 = vpop.f32.mrb[0].mxu0
    %v1153 = vpop.f32.mrb[0].mxu0
    %v1154 = vadd.f32 %v1057, %v1153
    %v1155 = vpop.f32.mrb[0].mxu0
    %1156 = vmatprep.mubr.bf16.mxu0 %v746
    %1157 = vmatmul.mubr.bf16.gmra.mrb[0].mxu0 %v745
    %v1158 = vpop.f32.mrb[0].mxu0
    %v1159 = vadd.f32 %v1062, %v1158
    %v1160 = vpop.f32.mrb[0].mxu0
    %v1161 = vpop.f32.mrb[0].mxu0
    %v1162 = vadd.f32 %v1065, %v1161
    %v1163 = vpop.f32.mrb[0].mxu0
    %1164 = vdwg.mxu0
    %v1165 = vpack.c.bf16 %v1106, %v1103
    %v1166 = vpack.c.bf16 %v1114, %v1111
    %v1167 = vpack.c.bf16 %v1122, %v1119
    %v1168 = vpack.c.bf16 %v1130, %v1127
    %v1169 = vpack.c.bf16 %v1138, %v1135
    %v1170 = vpack.c.bf16 %v1146, %v1143
    %v1171 = vpack.c.bf16 %v1154, %v1151
    %v1172 = vpack.c.bf16 %v1162, %v1159
    %v1173 = vld [vmem:[#allocation7] sm:$0xf]
    %v1174 = vld [vmem:[#allocation7 + $0x4] sm:$0xf]
    %v1175 = vld [vmem:[#allocation7 + $0x8] sm:$0xf]
    %v1176 = vld [vmem:[#allocation7 + $0xc] sm:$0xf]
    %v1177 = vld [vmem:[#allocation7 + $0x10] sm:$0xf]
    %v1178 = vld [vmem:[#allocation7 + $0x14] sm:$0xf]
    %v1179 = vld [vmem:[#allocation7 + $0x18] sm:$0xf]
    %v1180 = vld [vmem:[#allocation7 + $0x1c] sm:$0xf]
    %v1181 = vld [vmem:[#allocation7 + $0x20] sm:$0xf]
    %v1182 = vld [vmem:[#allocation7 + $0x24] sm:$0xf]
    %v1183 = vld [vmem:[#allocation7 + $0x28] sm:$0xf]
    %v1184 = vld [vmem:[#allocation7 + $0x2c] sm:$0xf]
    %v1185 = vld [vmem:[#allocation7 + $0x30] sm:$0xf]
    %v1186 = vld [vmem:[#allocation7 + $0x34] sm:$0xf]
    %v1187 = vld [vmem:[#allocation7 + $0x38] sm:$0xf]
    %v1188 = vld [vmem:[#allocation7 + $0x3c] sm:$0xf]
    %s1189 = scalar_lea.vmem [#allocation5], 256
    %v1190 = vld [vmem:[%s1189] sm:$0xff]
    %v1191 = vld [vmem:[%s1189 + $0x8] sm:$0xff]
    %v1192 = vld [vmem:[%s1189 + $0x10] sm:$0xff]
    %v1193 = vld [vmem:[%s1189 + $0x18] sm:$0xff]
    %v1194 = vld [vmem:[%s1189 + $0x20] sm:$0xff]
    %v1195 = vld [vmem:[%s1189 + $0x28] sm:$0xff]
    %v1196 = vld [vmem:[%s1189 + $0x30] sm:$0xff]
    %v1197 = vld [vmem:[%s1189 + $0x38] sm:$0xff]
    %v1198 = vld [vmem:[%s1189 + $0x40] sm:$0xff]
    %v1199 = vld [vmem:[%s1189 + $0x48] sm:$0xff]
    %v1200 = vld [vmem:[%s1189 + $0x50] sm:$0xff]
    %v1201 = vld [vmem:[%s1189 + $0x58] sm:$0xff]
    %v1202 = vld [vmem:[%s1189 + $0x60] sm:$0xff]
    %v1203 = vld [vmem:[%s1189 + $0x68] sm:$0xff]
    %v1204 = vld [vmem:[%s1189 + $0x70] sm:$0xff]
    %v1205 = vld [vmem:[%s1189 + $0x78] sm:$0xff]
    %v1206 = vld [vmem:[%s1189 + $0x80] sm:$0xff]
    %v1207 = vld [vmem:[%s1189 + $0x88] sm:$0xff]
    %v1208 = vld [vmem:[%s1189 + $0x90] sm:$0xff]
    %v1209 = vld [vmem:[%s1189 + $0x98] sm:$0xff]
    %v1210 = vld [vmem:[%s1189 + $0xa0] sm:$0xff]
    %v1211 = vld [vmem:[%s1189 + $0xa8] sm:$0xff]
    %v1212 = vld [vmem:[%s1189 + $0xb0] sm:$0xff]
    %v1213 = vld [vmem:[%s1189 + $0xb8] sm:$0xff]
    %v1214 = vld [vmem:[%s1189 + $0xc0] sm:$0xff]
    %v1215 = vld [vmem:[%s1189 + $0xc8] sm:$0xff]
    %v1216 = vld [vmem:[%s1189 + $0xd0] sm:$0xff]
    %v1217 = vld [vmem:[%s1189 + $0xd8] sm:$0xff]
    %v1218 = vld [vmem:[%s1189 + $0xe0] sm:$0xff]
    %v1219 = vld [vmem:[%s1189 + $0xe8] sm:$0xff]
    %v1220 = vld [vmem:[%s1189 + $0xf0] sm:$0xff]
    %v1221 = vld [vmem:[%s1189 + $0xf8] sm:$0xff]
    %v1254 = vunpack.c.l.b16 %v1190
    %v1255 = vunpack.c.h.b16 %v1190
    %v1256 = vunpack.c.l.b16 %v1191
    %v1257 = vunpack.c.h.b16 %v1191
    %v1258 = vunpack.c.l.b16 %v1192
    %v1259 = vunpack.c.h.b16 %v1192
    %v1260 = vunpack.c.l.b16 %v1193
    %v1261 = vunpack.c.h.b16 %v1193
    %v1262 = vunpack.c.l.b16 %v1194
    %v1263 = vunpack.c.h.b16 %v1194
    %v1264 = vunpack.c.l.b16 %v1195
    %v1265 = vunpack.c.h.b16 %v1195
    %v1266 = vunpack.c.l.b16 %v1196
    %v1267 = vunpack.c.h.b16 %v1196
    %v1268 = vunpack.c.l.b16 %v1197
    %v1269 = vunpack.c.h.b16 %v1197
    %v1270 = vunpack.c.l.b16 %v1198
    %v1271 = vunpack.c.h.b16 %v1198
    %v1272 = vunpack.c.l.b16 %v1199
    %v1273 = vunpack.c.h.b16 %v1199
    %v1274 = vunpack.c.l.b16 %v1200
    %v1275 = vunpack.c.h.b16 %v1200
    %v1276 = vunpack.c.l.b16 %v1201
    %v1277 = vunpack.c.h.b16 %v1201
    %v1278 = vunpack.c.l.b16 %v1202
    %v1279 = vunpack.c.h.b16 %v1202
    %v1280 = vunpack.c.l.b16 %v1203
    %v1281 = vunpack.c.h.b16 %v1203
    %v1282 = vunpack.c.l.b16 %v1204
    %v1283 = vunpack.c.h.b16 %v1204
    %v1284 = vunpack.c.l.b16 %v1205
    %v1285 = vunpack.c.h.b16 %v1205
    %v1286 = vunpack.c.l.b16 %v1206
    %v1287 = vunpack.c.h.b16 %v1206
    %v1288 = vunpack.c.l.b16 %v1207
    %v1289 = vunpack.c.h.b16 %v1207
    %v1290 = vunpack.c.l.b16 %v1208
    %v1291 = vunpack.c.h.b16 %v1208
    %v1292 = vunpack.c.l.b16 %v1209
    %v1293 = vunpack.c.h.b16 %v1209
    %v1294 = vunpack.c.l.b16 %v1210
    %v1295 = vunpack.c.h.b16 %v1210
    %v1296 = vunpack.c.l.b16 %v1211
    %v1297 = vunpack.c.h.b16 %v1211
    %v1298 = vunpack.c.l.b16 %v1212
    %v1299 = vunpack.c.h.b16 %v1212
    %v1300 = vunpack.c.l.b16 %v1213
    %v1301 = vunpack.c.h.b16 %v1213
    %v1302 = vunpack.c.l.b16 %v1214
    %v1303 = vunpack.c.h.b16 %v1214
    %v1304 = vunpack.c.l.b16 %v1215
    %v1305 = vunpack.c.h.b16 %v1215
    %v1306 = vunpack.c.l.b16 %v1216
    %v1307 = vunpack.c.h.b16 %v1216
    %v1308 = vunpack.c.l.b16 %v1217
    %v1309 = vunpack.c.h.b16 %v1217
    %v1310 = vunpack.c.l.b16 %v1218
    %v1311 = vunpack.c.h.b16 %v1218
    %v1312 = vunpack.c.l.b16 %v1219
    %v1313 = vunpack.c.h.b16 %v1219
    %v1314 = vunpack.c.l.b16 %v1220
    %v1315 = vunpack.c.h.b16 %v1220
    %v1316 = vunpack.c.l.b16 %v1221
    %v1317 = vunpack.c.h.b16 %v1221
    %v1318 = vpack.c.b16 %v1258, %v1254
    %v1319 = vpack.c.b16 %v1259, %v1255
    %v1320 = vpack.c.b16 %v1260, %v1256
    %v1321 = vpack.c.b16 %v1261, %v1257
    %v1322 = vpack.c.b16 %v1266, %v1262
    %v1323 = vpack.c.b16 %v1267, %v1263
    %v1324 = vpack.c.b16 %v1268, %v1264
    %v1325 = vpack.c.b16 %v1269, %v1265
    %v1326 = vpack.c.b16 %v1274, %v1270
    %v1327 = vpack.c.b16 %v1275, %v1271
    %v1328 = vpack.c.b16 %v1276, %v1272
    %v1329 = vpack.c.b16 %v1277, %v1273
    %v1330 = vpack.c.b16 %v1282, %v1278
    %v1331 = vpack.c.b16 %v1283, %v1279
    %v1332 = vpack.c.b16 %v1284, %v1280
    %v1333 = vpack.c.b16 %v1285, %v1281
    %v1334 = vpack.c.b16 %v1290, %v1286
    %v1335 = vpack.c.b16 %v1291, %v1287
    %v1336 = vpack.c.b16 %v1292, %v1288
    %v1337 = vpack.c.b16 %v1293, %v1289
    %v1338 = vpack.c.b16 %v1298, %v1294
    %v1339 = vpack.c.b16 %v1299, %v1295
    %v1340 = vpack.c.b16 %v1300, %v1296
    %v1341 = vpack.c.b16 %v1301, %v1297
    %v1342 = vpack.c.b16 %v1306, %v1302
    %v1343 = vpack.c.b16 %v1307, %v1303
    %v1344 = vpack.c.b16 %v1308, %v1304
    %v1345 = vpack.c.b16 %v1309, %v1305
    %v1346 = vpack.c.b16 %v1314, %v1310
    %v1347 = vpack.c.b16 %v1315, %v1311
    %v1348 = vpack.c.b16 %v1316, %v1312
    %v1349 = vpack.c.b16 %v1317, %v1313
    %1382 = vmatprep.subr.bf16.mxu0 0
    %1383 = vmatpush1.bf16.msra.mxu0 %v907
    %1384 = vmatprep.subr.bf16.mxu0 0
    %1385 = vmatpush1.bf16.msra.mxu0 %v908
    %1386 = vmatprep.subr.bf16.mxu0 0
    %1387 = vmatpush1.bf16.msra.mxu0 %v909
    %1388 = vmatprep.subr.bf16.mxu0 0
    %1389 = vmatpush1.bf16.msra.mxu0 %v910
    %1390 = vmatprep.subr.bf16.mxu0 0
    %1391 = vmatpush1.bf16.msra.mxu0 %v911
    %1392 = vmatprep.subr.bf16.mxu0 0
    %1393 = vmatpush1.bf16.msra.mxu0 %v912
    %1394 = vmatprep.subr.bf16.mxu0 0
    %1395 = vmatpush1.bf16.msra.mxu0 %v913
    %1396 = vmatprep.subr.bf16.mxu0 0
    %1397 = vmatpush1.bf16.msra.mxu0 %v914
    %1398 = vmatprep.subr.bf16.mxu0 0
    %1399 = vmatpush1.bf16.msra.mxu0 %v915
    %1400 = vmatprep.subr.bf16.mxu0 0
    %1401 = vmatpush1.bf16.msra.mxu0 %v916
    %1402 = vmatprep.subr.bf16.mxu0 0
    %1403 = vmatpush1.bf16.msra.mxu0 %v917
    %1404 = vmatprep.subr.bf16.mxu0 0
    %1405 = vmatpush1.bf16.msra.mxu0 %v918
    %1406 = vmatprep.subr.bf16.mxu0 0
    %1407 = vmatpush1.bf16.msra.mxu0 %v919
    %1408 = vmatprep.subr.bf16.mxu0 0
    %1409 = vmatpush1.bf16.msra.mxu0 %v920
    %1410 = vmatprep.subr.bf16.mxu0 0
    %1411 = vmatpush1.bf16.msra.mxu0 %v921
    %1412 = vmatprep.subr.bf16.mxu0 0
    %1413 = vmatpush1.bf16.msra.mxu0 %v922
    %1414 = vmatprep.mubr.bf16.mxu0 %v1319
    %1415 = vmatmul.mubr.bf16.gmra.mrb[0].mxu0 %v1318
    %v1416 = vpop.f32.mrb[0].mxu0
    %v1417 = vadd.f32 0.0, %v1416
    %v1418 = vpop.f32.mrb[0].mxu0
    %v1419 = vpop.f32.mrb[0].mxu0
    %v1420 = vadd.f32 0.0, %v1419
    %v1421 = vpop.f32.mrb[0].mxu0
    %1422 = vmatprep.mubr.bf16.mxu0 %v1323
    %1423 = vmatmul.mubr.bf16.gmra.mrb[0].mxu0 %v1322
    %v1424 = vpop.f32.mrb[0].mxu0
    %v1425 = vadd.f32 0.0, %v1424
    %v1426 = vpop.f32.mrb[0].mxu0
    %v1427 = vpop.f32.mrb[0].mxu0
    %v1428 = vadd.f32 0.0, %v1427
    %v1429 = vpop.f32.mrb[0].mxu0
    %1430 = vmatprep.mubr.bf16.mxu0 %v1327
    %1431 = vmatmul.mubr.bf16.gmra.mrb[0].mxu0 %v1326
    %v1432 = vpop.f32.mrb[0].mxu0
    %v1433 = vadd.f32 0.0, %v1432
    %v1434 = vpop.f32.mrb[0].mxu0
    %v1435 = vpop.f32.mrb[0].mxu0
    %v1436 = vadd.f32 0.0, %v1435
    %v1437 = vpop.f32.mrb[0].mxu0
    %1438 = vmatprep.mubr.bf16.mxu0 %v1331
    %1439 = vmatmul.mubr.bf16.gmra.mrb[0].mxu0 %v1330
    %v1440 = vpop.f32.mrb[0].mxu0
    %v1441 = vadd.f32 0.0, %v1440
    %v1442 = vpop.f32.mrb[0].mxu0
    %v1443 = vpop.f32.mrb[0].mxu0
    %v1444 = vadd.f32 0.0, %v1443
    %v1445 = vpop.f32.mrb[0].mxu0
    %1446 = vmatprep.mubr.bf16.mxu0 %v1335
    %1447 = vmatmul.mubr.bf16.gmra.mrb[0].mxu0 %v1334
    %v1448 = vpop.f32.mrb[0].mxu0
    %v1449 = vadd.f32 0.0, %v1448
    %v1450 = vpop.f32.mrb[0].mxu0
    %v1451 = vpop.f32.mrb[0].mxu0
    %v1452 = vadd.f32 0.0, %v1451
    %v1453 = vpop.f32.mrb[0].mxu0
    %1454 = vmatprep.mubr.bf16.mxu0 %v1339
    %1455 = vmatmul.mubr.bf16.gmra.mrb[0].mxu0 %v1338
    %v1456 = vpop.f32.mrb[0].mxu0
    %v1457 = vadd.f32 0.0, %v1456
    %v1458 = vpop.f32.mrb[0].mxu0
    %v1459 = vpop.f32.mrb[0].mxu0
    %v1460 = vadd.f32 0.0, %v1459
    %v1461 = vpop.f32.mrb[0].mxu0
    %1462 = vmatprep.mubr.bf16.mxu0 %v1343
    %1463 = vmatmul.mubr.bf16.gmra.mrb[0].mxu0 %v1342
    %v1464 = vpop.f32.mrb[0].mxu0
    %v1465 = vadd.f32 0.0, %v1464
    %v1466 = vpop.f32.mrb[0].mxu0
    %v1467 = vpop.f32.mrb[0].mxu0
    %v1468 = vadd.f32 0.0, %v1467
    %v1469 = vpop.f32.mrb[0].mxu0
    %1470 = vmatprep.mubr.bf16.mxu0 %v1347
    %1471 = vmatmul.mubr.bf16.gmra.mrb[0].mxu0 %v1346
    %v1472 = vpop.f32.mrb[0].mxu0
    %v1473 = vadd.f32 0.0, %v1472
    %v1474 = vpop.f32.mrb[0].mxu0
    %v1475 = vpop.f32.mrb[0].mxu0
    %v1476 = vadd.f32 0.0, %v1475
    %v1477 = vpop.f32.mrb[0].mxu0
    %1478 = vdwg.mxu0
    %1479 = vmatprep.subr.bf16.mxu0 0
    %1480 = vmatpush1.bf16.msra.mxu0 %v923
    %1481 = vmatprep.subr.bf16.mxu0 0
    %1482 = vmatpush1.bf16.msra.mxu0 %v924
    %1483 = vmatprep.subr.bf16.mxu0 0
    %1484 = vmatpush1.bf16.msra.mxu0 %v925
    %1485 = vmatprep.subr.bf16.mxu0 0
    %1486 = vmatpush1.bf16.msra.mxu0 %v926
    %1487 = vmatprep.subr.bf16.mxu0 0
    %1488 = vmatpush1.bf16.msra.mxu0 %v927
    %1489 = vmatprep.subr.bf16.mxu0 0
    %1490 = vmatpush1.bf16.msra.mxu0 %v928
    %1491 = vmatprep.subr.bf16.mxu0 0
    %1492 = vmatpush1.bf16.msra.mxu0 %v929
    %1493 = vmatprep.subr.bf16.mxu0 0
    %1494 = vmatpush1.bf16.msra.mxu0 %v930
    %1495 = vmatprep.subr.bf16.mxu0 0
    %1496 = vmatpush1.bf16.msra.mxu0 %v931
    %1497 = vmatprep.subr.bf16.mxu0 0
    %1498 = vmatpush1.bf16.msra.mxu0 %v932
    %1499 = vmatprep.subr.bf16.mxu0 0
    %1500 = vmatpush1.bf16.msra.mxu0 %v933
    %1501 = vmatprep.subr.bf16.mxu0 0
    %1502 = vmatpush1.bf16.msra.mxu0 %v934
    %1503 = vmatprep.subr.bf16.mxu0 0
    %1504 = vmatpush1.bf16.msra.mxu0 %v935
    %1505 = vmatprep.subr.bf16.mxu0 0
    %1506 = vmatpush1.bf16.msra.mxu0 %v936
    %1507 = vmatprep.subr.bf16.mxu0 0
    %1508 = vmatpush1.bf16.msra.mxu0 %v937
    %1509 = vmatprep.subr.bf16.mxu0 0
    %1510 = vmatpush1.bf16.msra.mxu0 %v938
    %1511 = vmatprep.mubr.bf16.mxu0 %v1321
    %1512 = vmatmul.mubr.bf16.gmra.mrb[0].mxu0 %v1320
    %v1513 = vpop.f32.mrb[0].mxu0
    %v1514 = vadd.f32 %v1417, %v1513
    %v1515 = vpop.f32.mrb[0].mxu0
    %v1516 = vpop.f32.mrb[0].mxu0
    %v1517 = vadd.f32 %v1420, %v1516
    %v1518 = vpop.f32.mrb[0].mxu0
    %1519 = vmatprep.mubr.bf16.mxu0 %v1325
    %1520 = vmatmul.mubr.bf16.gmra.mrb[0].mxu0 %v1324
    %v1521 = vpop.f32.mrb[0].mxu0
    %v1522 = vadd.f32 %v1425, %v1521
    %v1523 = vpop.f32.mrb[0].mxu0
    %v1524 = vpop.f32.mrb[0].mxu0
    %v1525 = vadd.f32 %v1428, %v1524
    %v1526 = vpop.f32.mrb[0].mxu0
    %1527 = vmatprep.mubr.bf16.mxu0 %v1329
    %1528 = vmatmul.mubr.bf16.gmra.mrb[0].mxu0 %v1328
    %v1529 = vpop.f32.mrb[0].mxu0
    %v1530 = vadd.f32 %v1433, %v1529
    %v1531 = vpop.f32.mrb[0].mxu0
    %v1532 = vpop.f32.mrb[0].mxu0
    %v1533 = vadd.f32 %v1436, %v1532
    %v1534 = vpop.f32.mrb[0].mxu0
    %1535 = vmatprep.mubr.bf16.mxu0 %v1333
    %1536 = vmatmul.mubr.bf16.gmra.mrb[0].mxu0 %v1332
    %v1537 = vpop.f32.mrb[0].mxu0
    %v1538 = vadd.f32 %v1441, %v1537
    %v1539 = vpop.f32.mrb[0].mxu0
    %v1540 = vpop.f32.mrb[0].mxu0
    %v1541 = vadd.f32 %v1444, %v1540
    %v1542 = vpop.f32.mrb[0].mxu0
    %1543 = vmatprep.mubr.bf16.mxu0 %v1337
    %1544 = vmatmul.mubr.bf16.gmra.mrb[0].mxu0 %v1336
    %v1545 = vpop.f32.mrb[0].mxu0
    %v1546 = vadd.f32 %v1449, %v1545
    %v1547 = vpop.f32.mrb[0].mxu0
    %v1548 = vpop.f32.mrb[0].mxu0
    %v1549 = vadd.f32 %v1452, %v1548
    %v1550 = vpop.f32.mrb[0].mxu0
    %1551 = vmatprep.mubr.bf16.mxu0 %v1341
    %1552 = vmatmul.mubr.bf16.gmra.mrb[0].mxu0 %v1340
    %v1553 = vpop.f32.mrb[0].mxu0
    %v1554 = vadd.f32 %v1457, %v1553
    %v1555 = vpop.f32.mrb[0].mxu0
    %v1556 = vpop.f32.mrb[0].mxu0
    %v1557 = vadd.f32 %v1460, %v1556
    %v1558 = vpop.f32.mrb[0].mxu0
    %1559 = vmatprep.mubr.bf16.mxu0 %v1345
    %1560 = vmatmul.mubr.bf16.gmra.mrb[0].mxu0 %v1344
    %v1561 = vpop.f32.mrb[0].mxu0
    %v1562 = vadd.f32 %v1465, %v1561
    %v1563 = vpop.f32.mrb[0].mxu0
    %v1564 = vpop.f32.mrb[0].mxu0
    %v1565 = vadd.f32 %v1468, %v1564
    %v1566 = vpop.f32.mrb[0].mxu0
    %1567 = vmatprep.mubr.bf16.mxu0 %v1349
    %1568 = vmatmul.mubr.bf16.gmra.mrb[0].mxu0 %v1348
    %v1569 = vpop.f32.mrb[0].mxu0
    %v1570 = vadd.f32 %v1473, %v1569
    %v1571 = vpop.f32.mrb[0].mxu0
    %v1572 = vpop.f32.mrb[0].mxu0
    %v1573 = vadd.f32 %v1476, %v1572
    %v1574 = vpop.f32.mrb[0].mxu0
    %1575 = vdwg.mxu0
    %v1576 = vpack.c.bf16 %v1517, %v1514
    %v1577 = vpack.c.bf16 %v1525, %v1522
    %v1578 = vpack.c.bf16 %v1533, %v1530
    %v1579 = vpack.c.bf16 %v1541, %v1538
    %v1580 = vpack.c.bf16 %v1549, %v1546
    %v1581 = vpack.c.bf16 %v1557, %v1554
    %v1582 = vpack.c.bf16 %v1565, %v1562
    %v1583 = vpack.c.bf16 %v1573, %v1570
    %s1584 = scalar_lea.vmem [#allocation7], 64
    %v1585 = vld [vmem:[%s1584] sm:$0xf]
    %v1586 = vld [vmem:[%s1584 + $0x4] sm:$0xf]
    %v1587 = vld [vmem:[%s1584 + $0x8] sm:$0xf]
    %v1588 = vld [vmem:[%s1584 + $0xc] sm:$0xf]
    %v1589 = vld [vmem:[%s1584 + $0x10] sm:$0xf]
    %v1590 = vld [vmem:[%s1584 + $0x14] sm:$0xf]
    %v1591 = vld [vmem:[%s1584 + $0x18] sm:$0xf]
    %v1592 = vld [vmem:[%s1584 + $0x1c] sm:$0xf]
    %v1593 = vld [vmem:[%s1584 + $0x20] sm:$0xf]
    %v1594 = vld [vmem:[%s1584 + $0x24] sm:$0xf]
    %v1595 = vld [vmem:[%s1584 + $0x28] sm:$0xf]
    %v1596 = vld [vmem:[%s1584 + $0x2c] sm:$0xf]
    %v1597 = vld [vmem:[%s1584 + $0x30] sm:$0xf]
    %v1598 = vld [vmem:[%s1584 + $0x34] sm:$0xf]
    %v1599 = vld [vmem:[%s1584 + $0x38] sm:$0xf]
    %v1600 = vld [vmem:[%s1584 + $0x3c] sm:$0xf]
    %v1617 = vunpack.c.l.b16 %v1585
    %v1618 = vunpack.c.l.b16 %v1586
    %v1619 = vunpack.c.l.b16 %v1587
    %v1620 = vunpack.c.l.b16 %v1588
    %v1621 = vunpack.c.l.b16 %v1589
    %v1622 = vunpack.c.l.b16 %v1590
    %v1623 = vunpack.c.l.b16 %v1591
    %v1624 = vunpack.c.l.b16 %v1592
    %v1625 = vunpack.c.l.b16 %v1593
    %v1626 = vunpack.c.l.b16 %v1594
    %v1627 = vunpack.c.l.b16 %v1595
    %v1628 = vunpack.c.l.b16 %v1596
    %v1629 = vunpack.c.l.b16 %v1597
    %v1630 = vunpack.c.l.b16 %v1598
    %v1631 = vunpack.c.l.b16 %v1599
    %v1632 = vunpack.c.l.b16 %v1600
    %v1633 = vpack.c.b16 %v1618, %v1617
    %v1634 = vpack.c.b16 %v1620, %v1619
    %v1635 = vpack.c.b16 %v1622, %v1621
    %v1636 = vpack.c.b16 %v1624, %v1623
    %v1637 = vpack.c.b16 %v1626, %v1625
    %v1638 = vpack.c.b16 %v1628, %v1627
    %v1639 = vpack.c.b16 %v1630, %v1629
    %v1640 = vpack.c.b16 %v1632, %v1631
    %1649 = vmatprep.subr.bf16.mxu0 0
    %1650 = vmatpush1.bf16.msra.mxu0 %v1633
    %1651 = vmatprep.subr.bf16.mxu0 0
    %1652 = vmatpush1.bf16.msra.mxu0 %v1634
    %1653 = vmatprep.subr.bf16.mxu0 0
    %1654 = vmatpush1.bf16.msra.mxu0 %v1635
    %1655 = vmatprep.subr.bf16.mxu0 0
    %1656 = vmatpush1.bf16.msra.mxu0 %v1636
    %1657 = vmatprep.subr.bf16.mxu0 0
    %1658 = vmatpush1.bf16.msra.mxu0 %v1637
    %1659 = vmatprep.subr.bf16.mxu0 0
    %1660 = vmatpush1.bf16.msra.mxu0 %v1638
    %1661 = vmatprep.subr.bf16.mxu0 0
    %1662 = vmatpush1.bf16.msra.mxu0 %v1639
    %1663 = vmatprep.subr.bf16.mxu0 0
    %1664 = vmatpush1.bf16.msra.mxu0 %v1640
    %1665 = vmatprep.subr.bf16.mxu0 0
    %1666 = vmatpush1.bf16.msra.mxu0 0
    %1667 = vmatprep.subr.bf16.mxu0 0
    %1668 = vmatpush1.bf16.msra.mxu0 0
    %1669 = vmatprep.subr.bf16.mxu0 0
    %1670 = vmatpush1.bf16.msra.mxu0 0
    %1671 = vmatprep.subr.bf16.mxu0 0
    %1672 = vmatpush1.bf16.msra.mxu0 0
    %1673 = vmatprep.subr.bf16.mxu0 0
    %1674 = vmatpush1.bf16.msra.mxu0 0
    %1675 = vmatprep.subr.bf16.mxu0 0
    %1676 = vmatpush1.bf16.msra.mxu0 0
    %1677 = vmatprep.subr.bf16.mxu0 0
    %1678 = vmatpush1.bf16.msra.mxu0 0
    %1679 = vmatprep.subr.bf16.mxu0 0
    %1680 = vmatpush1.bf16.msra.mxu0 0
    %1681 = vmatprep.mubr.bf16.mxu0 0
    %1682 = vmatmul.mubr.bf16.gmra.mrb[0].mxu0 %v1576
    %v1683 = vpop.f32.mrb[0].mxu0
    %v1684 = vadd.f32 0.0, %v1683
    %v1685 = vpop.f32.mrb[0].mxu0
    %v1686 = vpop.f32.mrb[0].mxu0
    %v1687 = vadd.f32 0.0, %v1686
    %v1688 = vpop.f32.mrb[0].mxu0
    %1689 = vmatprep.mubr.bf16.mxu0 0
    %1690 = vmatmul.mubr.bf16.gmra.mrb[0].mxu0 %v1577
    %v1691 = vpop.f32.mrb[0].mxu0
    %v1692 = vadd.f32 0.0, %v1691
    %v1693 = vpop.f32.mrb[0].mxu0
    %v1694 = vpop.f32.mrb[0].mxu0
    %v1695 = vadd.f32 0.0, %v1694
    %v1696 = vpop.f32.mrb[0].mxu0
    %1697 = vmatprep.mubr.bf16.mxu0 0
    %1698 = vmatmul.mubr.bf16.gmra.mrb[0].mxu0 %v1578
    %v1699 = vpop.f32.mrb[0].mxu0
    %v1700 = vadd.f32 0.0, %v1699
    %v1701 = vpop.f32.mrb[0].mxu0
    %v1702 = vpop.f32.mrb[0].mxu0
    %v1703 = vadd.f32 0.0, %v1702
    %v1704 = vpop.f32.mrb[0].mxu0
    %1705 = vmatprep.mubr.bf16.mxu0 0
    %1706 = vmatmul.mubr.bf16.gmra.mrb[0].mxu0 %v1579
    %v1707 = vpop.f32.mrb[0].mxu0
    %v1708 = vadd.f32 0.0, %v1707
    %v1709 = vpop.f32.mrb[0].mxu0
    %v1710 = vpop.f32.mrb[0].mxu0
    %v1711 = vadd.f32 0.0, %v1710
    %v1712 = vpop.f32.mrb[0].mxu0
    %1713 = vmatprep.mubr.bf16.mxu0 0
    %1714 = vmatmul.mubr.bf16.gmra.mrb[0].mxu0 %v1580
    %v1715 = vpop.f32.mrb[0].mxu0
    %v1716 = vadd.f32 0.0, %v1715
    %v1717 = vpop.f32.mrb[0].mxu0
    %v1718 = vpop.f32.mrb[0].mxu0
    %v1719 = vadd.f32 0.0, %v1718
    %v1720 = vpop.f32.mrb[0].mxu0
    %1721 = vmatprep.mubr.bf16.mxu0 0
    %1722 = vmatmul.mubr.bf16.gmra.mrb[0].mxu0 %v1581
    %v1723 = vpop.f32.mrb[0].mxu0
    %v1724 = vadd.f32 0.0, %v1723
    %v1725 = vpop.f32.mrb[0].mxu0
    %v1726 = vpop.f32.mrb[0].mxu0
    %v1727 = vadd.f32 0.0, %v1726
    %v1728 = vpop.f32.mrb[0].mxu0
    %1729 = vmatprep.mubr.bf16.mxu0 0
    %1730 = vmatmul.mubr.bf16.gmra.mrb[0].mxu0 %v1582
    %v1731 = vpop.f32.mrb[0].mxu0
    %v1732 = vadd.f32 0.0, %v1731
    %v1733 = vpop.f32.mrb[0].mxu0
    %v1734 = vpop.f32.mrb[0].mxu0
    %v1735 = vadd.f32 0.0, %v1734
    %v1736 = vpop.f32.mrb[0].mxu0
    %1737 = vmatprep.mubr.bf16.mxu0 0
    %1738 = vmatmul.mubr.bf16.gmra.mrb[0].mxu0 %v1583
    %v1739 = vpop.f32.mrb[0].mxu0
    %v1740 = vadd.f32 0.0, %v1739
    %v1741 = vpop.f32.mrb[0].mxu0
    %v1742 = vpop.f32.mrb[0].mxu0
    %v1743 = vadd.f32 0.0, %v1742
    %v1744 = vpop.f32.mrb[0].mxu0
    %1745 = vdwg.mxu0
    %v1762 = vunpack.c.l.b16 %v1173
    %v1763 = vunpack.c.l.b16 %v1174
    %v1764 = vunpack.c.l.b16 %v1175
    %v1765 = vunpack.c.l.b16 %v1176
    %v1766 = vunpack.c.l.b16 %v1177
    %v1767 = vunpack.c.l.b16 %v1178
    %v1768 = vunpack.c.l.b16 %v1179
    %v1769 = vunpack.c.l.b16 %v1180
    %v1770 = vunpack.c.l.b16 %v1181
    %v1771 = vunpack.c.l.b16 %v1182
    %v1772 = vunpack.c.l.b16 %v1183
    %v1773 = vunpack.c.l.b16 %v1184
    %v1774 = vunpack.c.l.b16 %v1185
    %v1775 = vunpack.c.l.b16 %v1186
    %v1776 = vunpack.c.l.b16 %v1187
    %v1777 = vunpack.c.l.b16 %v1188
    %v1778 = vpack.c.b16 %v1763, %v1762
    %v1779 = vpack.c.b16 %v1765, %v1764
    %v1780 = vpack.c.b16 %v1767, %v1766
    %v1781 = vpack.c.b16 %v1769, %v1768
    %v1782 = vpack.c.b16 %v1771, %v1770
    %v1783 = vpack.c.b16 %v1773, %v1772
    %v1784 = vpack.c.b16 %v1775, %v1774
    %v1785 = vpack.c.b16 %v1777, %v1776
    %1794 = vmatprep.subr.bf16.mxu0 0
    %1795 = vmatpush1.bf16.msra.mxu0 %v1778
    %1796 = vmatprep.subr.bf16.mxu0 0
    %1797 = vmatpush1.bf16.msra.mxu0 %v1779
    %1798 = vmatprep.subr.bf16.mxu0 0
    %1799 = vmatpush1.bf16.msra.mxu0 %v1780
    %1800 = vmatprep.subr.bf16.mxu0 0
    %1801 = vmatpush1.bf16.msra.mxu0 %v1781
    %1802 = vmatprep.subr.bf16.mxu0 0
    %1803 = vmatpush1.bf16.msra.mxu0 %v1782
    %1804 = vmatprep.subr.bf16.mxu0 0
    %1805 = vmatpush1.bf16.msra.mxu0 %v1783
    %1806 = vmatprep.subr.bf16.mxu0 0
    %1807 = vmatpush1.bf16.msra.mxu0 %v1784
    %1808 = vmatprep.subr.bf16.mxu0 0
    %1809 = vmatpush1.bf16.msra.mxu0 %v1785
    %1810 = vmatprep.subr.bf16.mxu0 0
    %1811 = vmatpush1.bf16.msra.mxu0 0
    %1812 = vmatprep.subr.bf16.mxu0 0
    %1813 = vmatpush1.bf16.msra.mxu0 0
    %1814 = vmatprep.subr.bf16.mxu0 0
    %1815 = vmatpush1.bf16.msra.mxu0 0
    %1816 = vmatprep.subr.bf16.mxu0 0
    %1817 = vmatpush1.bf16.msra.mxu0 0
    %1818 = vmatprep.subr.bf16.mxu0 0
    %1819 = vmatpush1.bf16.msra.mxu0 0
    %1820 = vmatprep.subr.bf16.mxu0 0
    %1821 = vmatpush1.bf16.msra.mxu0 0
    %1822 = vmatprep.subr.bf16.mxu0 0
    %1823 = vmatpush1.bf16.msra.mxu0 0
    %1824 = vmatprep.subr.bf16.mxu0 0
    %1825 = vmatpush1.bf16.msra.mxu0 0
    %1826 = vmatprep.mubr.bf16.mxu0 0
    %1827 = vmatmul.mubr.bf16.gmra.mrb[0].mxu0 %v1165
    %v1828 = vpop.f32.mrb[0].mxu0
    %v1829 = vadd.f32 %v1684, %v1828
    %v1830 = vpop.f32.mrb[0].mxu0
    %v1831 = vpop.f32.mrb[0].mxu0
    %v1832 = vadd.f32 %v1687, %v1831
    %v1833 = vpop.f32.mrb[0].mxu0
    %1834 = vmatprep.mubr.bf16.mxu0 0
    %1835 = vmatmul.mubr.bf16.gmra.mrb[0].mxu0 %v1166
    %v1836 = vpop.f32.mrb[0].mxu0
    %v1837 = vadd.f32 %v1692, %v1836
    %v1838 = vpop.f32.mrb[0].mxu0
    %v1839 = vpop.f32.mrb[0].mxu0
    %v1840 = vadd.f32 %v1695, %v1839
    %v1841 = vpop.f32.mrb[0].mxu0
    %1842 = vmatprep.mubr.bf16.mxu0 0
    %1843 = vmatmul.mubr.bf16.gmra.mrb[0].mxu0 %v1167
    %v1844 = vpop.f32.mrb[0].mxu0
    %v1845 = vadd.f32 %v1700, %v1844
    %v1846 = vpop.f32.mrb[0].mxu0
    %v1847 = vpop.f32.mrb[0].mxu0
    %v1848 = vadd.f32 %v1703, %v1847
    %v1849 = vpop.f32.mrb[0].mxu0
    %1850 = vmatprep.mubr.bf16.mxu0 0
    %1851 = vmatmul.mubr.bf16.gmra.mrb[0].mxu0 %v1168
    %v1852 = vpop.f32.mrb[0].mxu0
    %v1853 = vadd.f32 %v1708, %v1852
    %v1854 = vpop.f32.mrb[0].mxu0
    %v1855 = vpop.f32.mrb[0].mxu0
    %v1856 = vadd.f32 %v1711, %v1855
    %v1857 = vpop.f32.mrb[0].mxu0
    %1858 = vmatprep.mubr.bf16.mxu0 0
    %1859 = vmatmul.mubr.bf16.gmra.mrb[0].mxu0 %v1169
    %v1860 = vpop.f32.mrb[0].mxu0
    %v1861 = vadd.f32 %v1716, %v1860
    %v1862 = vpop.f32.mrb[0].mxu0
    %v1863 = vpop.f32.mrb[0].mxu0
    %v1864 = vadd.f32 %v1719, %v1863
    %v1865 = vpop.f32.mrb[0].mxu0
    %1866 = vmatprep.mubr.bf16.mxu0 0
    %1867 = vmatmul.mubr.bf16.gmra.mrb[0].mxu0 %v1170
    %v1868 = vpop.f32.mrb[0].mxu0
    %v1869 = vadd.f32 %v1724, %v1868
    %v1870 = vpop.f32.mrb[0].mxu0
    %v1871 = vpop.f32.mrb[0].mxu0
    %v1872 = vadd.f32 %v1727, %v1871
    %v1873 = vpop.f32.mrb[0].mxu0
    %1874 = vmatprep.mubr.bf16.mxu0 0
    %1875 = vmatmul.mubr.bf16.gmra.mrb[0].mxu0 %v1171
    %v1876 = vpop.f32.mrb[0].mxu0
    %v1877 = vadd.f32 %v1732, %v1876
    %v1878 = vpop.f32.mrb[0].mxu0
    %v1879 = vpop.f32.mrb[0].mxu0
    %v1880 = vadd.f32 %v1735, %v1879
    %v1881 = vpop.f32.mrb[0].mxu0
    %1882 = vmatprep.mubr.bf16.mxu0 0
    %1883 = vmatmul.mubr.bf16.gmra.mrb[0].mxu0 %v1172
    %v1884 = vpop.f32.mrb[0].mxu0
    %v1885 = vadd.f32 %v1740, %v1884
    %v1886 = vpop.f32.mrb[0].mxu0
    %v1887 = vpop.f32.mrb[0].mxu0
    %v1888 = vadd.f32 %v1743, %v1887
    %v1889 = vpop.f32.mrb[0].mxu0
    %1890 = vdwg.mxu0
    %s1891 = scalar_lea.vmem [#allocation5], 512
    %v1892 = vld [vmem:[%s1891] sm:$0xff]
    %v1893 = vld [vmem:[%s1891 + $0x8] sm:$0xff]
    %v1894 = vld [vmem:[%s1891 + $0x10] sm:$0xff]
    %v1895 = vld [vmem:[%s1891 + $0x18] sm:$0xff]
    %v1896 = vld [vmem:[%s1891 + $0x20] sm:$0xff]
    %v1897 = vld [vmem:[%s1891 + $0x28] sm:$0xff]
    %v1898 = vld [vmem:[%s1891 + $0x30] sm:$0xff]
    %v1899 = vld [vmem:[%s1891 + $0x38] sm:$0xff]
    %v1900 = vld [vmem:[%s1891 + $0x40] sm:$0xff]
    %v1901 = vld [vmem:[%s1891 + $0x48] sm:$0xff]
    %v1902 = vld [vmem:[%s1891 + $0x50] sm:$0xff]
    %v1903 = vld [vmem:[%s1891 + $0x58] sm:$0xff]
    %v1904 = vld [vmem:[%s1891 + $0x60] sm:$0xff]
    %v1905 = vld [vmem:[%s1891 + $0x68] sm:$0xff]
    %v1906 = vld [vmem:[%s1891 + $0x70] sm:$0xff]
    %v1907 = vld [vmem:[%s1891 + $0x78] sm:$0xff]
    %v1908 = vld [vmem:[%s1891 + $0x80] sm:$0xff]
    %v1909 = vld [vmem:[%s1891 + $0x88] sm:$0xff]
    %v1910 = vld [vmem:[%s1891 + $0x90] sm:$0xff]
    %v1911 = vld [vmem:[%s1891 + $0x98] sm:$0xff]
    %v1912 = vld [vmem:[%s1891 + $0xa0] sm:$0xff]
    %v1913 = vld [vmem:[%s1891 + $0xa8] sm:$0xff]
    %v1914 = vld [vmem:[%s1891 + $0xb0] sm:$0xff]
    %v1915 = vld [vmem:[%s1891 + $0xb8] sm:$0xff]
    %v1916 = vld [vmem:[%s1891 + $0xc0] sm:$0xff]
    %v1917 = vld [vmem:[%s1891 + $0xc8] sm:$0xff]
    %v1918 = vld [vmem:[%s1891 + $0xd0] sm:$0xff]
    %v1919 = vld [vmem:[%s1891 + $0xd8] sm:$0xff]
    %v1920 = vld [vmem:[%s1891 + $0xe0] sm:$0xff]
    %v1921 = vld [vmem:[%s1891 + $0xe8] sm:$0xff]
    %v1922 = vld [vmem:[%s1891 + $0xf0] sm:$0xff]
    %v1923 = vld [vmem:[%s1891 + $0xf8] sm:$0xff]
    %v1956 = vunpack.c.l.b16 %v1892
    %v1957 = vunpack.c.h.b16 %v1892
    %v1958 = vunpack.c.l.b16 %v1893
    %v1959 = vunpack.c.h.b16 %v1893
    %v1960 = vunpack.c.l.b16 %v1894
    %v1961 = vunpack.c.h.b16 %v1894
    %v1962 = vunpack.c.l.b16 %v1895
    %v1963 = vunpack.c.h.b16 %v1895
    %v1964 = vunpack.c.l.b16 %v1896
    %v1965 = vunpack.c.h.b16 %v1896
    %v1966 = vunpack.c.l.b16 %v1897
    %v1967 = vunpack.c.h.b16 %v1897
    %v1968 = vunpack.c.l.b16 %v1898
    %v1969 = vunpack.c.h.b16 %v1898
    %v1970 = vunpack.c.l.b16 %v1899
    %v1971 = vunpack.c.h.b16 %v1899
    %v1972 = vunpack.c.l.b16 %v1900
    %v1973 = vunpack.c.h.b16 %v1900
    %v1974 = vunpack.c.l.b16 %v1901
    %v1975 = vunpack.c.h.b16 %v1901
    %v1976 = vunpack.c.l.b16 %v1902
    %v1977 = vunpack.c.h.b16 %v1902
    %v1978 = vunpack.c.l.b16 %v1903
    %v1979 = vunpack.c.h.b16 %v1903
    %v1980 = vunpack.c.l.b16 %v1904
    %v1981 = vunpack.c.h.b16 %v1904
    %v1982 = vunpack.c.l.b16 %v1905
    %v1983 = vunpack.c.h.b16 %v1905
    %v1984 = vunpack.c.l.b16 %v1906
    %v1985 = vunpack.c.h.b16 %v1906
    %v1986 = vunpack.c.l.b16 %v1907
    %v1987 = vunpack.c.h.b16 %v1907
    %v1988 = vunpack.c.l.b16 %v1908
    %v1989 = vunpack.c.h.b16 %v1908
    %v1990 = vunpack.c.l.b16 %v1909
    %v1991 = vunpack.c.h.b16 %v1909
    %v1992 = vunpack.c.l.b16 %v1910
    %v1993 = vunpack.c.h.b16 %v1910
    %v1994 = vunpack.c.l.b16 %v1911
    %v1995 = vunpack.c.h.b16 %v1911
    %v1996 = vunpack.c.l.b16 %v1912
    %v1997 = vunpack.c.h.b16 %v1912
    %v1998 = vunpack.c.l.b16 %v1913
    %v1999 = vunpack.c.h.b16 %v1913
    %v2000 = vunpack.c.l.b16 %v1914
    %v2001 = vunpack.c.h.b16 %v1914
    %v2002 = vunpack.c.l.b16 %v1915
    %v2003 = vunpack.c.h.b16 %v1915
    %v2004 = vunpack.c.l.b16 %v1916
    %v2005 = vunpack.c.h.b16 %v1916
    %v2006 = vunpack.c.l.b16 %v1917
    %v2007 = vunpack.c.h.b16 %v1917
    %v2008 = vunpack.c.l.b16 %v1918
    %v2009 = vunpack.c.h.b16 %v1918
    %v2010 = vunpack.c.l.b16 %v1919
    %v2011 = vunpack.c.h.b16 %v1919
    %v2012 = vunpack.c.l.b16 %v1920
    %v2013 = vunpack.c.h.b16 %v1920
    %v2014 = vunpack.c.l.b16 %v1921
    %v2015 = vunpack.c.h.b16 %v1921
    %v2016 = vunpack.c.l.b16 %v1922
    %v2017 = vunpack.c.h.b16 %v1922
    %v2018 = vunpack.c.l.b16 %v1923
    %v2019 = vunpack.c.h.b16 %v1923
    %v2020 = vpack.c.b16 %v1960, %v1956
    %v2021 = vpack.c.b16 %v1961, %v1957
    %v2022 = vpack.c.b16 %v1962, %v1958
    %v2023 = vpack.c.b16 %v1963, %v1959
    %v2024 = vpack.c.b16 %v1968, %v1964
    %v2025 = vpack.c.b16 %v1969, %v1965
    %v2026 = vpack.c.b16 %v1970, %v1966
    %v2027 = vpack.c.b16 %v1971, %v1967
    %v2028 = vpack.c.b16 %v1976, %v1972
    %v2029 = vpack.c.b16 %v1977, %v1973
    %v2030 = vpack.c.b16 %v1978, %v1974
    %v2031 = vpack.c.b16 %v1979, %v1975
    %v2032 = vpack.c.b16 %v1984, %v1980
    %v2033 = vpack.c.b16 %v1985, %v1981
    %v2034 = vpack.c.b16 %v1986, %v1982
    %v2035 = vpack.c.b16 %v1987, %v1983
    %v2036 = vpack.c.b16 %v1992, %v1988
    %v2037 = vpack.c.b16 %v1993, %v1989
    %v2038 = vpack.c.b16 %v1994, %v1990
    %v2039 = vpack.c.b16 %v1995, %v1991
    %v2040 = vpack.c.b16 %v2000, %v1996
    %v2041 = vpack.c.b16 %v2001, %v1997
    %v2042 = vpack.c.b16 %v2002, %v1998
    %v2043 = vpack.c.b16 %v2003, %v1999
    %v2044 = vpack.c.b16 %v2008, %v2004
    %v2045 = vpack.c.b16 %v2009, %v2005
    %v2046 = vpack.c.b16 %v2010, %v2006
    %v2047 = vpack.c.b16 %v2011, %v2007
    %v2048 = vpack.c.b16 %v2016, %v2012
    %v2049 = vpack.c.b16 %v2017, %v2013
    %v2050 = vpack.c.b16 %v2018, %v2014
    %v2051 = vpack.c.b16 %v2019, %v2015
    %2084 = vmatprep.subr.bf16.mxu0 0
    %2085 = vmatpush1.bf16.msra.mxu0 %v907
    %2086 = vmatprep.subr.bf16.mxu0 0
    %2087 = vmatpush1.bf16.msra.mxu0 %v908
    %2088 = vmatprep.subr.bf16.mxu0 0
    %2089 = vmatpush1.bf16.msra.mxu0 %v909
    %2090 = vmatprep.subr.bf16.mxu0 0
    %2091 = vmatpush1.bf16.msra.mxu0 %v910
    %2092 = vmatprep.subr.bf16.mxu0 0
    %2093 = vmatpush1.bf16.msra.mxu0 %v911
    %2094 = vmatprep.subr.bf16.mxu0 0
    %2095 = vmatpush1.bf16.msra.mxu0 %v912
    %2096 = vmatprep.subr.bf16.mxu0 0
    %2097 = vmatpush1.bf16.msra.mxu0 %v913
    %2098 = vmatprep.subr.bf16.mxu0 0
    %2099 = vmatpush1.bf16.msra.mxu0 %v914
    %2100 = vmatprep.subr.bf16.mxu0 0
    %2101 = vmatpush1.bf16.msra.mxu0 %v915
    %2102 = vmatprep.subr.bf16.mxu0 0
    %2103 = vmatpush1.bf16.msra.mxu0 %v916
    %2104 = vmatprep.subr.bf16.mxu0 0
    %2105 = vmatpush1.bf16.msra.mxu0 %v917
    %2106 = vmatprep.subr.bf16.mxu0 0
    %2107 = vmatpush1.bf16.msra.mxu0 %v918
    %2108 = vmatprep.subr.bf16.mxu0 0
    %2109 = vmatpush1.bf16.msra.mxu0 %v919
    %2110 = vmatprep.subr.bf16.mxu0 0
    %2111 = vmatpush1.bf16.msra.mxu0 %v920
    %2112 = vmatprep.subr.bf16.mxu0 0
    %2113 = vmatpush1.bf16.msra.mxu0 %v921
    %2114 = vmatprep.subr.bf16.mxu0 0
    %2115 = vmatpush1.bf16.msra.mxu0 %v922
    %2116 = vmatprep.mubr.bf16.mxu0 %v2021
    %2117 = vmatmul.mubr.bf16.gmra.mrb[0].mxu0 %v2020
    %v2118 = vpop.f32.mrb[0].mxu0
    %v2119 = vadd.f32 0.0, %v2118
    %v2120 = vpop.f32.mrb[0].mxu0
    %v2121 = vpop.f32.mrb[0].mxu0
    %v2122 = vadd.f32 0.0, %v2121
    %v2123 = vpop.f32.mrb[0].mxu0
    %2124 = vmatprep.mubr.bf16.mxu0 %v2025
    %2125 = vmatmul.mubr.bf16.gmra.mrb[0].mxu0 %v2024
    %v2126 = vpop.f32.mrb[0].mxu0
    %v2127 = vadd.f32 0.0, %v2126
    %v2128 = vpop.f32.mrb[0].mxu0
    %v2129 = vpop.f32.mrb[0].mxu0
    %v2130 = vadd.f32 0.0, %v2129
    %v2131 = vpop.f32.mrb[0].mxu0
    %2132 = vmatprep.mubr.bf16.mxu0 %v2029
    %2133 = vmatmul.mubr.bf16.gmra.mrb[0].mxu0 %v2028
    %v2134 = vpop.f32.mrb[0].mxu0
    %v2135 = vadd.f32 0.0, %v2134
    %v2136 = vpop.f32.mrb[0].mxu0
    %v2137 = vpop.f32.mrb[0].mxu0
    %v2138 = vadd.f32 0.0, %v2137
    %v2139 = vpop.f32.mrb[0].mxu0
    %2140 = vmatprep.mubr.bf16.mxu0 %v2033
    %2141 = vmatmul.mubr.bf16.gmra.mrb[0].mxu0 %v2032
    %v2142 = vpop.f32.mrb[0].mxu0
    %v2143 = vadd.f32 0.0, %v2142
    %v2144 = vpop.f32.mrb[0].mxu0
    %v2145 = vpop.f32.mrb[0].mxu0
    %v2146 = vadd.f32 0.0, %v2145
    %v2147 = vpop.f32.mrb[0].mxu0
    %2148 = vmatprep.mubr.bf16.mxu0 %v2037
    %2149 = vmatmul.mubr.bf16.gmra.mrb[0].mxu0 %v2036
    %v2150 = vpop.f32.mrb[0].mxu0
    %v2151 = vadd.f32 0.0, %v2150
    %v2152 = vpop.f32.mrb[0].mxu0
    %v2153 = vpop.f32.mrb[0].mxu0
    %v2154 = vadd.f32 0.0, %v2153
    %v2155 = vpop.f32.mrb[0].mxu0
    %2156 = vmatprep.mubr.bf16.mxu0 %v2041
    %2157 = vmatmul.mubr.bf16.gmra.mrb[0].mxu0 %v2040
    %v2158 = vpop.f32.mrb[0].mxu0
    %v2159 = vadd.f32 0.0, %v2158
    %v2160 = vpop.f32.mrb[0].mxu0
    %v2161 = vpop.f32.mrb[0].mxu0
    %v2162 = vadd.f32 0.0, %v2161
    %v2163 = vpop.f32.mrb[0].mxu0
    %2164 = vmatprep.mubr.bf16.mxu0 %v2045
    %2165 = vmatmul.mubr.bf16.gmra.mrb[0].mxu0 %v2044
    %v2166 = vpop.f32.mrb[0].mxu0
    %v2167 = vadd.f32 0.0, %v2166
    %v2168 = vpop.f32.mrb[0].mxu0
    %v2169 = vpop.f32.mrb[0].mxu0
    %v2170 = vadd.f32 0.0, %v2169
    %v2171 = vpop.f32.mrb[0].mxu0
    %2172 = vmatprep.mubr.bf16.mxu0 %v2049
    %2173 = vmatmul.mubr.bf16.gmra.mrb[0].mxu0 %v2048
    %v2174 = vpop.f32.mrb[0].mxu0
    %v2175 = vadd.f32 0.0, %v2174
    %v2176 = vpop.f32.mrb[0].mxu0
    %v2177 = vpop.f32.mrb[0].mxu0
    %v2178 = vadd.f32 0.0, %v2177
    %v2179 = vpop.f32.mrb[0].mxu0
    %2180 = vdwg.mxu0
    %2181 = vmatprep.subr.bf16.mxu0 0
    %2182 = vmatpush1.bf16.msra.mxu0 %v923
    %2183 = vmatprep.subr.bf16.mxu0 0
    %2184 = vmatpush1.bf16.msra.mxu0 %v924
    %2185 = vmatprep.subr.bf16.mxu0 0
    %2186 = vmatpush1.bf16.msra.mxu0 %v925
    %2187 = vmatprep.subr.bf16.mxu0 0
    %2188 = vmatpush1.bf16.msra.mxu0 %v926
    %2189 = vmatprep.subr.bf16.mxu0 0
    %2190 = vmatpush1.bf16.msra.mxu0 %v927
    %2191 = vmatprep.subr.bf16.mxu0 0
    %2192 = vmatpush1.bf16.msra.mxu0 %v928
    %2193 = vmatprep.subr.bf16.mxu0 0
    %2194 = vmatpush1.bf16.msra.mxu0 %v929
    %2195 = vmatprep.subr.bf16.mxu0 0
    %2196 = vmatpush1.bf16.msra.mxu0 %v930
    %2197 = vmatprep.subr.bf16.mxu0 0
    %2198 = vmatpush1.bf16.msra.mxu0 %v931
    %2199 = vmatprep.subr.bf16.mxu0 0
    %2200 = vmatpush1.bf16.msra.mxu0 %v932
    %2201 = vmatprep.subr.bf16.mxu0 0
    %2202 = vmatpush1.bf16.msra.mxu0 %v933
    %2203 = vmatprep.subr.bf16.mxu0 0
    %2204 = vmatpush1.bf16.msra.mxu0 %v934
    %2205 = vmatprep.subr.bf16.mxu0 0
    %2206 = vmatpush1.bf16.msra.mxu0 %v935
    %2207 = vmatprep.subr.bf16.mxu0 0
    %2208 = vmatpush1.bf16.msra.mxu0 %v936
    %2209 = vmatprep.subr.bf16.mxu0 0
    %2210 = vmatpush1.bf16.msra.mxu0 %v937
    %2211 = vmatprep.subr.bf16.mxu0 0
    %2212 = vmatpush1.bf16.msra.mxu0 %v938
    %2213 = vmatprep.mubr.bf16.mxu0 %v2023
    %2214 = vmatmul.mubr.bf16.gmra.mrb[0].mxu0 %v2022
    %v2215 = vpop.f32.mrb[0].mxu0
    %v2216 = vadd.f32 %v2119, %v2215
    %v2217 = vpop.f32.mrb[0].mxu0
    %v2218 = vpop.f32.mrb[0].mxu0
    %v2219 = vadd.f32 %v2122, %v2218
    %v2220 = vpop.f32.mrb[0].mxu0
    %2221 = vmatprep.mubr.bf16.mxu0 %v2027
    %2222 = vmatmul.mubr.bf16.gmra.mrb[0].mxu0 %v2026
    %v2223 = vpop.f32.mrb[0].mxu0
    %v2224 = vadd.f32 %v2127, %v2223
    %v2225 = vpop.f32.mrb[0].mxu0
    %v2226 = vpop.f32.mrb[0].mxu0
    %v2227 = vadd.f32 %v2130, %v2226
    %v2228 = vpop.f32.mrb[0].mxu0
    %2229 = vmatprep.mubr.bf16.mxu0 %v2031
    %2230 = vmatmul.mubr.bf16.gmra.mrb[0].mxu0 %v2030
    %v2231 = vpop.f32.mrb[0].mxu0
    %v2232 = vadd.f32 %v2135, %v2231
    %v2233 = vpop.f32.mrb[0].mxu0
    %v2234 = vpop.f32.mrb[0].mxu0
    %v2235 = vadd.f32 %v2138, %v2234
    %v2236 = vpop.f32.mrb[0].mxu0
    %2237 = vmatprep.mubr.bf16.mxu0 %v2035
    %2238 = vmatmul.mubr.bf16.gmra.mrb[0].mxu0 %v2034
    %v2239 = vpop.f32.mrb[0].mxu0
    %v2240 = vadd.f32 %v2143, %v2239
    %v2241 = vpop.f32.mrb[0].mxu0
    %v2242 = vpop.f32.mrb[0].mxu0
    %v2243 = vadd.f32 %v2146, %v2242
    %v2244 = vpop.f32.mrb[0].mxu0
    %2245 = vmatprep.mubr.bf16.mxu0 %v2039
    %2246 = vmatmul.mubr.bf16.gmra.mrb[0].mxu0 %v2038
    %v2247 = vpop.f32.mrb[0].mxu0
    %v2248 = vadd.f32 %v2151, %v2247
    %v2249 = vpop.f32.mrb[0].mxu0
    %v2250 = vpop.f32.mrb[0].mxu0
    %v2251 = vadd.f32 %v2154, %v2250
    %v2252 = vpop.f32.mrb[0].mxu0
    %2253 = vmatprep.mubr.bf16.mxu0 %v2043
    %2254 = vmatmul.mubr.bf16.gmra.mrb[0].mxu0 %v2042
    %v2255 = vpop.f32.mrb[0].mxu0
    %v2256 = vadd.f32 %v2159, %v2255
    %v2257 = vpop.f32.mrb[0].mxu0
    %v2258 = vpop.f32.mrb[0].mxu0
    %v2259 = vadd.f32 %v2162, %v2258
    %v2260 = vpop.f32.mrb[0].mxu0
    %2261 = vmatprep.mubr.bf16.mxu0 %v2047
    %2262 = vmatmul.mubr.bf16.gmra.mrb[0].mxu0 %v2046
    %v2263 = vpop.f32.mrb[0].mxu0
    %v2264 = vadd.f32 %v2167, %v2263
    %v2265 = vpop.f32.mrb[0].mxu0
    %v2266 = vpop.f32.mrb[0].mxu0
    %v2267 = vadd.f32 %v2170, %v2266
    %v2268 = vpop.f32.mrb[0].mxu0
    %2269 = vmatprep.mubr.bf16.mxu0 %v2051
    %2270 = vmatmul.mubr.bf16.gmra.mrb[0].mxu0 %v2050
    %v2271 = vpop.f32.mrb[0].mxu0
    %v2272 = vadd.f32 %v2175, %v2271
    %v2273 = vpop.f32.mrb[0].mxu0
    %v2274 = vpop.f32.mrb[0].mxu0
    %v2275 = vadd.f32 %v2178, %v2274
    %v2276 = vpop.f32.mrb[0].mxu0
    %2277 = vdwg.mxu0
    %v2278 = vpack.c.bf16 %v2219, %v2216
    %v2279 = vpack.c.bf16 %v2227, %v2224
    %v2280 = vpack.c.bf16 %v2235, %v2232
    %v2281 = vpack.c.bf16 %v2243, %v2240
    %v2282 = vpack.c.bf16 %v2251, %v2248
    %v2283 = vpack.c.bf16 %v2259, %v2256
    %v2284 = vpack.c.bf16 %v2267, %v2264
    %v2285 = vpack.c.bf16 %v2275, %v2272
    %s2286 = scalar_lea.vmem [#allocation7], 128
    %v2287 = vld [vmem:[%s2286] sm:$0xf]
    %v2288 = vld [vmem:[%s2286 + $0x4] sm:$0xf]
    %v2289 = vld [vmem:[%s2286 + $0x8] sm:$0xf]
    %v2290 = vld [vmem:[%s2286 + $0xc] sm:$0xf]
    %v2291 = vld [vmem:[%s2286 + $0x10] sm:$0xf]
    %v2292 = vld [vmem:[%s2286 + $0x14] sm:$0xf]
    %v2293 = vld [vmem:[%s2286 + $0x18] sm:$0xf]
    %v2294 = vld [vmem:[%s2286 + $0x1c] sm:$0xf]
    %v2295 = vld [vmem:[%s2286 + $0x20] sm:$0xf]
    %v2296 = vld [vmem:[%s2286 + $0x24] sm:$0xf]
    %v2297 = vld [vmem:[%s2286 + $0x28] sm:$0xf]
    %v2298 = vld [vmem:[%s2286 + $0x2c] sm:$0xf]
    %v2299 = vld [vmem:[%s2286 + $0x30] sm:$0xf]
    %v2300 = vld [vmem:[%s2286 + $0x34] sm:$0xf]
    %v2301 = vld [vmem:[%s2286 + $0x38] sm:$0xf]
    %v2302 = vld [vmem:[%s2286 + $0x3c] sm:$0xf]
    %v2319 = vunpack.c.l.b16 %v2287
    %v2320 = vunpack.c.l.b16 %v2288
    %v2321 = vunpack.c.l.b16 %v2289
    %v2322 = vunpack.c.l.b16 %v2290
    %v2323 = vunpack.c.l.b16 %v2291
    %v2324 = vunpack.c.l.b16 %v2292
    %v2325 = vunpack.c.l.b16 %v2293
    %v2326 = vunpack.c.l.b16 %v2294
    %v2327 = vunpack.c.l.b16 %v2295
    %v2328 = vunpack.c.l.b16 %v2296
    %v2329 = vunpack.c.l.b16 %v2297
    %v2330 = vunpack.c.l.b16 %v2298
    %v2331 = vunpack.c.l.b16 %v2299
    %v2332 = vunpack.c.l.b16 %v2300
    %v2333 = vunpack.c.l.b16 %v2301
    %v2334 = vunpack.c.l.b16 %v2302
    %v2335 = vpack.c.b16 %v2320, %v2319
    %v2336 = vpack.c.b16 %v2322, %v2321
    %v2337 = vpack.c.b16 %v2324, %v2323
    %v2338 = vpack.c.b16 %v2326, %v2325
    %v2339 = vpack.c.b16 %v2328, %v2327
    %v2340 = vpack.c.b16 %v2330, %v2329
    %v2341 = vpack.c.b16 %v2332, %v2331
    %v2342 = vpack.c.b16 %v2334, %v2333
    %2351 = vmatprep.subr.bf16.mxu0 0
    %2352 = vmatpush1.bf16.msra.mxu0 %v2335
    %2353 = vmatprep.subr.bf16.mxu0 0
    %2354 = vmatpush1.bf16.msra.mxu0 %v2336
    %2355 = vmatprep.subr.bf16.mxu0 0
    %2356 = vmatpush1.bf16.msra.mxu0 %v2337
    %2357 = vmatprep.subr.bf16.mxu0 0
    %2358 = vmatpush1.bf16.msra.mxu0 %v2338
    %2359 = vmatprep.subr.bf16.mxu0 0
    %2360 = vmatpush1.bf16.msra.mxu0 %v2339
    %2361 = vmatprep.subr.bf16.mxu0 0
    %2362 = vmatpush1.bf16.msra.mxu0 %v2340
    %2363 = vmatprep.subr.bf16.mxu0 0
    %2364 = vmatpush1.bf16.msra.mxu0 %v2341
    %2365 = vmatprep.subr.bf16.mxu0 0
    %2366 = vmatpush1.bf16.msra.mxu0 %v2342
    %2367 = vmatprep.subr.bf16.mxu0 0
    %2368 = vmatpush1.bf16.msra.mxu0 0
    %2369 = vmatprep.subr.bf16.mxu0 0
    %2370 = vmatpush1.bf16.msra.mxu0 0
    %2371 = vmatprep.subr.bf16.mxu0 0
    %2372 = vmatpush1.bf16.msra.mxu0 0
    %2373 = vmatprep.subr.bf16.mxu0 0
    %2374 = vmatpush1.bf16.msra.mxu0 0
    %2375 = vmatprep.subr.bf16.mxu0 0
    %2376 = vmatpush1.bf16.msra.mxu0 0
    %2377 = vmatprep.subr.bf16.mxu0 0
    %2378 = vmatpush1.bf16.msra.mxu0 0
    %2379 = vmatprep.subr.bf16.mxu0 0
    %2380 = vmatpush1.bf16.msra.mxu0 0
    %2381 = vmatprep.subr.bf16.mxu0 0
    %2382 = vmatpush1.bf16.msra.mxu0 0
    %2383 = vmatprep.mubr.bf16.mxu0 0
    %2384 = vmatmul.mubr.bf16.gmra.mrb[0].mxu0 %v2278
    %v2385 = vpop.f32.mrb[0].mxu0
    %v2386 = vadd.f32 0.0, %v2385
    %v2387 = vpop.f32.mrb[0].mxu0
    %v2388 = vpop.f32.mrb[0].mxu0
    %v2389 = vadd.f32 0.0, %v2388
    %v2390 = vpop.f32.mrb[0].mxu0
    %2391 = vmatprep.mubr.bf16.mxu0 0
    %2392 = vmatmul.mubr.bf16.gmra.mrb[0].mxu0 %v2279
    %v2393 = vpop.f32.mrb[0].mxu0
    %v2394 = vadd.f32 0.0, %v2393
    %v2395 = vpop.f32.mrb[0].mxu0
    %v2396 = vpop.f32.mrb[0].mxu0
    %v2397 = vadd.f32 0.0, %v2396
    %v2398 = vpop.f32.mrb[0].mxu0
    %2399 = vmatprep.mubr.bf16.mxu0 0
    %2400 = vmatmul.mubr.bf16.gmra.mrb[0].mxu0 %v2280
    %v2401 = vpop.f32.mrb[0].mxu0
    %v2402 = vadd.f32 0.0, %v2401
    %v2403 = vpop.f32.mrb[0].mxu0
    %v2404 = vpop.f32.mrb[0].mxu0
    %v2405 = vadd.f32 0.0, %v2404
    %v2406 = vpop.f32.mrb[0].mxu0
    %2407 = vmatprep.mubr.bf16.mxu0 0
    %2408 = vmatmul.mubr.bf16.gmra.mrb[0].mxu0 %v2281
    %v2409 = vpop.f32.mrb[0].mxu0
    %v2410 = vadd.f32 0.0, %v2409
    %v2411 = vpop.f32.mrb[0].mxu0
    %v2412 = vpop.f32.mrb[0].mxu0
    %v2413 = vadd.f32 0.0, %v2412
    %v2414 = vpop.f32.mrb[0].mxu0
    %2415 = vmatprep.mubr.bf16.mxu0 0
    %2416 = vmatmul.mubr.bf16.gmra.mrb[0].mxu0 %v2282
    %v2417 = vpop.f32.mrb[0].mxu0
    %v2418 = vadd.f32 0.0, %v2417
    %v2419 = vpop.f32.mrb[0].mxu0
    %v2420 = vpop.f32.mrb[0].mxu0
    %v2421 = vadd.f32 0.0, %v2420
    %v2422 = vpop.f32.mrb[0].mxu0
    %2423 = vmatprep.mubr.bf16.mxu0 0
    %2424 = vmatmul.mubr.bf16.gmra.mrb[0].mxu0 %v2283
    %v2425 = vpop.f32.mrb[0].mxu0
    %v2426 = vadd.f32 0.0, %v2425
    %v2427 = vpop.f32.mrb[0].mxu0
    %v2428 = vpop.f32.mrb[0].mxu0
    %v2429 = vadd.f32 0.0, %v2428
    %v2430 = vpop.f32.mrb[0].mxu0
    %2431 = vmatprep.mubr.bf16.mxu0 0
    %2432 = vmatmul.mubr.bf16.gmra.mrb[0].mxu0 %v2284
    %v2433 = vpop.f32.mrb[0].mxu0
    %v2434 = vadd.f32 0.0, %v2433
    %v2435 = vpop.f32.mrb[0].mxu0
    %v2436 = vpop.f32.mrb[0].mxu0
    %v2437 = vadd.f32 0.0, %v2436
    %v2438 = vpop.f32.mrb[0].mxu0
    %2439 = vmatprep.mubr.bf16.mxu0 0
    %2440 = vmatmul.mubr.bf16.gmra.mrb[0].mxu0 %v2285
    %v2441 = vpop.f32.mrb[0].mxu0
    %v2442 = vadd.f32 0.0, %v2441
    %v2443 = vpop.f32.mrb[0].mxu0
    %v2444 = vpop.f32.mrb[0].mxu0
    %v2445 = vadd.f32 0.0, %v2444
    %v2446 = vpop.f32.mrb[0].mxu0
    %2447 = vdwg.mxu0
    %v2448 = vadd.f32 %v1829, %v2386
    %v2449 = vadd.f32 %v1832, %v2389
    %v2450 = vadd.f32 %v1837, %v2394
    %v2451 = vadd.f32 %v1840, %v2397
    %v2452 = vadd.f32 %v1845, %v2402
    %v2453 = vadd.f32 %v1848, %v2405
    %v2454 = vadd.f32 %v1853, %v2410
    %v2455 = vadd.f32 %v1856, %v2413
    %v2456 = vadd.f32 %v1861, %v2418
    %v2457 = vadd.f32 %v1864, %v2421
    %v2458 = vadd.f32 %v1869, %v2426
    %v2459 = vadd.f32 %v1872, %v2429
    %v2460 = vadd.f32 %v1877, %v2434
    %v2461 = vadd.f32 %v1880, %v2437
    %v2462 = vadd.f32 %v1885, %v2442
    %v2463 = vadd.f32 %v1888, %v2445
    %s2464 = scalar_lea.vmem [#allocation5], 768
    %v2465 = vld [vmem:[%s2464] sm:$0xff]
    %v2466 = vld [vmem:[%s2464 + $0x8] sm:$0xff]
    %v2467 = vld [vmem:[%s2464 + $0x10] sm:$0xff]
    %v2468 = vld [vmem:[%s2464 + $0x18] sm:$0xff]
    %v2469 = vld [vmem:[%s2464 + $0x20] sm:$0xff]
    %v2470 = vld [vmem:[%s2464 + $0x28] sm:$0xff]
    %v2471 = vld [vmem:[%s2464 + $0x30] sm:$0xff]
    %v2472 = vld [vmem:[%s2464 + $0x38] sm:$0xff]
    %v2473 = vld [vmem:[%s2464 + $0x40] sm:$0xff]
    %v2474 = vld [vmem:[%s2464 + $0x48] sm:$0xff]
    %v2475 = vld [vmem:[%s2464 + $0x50] sm:$0xff]
    %v2476 = vld [vmem:[%s2464 + $0x58] sm:$0xff]
    %v2477 = vld [vmem:[%s2464 + $0x60] sm:$0xff]
    %v2478 = vld [vmem:[%s2464 + $0x68] sm:$0xff]
    %v2479 = vld [vmem:[%s2464 + $0x70] sm:$0xff]
    %v2480 = vld [vmem:[%s2464 + $0x78] sm:$0xff]
    %v2481 = vld [vmem:[%s2464 + $0x80] sm:$0xff]
    %v2482 = vld [vmem:[%s2464 + $0x88] sm:$0xff]
    %v2483 = vld [vmem:[%s2464 + $0x90] sm:$0xff]
    %v2484 = vld [vmem:[%s2464 + $0x98] sm:$0xff]
    %v2485 = vld [vmem:[%s2464 + $0xa0] sm:$0xff]
    %v2486 = vld [vmem:[%s2464 + $0xa8] sm:$0xff]
    %v2487 = vld [vmem:[%s2464 + $0xb0] sm:$0xff]
    %v2488 = vld [vmem:[%s2464 + $0xb8] sm:$0xff]
    %v2489 = vld [vmem:[%s2464 + $0xc0] sm:$0xff]
    %v2490 = vld [vmem:[%s2464 + $0xc8] sm:$0xff]
    %v2491 = vld [vmem:[%s2464 + $0xd0] sm:$0xff]
    %v2492 = vld [vmem:[%s2464 + $0xd8] sm:$0xff]
    %v2493 = vld [vmem:[%s2464 + $0xe0] sm:$0xff]
    %v2494 = vld [vmem:[%s2464 + $0xe8] sm:$0xff]
    %v2495 = vld [vmem:[%s2464 + $0xf0] sm:$0xff]
    %v2496 = vld [vmem:[%s2464 + $0xf8] sm:$0xff]
    %v2529 = vunpack.c.l.b16 %v2465
    %v2530 = vunpack.c.h.b16 %v2465
    %v2531 = vunpack.c.l.b16 %v2466
    %v2532 = vunpack.c.h.b16 %v2466
    %v2533 = vunpack.c.l.b16 %v2467
    %v2534 = vunpack.c.h.b16 %v2467
    %v2535 = vunpack.c.l.b16 %v2468
    %v2536 = vunpack.c.h.b16 %v2468
    %v2537 = vunpack.c.l.b16 %v2469
    %v2538 = vunpack.c.h.b16 %v2469
    %v2539 = vunpack.c.l.b16 %v2470
    %v2540 = vunpack.c.h.b16 %v2470
    %v2541 = vunpack.c.l.b16 %v2471
    %v2542 = vunpack.c.h.b16 %v2471
    %v2543 = vunpack.c.l.b16 %v2472
    %v2544 = vunpack.c.h.b16 %v2472
    %v2545 = vunpack.c.l.b16 %v2473
    %v2546 = vunpack.c.h.b16 %v2473
    %v2547 = vunpack.c.l.b16 %v2474
    %v2548 = vunpack.c.h.b16 %v2474
    %v2549 = vunpack.c.l.b16 %v2475
    %v2550 = vunpack.c.h.b16 %v2475
    %v2551 = vunpack.c.l.b16 %v2476
    %v2552 = vunpack.c.h.b16 %v2476
    %v2553 = vunpack.c.l.b16 %v2477
    %v2554 = vunpack.c.h.b16 %v2477
    %v2555 = vunpack.c.l.b16 %v2478
    %v2556 = vunpack.c.h.b16 %v2478
    %v2557 = vunpack.c.l.b16 %v2479
    %v2558 = vunpack.c.h.b16 %v2479
    %v2559 = vunpack.c.l.b16 %v2480
    %v2560 = vunpack.c.h.b16 %v2480
    %v2561 = vunpack.c.l.b16 %v2481
    %v2562 = vunpack.c.h.b16 %v2481
    %v2563 = vunpack.c.l.b16 %v2482
    %v2564 = vunpack.c.h.b16 %v2482
    %v2565 = vunpack.c.l.b16 %v2483
    %v2566 = vunpack.c.h.b16 %v2483
    %v2567 = vunpack.c.l.b16 %v2484
    %v2568 = vunpack.c.h.b16 %v2484
    %v2569 = vunpack.c.l.b16 %v2485
    %v2570 = vunpack.c.h.b16 %v2485
    %v2571 = vunpack.c.l.b16 %v2486
    %v2572 = vunpack.c.h.b16 %v2486
    %v2573 = vunpack.c.l.b16 %v2487
    %v2574 = vunpack.c.h.b16 %v2487
    %v2575 = vunpack.c.l.b16 %v2488
    %v2576 = vunpack.c.h.b16 %v2488
    %v2577 = vunpack.c.l.b16 %v2489
    %v2578 = vunpack.c.h.b16 %v2489
    %v2579 = vunpack.c.l.b16 %v2490
    %v2580 = vunpack.c.h.b16 %v2490
    %v2581 = vunpack.c.l.b16 %v2491
    %v2582 = vunpack.c.h.b16 %v2491
    %v2583 = vunpack.c.l.b16 %v2492
    %v2584 = vunpack.c.h.b16 %v2492
    %v2585 = vunpack.c.l.b16 %v2493
    %v2586 = vunpack.c.h.b16 %v2493
    %v2587 = vunpack.c.l.b16 %v2494
    %v2588 = vunpack.c.h.b16 %v2494
    %v2589 = vunpack.c.l.b16 %v2495
    %v2590 = vunpack.c.h.b16 %v2495
    %v2591 = vunpack.c.l.b16 %v2496
    %v2592 = vunpack.c.h.b16 %v2496
    %v2593 = vpack.c.b16 %v2533, %v2529
    %v2594 = vpack.c.b16 %v2534, %v2530
    %v2595 = vpack.c.b16 %v2535, %v2531
    %v2596 = vpack.c.b16 %v2536, %v2532
    %v2597 = vpack.c.b16 %v2541, %v2537
    %v2598 = vpack.c.b16 %v2542, %v2538
    %v2599 = vpack.c.b16 %v2543, %v2539
    %v2600 = vpack.c.b16 %v2544, %v2540
    %v2601 = vpack.c.b16 %v2549, %v2545
    %v2602 = vpack.c.b16 %v2550, %v2546
    %v2603 = vpack.c.b16 %v2551, %v2547
    %v2604 = vpack.c.b16 %v2552, %v2548
    %v2605 = vpack.c.b16 %v2557, %v2553
    %v2606 = vpack.c.b16 %v2558, %v2554
    %v2607 = vpack.c.b16 %v2559, %v2555
    %v2608 = vpack.c.b16 %v2560, %v2556
    %v2609 = vpack.c.b16 %v2565, %v2561
    %v2610 = vpack.c.b16 %v2566, %v2562
    %v2611 = vpack.c.b16 %v2567, %v2563
    %v2612 = vpack.c.b16 %v2568, %v2564
    %v2613 = vpack.c.b16 %v2573, %v2569
    %v2614 = vpack.c.b16 %v2574, %v2570
    %v2615 = vpack.c.b16 %v2575, %v2571
    %v2616 = vpack.c.b16 %v2576, %v2572
    %v2617 = vpack.c.b16 %v2581, %v2577
    %v2618 = vpack.c.b16 %v2582, %v2578
    %v2619 = vpack.c.b16 %v2583, %v2579
    %v2620 = vpack.c.b16 %v2584, %v2580
    %v2621 = vpack.c.b16 %v2589, %v2585
    %v2622 = vpack.c.b16 %v2590, %v2586
    %v2623 = vpack.c.b16 %v2591, %v2587
    %v2624 = vpack.c.b16 %v2592, %v2588
    %2657 = vmatprep.subr.bf16.mxu0 0
    %2658 = vmatpush1.bf16.msra.mxu0 %v907
    %2659 = vmatprep.subr.bf16.mxu0 0
    %2660 = vmatpush1.bf16.msra.mxu0 %v908
    %2661 = vmatprep.subr.bf16.mxu0 0
    %2662 = vmatpush1.bf16.msra.mxu0 %v909
    %2663 = vmatprep.subr.bf16.mxu0 0
    %2664 = vmatpush1.bf16.msra.mxu0 %v910
    %2665 = vmatprep.subr.bf16.mxu0 0
    %2666 = vmatpush1.bf16.msra.mxu0 %v911
    %2667 = vmatprep.subr.bf16.mxu0 0
    %2668 = vmatpush1.bf16.msra.mxu0 %v912
    %2669 = vmatprep.subr.bf16.mxu0 0
    %2670 = vmatpush1.bf16.msra.mxu0 %v913
    %2671 = vmatprep.subr.bf16.mxu0 0
    %2672 = vmatpush1.bf16.msra.mxu0 %v914
    %2673 = vmatprep.subr.bf16.mxu0 0
    %2674 = vmatpush1.bf16.msra.mxu0 %v915
    %2675 = vmatprep.subr.bf16.mxu0 0
    %2676 = vmatpush1.bf16.msra.mxu0 %v916
    %2677 = vmatprep.subr.bf16.mxu0 0
    %2678 = vmatpush1.bf16.msra.mxu0 %v917
    %2679 = vmatprep.subr.bf16.mxu0 0
    %2680 = vmatpush1.bf16.msra.mxu0 %v918
    %2681 = vmatprep.subr.bf16.mxu0 0
    %2682 = vmatpush1.bf16.msra.mxu0 %v919
    %2683 = vmatprep.subr.bf16.mxu0 0
    %2684 = vmatpush1.bf16.msra.mxu0 %v920
    %2685 = vmatprep.subr.bf16.mxu0 0
    %2686 = vmatpush1.bf16.msra.mxu0 %v921
    %2687 = vmatprep.subr.bf16.mxu0 0
    %2688 = vmatpush1.bf16.msra.mxu0 %v922
    %2689 = vmatprep.mubr.bf16.mxu0 %v2594
    %2690 = vmatmul.mubr.bf16.gmra.mrb[0].mxu0 %v2593
    %v2691 = vpop.f32.mrb[0].mxu0
    %v2692 = vadd.f32 0.0, %v2691
    %v2693 = vpop.f32.mrb[0].mxu0
    %v2694 = vpop.f32.mrb[0].mxu0
    %v2695 = vadd.f32 0.0, %v2694
    %v2696 = vpop.f32.mrb[0].mxu0
    %2697 = vmatprep.mubr.bf16.mxu0 %v2598
    %2698 = vmatmul.mubr.bf16.gmra.mrb[0].mxu0 %v2597
    %v2699 = vpop.f32.mrb[0].mxu0
    %v2700 = vadd.f32 0.0, %v2699
    %v2701 = vpop.f32.mrb[0].mxu0
    %v2702 = vpop.f32.mrb[0].mxu0
    %v2703 = vadd.f32 0.0, %v2702
    %v2704 = vpop.f32.mrb[0].mxu0
    %2705 = vmatprep.mubr.bf16.mxu0 %v2602
    %2706 = vmatmul.mubr.bf16.gmra.mrb[0].mxu0 %v2601
    %v2707 = vpop.f32.mrb[0].mxu0
    %v2708 = vadd.f32 0.0, %v2707
    %v2709 = vpop.f32.mrb[0].mxu0
    %v2710 = vpop.f32.mrb[0].mxu0
    %v2711 = vadd.f32 0.0, %v2710
    %v2712 = vpop.f32.mrb[0].mxu0
    %2713 = vmatprep.mubr.bf16.mxu0 %v2606
    %2714 = vmatmul.mubr.bf16.gmra.mrb[0].mxu0 %v2605
    %v2715 = vpop.f32.mrb[0].mxu0
    %v2716 = vadd.f32 0.0, %v2715
    %v2717 = vpop.f32.mrb[0].mxu0
    %v2718 = vpop.f32.mrb[0].mxu0
    %v2719 = vadd.f32 0.0, %v2718
    %v2720 = vpop.f32.mrb[0].mxu0
    %2721 = vmatprep.mubr.bf16.mxu0 %v2610
    %2722 = vmatmul.mubr.bf16.gmra.mrb[0].mxu0 %v2609
    %v2723 = vpop.f32.mrb[0].mxu0
    %v2724 = vadd.f32 0.0, %v2723
    %v2725 = vpop.f32.mrb[0].mxu0
    %v2726 = vpop.f32.mrb[0].mxu0
    %v2727 = vadd.f32 0.0, %v2726
    %v2728 = vpop.f32.mrb[0].mxu0
    %2729 = vmatprep.mubr.bf16.mxu0 %v2614
    %2730 = vmatmul.mubr.bf16.gmra.mrb[0].mxu0 %v2613
    %v2731 = vpop.f32.mrb[0].mxu0
    %v2732 = vadd.f32 0.0, %v2731
    %v2733 = vpop.f32.mrb[0].mxu0
    %v2734 = vpop.f32.mrb[0].mxu0
    %v2735 = vadd.f32 0.0, %v2734
    %v2736 = vpop.f32.mrb[0].mxu0
    %2737 = vmatprep.mubr.bf16.mxu0 %v2618
    %2738 = vmatmul.mubr.bf16.gmra.mrb[0].mxu0 %v2617
    %v2739 = vpop.f32.mrb[0].mxu0
    %v2740 = vadd.f32 0.0, %v2739
    %v2741 = vpop.f32.mrb[0].mxu0
    %v2742 = vpop.f32.mrb[0].mxu0
    %v2743 = vadd.f32 0.0, %v2742
    %v2744 = vpop.f32.mrb[0].mxu0
    %2745 = vmatprep.mubr.bf16.mxu0 %v2622
    %2746 = vmatmul.mubr.bf16.gmra.mrb[0].mxu0 %v2621
    %v2747 = vpop.f32.mrb[0].mxu0
    %v2748 = vadd.f32 0.0, %v2747
    %v2749 = vpop.f32.mrb[0].mxu0
    %v2750 = vpop.f32.mrb[0].mxu0
    %v2751 = vadd.f32 0.0, %v2750
    %v2752 = vpop.f32.mrb[0].mxu0
    %2753 = vdwg.mxu0
    %2754 = vmatprep.subr.bf16.mxu0 0
    %2755 = vmatpush1.bf16.msra.mxu0 %v923
    %2756 = vmatprep.subr.bf16.mxu0 0
    %2757 = vmatpush1.bf16.msra.mxu0 %v924
    %2758 = vmatprep.subr.bf16.mxu0 0
    %2759 = vmatpush1.bf16.msra.mxu0 %v925
    %2760 = vmatprep.subr.bf16.mxu0 0
    %2761 = vmatpush1.bf16.msra.mxu0 %v926
    %2762 = vmatprep.subr.bf16.mxu0 0
    %2763 = vmatpush1.bf16.msra.mxu0 %v927
    %2764 = vmatprep.subr.bf16.mxu0 0
    %2765 = vmatpush1.bf16.msra.mxu0 %v928
    %2766 = vmatprep.subr.bf16.mxu0 0
    %2767 = vmatpush1.bf16.msra.mxu0 %v929
    %2768 = vmatprep.subr.bf16.mxu0 0
    %2769 = vmatpush1.bf16.msra.mxu0 %v930
    %2770 = vmatprep.subr.bf16.mxu0 0
    %2771 = vmatpush1.bf16.msra.mxu0 %v931
    %2772 = vmatprep.subr.bf16.mxu0 0
    %2773 = vmatpush1.bf16.msra.mxu0 %v932
    %2774 = vmatprep.subr.bf16.mxu0 0
    %2775 = vmatpush1.bf16.msra.mxu0 %v933
    %2776 = vmatprep.subr.bf16.mxu0 0
    %2777 = vmatpush1.bf16.msra.mxu0 %v934
    %2778 = vmatprep.subr.bf16.mxu0 0
    %2779 = vmatpush1.bf16.msra.mxu0 %v935
    %2780 = vmatprep.subr.bf16.mxu0 0
    %2781 = vmatpush1.bf16.msra.mxu0 %v936
    %2782 = vmatprep.subr.bf16.mxu0 0
    %2783 = vmatpush1.bf16.msra.mxu0 %v937
    %2784 = vmatprep.subr.bf16.mxu0 0
    %2785 = vmatpush1.bf16.msra.mxu0 %v938
    %2786 = vmatprep.mubr.bf16.mxu0 %v2596
    %2787 = vmatmul.mubr.bf16.gmra.mrb[0].mxu0 %v2595
    %v2788 = vpop.f32.mrb[0].mxu0
    %v2789 = vadd.f32 %v2692, %v2788
    %v2790 = vpop.f32.mrb[0].mxu0
    %v2791 = vpop.f32.mrb[0].mxu0
    %v2792 = vadd.f32 %v2695, %v2791
    %v2793 = vpop.f32.mrb[0].mxu0
    %2794 = vmatprep.mubr.bf16.mxu0 %v2600
    %2795 = vmatmul.mubr.bf16.gmra.mrb[0].mxu0 %v2599
    %v2796 = vpop.f32.mrb[0].mxu0
    %v2797 = vadd.f32 %v2700, %v2796
    %v2798 = vpop.f32.mrb[0].mxu0
    %v2799 = vpop.f32.mrb[0].mxu0
    %v2800 = vadd.f32 %v2703, %v2799
    %v2801 = vpop.f32.mrb[0].mxu0
    %2802 = vmatprep.mubr.bf16.mxu0 %v2604
    %2803 = vmatmul.mubr.bf16.gmra.mrb[0].mxu0 %v2603
    %v2804 = vpop.f32.mrb[0].mxu0
    %v2805 = vadd.f32 %v2708, %v2804
    %v2806 = vpop.f32.mrb[0].mxu0
    %v2807 = vpop.f32.mrb[0].mxu0
    %v2808 = vadd.f32 %v2711, %v2807
    %v2809 = vpop.f32.mrb[0].mxu0
    %2810 = vmatprep.mubr.bf16.mxu0 %v2608
    %2811 = vmatmul.mubr.bf16.gmra.mrb[0].mxu0 %v2607
    %v2812 = vpop.f32.mrb[0].mxu0
    %v2813 = vadd.f32 %v2716, %v2812
    %v2814 = vpop.f32.mrb[0].mxu0
    %v2815 = vpop.f32.mrb[0].mxu0
    %v2816 = vadd.f32 %v2719, %v2815
    %v2817 = vpop.f32.mrb[0].mxu0
    %2818 = vmatprep.mubr.bf16.mxu0 %v2612
    %2819 = vmatmul.mubr.bf16.gmra.mrb[0].mxu0 %v2611
    %v2820 = vpop.f32.mrb[0].mxu0
    %v2821 = vadd.f32 %v2724, %v2820
    %v2822 = vpop.f32.mrb[0].mxu0
    %v2823 = vpop.f32.mrb[0].mxu0
    %v2824 = vadd.f32 %v2727, %v2823
    %v2825 = vpop.f32.mrb[0].mxu0
    %2826 = vmatprep.mubr.bf16.mxu0 %v2616
    %2827 = vmatmul.mubr.bf16.gmra.mrb[0].mxu0 %v2615
    %v2828 = vpop.f32.mrb[0].mxu0
    %v2829 = vadd.f32 %v2732, %v2828
    %v2830 = vpop.f32.mrb[0].mxu0
    %v2831 = vpop.f32.mrb[0].mxu0
    %v2832 = vadd.f32 %v2735, %v2831
    %v2833 = vpop.f32.mrb[0].mxu0
    %2834 = vmatprep.mubr.bf16.mxu0 %v2620
    %2835 = vmatmul.mubr.bf16.gmra.mrb[0].mxu0 %v2619
    %v2836 = vpop.f32.mrb[0].mxu0
    %v2837 = vadd.f32 %v2740, %v2836
    %v2838 = vpop.f32.mrb[0].mxu0
    %v2839 = vpop.f32.mrb[0].mxu0
    %v2840 = vadd.f32 %v2743, %v2839
    %v2841 = vpop.f32.mrb[0].mxu0
    %2842 = vmatprep.mubr.bf16.mxu0 %v2624
    %2843 = vmatmul.mubr.bf16.gmra.mrb[0].mxu0 %v2623
    %v2844 = vpop.f32.mrb[0].mxu0
    %v2845 = vadd.f32 %v2748, %v2844
    %v2846 = vpop.f32.mrb[0].mxu0
    %v2847 = vpop.f32.mrb[0].mxu0
    %v2848 = vadd.f32 %v2751, %v2847
    %v2849 = vpop.f32.mrb[0].mxu0
    %2850 = vdwg.mxu0
    %v2851 = vpack.c.bf16 %v2792, %v2789
    %v2852 = vpack.c.bf16 %v2800, %v2797
    %v2853 = vpack.c.bf16 %v2808, %v2805
    %v2854 = vpack.c.bf16 %v2816, %v2813
    %v2855 = vpack.c.bf16 %v2824, %v2821
    %v2856 = vpack.c.bf16 %v2832, %v2829
    %v2857 = vpack.c.bf16 %v2840, %v2837
    %v2858 = vpack.c.bf16 %v2848, %v2845
    %s2859 = scalar_lea.vmem [#allocation7], 192
    %v2860 = vld [vmem:[%s2859] sm:$0xf]
    %v2861 = vld [vmem:[%s2859 + $0x4] sm:$0xf]
    %v2862 = vld [vmem:[%s2859 + $0x8] sm:$0xf]
    %v2863 = vld [vmem:[%s2859 + $0xc] sm:$0xf]
    %v2864 = vld [vmem:[%s2859 + $0x10] sm:$0xf]
    %v2865 = vld [vmem:[%s2859 + $0x14] sm:$0xf]
    %v2866 = vld [vmem:[%s2859 + $0x18] sm:$0xf]
    %v2867 = vld [vmem:[%s2859 + $0x1c] sm:$0xf]
    %v2868 = vld [vmem:[%s2859 + $0x20] sm:$0xf]
    %v2869 = vld [vmem:[%s2859 + $0x24] sm:$0xf]
    %v2870 = vld [vmem:[%s2859 + $0x28] sm:$0xf]
    %v2871 = vld [vmem:[%s2859 + $0x2c] sm:$0xf]
    %v2872 = vld [vmem:[%s2859 + $0x30] sm:$0xf]
    %v2873 = vld [vmem:[%s2859 + $0x34] sm:$0xf]
    %v2874 = vld [vmem:[%s2859 + $0x38] sm:$0xf]
    %v2875 = vld [vmem:[%s2859 + $0x3c] sm:$0xf]
    %v2892 = vunpack.c.l.b16 %v2860
    %v2893 = vunpack.c.l.b16 %v2861
    %v2894 = vunpack.c.l.b16 %v2862
    %v2895 = vunpack.c.l.b16 %v2863
    %v2896 = vunpack.c.l.b16 %v2864
    %v2897 = vunpack.c.l.b16 %v2865
    %v2898 = vunpack.c.l.b16 %v2866
    %v2899 = vunpack.c.l.b16 %v2867
    %v2900 = vunpack.c.l.b16 %v2868
    %v2901 = vunpack.c.l.b16 %v2869
    %v2902 = vunpack.c.l.b16 %v2870
    %v2903 = vunpack.c.l.b16 %v2871
    %v2904 = vunpack.c.l.b16 %v2872
    %v2905 = vunpack.c.l.b16 %v2873
    %v2906 = vunpack.c.l.b16 %v2874
    %v2907 = vunpack.c.l.b16 %v2875
    %v2908 = vpack.c.b16 %v2893, %v2892
    %v2909 = vpack.c.b16 %v2895, %v2894
    %v2910 = vpack.c.b16 %v2897, %v2896
    %v2911 = vpack.c.b16 %v2899, %v2898
    %v2912 = vpack.c.b16 %v2901, %v2900
    %v2913 = vpack.c.b16 %v2903, %v2902
    %v2914 = vpack.c.b16 %v2905, %v2904
    %v2915 = vpack.c.b16 %v2907, %v2906
    %2924 = vmatprep.subr.bf16.mxu0 0
    %2925 = vmatpush1.bf16.msra.mxu0 %v2908
    %2926 = vmatprep.subr.bf16.mxu0 0
    %2927 = vmatpush1.bf16.msra.mxu0 %v2909
    %2928 = vmatprep.subr.bf16.mxu0 0
    %2929 = vmatpush1.bf16.msra.mxu0 %v2910
    %2930 = vmatprep.subr.bf16.mxu0 0
    %2931 = vmatpush1.bf16.msra.mxu0 %v2911
    %2932 = vmatprep.subr.bf16.mxu0 0
    %2933 = vmatpush1.bf16.msra.mxu0 %v2912
    %2934 = vmatprep.subr.bf16.mxu0 0
    %2935 = vmatpush1.bf16.msra.mxu0 %v2913
    %2936 = vmatprep.subr.bf16.mxu0 0
    %2937 = vmatpush1.bf16.msra.mxu0 %v2914
    %2938 = vmatprep.subr.bf16.mxu0 0
    %2939 = vmatpush1.bf16.msra.mxu0 %v2915
    %2940 = vmatprep.subr.bf16.mxu0 0
    %2941 = vmatpush1.bf16.msra.mxu0 0
    %2942 = vmatprep.subr.bf16.mxu0 0
    %2943 = vmatpush1.bf16.msra.mxu0 0
    %2944 = vmatprep.subr.bf16.mxu0 0
    %2945 = vmatpush1.bf16.msra.mxu0 0
    %2946 = vmatprep.subr.bf16.mxu0 0
    %2947 = vmatpush1.bf16.msra.mxu0 0
    %2948 = vmatprep.subr.bf16.mxu0 0
    %2949 = vmatpush1.bf16.msra.mxu0 0
    %2950 = vmatprep.subr.bf16.mxu0 0
    %2951 = vmatpush1.bf16.msra.mxu0 0
    %2952 = vmatprep.subr.bf16.mxu0 0
    %2953 = vmatpush1.bf16.msra.mxu0 0
    %2954 = vmatprep.subr.bf16.mxu0 0
    %2955 = vmatpush1.bf16.msra.mxu0 0
    %2956 = vmatprep.mubr.bf16.mxu0 0
    %2957 = vmatmul.mubr.bf16.gmra.mrb[0].mxu0 %v2851
    %v2958 = vpop.f32.mrb[0].mxu0
    %v2959 = vadd.f32 0.0, %v2958
    %v2960 = vpop.f32.mrb[0].mxu0
    %v2961 = vpop.f32.mrb[0].mxu0
    %v2962 = vadd.f32 0.0, %v2961
    %v2963 = vpop.f32.mrb[0].mxu0
    %2964 = vmatprep.mubr.bf16.mxu0 0
    %2965 = vmatmul.mubr.bf16.gmra.mrb[0].mxu0 %v2852
    %v2966 = vpop.f32.mrb[0].mxu0
    %v2967 = vadd.f32 0.0, %v2966
    %v2968 = vpop.f32.mrb[0].mxu0
    %v2969 = vpop.f32.mrb[0].mxu0
    %v2970 = vadd.f32 0.0, %v2969
    %v2971 = vpop.f32.mrb[0].mxu0
    %2972 = vmatprep.mubr.bf16.mxu0 0
    %2973 = vmatmul.mubr.bf16.gmra.mrb[0].mxu0 %v2853
    %v2974 = vpop.f32.mrb[0].mxu0
    %v2975 = vadd.f32 0.0, %v2974
    %v2976 = vpop.f32.mrb[0].mxu0
    %v2977 = vpop.f32.mrb[0].mxu0
    %v2978 = vadd.f32 0.0, %v2977
    %v2979 = vpop.f32.mrb[0].mxu0
    %2980 = vmatprep.mubr.bf16.mxu0 0
    %2981 = vmatmul.mubr.bf16.gmra.mrb[0].mxu0 %v2854
    %v2982 = vpop.f32.mrb[0].mxu0
    %v2983 = vadd.f32 0.0, %v2982
    %v2984 = vpop.f32.mrb[0].mxu0
    %v2985 = vpop.f32.mrb[0].mxu0
    %v2986 = vadd.f32 0.0, %v2985
    %v2987 = vpop.f32.mrb[0].mxu0
    %2988 = vmatprep.mubr.bf16.mxu0 0
    %2989 = vmatmul.mubr.bf16.gmra.mrb[0].mxu0 %v2855
    %v2990 = vpop.f32.mrb[0].mxu0
    %v2991 = vadd.f32 0.0, %v2990
    %v2992 = vpop.f32.mrb[0].mxu0
    %v2993 = vpop.f32.mrb[0].mxu0
    %v2994 = vadd.f32 0.0, %v2993
    %v2995 = vpop.f32.mrb[0].mxu0
    %2996 = vmatprep.mubr.bf16.mxu0 0
    %2997 = vmatmul.mubr.bf16.gmra.mrb[0].mxu0 %v2856
    %v2998 = vpop.f32.mrb[0].mxu0
    %v2999 = vadd.f32 0.0, %v2998
    %v3000 = vpop.f32.mrb[0].mxu0
    %v3001 = vpop.f32.mrb[0].mxu0
    %v3002 = vadd.f32 0.0, %v3001
    %v3003 = vpop.f32.mrb[0].mxu0
    %3004 = vmatprep.mubr.bf16.mxu0 0
    %3005 = vmatmul.mubr.bf16.gmra.mrb[0].mxu0 %v2857
    %v3006 = vpop.f32.mrb[0].mxu0
    %v3007 = vadd.f32 0.0, %v3006
    %v3008 = vpop.f32.mrb[0].mxu0
    %v3009 = vpop.f32.mrb[0].mxu0
    %v3010 = vadd.f32 0.0, %v3009
    %v3011 = vpop.f32.mrb[0].mxu0
    %3012 = vmatprep.mubr.bf16.mxu0 0
    %3013 = vmatmul.mubr.bf16.gmra.mrb[0].mxu0 %v2858
    %v3014 = vpop.f32.mrb[0].mxu0
    %v3015 = vadd.f32 0.0, %v3014
    %v3016 = vpop.f32.mrb[0].mxu0
    %v3017 = vpop.f32.mrb[0].mxu0
    %v3018 = vadd.f32 0.0, %v3017
    %v3019 = vpop.f32.mrb[0].mxu0
    %3020 = vdwg.mxu0
    %v3021 = vadd.f32 %v2448, %v2959
    %v3022 = vadd.f32 %v2449, %v2962
    %v3023 = vadd.f32 %v2450, %v2967
    %v3024 = vadd.f32 %v2451, %v2970
    %v3025 = vadd.f32 %v2452, %v2975
    %v3026 = vadd.f32 %v2453, %v2978
    %v3027 = vadd.f32 %v2454, %v2983
    %v3028 = vadd.f32 %v2455, %v2986
    %v3029 = vadd.f32 %v2456, %v2991
    %v3030 = vadd.f32 %v2457, %v2994
    %v3031 = vadd.f32 %v2458, %v2999
    %v3032 = vadd.f32 %v2459, %v3002
    %v3033 = vadd.f32 %v2460, %v3007
    %v3034 = vadd.f32 %v2461, %v3010
    %v3035 = vadd.f32 %v2462, %v3015
    %v3036 = vadd.f32 %v2463, %v3018
    %s3037 = scalar_lea.vmem [#allocation5], 1024
    %v3038 = vld [vmem:[%s3037] sm:$0xff]
    %v3039 = vld [vmem:[%s3037 + $0x8] sm:$0xff]
    %v3040 = vld [vmem:[%s3037 + $0x10] sm:$0xff]
    %v3041 = vld [vmem:[%s3037 + $0x18] sm:$0xff]
    %v3042 = vld [vmem:[%s3037 + $0x20] sm:$0xff]
    %v3043 = vld [vmem:[%s3037 + $0x28] sm:$0xff]
    %v3044 = vld [vmem:[%s3037 + $0x30] sm:$0xff]
    %v3045 = vld [vmem:[%s3037 + $0x38] sm:$0xff]
    %v3046 = vld [vmem:[%s3037 + $0x40] sm:$0xff]
    %v3047 = vld [vmem:[%s3037 + $0x48] sm:$0xff]
    %v3048 = vld [vmem:[%s3037 + $0x50] sm:$0xff]
    %v3049 = vld [vmem:[%s3037 + $0x58] sm:$0xff]
    %v3050 = vld [vmem:[%s3037 + $0x60] sm:$0xff]
    %v3051 = vld [vmem:[%s3037 + $0x68] sm:$0xff]
    %v3052 = vld [vmem:[%s3037 + $0x70] sm:$0xff]
    %v3053 = vld [vmem:[%s3037 + $0x78] sm:$0xff]
    %v3054 = vld [vmem:[%s3037 + $0x80] sm:$0xff]
    %v3055 = vld [vmem:[%s3037 + $0x88] sm:$0xff]
    %v3056 = vld [vmem:[%s3037 + $0x90] sm:$0xff]
    %v3057 = vld [vmem:[%s3037 + $0x98] sm:$0xff]
    %v3058 = vld [vmem:[%s3037 + $0xa0] sm:$0xff]
    %v3059 = vld [vmem:[%s3037 + $0xa8] sm:$0xff]
    %v3060 = vld [vmem:[%s3037 + $0xb0] sm:$0xff]
    %v3061 = vld [vmem:[%s3037 + $0xb8] sm:$0xff]
    %v3062 = vld [vmem:[%s3037 + $0xc0] sm:$0xff]
    %v3063 = vld [vmem:[%s3037 + $0xc8] sm:$0xff]
    %v3064 = vld [vmem:[%s3037 + $0xd0] sm:$0xff]
    %v3065 = vld [vmem:[%s3037 + $0xd8] sm:$0xff]
    %v3066 = vld [vmem:[%s3037 + $0xe0] sm:$0xff]
    %v3067 = vld [vmem:[%s3037 + $0xe8] sm:$0xff]
    %v3068 = vld [vmem:[%s3037 + $0xf0] sm:$0xff]
    %v3069 = vld [vmem:[%s3037 + $0xf8] sm:$0xff]
    %v3102 = vunpack.c.l.b16 %v3038
    %v3103 = vunpack.c.h.b16 %v3038
    %v3104 = vunpack.c.l.b16 %v3039
    %v3105 = vunpack.c.h.b16 %v3039
    %v3106 = vunpack.c.l.b16 %v3040
    %v3107 = vunpack.c.h.b16 %v3040
    %v3108 = vunpack.c.l.b16 %v3041
    %v3109 = vunpack.c.h.b16 %v3041
    %v3110 = vunpack.c.l.b16 %v3042
    %v3111 = vunpack.c.h.b16 %v3042
    %v3112 = vunpack.c.l.b16 %v3043
    %v3113 = vunpack.c.h.b16 %v3043
    %v3114 = vunpack.c.l.b16 %v3044
    %v3115 = vunpack.c.h.b16 %v3044
    %v3116 = vunpack.c.l.b16 %v3045
    %v3117 = vunpack.c.h.b16 %v3045
    %v3118 = vunpack.c.l.b16 %v3046
    %v3119 = vunpack.c.h.b16 %v3046
    %v3120 = vunpack.c.l.b16 %v3047
    %v3121 = vunpack.c.h.b16 %v3047
    %v3122 = vunpack.c.l.b16 %v3048
    %v3123 = vunpack.c.h.b16 %v3048
    %v3124 = vunpack.c.l.b16 %v3049
    %v3125 = vunpack.c.h.b16 %v3049
    %v3126 = vunpack.c.l.b16 %v3050
    %v3127 = vunpack.c.h.b16 %v3050
    %v3128 = vunpack.c.l.b16 %v3051
    %v3129 = vunpack.c.h.b16 %v3051
    %v3130 = vunpack.c.l.b16 %v3052
    %v3131 = vunpack.c.h.b16 %v3052
    %v3132 = vunpack.c.l.b16 %v3053
    %v3133 = vunpack.c.h.b16 %v3053
    %v3134 = vunpack.c.l.b16 %v3054
    %v3135 = vunpack.c.h.b16 %v3054
    %v3136 = vunpack.c.l.b16 %v3055
    %v3137 = vunpack.c.h.b16 %v3055
    %v3138 = vunpack.c.l.b16 %v3056
    %v3139 = vunpack.c.h.b16 %v3056
    %v3140 = vunpack.c.l.b16 %v3057
    %v3141 = vunpack.c.h.b16 %v3057
    %v3142 = vunpack.c.l.b16 %v3058
    %v3143 = vunpack.c.h.b16 %v3058
    %v3144 = vunpack.c.l.b16 %v3059
    %v3145 = vunpack.c.h.b16 %v3059
    %v3146 = vunpack.c.l.b16 %v3060
    %v3147 = vunpack.c.h.b16 %v3060
    %v3148 = vunpack.c.l.b16 %v3061
    %v3149 = vunpack.c.h.b16 %v3061
    %v3150 = vunpack.c.l.b16 %v3062
    %v3151 = vunpack.c.h.b16 %v3062
    %v3152 = vunpack.c.l.b16 %v3063
    %v3153 = vunpack.c.h.b16 %v3063
    %v3154 = vunpack.c.l.b16 %v3064
    %v3155 = vunpack.c.h.b16 %v3064
    %v3156 = vunpack.c.l.b16 %v3065
    %v3157 = vunpack.c.h.b16 %v3065
    %v3158 = vunpack.c.l.b16 %v3066
    %v3159 = vunpack.c.h.b16 %v3066
    %v3160 = vunpack.c.l.b16 %v3067
    %v3161 = vunpack.c.h.b16 %v3067
    %v3162 = vunpack.c.l.b16 %v3068
    %v3163 = vunpack.c.h.b16 %v3068
    %v3164 = vunpack.c.l.b16 %v3069
    %v3165 = vunpack.c.h.b16 %v3069
    %v3166 = vpack.c.b16 %v3106, %v3102
    %v3167 = vpack.c.b16 %v3107, %v3103
    %v3168 = vpack.c.b16 %v3108, %v3104
    %v3169 = vpack.c.b16 %v3109, %v3105
    %v3170 = vpack.c.b16 %v3114, %v3110
    %v3171 = vpack.c.b16 %v3115, %v3111
    %v3172 = vpack.c.b16 %v3116, %v3112
    %v3173 = vpack.c.b16 %v3117, %v3113
    %v3174 = vpack.c.b16 %v3122, %v3118
    %v3175 = vpack.c.b16 %v3123, %v3119
    %v3176 = vpack.c.b16 %v3124, %v3120
    %v3177 = vpack.c.b16 %v3125, %v3121
    %v3178 = vpack.c.b16 %v3130, %v3126
    %v3179 = vpack.c.b16 %v3131, %v3127
    %v3180 = vpack.c.b16 %v3132, %v3128
    %v3181 = vpack.c.b16 %v3133, %v3129
    %v3182 = vpack.c.b16 %v3138, %v3134
    %v3183 = vpack.c.b16 %v3139, %v3135
    %v3184 = vpack.c.b16 %v3140, %v3136
    %v3185 = vpack.c.b16 %v3141, %v3137
    %v3186 = vpack.c.b16 %v3146, %v3142
    %v3187 = vpack.c.b16 %v3147, %v3143
    %v3188 = vpack.c.b16 %v3148, %v3144
    %v3189 = vpack.c.b16 %v3149, %v3145
    %v3190 = vpack.c.b16 %v3154, %v3150
    %v3191 = vpack.c.b16 %v3155, %v3151
    %v3192 = vpack.c.b16 %v3156, %v3152
    %v3193 = vpack.c.b16 %v3157, %v3153
    %v3194 = vpack.c.b16 %v3162, %v3158
    %v3195 = vpack.c.b16 %v3163, %v3159
    %v3196 = vpack.c.b16 %v3164, %v3160
    %v3197 = vpack.c.b16 %v3165, %v3161
    %3230 = vmatprep.subr.bf16.mxu0 0
    %3231 = vmatpush1.bf16.msra.mxu0 %v907
    %3232 = vmatprep.subr.bf16.mxu0 0
    %3233 = vmatpush1.bf16.msra.mxu0 %v908
    %3234 = vmatprep.subr.bf16.mxu0 0
    %3235 = vmatpush1.bf16.msra.mxu0 %v909
    %3236 = vmatprep.subr.bf16.mxu0 0
    %3237 = vmatpush1.bf16.msra.mxu0 %v910
    %3238 = vmatprep.subr.bf16.mxu0 0
    %3239 = vmatpush1.bf16.msra.mxu0 %v911
    %3240 = vmatprep.subr.bf16.mxu0 0
    %3241 = vmatpush1.bf16.msra.mxu0 %v912
    %3242 = vmatprep.subr.bf16.mxu0 0
    %3243 = vmatpush1.bf16.msra.mxu0 %v913
    %3244 = vmatprep.subr.bf16.mxu0 0
    %3245 = vmatpush1.bf16.msra.mxu0 %v914
    %3246 = vmatprep.subr.bf16.mxu0 0
    %3247 = vmatpush1.bf16.msra.mxu0 %v915
    %3248 = vmatprep.subr.bf16.mxu0 0
    %3249 = vmatpush1.bf16.msra.mxu0 %v916
    %3250 = vmatprep.subr.bf16.mxu0 0
    %3251 = vmatpush1.bf16.msra.mxu0 %v917
    %3252 = vmatprep.subr.bf16.mxu0 0
    %3253 = vmatpush1.bf16.msra.mxu0 %v918
    %3254 = vmatprep.subr.bf16.mxu0 0
    %3255 = vmatpush1.bf16.msra.mxu0 %v919
    %3256 = vmatprep.subr.bf16.mxu0 0
    %3257 = vmatpush1.bf16.msra.mxu0 %v920
    %3258 = vmatprep.subr.bf16.mxu0 0
    %3259 = vmatpush1.bf16.msra.mxu0 %v921
    %3260 = vmatprep.subr.bf16.mxu0 0
    %3261 = vmatpush1.bf16.msra.mxu0 %v922
    %3262 = vmatprep.mubr.bf16.mxu0 %v3167
    %3263 = vmatmul.mubr.bf16.gmra.mrb[0].mxu0 %v3166
    %v3264 = vpop.f32.mrb[0].mxu0
    %v3265 = vadd.f32 0.0, %v3264
    %v3266 = vpop.f32.mrb[0].mxu0
    %v3267 = vpop.f32.mrb[0].mxu0
    %v3268 = vadd.f32 0.0, %v3267
    %v3269 = vpop.f32.mrb[0].mxu0
    %3270 = vmatprep.mubr.bf16.mxu0 %v3171
    %3271 = vmatmul.mubr.bf16.gmra.mrb[0].mxu0 %v3170
    %v3272 = vpop.f32.mrb[0].mxu0
    %v3273 = vadd.f32 0.0, %v3272
    %v3274 = vpop.f32.mrb[0].mxu0
    %v3275 = vpop.f32.mrb[0].mxu0
    %v3276 = vadd.f32 0.0, %v3275
    %v3277 = vpop.f32.mrb[0].mxu0
    %3278 = vmatprep.mubr.bf16.mxu0 %v3175
    %3279 = vmatmul.mubr.bf16.gmra.mrb[0].mxu0 %v3174
    %v3280 = vpop.f32.mrb[0].mxu0
    %v3281 = vadd.f32 0.0, %v3280
    %v3282 = vpop.f32.mrb[0].mxu0
    %v3283 = vpop.f32.mrb[0].mxu0
    %v3284 = vadd.f32 0.0, %v3283
    %v3285 = vpop.f32.mrb[0].mxu0
    %3286 = vmatprep.mubr.bf16.mxu0 %v3179
    %3287 = vmatmul.mubr.bf16.gmra.mrb[0].mxu0 %v3178
    %v3288 = vpop.f32.mrb[0].mxu0
    %v3289 = vadd.f32 0.0, %v3288
    %v3290 = vpop.f32.mrb[0].mxu0
    %v3291 = vpop.f32.mrb[0].mxu0
    %v3292 = vadd.f32 0.0, %v3291
    %v3293 = vpop.f32.mrb[0].mxu0
    %3294 = vmatprep.mubr.bf16.mxu0 %v3183
    %3295 = vmatmul.mubr.bf16.gmra.mrb[0].mxu0 %v3182
    %v3296 = vpop.f32.mrb[0].mxu0
    %v3297 = vadd.f32 0.0, %v3296
    %v3298 = vpop.f32.mrb[0].mxu0
    %v3299 = vpop.f32.mrb[0].mxu0
    %v3300 = vadd.f32 0.0, %v3299
    %v3301 = vpop.f32.mrb[0].mxu0
    %3302 = vmatprep.mubr.bf16.mxu0 %v3187
    %3303 = vmatmul.mubr.bf16.gmra.mrb[0].mxu0 %v3186
    %v3304 = vpop.f32.mrb[0].mxu0
    %v3305 = vadd.f32 0.0, %v3304
    %v3306 = vpop.f32.mrb[0].mxu0
    %v3307 = vpop.f32.mrb[0].mxu0
    %v3308 = vadd.f32 0.0, %v3307
    %v3309 = vpop.f32.mrb[0].mxu0
    %3310 = vmatprep.mubr.bf16.mxu0 %v3191
    %3311 = vmatmul.mubr.bf16.gmra.mrb[0].mxu0 %v3190
    %v3312 = vpop.f32.mrb[0].mxu0
    %v3313 = vadd.f32 0.0, %v3312
    %v3314 = vpop.f32.mrb[0].mxu0
    %v3315 = vpop.f32.mrb[0].mxu0
    %v3316 = vadd.f32 0.0, %v3315
    %v3317 = vpop.f32.mrb[0].mxu0
    %3318 = vmatprep.mubr.bf16.mxu0 %v3195
    %3319 = vmatmul.mubr.bf16.gmra.mrb[0].mxu0 %v3194
    %v3320 = vpop.f32.mrb[0].mxu0
    %v3321 = vadd.f32 0.0, %v3320
    %v3322 = vpop.f32.mrb[0].mxu0
    %v3323 = vpop.f32.mrb[0].mxu0
    %v3324 = vadd.f32 0.0, %v3323
    %v3325 = vpop.f32.mrb[0].mxu0
    %3326 = vdwg.mxu0
    %3327 = vmatprep.subr.bf16.mxu0 0
    %3328 = vmatpush1.bf16.msra.mxu0 %v923
    %3329 = vmatprep.subr.bf16.mxu0 0
    %3330 = vmatpush1.bf16.msra.mxu0 %v924
    %3331 = vmatprep.subr.bf16.mxu0 0
    %3332 = vmatpush1.bf16.msra.mxu0 %v925
    %3333 = vmatprep.subr.bf16.mxu0 0
    %3334 = vmatpush1.bf16.msra.mxu0 %v926
    %3335 = vmatprep.subr.bf16.mxu0 0
    %3336 = vmatpush1.bf16.msra.mxu0 %v927
    %3337 = vmatprep.subr.bf16.mxu0 0
    %3338 = vmatpush1.bf16.msra.mxu0 %v928
    %3339 = vmatprep.subr.bf16.mxu0 0
    %3340 = vmatpush1.bf16.msra.mxu0 %v929
    %3341 = vmatprep.subr.bf16.mxu0 0
    %3342 = vmatpush1.bf16.msra.mxu0 %v930
    %3343 = vmatprep.subr.bf16.mxu0 0
    %3344 = vmatpush1.bf16.msra.mxu0 %v931
    %3345 = vmatprep.subr.bf16.mxu0 0
    %3346 = vmatpush1.bf16.msra.mxu0 %v932
    %3347 = vmatprep.subr.bf16.mxu0 0
    %3348 = vmatpush1.bf16.msra.mxu0 %v933
    %3349 = vmatprep.subr.bf16.mxu0 0
    %3350 = vmatpush1.bf16.msra.mxu0 %v934
    %3351 = vmatprep.subr.bf16.mxu0 0
    %3352 = vmatpush1.bf16.msra.mxu0 %v935
    %3353 = vmatprep.subr.bf16.mxu0 0
    %3354 = vmatpush1.bf16.msra.mxu0 %v936
    %3355 = vmatprep.subr.bf16.mxu0 0
    %3356 = vmatpush1.bf16.msra.mxu0 %v937
    %3357 = vmatprep.subr.bf16.mxu0 0
    %3358 = vmatpush1.bf16.msra.mxu0 %v938
    %3359 = vmatprep.mubr.bf16.mxu0 %v3169
    %3360 = vmatmul.mubr.bf16.gmra.mrb[0].mxu0 %v3168
    %v3361 = vpop.f32.mrb[0].mxu0
    %v3362 = vadd.f32 %v3265, %v3361
    %v3363 = vpop.f32.mrb[0].mxu0
    %v3364 = vpop.f32.mrb[0].mxu0
    %v3365 = vadd.f32 %v3268, %v3364
    %v3366 = vpop.f32.mrb[0].mxu0
    %3367 = vmatprep.mubr.bf16.mxu0 %v3173
    %3368 = vmatmul.mubr.bf16.gmra.mrb[0].mxu0 %v3172
    %v3369 = vpop.f32.mrb[0].mxu0
    %v3370 = vadd.f32 %v3273, %v3369
    %v3371 = vpop.f32.mrb[0].mxu0
    %v3372 = vpop.f32.mrb[0].mxu0
    %v3373 = vadd.f32 %v3276, %v3372
    %v3374 = vpop.f32.mrb[0].mxu0
    %3375 = vmatprep.mubr.bf16.mxu0 %v3177
    %3376 = vmatmul.mubr.bf16.gmra.mrb[0].mxu0 %v3176
    %v3377 = vpop.f32.mrb[0].mxu0
    %v3378 = vadd.f32 %v3281, %v3377
    %v3379 = vpop.f32.mrb[0].mxu0
    %v3380 = vpop.f32.mrb[0].mxu0
    %v3381 = vadd.f32 %v3284, %v3380
    %v3382 = vpop.f32.mrb[0].mxu0
    %3383 = vmatprep.mubr.bf16.mxu0 %v3181
    %3384 = vmatmul.mubr.bf16.gmra.mrb[0].mxu0 %v3180
    %v3385 = vpop.f32.mrb[0].mxu0
    %v3386 = vadd.f32 %v3289, %v3385
    %v3387 = vpop.f32.mrb[0].mxu0
    %v3388 = vpop.f32.mrb[0].mxu0
    %v3389 = vadd.f32 %v3292, %v3388
    %v3390 = vpop.f32.mrb[0].mxu0
    %3391 = vmatprep.mubr.bf16.mxu0 %v3185
    %3392 = vmatmul.mubr.bf16.gmra.mrb[0].mxu0 %v3184
    %v3393 = vpop.f32.mrb[0].mxu0
    %v3394 = vadd.f32 %v3297, %v3393
    %v3395 = vpop.f32.mrb[0].mxu0
    %v3396 = vpop.f32.mrb[0].mxu0
    %v3397 = vadd.f32 %v3300, %v3396
    %v3398 = vpop.f32.mrb[0].mxu0
    %3399 = vmatprep.mubr.bf16.mxu0 %v3189
    %3400 = vmatmul.mubr.bf16.gmra.mrb[0].mxu0 %v3188
    %v3401 = vpop.f32.mrb[0].mxu0
    %v3402 = vadd.f32 %v3305, %v3401
    %v3403 = vpop.f32.mrb[0].mxu0
    %v3404 = vpop.f32.mrb[0].mxu0
    %v3405 = vadd.f32 %v3308, %v3404
    %v3406 = vpop.f32.mrb[0].mxu0
    %3407 = vmatprep.mubr.bf16.mxu0 %v3193
    %3408 = vmatmul.mubr.bf16.gmra.mrb[0].mxu0 %v3192
    %v3409 = vpop.f32.mrb[0].mxu0
    %v3410 = vadd.f32 %v3313, %v3409
    %v3411 = vpop.f32.mrb[0].mxu0
    %v3412 = vpop.f32.mrb[0].mxu0
    %v3413 = vadd.f32 %v3316, %v3412
    %v3414 = vpop.f32.mrb[0].mxu0
    %3415 = vmatprep.mubr.bf16.mxu0 %v3197
    %3416 = vmatmul.mubr.bf16.gmra.mrb[0].mxu0 %v3196
    %v3417 = vpop.f32.mrb[0].mxu0
    %v3418 = vadd.f32 %v3321, %v3417
    %v3419 = vpop.f32.mrb[0].mxu0
    %v3420 = vpop.f32.mrb[0].mxu0
    %v3421 = vadd.f32 %v3324, %v3420
    %v3422 = vpop.f32.mrb[0].mxu0
    %3423 = vdwg.mxu0
    %v3424 = vpack.c.bf16 %v3365, %v3362
    %v3425 = vpack.c.bf16 %v3373, %v3370
    %v3426 = vpack.c.bf16 %v3381, %v3378
    %v3427 = vpack.c.bf16 %v3389, %v3386
    %v3428 = vpack.c.bf16 %v3397, %v3394
    %v3429 = vpack.c.bf16 %v3405, %v3402
    %v3430 = vpack.c.bf16 %v3413, %v3410
    %v3431 = vpack.c.bf16 %v3421, %v3418
    %s3432 = scalar_lea.vmem [#allocation7], 256
    %v3433 = vld [vmem:[%s3432] sm:$0xf]
    %v3434 = vld [vmem:[%s3432 + $0x4] sm:$0xf]
    %v3435 = vld [vmem:[%s3432 + $0x8] sm:$0xf]
    %v3436 = vld [vmem:[%s3432 + $0xc] sm:$0xf]
    %v3437 = vld [vmem:[%s3432 + $0x10] sm:$0xf]
    %v3438 = vld [vmem:[%s3432 + $0x14] sm:$0xf]
    %v3439 = vld [vmem:[%s3432 + $0x18] sm:$0xf]
    %v3440 = vld [vmem:[%s3432 + $0x1c] sm:$0xf]
    %v3441 = vld [vmem:[%s3432 + $0x20] sm:$0xf]
    %v3442 = vld [vmem:[%s3432 + $0x24] sm:$0xf]
    %v3443 = vld [vmem:[%s3432 + $0x28] sm:$0xf]
    %v3444 = vld [vmem:[%s3432 + $0x2c] sm:$0xf]
    %v3445 = vld [vmem:[%s3432 + $0x30] sm:$0xf]
    %v3446 = vld [vmem:[%s3432 + $0x34] sm:$0xf]
    %v3447 = vld [vmem:[%s3432 + $0x38] sm:$0xf]
    %v3448 = vld [vmem:[%s3432 + $0x3c] sm:$0xf]
    %v3465 = vunpack.c.l.b16 %v3433
    %v3466 = vunpack.c.l.b16 %v3434
    %v3467 = vunpack.c.l.b16 %v3435
    %v3468 = vunpack.c.l.b16 %v3436
    %v3469 = vunpack.c.l.b16 %v3437
    %v3470 = vunpack.c.l.b16 %v3438
    %v3471 = vunpack.c.l.b16 %v3439
    %v3472 = vunpack.c.l.b16 %v3440
    %v3473 = vunpack.c.l.b16 %v3441
    %v3474 = vunpack.c.l.b16 %v3442
    %v3475 = vunpack.c.l.b16 %v3443
    %v3476 = vunpack.c.l.b16 %v3444
    %v3477 = vunpack.c.l.b16 %v3445
    %v3478 = vunpack.c.l.b16 %v3446
    %v3479 = vunpack.c.l.b16 %v3447
    %v3480 = vunpack.c.l.b16 %v3448
    %v3481 = vpack.c.b16 %v3466, %v3465
    %v3482 = vpack.c.b16 %v3468, %v3467
    %v3483 = vpack.c.b16 %v3470, %v3469
    %v3484 = vpack.c.b16 %v3472, %v3471
    %v3485 = vpack.c.b16 %v3474, %v3473
    %v3486 = vpack.c.b16 %v3476, %v3475
    %v3487 = vpack.c.b16 %v3478, %v3477
    %v3488 = vpack.c.b16 %v3480, %v3479
    %3497 = vmatprep.subr.bf16.mxu0 0
    %3498 = vmatpush1.bf16.msra.mxu0 %v3481
    %3499 = vmatprep.subr.bf16.mxu0 0
    %3500 = vmatpush1.bf16.msra.mxu0 %v3482
    %3501 = vmatprep.subr.bf16.mxu0 0
    %3502 = vmatpush1.bf16.msra.mxu0 %v3483
    %3503 = vmatprep.subr.bf16.mxu0 0
    %3504 = vmatpush1.bf16.msra.mxu0 %v3484
    %3505 = vmatprep.subr.bf16.mxu0 0
    %3506 = vmatpush1.bf16.msra.mxu0 %v3485
    %3507 = vmatprep.subr.bf16.mxu0 0
    %3508 = vmatpush1.bf16.msra.mxu0 %v3486
    %3509 = vmatprep.subr.bf16.mxu0 0
    %3510 = vmatpush1.bf16.msra.mxu0 %v3487
    %3511 = vmatprep.subr.bf16.mxu0 0
    %3512 = vmatpush1.bf16.msra.mxu0 %v3488
    %3513 = vmatprep.subr.bf16.mxu0 0
    %3514 = vmatpush1.bf16.msra.mxu0 0
    %3515 = vmatprep.subr.bf16.mxu0 0
    %3516 = vmatpush1.bf16.msra.mxu0 0
    %3517 = vmatprep.subr.bf16.mxu0 0
    %3518 = vmatpush1.bf16.msra.mxu0 0
    %3519 = vmatprep.subr.bf16.mxu0 0
    %3520 = vmatpush1.bf16.msra.mxu0 0
    %3521 = vmatprep.subr.bf16.mxu0 0
    %3522 = vmatpush1.bf16.msra.mxu0 0
    %3523 = vmatprep.subr.bf16.mxu0 0
    %3524 = vmatpush1.bf16.msra.mxu0 0
    %3525 = vmatprep.subr.bf16.mxu0 0
    %3526 = vmatpush1.bf16.msra.mxu0 0
    %3527 = vmatprep.subr.bf16.mxu0 0
    %3528 = vmatpush1.bf16.msra.mxu0 0
    %3529 = vmatprep.mubr.bf16.mxu0 0
    %3530 = vmatmul.mubr.bf16.gmra.mrb[0].mxu0 %v3424
    %v3531 = vpop.f32.mrb[0].mxu0
    %v3532 = vadd.f32 0.0, %v3531
    %v3533 = vpop.f32.mrb[0].mxu0
    %v3534 = vpop.f32.mrb[0].mxu0
    %v3535 = vadd.f32 0.0, %v3534
    %v3536 = vpop.f32.mrb[0].mxu0
    %3537 = vmatprep.mubr.bf16.mxu0 0
    %3538 = vmatmul.mubr.bf16.gmra.mrb[0].mxu0 %v3425
    %v3539 = vpop.f32.mrb[0].mxu0
    %v3540 = vadd.f32 0.0, %v3539
    %v3541 = vpop.f32.mrb[0].mxu0
    %v3542 = vpop.f32.mrb[0].mxu0
    %v3543 = vadd.f32 0.0, %v3542
    %v3544 = vpop.f32.mrb[0].mxu0
    %3545 = vmatprep.mubr.bf16.mxu0 0
    %3546 = vmatmul.mubr.bf16.gmra.mrb[0].mxu0 %v3426
    %v3547 = vpop.f32.mrb[0].mxu0
    %v3548 = vadd.f32 0.0, %v3547
    %v3549 = vpop.f32.mrb[0].mxu0
    %v3550 = vpop.f32.mrb[0].mxu0
    %v3551 = vadd.f32 0.0, %v3550
    %v3552 = vpop.f32.mrb[0].mxu0
    %3553 = vmatprep.mubr.bf16.mxu0 0
    %3554 = vmatmul.mubr.bf16.gmra.mrb[0].mxu0 %v3427
    %v3555 = vpop.f32.mrb[0].mxu0
    %v3556 = vadd.f32 0.0, %v3555
    %v3557 = vpop.f32.mrb[0].mxu0
    %v3558 = vpop.f32.mrb[0].mxu0
    %v3559 = vadd.f32 0.0, %v3558
    %v3560 = vpop.f32.mrb[0].mxu0
    %3561 = vmatprep.mubr.bf16.mxu0 0
    %3562 = vmatmul.mubr.bf16.gmra.mrb[0].mxu0 %v3428
    %v3563 = vpop.f32.mrb[0].mxu0
    %v3564 = vadd.f32 0.0, %v3563
    %v3565 = vpop.f32.mrb[0].mxu0
    %v3566 = vpop.f32.mrb[0].mxu0
    %v3567 = vadd.f32 0.0, %v3566
    %v3568 = vpop.f32.mrb[0].mxu0
    %3569 = vmatprep.mubr.bf16.mxu0 0
    %3570 = vmatmul.mubr.bf16.gmra.mrb[0].mxu0 %v3429
    %v3571 = vpop.f32.mrb[0].mxu0
    %v3572 = vadd.f32 0.0, %v3571
    %v3573 = vpop.f32.mrb[0].mxu0
    %v3574 = vpop.f32.mrb[0].mxu0
    %v3575 = vadd.f32 0.0, %v3574
    %v3576 = vpop.f32.mrb[0].mxu0
    %3577 = vmatprep.mubr.bf16.mxu0 0
    %3578 = vmatmul.mubr.bf16.gmra.mrb[0].mxu0 %v3430
    %v3579 = vpop.f32.mrb[0].mxu0
    %v3580 = vadd.f32 0.0, %v3579
    %v3581 = vpop.f32.mrb[0].mxu0
    %v3582 = vpop.f32.mrb[0].mxu0
    %v3583 = vadd.f32 0.0, %v3582
    %v3584 = vpop.f32.mrb[0].mxu0
    %3585 = vmatprep.mubr.bf16.mxu0 0
    %3586 = vmatmul.mubr.bf16.gmra.mrb[0].mxu0 %v3431
    %v3587 = vpop.f32.mrb[0].mxu0
    %v3588 = vadd.f32 0.0, %v3587
    %v3589 = vpop.f32.mrb[0].mxu0
    %v3590 = vpop.f32.mrb[0].mxu0
    %v3591 = vadd.f32 0.0, %v3590
    %v3592 = vpop.f32.mrb[0].mxu0
    %3593 = vdwg.mxu0
    %v3594 = vadd.f32 %v3021, %v3532
    %v3595 = vadd.f32 %v3022, %v3535
    %v3596 = vadd.f32 %v3023, %v3540
    %v3597 = vadd.f32 %v3024, %v3543
    %v3598 = vadd.f32 %v3025, %v3548
    %v3599 = vadd.f32 %v3026, %v3551
    %v3600 = vadd.f32 %v3027, %v3556
    %v3601 = vadd.f32 %v3028, %v3559
    %v3602 = vadd.f32 %v3029, %v3564
    %v3603 = vadd.f32 %v3030, %v3567
    %v3604 = vadd.f32 %v3031, %v3572
    %v3605 = vadd.f32 %v3032, %v3575
    %v3606 = vadd.f32 %v3033, %v3580
    %v3607 = vadd.f32 %v3034, %v3583
    %v3608 = vadd.f32 %v3035, %v3588
    %v3609 = vadd.f32 %v3036, %v3591
    %s3610 = scalar_lea.vmem [#allocation5], 1280
    %v3611 = vld [vmem:[%s3610] sm:$0xff]
    %v3612 = vld [vmem:[%s3610 + $0x8] sm:$0xff]
    %v3613 = vld [vmem:[%s3610 + $0x10] sm:$0xff]
    %v3614 = vld [vmem:[%s3610 + $0x18] sm:$0xff]
    %v3615 = vld [vmem:[%s3610 + $0x20] sm:$0xff]
    %v3616 = vld [vmem:[%s3610 + $0x28] sm:$0xff]
    %v3617 = vld [vmem:[%s3610 + $0x30] sm:$0xff]
    %v3618 = vld [vmem:[%s3610 + $0x38] sm:$0xff]
    %v3619 = vld [vmem:[%s3610 + $0x40] sm:$0xff]
    %v3620 = vld [vmem:[%s3610 + $0x48] sm:$0xff]
    %v3621 = vld [vmem:[%s3610 + $0x50] sm:$0xff]
    %v3622 = vld [vmem:[%s3610 + $0x58] sm:$0xff]
    %v3623 = vld [vmem:[%s3610 + $0x60] sm:$0xff]
    %v3624 = vld [vmem:[%s3610 + $0x68] sm:$0xff]
    %v3625 = vld [vmem:[%s3610 + $0x70] sm:$0xff]
    %v3626 = vld [vmem:[%s3610 + $0x78] sm:$0xff]
    %v3627 = vld [vmem:[%s3610 + $0x80] sm:$0xff]
    %v3628 = vld [vmem:[%s3610 + $0x88] sm:$0xff]
    %v3629 = vld [vmem:[%s3610 + $0x90] sm:$0xff]
    %v3630 = vld [vmem:[%s3610 + $0x98] sm:$0xff]
    %v3631 = vld [vmem:[%s3610 + $0xa0] sm:$0xff]
    %v3632 = vld [vmem:[%s3610 + $0xa8] sm:$0xff]
    %v3633 = vld [vmem:[%s3610 + $0xb0] sm:$0xff]
    %v3634 = vld [vmem:[%s3610 + $0xb8] sm:$0xff]
    %v3635 = vld [vmem:[%s3610 + $0xc0] sm:$0xff]
    %v3636 = vld [vmem:[%s3610 + $0xc8] sm:$0xff]
    %v3637 = vld [vmem:[%s3610 + $0xd0] sm:$0xff]
    %v3638 = vld [vmem:[%s3610 + $0xd8] sm:$0xff]
    %v3639 = vld [vmem:[%s3610 + $0xe0] sm:$0xff]
    %v3640 = vld [vmem:[%s3610 + $0xe8] sm:$0xff]
    %v3641 = vld [vmem:[%s3610 + $0xf0] sm:$0xff]
    %v3642 = vld [vmem:[%s3610 + $0xf8] sm:$0xff]
    %v3675 = vunpack.c.l.b16 %v3611
    %v3676 = vunpack.c.h.b16 %v3611
    %v3677 = vunpack.c.l.b16 %v3612
    %v3678 = vunpack.c.h.b16 %v3612
    %v3679 = vunpack.c.l.b16 %v3613
    %v3680 = vunpack.c.h.b16 %v3613
    %v3681 = vunpack.c.l.b16 %v3614
    %v3682 = vunpack.c.h.b16 %v3614
    %v3683 = vunpack.c.l.b16 %v3615
    %v3684 = vunpack.c.h.b16 %v3615
    %v3685 = vunpack.c.l.b16 %v3616
    %v3686 = vunpack.c.h.b16 %v3616
    %v3687 = vunpack.c.l.b16 %v3617
    %v3688 = vunpack.c.h.b16 %v3617
    %v3689 = vunpack.c.l.b16 %v3618
    %v3690 = vunpack.c.h.b16 %v3618
    %v3691 = vunpack.c.l.b16 %v3619
    %v3692 = vunpack.c.h.b16 %v3619
    %v3693 = vunpack.c.l.b16 %v3620
    %v3694 = vunpack.c.h.b16 %v3620
    %v3695 = vunpack.c.l.b16 %v3621
    %v3696 = vunpack.c.h.b16 %v3621
    %v3697 = vunpack.c.l.b16 %v3622
    %v3698 = vunpack.c.h.b16 %v3622
    %v3699 = vunpack.c.l.b16 %v3623
    %v3700 = vunpack.c.h.b16 %v3623
    %v3701 = vunpack.c.l.b16 %v3624
    %v3702 = vunpack.c.h.b16 %v3624
    %v3703 = vunpack.c.l.b16 %v3625
    %v3704 = vunpack.c.h.b16 %v3625
    %v3705 = vunpack.c.l.b16 %v3626
    %v3706 = vunpack.c.h.b16 %v3626
    %v3707 = vunpack.c.l.b16 %v3627
    %v3708 = vunpack.c.h.b16 %v3627
    %v3709 = vunpack.c.l.b16 %v3628
    %v3710 = vunpack.c.h.b16 %v3628
    %v3711 = vunpack.c.l.b16 %v3629
    %v3712 = vunpack.c.h.b16 %v3629
    %v3713 = vunpack.c.l.b16 %v3630
    %v3714 = vunpack.c.h.b16 %v3630
    %v3715 = vunpack.c.l.b16 %v3631
    %v3716 = vunpack.c.h.b16 %v3631
    %v3717 = vunpack.c.l.b16 %v3632
    %v3718 = vunpack.c.h.b16 %v3632
    %v3719 = vunpack.c.l.b16 %v3633
    %v3720 = vunpack.c.h.b16 %v3633
    %v3721 = vunpack.c.l.b16 %v3634
    %v3722 = vunpack.c.h.b16 %v3634
    %v3723 = vunpack.c.l.b16 %v3635
    %v3724 = vunpack.c.h.b16 %v3635
    %v3725 = vunpack.c.l.b16 %v3636
    %v3726 = vunpack.c.h.b16 %v3636
    %v3727 = vunpack.c.l.b16 %v3637
    %v3728 = vunpack.c.h.b16 %v3637
    %v3729 = vunpack.c.l.b16 %v3638
    %v3730 = vunpack.c.h.b16 %v3638
    %v3731 = vunpack.c.l.b16 %v3639
    %v3732 = vunpack.c.h.b16 %v3639
    %v3733 = vunpack.c.l.b16 %v3640
    %v3734 = vunpack.c.h.b16 %v3640
    %v3735 = vunpack.c.l.b16 %v3641
    %v3736 = vunpack.c.h.b16 %v3641
    %v3737 = vunpack.c.l.b16 %v3642
    %v3738 = vunpack.c.h.b16 %v3642
    %v3739 = vpack.c.b16 %v3679, %v3675
    %v3740 = vpack.c.b16 %v3680, %v3676
    %v3741 = vpack.c.b16 %v3681, %v3677
    %v3742 = vpack.c.b16 %v3682, %v3678
    %v3743 = vpack.c.b16 %v3687, %v3683
    %v3744 = vpack.c.b16 %v3688, %v3684
    %v3745 = vpack.c.b16 %v3689, %v3685
    %v3746 = vpack.c.b16 %v3690, %v3686
    %v3747 = vpack.c.b16 %v3695, %v3691
    %v3748 = vpack.c.b16 %v3696, %v3692
    %v3749 = vpack.c.b16 %v3697, %v3693
    %v3750 = vpack.c.b16 %v3698, %v3694
    %v3751 = vpack.c.b16 %v3703, %v3699
    %v3752 = vpack.c.b16 %v3704, %v3700
    %v3753 = vpack.c.b16 %v3705, %v3701
    %v3754 = vpack.c.b16 %v3706, %v3702
    %v3755 = vpack.c.b16 %v3711, %v3707
    %v3756 = vpack.c.b16 %v3712, %v3708
    %v3757 = vpack.c.b16 %v3713, %v3709
    %v3758 = vpack.c.b16 %v3714, %v3710
    %v3759 = vpack.c.b16 %v3719, %v3715
    %v3760 = vpack.c.b16 %v3720, %v3716
    %v3761 = vpack.c.b16 %v3721, %v3717
    %v3762 = vpack.c.b16 %v3722, %v3718
    %v3763 = vpack.c.b16 %v3727, %v3723
    %v3764 = vpack.c.b16 %v3728, %v3724
    %v3765 = vpack.c.b16 %v3729, %v3725
    %v3766 = vpack.c.b16 %v3730, %v3726
    %v3767 = vpack.c.b16 %v3735, %v3731
    %v3768 = vpack.c.b16 %v3736, %v3732
    %v3769 = vpack.c.b16 %v3737, %v3733
    %v3770 = vpack.c.b16 %v3738, %v3734
    %3803 = vmatprep.subr.bf16.mxu0 0
    %3804 = vmatpush1.bf16.msra.mxu0 %v907
    %3805 = vmatprep.subr.bf16.mxu0 0
    %3806 = vmatpush1.bf16.msra.mxu0 %v908
    %3807 = vmatprep.subr.bf16.mxu0 0
    %3808 = vmatpush1.bf16.msra.mxu0 %v909
    %3809 = vmatprep.subr.bf16.mxu0 0
    %3810 = vmatpush1.bf16.msra.mxu0 %v910
    %3811 = vmatprep.subr.bf16.mxu0 0
    %3812 = vmatpush1.bf16.msra.mxu0 %v911
    %3813 = vmatprep.subr.bf16.mxu0 0
    %3814 = vmatpush1.bf16.msra.mxu0 %v912
    %3815 = vmatprep.subr.bf16.mxu0 0
    %3816 = vmatpush1.bf16.msra.mxu0 %v913
    %3817 = vmatprep.subr.bf16.mxu0 0
    %3818 = vmatpush1.bf16.msra.mxu0 %v914
    %3819 = vmatprep.subr.bf16.mxu0 0
    %3820 = vmatpush1.bf16.msra.mxu0 %v915
    %3821 = vmatprep.subr.bf16.mxu0 0
    %3822 = vmatpush1.bf16.msra.mxu0 %v916
    %3823 = vmatprep.subr.bf16.mxu0 0
    %3824 = vmatpush1.bf16.msra.mxu0 %v917
    %3825 = vmatprep.subr.bf16.mxu0 0
    %3826 = vmatpush1.bf16.msra.mxu0 %v918
    %3827 = vmatprep.subr.bf16.mxu0 0
    %3828 = vmatpush1.bf16.msra.mxu0 %v919
    %3829 = vmatprep.subr.bf16.mxu0 0
    %3830 = vmatpush1.bf16.msra.mxu0 %v920
    %3831 = vmatprep.subr.bf16.mxu0 0
    %3832 = vmatpush1.bf16.msra.mxu0 %v921
    %3833 = vmatprep.subr.bf16.mxu0 0
    %3834 = vmatpush1.bf16.msra.mxu0 %v922
    %3835 = vmatprep.mubr.bf16.mxu0 %v3740
    %3836 = vmatmul.mubr.bf16.gmra.mrb[0].mxu0 %v3739
    %v3837 = vpop.f32.mrb[0].mxu0
    %v3838 = vadd.f32 0.0, %v3837
    %v3839 = vpop.f32.mrb[0].mxu0
    %v3840 = vpop.f32.mrb[0].mxu0
    %v3841 = vadd.f32 0.0, %v3840
    %v3842 = vpop.f32.mrb[0].mxu0
    %3843 = vmatprep.mubr.bf16.mxu0 %v3744
    %3844 = vmatmul.mubr.bf16.gmra.mrb[0].mxu0 %v3743
    %v3845 = vpop.f32.mrb[0].mxu0
    %v3846 = vadd.f32 0.0, %v3845
    %v3847 = vpop.f32.mrb[0].mxu0
    %v3848 = vpop.f32.mrb[0].mxu0
    %v3849 = vadd.f32 0.0, %v3848
    %v3850 = vpop.f32.mrb[0].mxu0
    %3851 = vmatprep.mubr.bf16.mxu0 %v3748
    %3852 = vmatmul.mubr.bf16.gmra.mrb[0].mxu0 %v3747
    %v3853 = vpop.f32.mrb[0].mxu0
    %v3854 = vadd.f32 0.0, %v3853
    %v3855 = vpop.f32.mrb[0].mxu0
    %v3856 = vpop.f32.mrb[0].mxu0
    %v3857 = vadd.f32 0.0, %v3856
    %v3858 = vpop.f32.mrb[0].mxu0
    %3859 = vmatprep.mubr.bf16.mxu0 %v3752
    %3860 = vmatmul.mubr.bf16.gmra.mrb[0].mxu0 %v3751
    %v3861 = vpop.f32.mrb[0].mxu0
    %v3862 = vadd.f32 0.0, %v3861
    %v3863 = vpop.f32.mrb[0].mxu0
    %v3864 = vpop.f32.mrb[0].mxu0
    %v3865 = vadd.f32 0.0, %v3864
    %v3866 = vpop.f32.mrb[0].mxu0
    %3867 = vmatprep.mubr.bf16.mxu0 %v3756
    %3868 = vmatmul.mubr.bf16.gmra.mrb[0].mxu0 %v3755
    %v3869 = vpop.f32.mrb[0].mxu0
    %v3870 = vadd.f32 0.0, %v3869
    %v3871 = vpop.f32.mrb[0].mxu0
    %v3872 = vpop.f32.mrb[0].mxu0
    %v3873 = vadd.f32 0.0, %v3872
    %v3874 = vpop.f32.mrb[0].mxu0
    %3875 = vmatprep.mubr.bf16.mxu0 %v3760
    %3876 = vmatmul.mubr.bf16.gmra.mrb[0].mxu0 %v3759
    %v3877 = vpop.f32.mrb[0].mxu0
    %v3878 = vadd.f32 0.0, %v3877
    %v3879 = vpop.f32.mrb[0].mxu0
    %v3880 = vpop.f32.mrb[0].mxu0
    %v3881 = vadd.f32 0.0, %v3880
    %v3882 = vpop.f32.mrb[0].mxu0
    %3883 = vmatprep.mubr.bf16.mxu0 %v3764
    %3884 = vmatmul.mubr.bf16.gmra.mrb[0].mxu0 %v3763
    %v3885 = vpop.f32.mrb[0].mxu0
    %v3886 = vadd.f32 0.0, %v3885
    %v3887 = vpop.f32.mrb[0].mxu0
    %v3888 = vpop.f32.mrb[0].mxu0
    %v3889 = vadd.f32 0.0, %v3888
    %v3890 = vpop.f32.mrb[0].mxu0
    %3891 = vmatprep.mubr.bf16.mxu0 %v3768
    %3892 = vmatmul.mubr.bf16.gmra.mrb[0].mxu0 %v3767
    %v3893 = vpop.f32.mrb[0].mxu0
    %v3894 = vadd.f32 0.0, %v3893
    %v3895 = vpop.f32.mrb[0].mxu0
    %v3896 = vpop.f32.mrb[0].mxu0
    %v3897 = vadd.f32 0.0, %v3896
    %v3898 = vpop.f32.mrb[0].mxu0
    %3899 = vdwg.mxu0
    %3900 = vmatprep.subr.bf16.mxu0 0
    %3901 = vmatpush1.bf16.msra.mxu0 %v923
    %3902 = vmatprep.subr.bf16.mxu0 0
    %3903 = vmatpush1.bf16.msra.mxu0 %v924
    %3904 = vmatprep.subr.bf16.mxu0 0
    %3905 = vmatpush1.bf16.msra.mxu0 %v925
    %3906 = vmatprep.subr.bf16.mxu0 0
    %3907 = vmatpush1.bf16.msra.mxu0 %v926
    %3908 = vmatprep.subr.bf16.mxu0 0
    %3909 = vmatpush1.bf16.msra.mxu0 %v927
    %3910 = vmatprep.subr.bf16.mxu0 0
    %3911 = vmatpush1.bf16.msra.mxu0 %v928
    %3912 = vmatprep.subr.bf16.mxu0 0
    %3913 = vmatpush1.bf16.msra.mxu0 %v929
    %3914 = vmatprep.subr.bf16.mxu0 0
    %3915 = vmatpush1.bf16.msra.mxu0 %v930
    %3916 = vmatprep.subr.bf16.mxu0 0
    %3917 = vmatpush1.bf16.msra.mxu0 %v931
    %3918 = vmatprep.subr.bf16.mxu0 0
    %3919 = vmatpush1.bf16.msra.mxu0 %v932
    %3920 = vmatprep.subr.bf16.mxu0 0
    %3921 = vmatpush1.bf16.msra.mxu0 %v933
    %3922 = vmatprep.subr.bf16.mxu0 0
    %3923 = vmatpush1.bf16.msra.mxu0 %v934
    %3924 = vmatprep.subr.bf16.mxu0 0
    %3925 = vmatpush1.bf16.msra.mxu0 %v935
    %3926 = vmatprep.subr.bf16.mxu0 0
    %3927 = vmatpush1.bf16.msra.mxu0 %v936
    %3928 = vmatprep.subr.bf16.mxu0 0
    %3929 = vmatpush1.bf16.msra.mxu0 %v937
    %3930 = vmatprep.subr.bf16.mxu0 0
    %3931 = vmatpush1.bf16.msra.mxu0 %v938
    %3932 = vmatprep.mubr.bf16.mxu0 %v3742
    %3933 = vmatmul.mubr.bf16.gmra.mrb[0].mxu0 %v3741
    %v3934 = vpop.f32.mrb[0].mxu0
    %v3935 = vadd.f32 %v3838, %v3934
    %v3936 = vpop.f32.mrb[0].mxu0
    %v3937 = vpop.f32.mrb[0].mxu0
    %v3938 = vadd.f32 %v3841, %v3937
    %v3939 = vpop.f32.mrb[0].mxu0
    %3940 = vmatprep.mubr.bf16.mxu0 %v3746
    %3941 = vmatmul.mubr.bf16.gmra.mrb[0].mxu0 %v3745
    %v3942 = vpop.f32.mrb[0].mxu0
    %v3943 = vadd.f32 %v3846, %v3942
    %v3944 = vpop.f32.mrb[0].mxu0
    %v3945 = vpop.f32.mrb[0].mxu0
    %v3946 = vadd.f32 %v3849, %v3945
    %v3947 = vpop.f32.mrb[0].mxu0
    %3948 = vmatprep.mubr.bf16.mxu0 %v3750
    %3949 = vmatmul.mubr.bf16.gmra.mrb[0].mxu0 %v3749
    %v3950 = vpop.f32.mrb[0].mxu0
    %v3951 = vadd.f32 %v3854, %v3950
    %v3952 = vpop.f32.mrb[0].mxu0
    %v3953 = vpop.f32.mrb[0].mxu0
    %v3954 = vadd.f32 %v3857, %v3953
    %v3955 = vpop.f32.mrb[0].mxu0
    %3956 = vmatprep.mubr.bf16.mxu0 %v3754
    %3957 = vmatmul.mubr.bf16.gmra.mrb[0].mxu0 %v3753
    %v3958 = vpop.f32.mrb[0].mxu0
    %v3959 = vadd.f32 %v3862, %v3958
    %v3960 = vpop.f32.mrb[0].mxu0
    %v3961 = vpop.f32.mrb[0].mxu0
    %v3962 = vadd.f32 %v3865, %v3961
    %v3963 = vpop.f32.mrb[0].mxu0
    %3964 = vmatprep.mubr.bf16.mxu0 %v3758
    %3965 = vmatmul.mubr.bf16.gmra.mrb[0].mxu0 %v3757
    %v3966 = vpop.f32.mrb[0].mxu0
    %v3967 = vadd.f32 %v3870, %v3966
    %v3968 = vpop.f32.mrb[0].mxu0
    %v3969 = vpop.f32.mrb[0].mxu0
    %v3970 = vadd.f32 %v3873, %v3969
    %v3971 = vpop.f32.mrb[0].mxu0
    %3972 = vmatprep.mubr.bf16.mxu0 %v3762
    %3973 = vmatmul.mubr.bf16.gmra.mrb[0].mxu0 %v3761
    %v3974 = vpop.f32.mrb[0].mxu0
    %v3975 = vadd.f32 %v3878, %v3974
    %v3976 = vpop.f32.mrb[0].mxu0
    %v3977 = vpop.f32.mrb[0].mxu0
    %v3978 = vadd.f32 %v3881, %v3977
    %v3979 = vpop.f32.mrb[0].mxu0
    %3980 = vmatprep.mubr.bf16.mxu0 %v3766
    %3981 = vmatmul.mubr.bf16.gmra.mrb[0].mxu0 %v3765
    %v3982 = vpop.f32.mrb[0].mxu0
    %v3983 = vadd.f32 %v3886, %v3982
    %v3984 = vpop.f32.mrb[0].mxu0
    %v3985 = vpop.f32.mrb[0].mxu0
    %v3986 = vadd.f32 %v3889, %v3985
    %v3987 = vpop.f32.mrb[0].mxu0
    %3988 = vmatprep.mubr.bf16.mxu0 %v3770
    %3989 = vmatmul.mubr.bf16.gmra.mrb[0].mxu0 %v3769
    %v3990 = vpop.f32.mrb[0].mxu0
    %v3991 = vadd.f32 %v3894, %v3990
    %v3992 = vpop.f32.mrb[0].mxu0
    %v3993 = vpop.f32.mrb[0].mxu0
    %v3994 = vadd.f32 %v3897, %v3993
    %v3995 = vpop.f32.mrb[0].mxu0
    %3996 = vdwg.mxu0
    %v3997 = vpack.c.bf16 %v3938, %v3935
    %v3998 = vpack.c.bf16 %v3946, %v3943
    %v3999 = vpack.c.bf16 %v3954, %v3951
    %v4000 = vpack.c.bf16 %v3962, %v3959
    %v4001 = vpack.c.bf16 %v3970, %v3967
    %v4002 = vpack.c.bf16 %v3978, %v3975
    %v4003 = vpack.c.bf16 %v3986, %v3983
    %v4004 = vpack.c.bf16 %v3994, %v3991
    %s4005 = scalar_lea.vmem [#allocation7], 320
    %v4006 = vld [vmem:[%s4005] sm:$0xf]
    %v4007 = vld [vmem:[%s4005 + $0x4] sm:$0xf]
    %v4008 = vld [vmem:[%s4005 + $0x8] sm:$0xf]
    %v4009 = vld [vmem:[%s4005 + $0xc] sm:$0xf]
    %v4010 = vld [vmem:[%s4005 + $0x10] sm:$0xf]
    %v4011 = vld [vmem:[%s4005 + $0x14] sm:$0xf]
    %v4012 = vld [vmem:[%s4005 + $0x18] sm:$0xf]
    %v4013 = vld [vmem:[%s4005 + $0x1c] sm:$0xf]
    %v4014 = vld [vmem:[%s4005 + $0x20] sm:$0xf]
    %v4015 = vld [vmem:[%s4005 + $0x24] sm:$0xf]
    %v4016 = vld [vmem:[%s4005 + $0x28] sm:$0xf]
    %v4017 = vld [vmem:[%s4005 + $0x2c] sm:$0xf]
    %v4018 = vld [vmem:[%s4005 + $0x30] sm:$0xf]
    %v4019 = vld [vmem:[%s4005 + $0x34] sm:$0xf]
    %v4020 = vld [vmem:[%s4005 + $0x38] sm:$0xf]
    %v4021 = vld [vmem:[%s4005 + $0x3c] sm:$0xf]
    %v4038 = vunpack.c.l.b16 %v4006
    %v4039 = vunpack.c.l.b16 %v4007
    %v4040 = vunpack.c.l.b16 %v4008
    %v4041 = vunpack.c.l.b16 %v4009
    %v4042 = vunpack.c.l.b16 %v4010
    %v4043 = vunpack.c.l.b16 %v4011
    %v4044 = vunpack.c.l.b16 %v4012
    %v4045 = vunpack.c.l.b16 %v4013
    %v4046 = vunpack.c.l.b16 %v4014
    %v4047 = vunpack.c.l.b16 %v4015
    %v4048 = vunpack.c.l.b16 %v4016
    %v4049 = vunpack.c.l.b16 %v4017
    %v4050 = vunpack.c.l.b16 %v4018
    %v4051 = vunpack.c.l.b16 %v4019
    %v4052 = vunpack.c.l.b16 %v4020
    %v4053 = vunpack.c.l.b16 %v4021
    %v4054 = vpack.c.b16 %v4039, %v4038
    %v4055 = vpack.c.b16 %v4041, %v4040
    %v4056 = vpack.c.b16 %v4043, %v4042
    %v4057 = vpack.c.b16 %v4045, %v4044
    %v4058 = vpack.c.b16 %v4047, %v4046
    %v4059 = vpack.c.b16 %v4049, %v4048
    %v4060 = vpack.c.b16 %v4051, %v4050
    %v4061 = vpack.c.b16 %v4053, %v4052
    %4070 = vmatprep.subr.bf16.mxu0 0
    %4071 = vmatpush1.bf16.msra.mxu0 %v4054
    %4072 = vmatprep.subr.bf16.mxu0 0
    %4073 = vmatpush1.bf16.msra.mxu0 %v4055
    %4074 = vmatprep.subr.bf16.mxu0 0
    %4075 = vmatpush1.bf16.msra.mxu0 %v4056
    %4076 = vmatprep.subr.bf16.mxu0 0
    %4077 = vmatpush1.bf16.msra.mxu0 %v4057
    %4078 = vmatprep.subr.bf16.mxu0 0
    %4079 = vmatpush1.bf16.msra.mxu0 %v4058
    %4080 = vmatprep.subr.bf16.mxu0 0
    %4081 = vmatpush1.bf16.msra.mxu0 %v4059
    %4082 = vmatprep.subr.bf16.mxu0 0
    %4083 = vmatpush1.bf16.msra.mxu0 %v4060
    %4084 = vmatprep.subr.bf16.mxu0 0
    %4085 = vmatpush1.bf16.msra.mxu0 %v4061
    %4086 = vmatprep.subr.bf16.mxu0 0
    %4087 = vmatpush1.bf16.msra.mxu0 0
    %4088 = vmatprep.subr.bf16.mxu0 0
    %4089 = vmatpush1.bf16.msra.mxu0 0
    %4090 = vmatprep.subr.bf16.mxu0 0
    %4091 = vmatpush1.bf16.msra.mxu0 0
    %4092 = vmatprep.subr.bf16.mxu0 0
    %4093 = vmatpush1.bf16.msra.mxu0 0
    %4094 = vmatprep.subr.bf16.mxu0 0
    %4095 = vmatpush1.bf16.msra.mxu0 0
    %4096 = vmatprep.subr.bf16.mxu0 0
    %4097 = vmatpush1.bf16.msra.mxu0 0
    %4098 = vmatprep.subr.bf16.mxu0 0
    %4099 = vmatpush1.bf16.msra.mxu0 0
    %4100 = vmatprep.subr.bf16.mxu0 0
    %4101 = vmatpush1.bf16.msra.mxu0 0
    %4102 = vmatprep.mubr.bf16.mxu0 0
    %4103 = vmatmul.mubr.bf16.gmra.mrb[0].mxu0 %v3997
    %v4104 = vpop.f32.mrb[0].mxu0
    %v4105 = vadd.f32 0.0, %v4104
    %v4106 = vpop.f32.mrb[0].mxu0
    %v4107 = vpop.f32.mrb[0].mxu0
    %v4108 = vadd.f32 0.0, %v4107
    %v4109 = vpop.f32.mrb[0].mxu0
    %4110 = vmatprep.mubr.bf16.mxu0 0
    %4111 = vmatmul.mubr.bf16.gmra.mrb[0].mxu0 %v3998
    %v4112 = vpop.f32.mrb[0].mxu0
    %v4113 = vadd.f32 0.0, %v4112
    %v4114 = vpop.f32.mrb[0].mxu0
    %v4115 = vpop.f32.mrb[0].mxu0
    %v4116 = vadd.f32 0.0, %v4115
    %v4117 = vpop.f32.mrb[0].mxu0
    %4118 = vmatprep.mubr.bf16.mxu0 0
    %4119 = vmatmul.mubr.bf16.gmra.mrb[0].mxu0 %v3999
    %v4120 = vpop.f32.mrb[0].mxu0
    %v4121 = vadd.f32 0.0, %v4120
    %v4122 = vpop.f32.mrb[0].mxu0
    %v4123 = vpop.f32.mrb[0].mxu0
    %v4124 = vadd.f32 0.0, %v4123
    %v4125 = vpop.f32.mrb[0].mxu0
    %4126 = vmatprep.mubr.bf16.mxu0 0
    %4127 = vmatmul.mubr.bf16.gmra.mrb[0].mxu0 %v4000
    %v4128 = vpop.f32.mrb[0].mxu0
    %v4129 = vadd.f32 0.0, %v4128
    %v4130 = vpop.f32.mrb[0].mxu0
    %v4131 = vpop.f32.mrb[0].mxu0
    %v4132 = vadd.f32 0.0, %v4131
    %v4133 = vpop.f32.mrb[0].mxu0
    %4134 = vmatprep.mubr.bf16.mxu0 0
    %4135 = vmatmul.mubr.bf16.gmra.mrb[0].mxu0 %v4001
    %v4136 = vpop.f32.mrb[0].mxu0
    %v4137 = vadd.f32 0.0, %v4136
    %v4138 = vpop.f32.mrb[0].mxu0
    %v4139 = vpop.f32.mrb[0].mxu0
    %v4140 = vadd.f32 0.0, %v4139
    %v4141 = vpop.f32.mrb[0].mxu0
    %4142 = vmatprep.mubr.bf16.mxu0 0
    %4143 = vmatmul.mubr.bf16.gmra.mrb[0].mxu0 %v4002
    %v4144 = vpop.f32.mrb[0].mxu0
    %v4145 = vadd.f32 0.0, %v4144
    %v4146 = vpop.f32.mrb[0].mxu0
    %v4147 = vpop.f32.mrb[0].mxu0
    %v4148 = vadd.f32 0.0, %v4147
    %v4149 = vpop.f32.mrb[0].mxu0
    %4150 = vmatprep.mubr.bf16.mxu0 0
    %4151 = vmatmul.mubr.bf16.gmra.mrb[0].mxu0 %v4003
    %v4152 = vpop.f32.mrb[0].mxu0
    %v4153 = vadd.f32 0.0, %v4152
    %v4154 = vpop.f32.mrb[0].mxu0
    %v4155 = vpop.f32.mrb[0].mxu0
    %v4156 = vadd.f32 0.0, %v4155
    %v4157 = vpop.f32.mrb[0].mxu0
    %4158 = vmatprep.mubr.bf16.mxu0 0
    %4159 = vmatmul.mubr.bf16.gmra.mrb[0].mxu0 %v4004
    %v4160 = vpop.f32.mrb[0].mxu0
    %v4161 = vadd.f32 0.0, %v4160
    %v4162 = vpop.f32.mrb[0].mxu0
    %v4163 = vpop.f32.mrb[0].mxu0
    %v4164 = vadd.f32 0.0, %v4163
    %v4165 = vpop.f32.mrb[0].mxu0
    %4166 = vdwg.mxu0
    %v4167 = vadd.f32 %v3594, %v4105
    %v4168 = vadd.f32 %v3595, %v4108
    %v4169 = vadd.f32 %v3596, %v4113
    %v4170 = vadd.f32 %v3597, %v4116
    %v4171 = vadd.f32 %v3598, %v4121
    %v4172 = vadd.f32 %v3599, %v4124
    %v4173 = vadd.f32 %v3600, %v4129
    %v4174 = vadd.f32 %v3601, %v4132
    %v4175 = vadd.f32 %v3602, %v4137
    %v4176 = vadd.f32 %v3603, %v4140
    %v4177 = vadd.f32 %v3604, %v4145
    %v4178 = vadd.f32 %v3605, %v4148
    %v4179 = vadd.f32 %v3606, %v4153
    %v4180 = vadd.f32 %v3607, %v4156
    %v4181 = vadd.f32 %v3608, %v4161
    %v4182 = vadd.f32 %v3609, %v4164
    %s4183 = scalar_lea.vmem [#allocation5], 1536
    %v4184 = vld [vmem:[%s4183] sm:$0xff]
    %v4185 = vld [vmem:[%s4183 + $0x8] sm:$0xff]
    %v4186 = vld [vmem:[%s4183 + $0x10] sm:$0xff]
    %v4187 = vld [vmem:[%s4183 + $0x18] sm:$0xff]
    %v4188 = vld [vmem:[%s4183 + $0x20] sm:$0xff]
    %v4189 = vld [vmem:[%s4183 + $0x28] sm:$0xff]
    %v4190 = vld [vmem:[%s4183 + $0x30] sm:$0xff]
    %v4191 = vld [vmem:[%s4183 + $0x38] sm:$0xff]
    %v4192 = vld [vmem:[%s4183 + $0x40] sm:$0xff]
    %v4193 = vld [vmem:[%s4183 + $0x48] sm:$0xff]
    %v4194 = vld [vmem:[%s4183 + $0x50] sm:$0xff]
    %v4195 = vld [vmem:[%s4183 + $0x58] sm:$0xff]
    %v4196 = vld [vmem:[%s4183 + $0x60] sm:$0xff]
    %v4197 = vld [vmem:[%s4183 + $0x68] sm:$0xff]
    %v4198 = vld [vmem:[%s4183 + $0x70] sm:$0xff]
    %v4199 = vld [vmem:[%s4183 + $0x78] sm:$0xff]
    %v4200 = vld [vmem:[%s4183 + $0x80] sm:$0xff]
    %v4201 = vld [vmem:[%s4183 + $0x88] sm:$0xff]
    %v4202 = vld [vmem:[%s4183 + $0x90] sm:$0xff]
    %v4203 = vld [vmem:[%s4183 + $0x98] sm:$0xff]
    %v4204 = vld [vmem:[%s4183 + $0xa0] sm:$0xff]
    %v4205 = vld [vmem:[%s4183 + $0xa8] sm:$0xff]
    %v4206 = vld [vmem:[%s4183 + $0xb0] sm:$0xff]
    %v4207 = vld [vmem:[%s4183 + $0xb8] sm:$0xff]
    %v4208 = vld [vmem:[%s4183 + $0xc0] sm:$0xff]
    %v4209 = vld [vmem:[%s4183 + $0xc8] sm:$0xff]
    %v4210 = vld [vmem:[%s4183 + $0xd0] sm:$0xff]
    %v4211 = vld [vmem:[%s4183 + $0xd8] sm:$0xff]
    %v4212 = vld [vmem:[%s4183 + $0xe0] sm:$0xff]
    %v4213 = vld [vmem:[%s4183 + $0xe8] sm:$0xff]
    %v4214 = vld [vmem:[%s4183 + $0xf0] sm:$0xff]
    %v4215 = vld [vmem:[%s4183 + $0xf8] sm:$0xff]
    %v4248 = vunpack.c.l.b16 %v4184
    %v4249 = vunpack.c.h.b16 %v4184
    %v4250 = vunpack.c.l.b16 %v4185
    %v4251 = vunpack.c.h.b16 %v4185
    %v4252 = vunpack.c.l.b16 %v4186
    %v4253 = vunpack.c.h.b16 %v4186
    %v4254 = vunpack.c.l.b16 %v4187
    %v4255 = vunpack.c.h.b16 %v4187
    %v4256 = vunpack.c.l.b16 %v4188
    %v4257 = vunpack.c.h.b16 %v4188
    %v4258 = vunpack.c.l.b16 %v4189
    %v4259 = vunpack.c.h.b16 %v4189
    %v4260 = vunpack.c.l.b16 %v4190
    %v4261 = vunpack.c.h.b16 %v4190
    %v4262 = vunpack.c.l.b16 %v4191
    %v4263 = vunpack.c.h.b16 %v4191
    %v4264 = vunpack.c.l.b16 %v4192
    %v4265 = vunpack.c.h.b16 %v4192
    %v4266 = vunpack.c.l.b16 %v4193
    %v4267 = vunpack.c.h.b16 %v4193
    %v4268 = vunpack.c.l.b16 %v4194
    %v4269 = vunpack.c.h.b16 %v4194
    %v4270 = vunpack.c.l.b16 %v4195
    %v4271 = vunpack.c.h.b16 %v4195
    %v4272 = vunpack.c.l.b16 %v4196
    %v4273 = vunpack.c.h.b16 %v4196
    %v4274 = vunpack.c.l.b16 %v4197
    %v4275 = vunpack.c.h.b16 %v4197
    %v4276 = vunpack.c.l.b16 %v4198
    %v4277 = vunpack.c.h.b16 %v4198
    %v4278 = vunpack.c.l.b16 %v4199
    %v4279 = vunpack.c.h.b16 %v4199
    %v4280 = vunpack.c.l.b16 %v4200
    %v4281 = vunpack.c.h.b16 %v4200
    %v4282 = vunpack.c.l.b16 %v4201
    %v4283 = vunpack.c.h.b16 %v4201
    %v4284 = vunpack.c.l.b16 %v4202
    %v4285 = vunpack.c.h.b16 %v4202
    %v4286 = vunpack.c.l.b16 %v4203
    %v4287 = vunpack.c.h.b16 %v4203
    %v4288 = vunpack.c.l.b16 %v4204
    %v4289 = vunpack.c.h.b16 %v4204
    %v4290 = vunpack.c.l.b16 %v4205
    %v4291 = vunpack.c.h.b16 %v4205
    %v4292 = vunpack.c.l.b16 %v4206
    %v4293 = vunpack.c.h.b16 %v4206
    %v4294 = vunpack.c.l.b16 %v4207
    %v4295 = vunpack.c.h.b16 %v4207
    %v4296 = vunpack.c.l.b16 %v4208
    %v4297 = vunpack.c.h.b16 %v4208
    %v4298 = vunpack.c.l.b16 %v4209
    %v4299 = vunpack.c.h.b16 %v4209
    %v4300 = vunpack.c.l.b16 %v4210
    %v4301 = vunpack.c.h.b16 %v4210
    %v4302 = vunpack.c.l.b16 %v4211
    %v4303 = vunpack.c.h.b16 %v4211
    %v4304 = vunpack.c.l.b16 %v4212
    %v4305 = vunpack.c.h.b16 %v4212
    %v4306 = vunpack.c.l.b16 %v4213
    %v4307 = vunpack.c.h.b16 %v4213
    %v4308 = vunpack.c.l.b16 %v4214
    %v4309 = vunpack.c.h.b16 %v4214
    %v4310 = vunpack.c.l.b16 %v4215
    %v4311 = vunpack.c.h.b16 %v4215
    %v4312 = vpack.c.b16 %v4252, %v4248
    %v4313 = vpack.c.b16 %v4253, %v4249
    %v4314 = vpack.c.b16 %v4254, %v4250
    %v4315 = vpack.c.b16 %v4255, %v4251
    %v4316 = vpack.c.b16 %v4260, %v4256
    %v4317 = vpack.c.b16 %v4261, %v4257
    %v4318 = vpack.c.b16 %v4262, %v4258
    %v4319 = vpack.c.b16 %v4263, %v4259
    %v4320 = vpack.c.b16 %v4268, %v4264
    %v4321 = vpack.c.b16 %v4269, %v4265
    %v4322 = vpack.c.b16 %v4270, %v4266
    %v4323 = vpack.c.b16 %v4271, %v4267
    %v4324 = vpack.c.b16 %v4276, %v4272
    %v4325 = vpack.c.b16 %v4277, %v4273
    %v4326 = vpack.c.b16 %v4278, %v4274
    %v4327 = vpack.c.b16 %v4279, %v4275
    %v4328 = vpack.c.b16 %v4284, %v4280
    %v4329 = vpack.c.b16 %v4285, %v4281
    %v4330 = vpack.c.b16 %v4286, %v4282
    %v4331 = vpack.c.b16 %v4287, %v4283
    %v4332 = vpack.c.b16 %v4292, %v4288
    %v4333 = vpack.c.b16 %v4293, %v4289
    %v4334 = vpack.c.b16 %v4294, %v4290
    %v4335 = vpack.c.b16 %v4295, %v4291
    %v4336 = vpack.c.b16 %v4300, %v4296
    %v4337 = vpack.c.b16 %v4301, %v4297
    %v4338 = vpack.c.b16 %v4302, %v4298
    %v4339 = vpack.c.b16 %v4303, %v4299
    %v4340 = vpack.c.b16 %v4308, %v4304
    %v4341 = vpack.c.b16 %v4309, %v4305
    %v4342 = vpack.c.b16 %v4310, %v4306
    %v4343 = vpack.c.b16 %v4311, %v4307
    %4376 = vmatprep.subr.bf16.mxu0 0
    %4377 = vmatpush1.bf16.msra.mxu0 %v907
    %4378 = vmatprep.subr.bf16.mxu0 0
    %4379 = vmatpush1.bf16.msra.mxu0 %v908
    %4380 = vmatprep.subr.bf16.mxu0 0
    %4381 = vmatpush1.bf16.msra.mxu0 %v909
    %4382 = vmatprep.subr.bf16.mxu0 0
    %4383 = vmatpush1.bf16.msra.mxu0 %v910
    %4384 = vmatprep.subr.bf16.mxu0 0
    %4385 = vmatpush1.bf16.msra.mxu0 %v911
    %4386 = vmatprep.subr.bf16.mxu0 0
    %4387 = vmatpush1.bf16.msra.mxu0 %v912
    %4388 = vmatprep.subr.bf16.mxu0 0
    %4389 = vmatpush1.bf16.msra.mxu0 %v913
    %4390 = vmatprep.subr.bf16.mxu0 0
    %4391 = vmatpush1.bf16.msra.mxu0 %v914
    %4392 = vmatprep.subr.bf16.mxu0 0
    %4393 = vmatpush1.bf16.msra.mxu0 %v915
    %4394 = vmatprep.subr.bf16.mxu0 0
    %4395 = vmatpush1.bf16.msra.mxu0 %v916
    %4396 = vmatprep.subr.bf16.mxu0 0
    %4397 = vmatpush1.bf16.msra.mxu0 %v917
    %4398 = vmatprep.subr.bf16.mxu0 0
    %4399 = vmatpush1.bf16.msra.mxu0 %v918
    %4400 = vmatprep.subr.bf16.mxu0 0
    %4401 = vmatpush1.bf16.msra.mxu0 %v919
    %4402 = vmatprep.subr.bf16.mxu0 0
    %4403 = vmatpush1.bf16.msra.mxu0 %v920
    %4404 = vmatprep.subr.bf16.mxu0 0
    %4405 = vmatpush1.bf16.msra.mxu0 %v921
    %4406 = vmatprep.subr.bf16.mxu0 0
    %4407 = vmatpush1.bf16.msra.mxu0 %v922
    %4408 = vmatprep.mubr.bf16.mxu0 %v4313
    %4409 = vmatmul.mubr.bf16.gmra.mrb[0].mxu0 %v4312
    %v4410 = vpop.f32.mrb[0].mxu0
    %v4411 = vadd.f32 0.0, %v4410
    %v4412 = vpop.f32.mrb[0].mxu0
    %v4413 = vpop.f32.mrb[0].mxu0
    %v4414 = vadd.f32 0.0, %v4413
    %v4415 = vpop.f32.mrb[0].mxu0
    %4416 = vmatprep.mubr.bf16.mxu0 %v4317
    %4417 = vmatmul.mubr.bf16.gmra.mrb[0].mxu0 %v4316
    %v4418 = vpop.f32.mrb[0].mxu0
    %v4419 = vadd.f32 0.0, %v4418
    %v4420 = vpop.f32.mrb[0].mxu0
    %v4421 = vpop.f32.mrb[0].mxu0
    %v4422 = vadd.f32 0.0, %v4421
    %v4423 = vpop.f32.mrb[0].mxu0
    %4424 = vmatprep.mubr.bf16.mxu0 %v4321
    %4425 = vmatmul.mubr.bf16.gmra.mrb[0].mxu0 %v4320
    %v4426 = vpop.f32.mrb[0].mxu0
    %v4427 = vadd.f32 0.0, %v4426
    %v4428 = vpop.f32.mrb[0].mxu0
    %v4429 = vpop.f32.mrb[0].mxu0
    %v4430 = vadd.f32 0.0, %v4429
    %v4431 = vpop.f32.mrb[0].mxu0
    %4432 = vmatprep.mubr.bf16.mxu0 %v4325
    %4433 = vmatmul.mubr.bf16.gmra.mrb[0].mxu0 %v4324
    %v4434 = vpop.f32.mrb[0].mxu0
    %v4435 = vadd.f32 0.0, %v4434
    %v4436 = vpop.f32.mrb[0].mxu0
    %v4437 = vpop.f32.mrb[0].mxu0
    %v4438 = vadd.f32 0.0, %v4437
    %v4439 = vpop.f32.mrb[0].mxu0
    %4440 = vmatprep.mubr.bf16.mxu0 %v4329
    %4441 = vmatmul.mubr.bf16.gmra.mrb[0].mxu0 %v4328
    %v4442 = vpop.f32.mrb[0].mxu0
    %v4443 = vadd.f32 0.0, %v4442
    %v4444 = vpop.f32.mrb[0].mxu0
    %v4445 = vpop.f32.mrb[0].mxu0
    %v4446 = vadd.f32 0.0, %v4445
    %v4447 = vpop.f32.mrb[0].mxu0
    %4448 = vmatprep.mubr.bf16.mxu0 %v4333
    %4449 = vmatmul.mubr.bf16.gmra.mrb[0].mxu0 %v4332
    %v4450 = vpop.f32.mrb[0].mxu0
    %v4451 = vadd.f32 0.0, %v4450
    %v4452 = vpop.f32.mrb[0].mxu0
    %v4453 = vpop.f32.mrb[0].mxu0
    %v4454 = vadd.f32 0.0, %v4453
    %v4455 = vpop.f32.mrb[0].mxu0
    %4456 = vmatprep.mubr.bf16.mxu0 %v4337
    %4457 = vmatmul.mubr.bf16.gmra.mrb[0].mxu0 %v4336
    %v4458 = vpop.f32.mrb[0].mxu0
    %v4459 = vadd.f32 0.0, %v4458
    %v4460 = vpop.f32.mrb[0].mxu0
    %v4461 = vpop.f32.mrb[0].mxu0
    %v4462 = vadd.f32 0.0, %v4461
    %v4463 = vpop.f32.mrb[0].mxu0
    %4464 = vmatprep.mubr.bf16.mxu0 %v4341
    %4465 = vmatmul.mubr.bf16.gmra.mrb[0].mxu0 %v4340
    %v4466 = vpop.f32.mrb[0].mxu0
    %v4467 = vadd.f32 0.0, %v4466
    %v4468 = vpop.f32.mrb[0].mxu0
    %v4469 = vpop.f32.mrb[0].mxu0
    %v4470 = vadd.f32 0.0, %v4469
    %v4471 = vpop.f32.mrb[0].mxu0
    %4472 = vdwg.mxu0
    %4473 = vmatprep.subr.bf16.mxu0 0
    %4474 = vmatpush1.bf16.msra.mxu0 %v923
    %4475 = vmatprep.subr.bf16.mxu0 0
    %4476 = vmatpush1.bf16.msra.mxu0 %v924
    %4477 = vmatprep.subr.bf16.mxu0 0
    %4478 = vmatpush1.bf16.msra.mxu0 %v925
    %4479 = vmatprep.subr.bf16.mxu0 0
    %4480 = vmatpush1.bf16.msra.mxu0 %v926
    %4481 = vmatprep.subr.bf16.mxu0 0
    %4482 = vmatpush1.bf16.msra.mxu0 %v927
    %4483 = vmatprep.subr.bf16.mxu0 0
    %4484 = vmatpush1.bf16.msra.mxu0 %v928
    %4485 = vmatprep.subr.bf16.mxu0 0
    %4486 = vmatpush1.bf16.msra.mxu0 %v929
    %4487 = vmatprep.subr.bf16.mxu0 0
    %4488 = vmatpush1.bf16.msra.mxu0 %v930
    %4489 = vmatprep.subr.bf16.mxu0 0
    %4490 = vmatpush1.bf16.msra.mxu0 %v931
    %4491 = vmatprep.subr.bf16.mxu0 0
    %4492 = vmatpush1.bf16.msra.mxu0 %v932
    %4493 = vmatprep.subr.bf16.mxu0 0
    %4494 = vmatpush1.bf16.msra.mxu0 %v933
    %4495 = vmatprep.subr.bf16.mxu0 0
    %4496 = vmatpush1.bf16.msra.mxu0 %v934
    %4497 = vmatprep.subr.bf16.mxu0 0
    %4498 = vmatpush1.bf16.msra.mxu0 %v935
    %4499 = vmatprep.subr.bf16.mxu0 0
    %4500 = vmatpush1.bf16.msra.mxu0 %v936
    %4501 = vmatprep.subr.bf16.mxu0 0
    %4502 = vmatpush1.bf16.msra.mxu0 %v937
    %4503 = vmatprep.subr.bf16.mxu0 0
    %4504 = vmatpush1.bf16.msra.mxu0 %v938
    %4505 = vmatprep.mubr.bf16.mxu0 %v4315
    %4506 = vmatmul.mubr.bf16.gmra.mrb[0].mxu0 %v4314
    %v4507 = vpop.f32.mrb[0].mxu0
    %v4508 = vadd.f32 %v4411, %v4507
    %v4509 = vpop.f32.mrb[0].mxu0
    %v4510 = vpop.f32.mrb[0].mxu0
    %v4511 = vadd.f32 %v4414, %v4510
    %v4512 = vpop.f32.mrb[0].mxu0
    %4513 = vmatprep.mubr.bf16.mxu0 %v4319
    %4514 = vmatmul.mubr.bf16.gmra.mrb[0].mxu0 %v4318
    %v4515 = vpop.f32.mrb[0].mxu0
    %v4516 = vadd.f32 %v4419, %v4515
    %v4517 = vpop.f32.mrb[0].mxu0
    %v4518 = vpop.f32.mrb[0].mxu0
    %v4519 = vadd.f32 %v4422, %v4518
    %v4520 = vpop.f32.mrb[0].mxu0
    %4521 = vmatprep.mubr.bf16.mxu0 %v4323
    %4522 = vmatmul.mubr.bf16.gmra.mrb[0].mxu0 %v4322
    %v4523 = vpop.f32.mrb[0].mxu0
    %v4524 = vadd.f32 %v4427, %v4523
    %v4525 = vpop.f32.mrb[0].mxu0
    %v4526 = vpop.f32.mrb[0].mxu0
    %v4527 = vadd.f32 %v4430, %v4526
    %v4528 = vpop.f32.mrb[0].mxu0
    %4529 = vmatprep.mubr.bf16.mxu0 %v4327
    %4530 = vmatmul.mubr.bf16.gmra.mrb[0].mxu0 %v4326
    %v4531 = vpop.f32.mrb[0].mxu0
    %v4532 = vadd.f32 %v4435, %v4531
    %v4533 = vpop.f32.mrb[0].mxu0
    %v4534 = vpop.f32.mrb[0].mxu0
    %v4535 = vadd.f32 %v4438, %v4534
    %v4536 = vpop.f32.mrb[0].mxu0
    %4537 = vmatprep.mubr.bf16.mxu0 %v4331
    %4538 = vmatmul.mubr.bf16.gmra.mrb[0].mxu0 %v4330
    %v4539 = vpop.f32.mrb[0].mxu0
    %v4540 = vadd.f32 %v4443, %v4539
    %v4541 = vpop.f32.mrb[0].mxu0
    %v4542 = vpop.f32.mrb[0].mxu0
    %v4543 = vadd.f32 %v4446, %v4542
    %v4544 = vpop.f32.mrb[0].mxu0
    %4545 = vmatprep.mubr.bf16.mxu0 %v4335
    %4546 = vmatmul.mubr.bf16.gmra.mrb[0].mxu0 %v4334
    %v4547 = vpop.f32.mrb[0].mxu0
    %v4548 = vadd.f32 %v4451, %v4547
    %v4549 = vpop.f32.mrb[0].mxu0
    %v4550 = vpop.f32.mrb[0].mxu0
    %v4551 = vadd.f32 %v4454, %v4550
    %v4552 = vpop.f32.mrb[0].mxu0
    %4553 = vmatprep.mubr.bf16.mxu0 %v4339
    %4554 = vmatmul.mubr.bf16.gmra.mrb[0].mxu0 %v4338
    %v4555 = vpop.f32.mrb[0].mxu0
    %v4556 = vadd.f32 %v4459, %v4555
    %v4557 = vpop.f32.mrb[0].mxu0
    %v4558 = vpop.f32.mrb[0].mxu0
    %v4559 = vadd.f32 %v4462, %v4558
    %v4560 = vpop.f32.mrb[0].mxu0
    %4561 = vmatprep.mubr.bf16.mxu0 %v4343
    %4562 = vmatmul.mubr.bf16.gmra.mrb[0].mxu0 %v4342
    %v4563 = vpop.f32.mrb[0].mxu0
    %v4564 = vadd.f32 %v4467, %v4563
    %v4565 = vpop.f32.mrb[0].mxu0
    %v4566 = vpop.f32.mrb[0].mxu0
    %v4567 = vadd.f32 %v4470, %v4566
    %v4568 = vpop.f32.mrb[0].mxu0
    %4569 = vdwg.mxu0
    %v4570 = vpack.c.bf16 %v4511, %v4508
    %v4571 = vpack.c.bf16 %v4519, %v4516
    %v4572 = vpack.c.bf16 %v4527, %v4524
    %v4573 = vpack.c.bf16 %v4535, %v4532
    %v4574 = vpack.c.bf16 %v4543, %v4540
    %v4575 = vpack.c.bf16 %v4551, %v4548
    %v4576 = vpack.c.bf16 %v4559, %v4556
    %v4577 = vpack.c.bf16 %v4567, %v4564
    %s4578 = scalar_lea.vmem [#allocation7], 384
    %v4579 = vld [vmem:[%s4578] sm:$0xf]
    %v4580 = vld [vmem:[%s4578 + $0x4] sm:$0xf]
    %v4581 = vld [vmem:[%s4578 + $0x8] sm:$0xf]
    %v4582 = vld [vmem:[%s4578 + $0xc] sm:$0xf]
    %v4583 = vld [vmem:[%s4578 + $0x10] sm:$0xf]
    %v4584 = vld [vmem:[%s4578 + $0x14] sm:$0xf]
    %v4585 = vld [vmem:[%s4578 + $0x18] sm:$0xf]
    %v4586 = vld [vmem:[%s4578 + $0x1c] sm:$0xf]
    %v4587 = vld [vmem:[%s4578 + $0x20] sm:$0xf]
    %v4588 = vld [vmem:[%s4578 + $0x24] sm:$0xf]
    %v4589 = vld [vmem:[%s4578 + $0x28] sm:$0xf]
    %v4590 = vld [vmem:[%s4578 + $0x2c] sm:$0xf]
    %v4591 = vld [vmem:[%s4578 + $0x30] sm:$0xf]
    %v4592 = vld [vmem:[%s4578 + $0x34] sm:$0xf]
    %v4593 = vld [vmem:[%s4578 + $0x38] sm:$0xf]
    %v4594 = vld [vmem:[%s4578 + $0x3c] sm:$0xf]
    %v4611 = vunpack.c.l.b16 %v4579
    %v4612 = vunpack.c.l.b16 %v4580
    %v4613 = vunpack.c.l.b16 %v4581
    %v4614 = vunpack.c.l.b16 %v4582
    %v4615 = vunpack.c.l.b16 %v4583
    %v4616 = vunpack.c.l.b16 %v4584
    %v4617 = vunpack.c.l.b16 %v4585
    %v4618 = vunpack.c.l.b16 %v4586
    %v4619 = vunpack.c.l.b16 %v4587
    %v4620 = vunpack.c.l.b16 %v4588
    %v4621 = vunpack.c.l.b16 %v4589
    %v4622 = vunpack.c.l.b16 %v4590
    %v4623 = vunpack.c.l.b16 %v4591
    %v4624 = vunpack.c.l.b16 %v4592
    %v4625 = vunpack.c.l.b16 %v4593
    %v4626 = vunpack.c.l.b16 %v4594
    %v4627 = vpack.c.b16 %v4612, %v4611
    %v4628 = vpack.c.b16 %v4614, %v4613
    %v4629 = vpack.c.b16 %v4616, %v4615
    %v4630 = vpack.c.b16 %v4618, %v4617
    %v4631 = vpack.c.b16 %v4620, %v4619
    %v4632 = vpack.c.b16 %v4622, %v4621
    %v4633 = vpack.c.b16 %v4624, %v4623
    %v4634 = vpack.c.b16 %v4626, %v4625
    %4643 = vmatprep.subr.bf16.mxu0 0
    %4644 = vmatpush1.bf16.msra.mxu0 %v4627
    %4645 = vmatprep.subr.bf16.mxu0 0
    %4646 = vmatpush1.bf16.msra.mxu0 %v4628
    %4647 = vmatprep.subr.bf16.mxu0 0
    %4648 = vmatpush1.bf16.msra.mxu0 %v4629
    %4649 = vmatprep.subr.bf16.mxu0 0
    %4650 = vmatpush1.bf16.msra.mxu0 %v4630
    %4651 = vmatprep.subr.bf16.mxu0 0
    %4652 = vmatpush1.bf16.msra.mxu0 %v4631
    %4653 = vmatprep.subr.bf16.mxu0 0
    %4654 = vmatpush1.bf16.msra.mxu0 %v4632
    %4655 = vmatprep.subr.bf16.mxu0 0
    %4656 = vmatpush1.bf16.msra.mxu0 %v4633
    %4657 = vmatprep.subr.bf16.mxu0 0
    %4658 = vmatpush1.bf16.msra.mxu0 %v4634
    %4659 = vmatprep.subr.bf16.mxu0 0
    %4660 = vmatpush1.bf16.msra.mxu0 0
    %4661 = vmatprep.subr.bf16.mxu0 0
    %4662 = vmatpush1.bf16.msra.mxu0 0
    %4663 = vmatprep.subr.bf16.mxu0 0
    %4664 = vmatpush1.bf16.msra.mxu0 0
    %4665 = vmatprep.subr.bf16.mxu0 0
    %4666 = vmatpush1.bf16.msra.mxu0 0
    %4667 = vmatprep.subr.bf16.mxu0 0
    %4668 = vmatpush1.bf16.msra.mxu0 0
    %4669 = vmatprep.subr.bf16.mxu0 0
    %4670 = vmatpush1.bf16.msra.mxu0 0
    %4671 = vmatprep.subr.bf16.mxu0 0
    %4672 = vmatpush1.bf16.msra.mxu0 0
    %4673 = vmatprep.subr.bf16.mxu0 0
    %4674 = vmatpush1.bf16.msra.mxu0 0
    %4675 = vmatprep.mubr.bf16.mxu0 0
    %4676 = vmatmul.mubr.bf16.gmra.mrb[0].mxu0 %v4570
    %v4677 = vpop.f32.mrb[0].mxu0
    %v4678 = vadd.f32 0.0, %v4677
    %v4679 = vpop.f32.mrb[0].mxu0
    %v4680 = vpop.f32.mrb[0].mxu0
    %v4681 = vadd.f32 0.0, %v4680
    %v4682 = vpop.f32.mrb[0].mxu0
    %4683 = vmatprep.mubr.bf16.mxu0 0
    %4684 = vmatmul.mubr.bf16.gmra.mrb[0].mxu0 %v4571
    %v4685 = vpop.f32.mrb[0].mxu0
    %v4686 = vadd.f32 0.0, %v4685
    %v4687 = vpop.f32.mrb[0].mxu0
    %v4688 = vpop.f32.mrb[0].mxu0
    %v4689 = vadd.f32 0.0, %v4688
    %v4690 = vpop.f32.mrb[0].mxu0
    %4691 = vmatprep.mubr.bf16.mxu0 0
    %4692 = vmatmul.mubr.bf16.gmra.mrb[0].mxu0 %v4572
    %v4693 = vpop.f32.mrb[0].mxu0
    %v4694 = vadd.f32 0.0, %v4693
    %v4695 = vpop.f32.mrb[0].mxu0
    %v4696 = vpop.f32.mrb[0].mxu0
    %v4697 = vadd.f32 0.0, %v4696
    %v4698 = vpop.f32.mrb[0].mxu0
    %4699 = vmatprep.mubr.bf16.mxu0 0
    %4700 = vmatmul.mubr.bf16.gmra.mrb[0].mxu0 %v4573
    %v4701 = vpop.f32.mrb[0].mxu0
    %v4702 = vadd.f32 0.0, %v4701
    %v4703 = vpop.f32.mrb[0].mxu0
    %v4704 = vpop.f32.mrb[0].mxu0
    %v4705 = vadd.f32 0.0, %v4704
    %v4706 = vpop.f32.mrb[0].mxu0
    %4707 = vmatprep.mubr.bf16.mxu0 0
    %4708 = vmatmul.mubr.bf16.gmra.mrb[0].mxu0 %v4574
    %v4709 = vpop.f32.mrb[0].mxu0
    %v4710 = vadd.f32 0.0, %v4709
    %v4711 = vpop.f32.mrb[0].mxu0
    %v4712 = vpop.f32.mrb[0].mxu0
    %v4713 = vadd.f32 0.0, %v4712
    %v4714 = vpop.f32.mrb[0].mxu0
    %4715 = vmatprep.mubr.bf16.mxu0 0
    %4716 = vmatmul.mubr.bf16.gmra.mrb[0].mxu0 %v4575
    %v4717 = vpop.f32.mrb[0].mxu0
    %v4718 = vadd.f32 0.0, %v4717
    %v4719 = vpop.f32.mrb[0].mxu0
    %v4720 = vpop.f32.mrb[0].mxu0
    %v4721 = vadd.f32 0.0, %v4720
    %v4722 = vpop.f32.mrb[0].mxu0
    %4723 = vmatprep.mubr.bf16.mxu0 0
    %4724 = vmatmul.mubr.bf16.gmra.mrb[0].mxu0 %v4576
    %v4725 = vpop.f32.mrb[0].mxu0
    %v4726 = vadd.f32 0.0, %v4725
    %v4727 = vpop.f32.mrb[0].mxu0
    %v4728 = vpop.f32.mrb[0].mxu0
    %v4729 = vadd.f32 0.0, %v4728
    %v4730 = vpop.f32.mrb[0].mxu0
    %4731 = vmatprep.mubr.bf16.mxu0 0
    %4732 = vmatmul.mubr.bf16.gmra.mrb[0].mxu0 %v4577
    %v4733 = vpop.f32.mrb[0].mxu0
    %v4734 = vadd.f32 0.0, %v4733
    %v4735 = vpop.f32.mrb[0].mxu0
    %v4736 = vpop.f32.mrb[0].mxu0
    %v4737 = vadd.f32 0.0, %v4736
    %v4738 = vpop.f32.mrb[0].mxu0
    %4739 = vdwg.mxu0
    %v4740 = vadd.f32 %v4167, %v4678
    %v4741 = vadd.f32 %v4168, %v4681
    %v4742 = vadd.f32 %v4169, %v4686
    %v4743 = vadd.f32 %v4170, %v4689
    %v4744 = vadd.f32 %v4171, %v4694
    %v4745 = vadd.f32 %v4172, %v4697
    %v4746 = vadd.f32 %v4173, %v4702
    %v4747 = vadd.f32 %v4174, %v4705
    %v4748 = vadd.f32 %v4175, %v4710
    %v4749 = vadd.f32 %v4176, %v4713
    %v4750 = vadd.f32 %v4177, %v4718
    %v4751 = vadd.f32 %v4178, %v4721
    %v4752 = vadd.f32 %v4179, %v4726
    %v4753 = vadd.f32 %v4180, %v4729
    %v4754 = vadd.f32 %v4181, %v4734
    %v4755 = vadd.f32 %v4182, %v4737
    %s4756 = scalar_lea.vmem [#allocation5], 1792
    %v4757 = vld [vmem:[%s4756] sm:$0xff]
    %v4758 = vld [vmem:[%s4756 + $0x8] sm:$0xff]
    %v4759 = vld [vmem:[%s4756 + $0x10] sm:$0xff]
    %v4760 = vld [vmem:[%s4756 + $0x18] sm:$0xff]
    %v4761 = vld [vmem:[%s4756 + $0x20] sm:$0xff]
    %v4762 = vld [vmem:[%s4756 + $0x28] sm:$0xff]
    %v4763 = vld [vmem:[%s4756 + $0x30] sm:$0xff]
    %v4764 = vld [vmem:[%s4756 + $0x38] sm:$0xff]
    %v4765 = vld [vmem:[%s4756 + $0x40] sm:$0xff]
    %v4766 = vld [vmem:[%s4756 + $0x48] sm:$0xff]
    %v4767 = vld [vmem:[%s4756 + $0x50] sm:$0xff]
    %v4768 = vld [vmem:[%s4756 + $0x58] sm:$0xff]
    %v4769 = vld [vmem:[%s4756 + $0x60] sm:$0xff]
    %v4770 = vld [vmem:[%s4756 + $0x68] sm:$0xff]
    %v4771 = vld [vmem:[%s4756 + $0x70] sm:$0xff]
    %v4772 = vld [vmem:[%s4756 + $0x78] sm:$0xff]
    %v4773 = vld [vmem:[%s4756 + $0x80] sm:$0xff]
    %v4774 = vld [vmem:[%s4756 + $0x88] sm:$0xff]
    %v4775 = vld [vmem:[%s4756 + $0x90] sm:$0xff]
    %v4776 = vld [vmem:[%s4756 + $0x98] sm:$0xff]
    %v4777 = vld [vmem:[%s4756 + $0xa0] sm:$0xff]
    %v4778 = vld [vmem:[%s4756 + $0xa8] sm:$0xff]
    %v4779 = vld [vmem:[%s4756 + $0xb0] sm:$0xff]
    %v4780 = vld [vmem:[%s4756 + $0xb8] sm:$0xff]
    %v4781 = vld [vmem:[%s4756 + $0xc0] sm:$0xff]
    %v4782 = vld [vmem:[%s4756 + $0xc8] sm:$0xff]
    %v4783 = vld [vmem:[%s4756 + $0xd0] sm:$0xff]
    %v4784 = vld [vmem:[%s4756 + $0xd8] sm:$0xff]
    %v4785 = vld [vmem:[%s4756 + $0xe0] sm:$0xff]
    %v4786 = vld [vmem:[%s4756 + $0xe8] sm:$0xff]
    %v4787 = vld [vmem:[%s4756 + $0xf0] sm:$0xff]
    %v4788 = vld [vmem:[%s4756 + $0xf8] sm:$0xff]
    %v4821 = vunpack.c.l.b16 %v4757
    %v4822 = vunpack.c.h.b16 %v4757
    %v4823 = vunpack.c.l.b16 %v4758
    %v4824 = vunpack.c.h.b16 %v4758
    %v4825 = vunpack.c.l.b16 %v4759
    %v4826 = vunpack.c.h.b16 %v4759
    %v4827 = vunpack.c.l.b16 %v4760
    %v4828 = vunpack.c.h.b16 %v4760
    %v4829 = vunpack.c.l.b16 %v4761
    %v4830 = vunpack.c.h.b16 %v4761
    %v4831 = vunpack.c.l.b16 %v4762
    %v4832 = vunpack.c.h.b16 %v4762
    %v4833 = vunpack.c.l.b16 %v4763
    %v4834 = vunpack.c.h.b16 %v4763
    %v4835 = vunpack.c.l.b16 %v4764
    %v4836 = vunpack.c.h.b16 %v4764
    %v4837 = vunpack.c.l.b16 %v4765
    %v4838 = vunpack.c.h.b16 %v4765
    %v4839 = vunpack.c.l.b16 %v4766
    %v4840 = vunpack.c.h.b16 %v4766
    %v4841 = vunpack.c.l.b16 %v4767
    %v4842 = vunpack.c.h.b16 %v4767
    %v4843 = vunpack.c.l.b16 %v4768
    %v4844 = vunpack.c.h.b16 %v4768
    %v4845 = vunpack.c.l.b16 %v4769
    %v4846 = vunpack.c.h.b16 %v4769
    %v4847 = vunpack.c.l.b16 %v4770
    %v4848 = vunpack.c.h.b16 %v4770
    %v4849 = vunpack.c.l.b16 %v4771
    %v4850 = vunpack.c.h.b16 %v4771
    %v4851 = vunpack.c.l.b16 %v4772
    %v4852 = vunpack.c.h.b16 %v4772
    %v4853 = vunpack.c.l.b16 %v4773
    %v4854 = vunpack.c.h.b16 %v4773
    %v4855 = vunpack.c.l.b16 %v4774
    %v4856 = vunpack.c.h.b16 %v4774
    %v4857 = vunpack.c.l.b16 %v4775
    %v4858 = vunpack.c.h.b16 %v4775
    %v4859 = vunpack.c.l.b16 %v4776
    %v4860 = vunpack.c.h.b16 %v4776
    %v4861 = vunpack.c.l.b16 %v4777
    %v4862 = vunpack.c.h.b16 %v4777
    %v4863 = vunpack.c.l.b16 %v4778
    %v4864 = vunpack.c.h.b16 %v4778
    %v4865 = vunpack.c.l.b16 %v4779
    %v4866 = vunpack.c.h.b16 %v4779
    %v4867 = vunpack.c.l.b16 %v4780
    %v4868 = vunpack.c.h.b16 %v4780
    %v4869 = vunpack.c.l.b16 %v4781
    %v4870 = vunpack.c.h.b16 %v4781
    %v4871 = vunpack.c.l.b16 %v4782
    %v4872 = vunpack.c.h.b16 %v4782
    %v4873 = vunpack.c.l.b16 %v4783
    %v4874 = vunpack.c.h.b16 %v4783
    %v4875 = vunpack.c.l.b16 %v4784
    %v4876 = vunpack.c.h.b16 %v4784
    %v4877 = vunpack.c.l.b16 %v4785
    %v4878 = vunpack.c.h.b16 %v4785
    %v4879 = vunpack.c.l.b16 %v4786
    %v4880 = vunpack.c.h.b16 %v4786
    %v4881 = vunpack.c.l.b16 %v4787
    %v4882 = vunpack.c.h.b16 %v4787
    %v4883 = vunpack.c.l.b16 %v4788
    %v4884 = vunpack.c.h.b16 %v4788
    %v4885 = vpack.c.b16 %v4825, %v4821
    %v4886 = vpack.c.b16 %v4826, %v4822
    %v4887 = vpack.c.b16 %v4827, %v4823
    %v4888 = vpack.c.b16 %v4828, %v4824
    %v4889 = vpack.c.b16 %v4833, %v4829
    %v4890 = vpack.c.b16 %v4834, %v4830
    %v4891 = vpack.c.b16 %v4835, %v4831
    %v4892 = vpack.c.b16 %v4836, %v4832
    %v4893 = vpack.c.b16 %v4841, %v4837
    %v4894 = vpack.c.b16 %v4842, %v4838
    %v4895 = vpack.c.b16 %v4843, %v4839
    %v4896 = vpack.c.b16 %v4844, %v4840
    %v4897 = vpack.c.b16 %v4849, %v4845
    %v4898 = vpack.c.b16 %v4850, %v4846
    %v4899 = vpack.c.b16 %v4851, %v4847
    %v4900 = vpack.c.b16 %v4852, %v4848
    %v4901 = vpack.c.b16 %v4857, %v4853
    %v4902 = vpack.c.b16 %v4858, %v4854
    %v4903 = vpack.c.b16 %v4859, %v4855
    %v4904 = vpack.c.b16 %v4860, %v4856
    %v4905 = vpack.c.b16 %v4865, %v4861
    %v4906 = vpack.c.b16 %v4866, %v4862
    %v4907 = vpack.c.b16 %v4867, %v4863
    %v4908 = vpack.c.b16 %v4868, %v4864
    %v4909 = vpack.c.b16 %v4873, %v4869
    %v4910 = vpack.c.b16 %v4874, %v4870
    %v4911 = vpack.c.b16 %v4875, %v4871
    %v4912 = vpack.c.b16 %v4876, %v4872
    %v4913 = vpack.c.b16 %v4881, %v4877
    %v4914 = vpack.c.b16 %v4882, %v4878
    %v4915 = vpack.c.b16 %v4883, %v4879
    %v4916 = vpack.c.b16 %v4884, %v4880
    %4949 = vmatprep.subr.bf16.mxu0 0
    %4950 = vmatpush1.bf16.msra.mxu0 %v907
    %4951 = vmatprep.subr.bf16.mxu0 0
    %4952 = vmatpush1.bf16.msra.mxu0 %v908
    %4953 = vmatprep.subr.bf16.mxu0 0
    %4954 = vmatpush1.bf16.msra.mxu0 %v909
    %4955 = vmatprep.subr.bf16.mxu0 0
    %4956 = vmatpush1.bf16.msra.mxu0 %v910
    %4957 = vmatprep.subr.bf16.mxu0 0
    %4958 = vmatpush1.bf16.msra.mxu0 %v911
    %4959 = vmatprep.subr.bf16.mxu0 0
    %4960 = vmatpush1.bf16.msra.mxu0 %v912
    %4961 = vmatprep.subr.bf16.mxu0 0
    %4962 = vmatpush1.bf16.msra.mxu0 %v913
    %4963 = vmatprep.subr.bf16.mxu0 0
    %4964 = vmatpush1.bf16.msra.mxu0 %v914
    %4965 = vmatprep.subr.bf16.mxu0 0
    %4966 = vmatpush1.bf16.msra.mxu0 %v915
    %4967 = vmatprep.subr.bf16.mxu0 0
    %4968 = vmatpush1.bf16.msra.mxu0 %v916
    %4969 = vmatprep.subr.bf16.mxu0 0
    %4970 = vmatpush1.bf16.msra.mxu0 %v917
    %4971 = vmatprep.subr.bf16.mxu0 0
    %4972 = vmatpush1.bf16.msra.mxu0 %v918
    %4973 = vmatprep.subr.bf16.mxu0 0
    %4974 = vmatpush1.bf16.msra.mxu0 %v919
    %4975 = vmatprep.subr.bf16.mxu0 0
    %4976 = vmatpush1.bf16.msra.mxu0 %v920
    %4977 = vmatprep.subr.bf16.mxu0 0
    %4978 = vmatpush1.bf16.msra.mxu0 %v921
    %4979 = vmatprep.subr.bf16.mxu0 0
    %4980 = vmatpush1.bf16.msra.mxu0 %v922
    %4981 = vmatprep.mubr.bf16.mxu0 %v4886
    %4982 = vmatmul.mubr.bf16.gmra.mrb[0].mxu0 %v4885
    %v4983 = vpop.f32.mrb[0].mxu0
    %v4984 = vadd.f32 0.0, %v4983
    %v4985 = vpop.f32.mrb[0].mxu0
    %v4986 = vpop.f32.mrb[0].mxu0
    %v4987 = vadd.f32 0.0, %v4986
    %v4988 = vpop.f32.mrb[0].mxu0
    %4989 = vmatprep.mubr.bf16.mxu0 %v4890
    %4990 = vmatmul.mubr.bf16.gmra.mrb[0].mxu0 %v4889
    %v4991 = vpop.f32.mrb[0].mxu0
    %v4992 = vadd.f32 0.0, %v4991
    %v4993 = vpop.f32.mrb[0].mxu0
    %v4994 = vpop.f32.mrb[0].mxu0
    %v4995 = vadd.f32 0.0, %v4994
    %v4996 = vpop.f32.mrb[0].mxu0
    %4997 = vmatprep.mubr.bf16.mxu0 %v4894
    %4998 = vmatmul.mubr.bf16.gmra.mrb[0].mxu0 %v4893
    %v4999 = vpop.f32.mrb[0].mxu0
    %v5000 = vadd.f32 0.0, %v4999
    %v5001 = vpop.f32.mrb[0].mxu0
    %v5002 = vpop.f32.mrb[0].mxu0
    %v5003 = vadd.f32 0.0, %v5002
    %v5004 = vpop.f32.mrb[0].mxu0
    %5005 = vmatprep.mubr.bf16.mxu0 %v4898
    %5006 = vmatmul.mubr.bf16.gmra.mrb[0].mxu0 %v4897
    %v5007 = vpop.f32.mrb[0].mxu0
    %v5008 = vadd.f32 0.0, %v5007
    %v5009 = vpop.f32.mrb[0].mxu0
    %v5010 = vpop.f32.mrb[0].mxu0
    %v5011 = vadd.f32 0.0, %v5010
    %v5012 = vpop.f32.mrb[0].mxu0
    %5013 = vmatprep.mubr.bf16.mxu0 %v4902
    %5014 = vmatmul.mubr.bf16.gmra.mrb[0].mxu0 %v4901
    %v5015 = vpop.f32.mrb[0].mxu0
    %v5016 = vadd.f32 0.0, %v5015
    %v5017 = vpop.f32.mrb[0].mxu0
    %v5018 = vpop.f32.mrb[0].mxu0
    %v5019 = vadd.f32 0.0, %v5018
    %v5020 = vpop.f32.mrb[0].mxu0
    %5021 = vmatprep.mubr.bf16.mxu0 %v4906
    %5022 = vmatmul.mubr.bf16.gmra.mrb[0].mxu0 %v4905
    %v5023 = vpop.f32.mrb[0].mxu0
    %v5024 = vadd.f32 0.0, %v5023
    %v5025 = vpop.f32.mrb[0].mxu0
    %v5026 = vpop.f32.mrb[0].mxu0
    %v5027 = vadd.f32 0.0, %v5026
    %v5028 = vpop.f32.mrb[0].mxu0
    %5029 = vmatprep.mubr.bf16.mxu0 %v4910
    %5030 = vmatmul.mubr.bf16.gmra.mrb[0].mxu0 %v4909
    %v5031 = vpop.f32.mrb[0].mxu0
    %v5032 = vadd.f32 0.0, %v5031
    %v5033 = vpop.f32.mrb[0].mxu0
    %v5034 = vpop.f32.mrb[0].mxu0
    %v5035 = vadd.f32 0.0, %v5034
    %v5036 = vpop.f32.mrb[0].mxu0
    %5037 = vmatprep.mubr.bf16.mxu0 %v4914
    %5038 = vmatmul.mubr.bf16.gmra.mrb[0].mxu0 %v4913
    %v5039 = vpop.f32.mrb[0].mxu0
    %v5040 = vadd.f32 0.0, %v5039
    %v5041 = vpop.f32.mrb[0].mxu0
    %v5042 = vpop.f32.mrb[0].mxu0
    %v5043 = vadd.f32 0.0, %v5042
    %v5044 = vpop.f32.mrb[0].mxu0
    %5045 = vdwg.mxu0
    %5046 = vmatprep.subr.bf16.mxu0 0
    %5047 = vmatpush1.bf16.msra.mxu0 %v923
    %5048 = vmatprep.subr.bf16.mxu0 0
    %5049 = vmatpush1.bf16.msra.mxu0 %v924
    %5050 = vmatprep.subr.bf16.mxu0 0
    %5051 = vmatpush1.bf16.msra.mxu0 %v925
    %5052 = vmatprep.subr.bf16.mxu0 0
    %5053 = vmatpush1.bf16.msra.mxu0 %v926
    %5054 = vmatprep.subr.bf16.mxu0 0
    %5055 = vmatpush1.bf16.msra.mxu0 %v927
    %5056 = vmatprep.subr.bf16.mxu0 0
    %5057 = vmatpush1.bf16.msra.mxu0 %v928
    %5058 = vmatprep.subr.bf16.mxu0 0
    %5059 = vmatpush1.bf16.msra.mxu0 %v929
    %5060 = vmatprep.subr.bf16.mxu0 0
    %5061 = vmatpush1.bf16.msra.mxu0 %v930
    %5062 = vmatprep.subr.bf16.mxu0 0
    %5063 = vmatpush1.bf16.msra.mxu0 %v931
    %5064 = vmatprep.subr.bf16.mxu0 0
    %5065 = vmatpush1.bf16.msra.mxu0 %v932
    %5066 = vmatprep.subr.bf16.mxu0 0
    %5067 = vmatpush1.bf16.msra.mxu0 %v933
    %5068 = vmatprep.subr.bf16.mxu0 0
    %5069 = vmatpush1.bf16.msra.mxu0 %v934
    %5070 = vmatprep.subr.bf16.mxu0 0
    %5071 = vmatpush1.bf16.msra.mxu0 %v935
    %5072 = vmatprep.subr.bf16.mxu0 0
    %5073 = vmatpush1.bf16.msra.mxu0 %v936
    %5074 = vmatprep.subr.bf16.mxu0 0
    %5075 = vmatpush1.bf16.msra.mxu0 %v937
    %5076 = vmatprep.subr.bf16.mxu0 0
    %5077 = vmatpush1.bf16.msra.mxu0 %v938
    %5078 = vmatprep.mubr.bf16.mxu0 %v4888
    %5079 = vmatmul.mubr.bf16.gmra.mrb[0].mxu0 %v4887
    %v5080 = vpop.f32.mrb[0].mxu0
    %v5081 = vadd.f32 %v4984, %v5080
    %v5082 = vpop.f32.mrb[0].mxu0
    %v5083 = vpop.f32.mrb[0].mxu0
    %v5084 = vadd.f32 %v4987, %v5083
    %v5085 = vpop.f32.mrb[0].mxu0
    %5086 = vmatprep.mubr.bf16.mxu0 %v4892
    %5087 = vmatmul.mubr.bf16.gmra.mrb[0].mxu0 %v4891
    %v5088 = vpop.f32.mrb[0].mxu0
    %v5089 = vadd.f32 %v4992, %v5088
    %v5090 = vpop.f32.mrb[0].mxu0
    %v5091 = vpop.f32.mrb[0].mxu0
    %v5092 = vadd.f32 %v4995, %v5091
    %v5093 = vpop.f32.mrb[0].mxu0
    %5094 = vmatprep.mubr.bf16.mxu0 %v4896
    %5095 = vmatmul.mubr.bf16.gmra.mrb[0].mxu0 %v4895
    %v5096 = vpop.f32.mrb[0].mxu0
    %v5097 = vadd.f32 %v5000, %v5096
    %v5098 = vpop.f32.mrb[0].mxu0
    %v5099 = vpop.f32.mrb[0].mxu0
    %v5100 = vadd.f32 %v5003, %v5099
    %v5101 = vpop.f32.mrb[0].mxu0
    %5102 = vmatprep.mubr.bf16.mxu0 %v4900
    %5103 = vmatmul.mubr.bf16.gmra.mrb[0].mxu0 %v4899
    %v5104 = vpop.f32.mrb[0].mxu0
    %v5105 = vadd.f32 %v5008, %v5104
    %v5106 = vpop.f32.mrb[0].mxu0
    %v5107 = vpop.f32.mrb[0].mxu0
    %v5108 = vadd.f32 %v5011, %v5107
    %v5109 = vpop.f32.mrb[0].mxu0
    %5110 = vmatprep.mubr.bf16.mxu0 %v4904
    %5111 = vmatmul.mubr.bf16.gmra.mrb[0].mxu0 %v4903
    %v5112 = vpop.f32.mrb[0].mxu0
    %v5113 = vadd.f32 %v5016, %v5112
    %v5114 = vpop.f32.mrb[0].mxu0
    %v5115 = vpop.f32.mrb[0].mxu0
    %v5116 = vadd.f32 %v5019, %v5115
    %v5117 = vpop.f32.mrb[0].mxu0
    %5118 = vmatprep.mubr.bf16.mxu0 %v4908
    %5119 = vmatmul.mubr.bf16.gmra.mrb[0].mxu0 %v4907
    %v5120 = vpop.f32.mrb[0].mxu0
    %v5121 = vadd.f32 %v5024, %v5120
    %v5122 = vpop.f32.mrb[0].mxu0
    %v5123 = vpop.f32.mrb[0].mxu0
    %v5124 = vadd.f32 %v5027, %v5123
    %v5125 = vpop.f32.mrb[0].mxu0
    %5126 = vmatprep.mubr.bf16.mxu0 %v4912
    %5127 = vmatmul.mubr.bf16.gmra.mrb[0].mxu0 %v4911
    %v5128 = vpop.f32.mrb[0].mxu0
    %v5129 = vadd.f32 %v5032, %v5128
    %v5130 = vpop.f32.mrb[0].mxu0
    %v5131 = vpop.f32.mrb[0].mxu0
    %v5132 = vadd.f32 %v5035, %v5131
    %v5133 = vpop.f32.mrb[0].mxu0
    %5134 = vmatprep.mubr.bf16.mxu0 %v4916
    %5135 = vmatmul.mubr.bf16.gmra.mrb[0].mxu0 %v4915
    %v5136 = vpop.f32.mrb[0].mxu0
    %v5137 = vadd.f32 %v5040, %v5136
    %v5138 = vpop.f32.mrb[0].mxu0
    %v5139 = vpop.f32.mrb[0].mxu0
    %v5140 = vadd.f32 %v5043, %v5139
    %v5141 = vpop.f32.mrb[0].mxu0
    %5142 = vdwg.mxu0
    %v5143 = vpack.c.bf16 %v5084, %v5081
    %v5144 = vpack.c.bf16 %v5092, %v5089
    %v5145 = vpack.c.bf16 %v5100, %v5097
    %v5146 = vpack.c.bf16 %v5108, %v5105
    %v5147 = vpack.c.bf16 %v5116, %v5113
    %v5148 = vpack.c.bf16 %v5124, %v5121
    %v5149 = vpack.c.bf16 %v5132, %v5129
    %v5150 = vpack.c.bf16 %v5140, %v5137
    %s5151 = scalar_lea.vmem [#allocation7], 448
    %v5152 = vld [vmem:[%s5151] sm:$0xf]
    %v5153 = vld [vmem:[%s5151 + $0x4] sm:$0xf]
    %v5154 = vld [vmem:[%s5151 + $0x8] sm:$0xf]
    %v5155 = vld [vmem:[%s5151 + $0xc] sm:$0xf]
    %v5156 = vld [vmem:[%s5151 + $0x10] sm:$0xf]
    %v5157 = vld [vmem:[%s5151 + $0x14] sm:$0xf]
    %v5158 = vld [vmem:[%s5151 + $0x18] sm:$0xf]
    %v5159 = vld [vmem:[%s5151 + $0x1c] sm:$0xf]
    %v5160 = vld [vmem:[%s5151 + $0x20] sm:$0xf]
    %v5161 = vld [vmem:[%s5151 + $0x24] sm:$0xf]
    %v5162 = vld [vmem:[%s5151 + $0x28] sm:$0xf]
    %v5163 = vld [vmem:[%s5151 + $0x2c] sm:$0xf]
    %v5164 = vld [vmem:[%s5151 + $0x30] sm:$0xf]
    %v5165 = vld [vmem:[%s5151 + $0x34] sm:$0xf]
    %v5166 = vld [vmem:[%s5151 + $0x38] sm:$0xf]
    %v5167 = vld [vmem:[%s5151 + $0x3c] sm:$0xf]
    %v5184 = vunpack.c.l.b16 %v5152
    %v5185 = vunpack.c.l.b16 %v5153
    %v5186 = vunpack.c.l.b16 %v5154
    %v5187 = vunpack.c.l.b16 %v5155
    %v5188 = vunpack.c.l.b16 %v5156
    %v5189 = vunpack.c.l.b16 %v5157
    %v5190 = vunpack.c.l.b16 %v5158
    %v5191 = vunpack.c.l.b16 %v5159
    %v5192 = vunpack.c.l.b16 %v5160
    %v5193 = vunpack.c.l.b16 %v5161
    %v5194 = vunpack.c.l.b16 %v5162
    %v5195 = vunpack.c.l.b16 %v5163
    %v5196 = vunpack.c.l.b16 %v5164
    %v5197 = vunpack.c.l.b16 %v5165
    %v5198 = vunpack.c.l.b16 %v5166
    %v5199 = vunpack.c.l.b16 %v5167
    %v5200 = vpack.c.b16 %v5185, %v5184
    %v5201 = vpack.c.b16 %v5187, %v5186
    %v5202 = vpack.c.b16 %v5189, %v5188
    %v5203 = vpack.c.b16 %v5191, %v5190
    %v5204 = vpack.c.b16 %v5193, %v5192
    %v5205 = vpack.c.b16 %v5195, %v5194
    %v5206 = vpack.c.b16 %v5197, %v5196
    %v5207 = vpack.c.b16 %v5199, %v5198
    %5216 = vmatprep.subr.bf16.mxu0 0
    %5217 = vmatpush1.bf16.msra.mxu0 %v5200
    %5218 = vmatprep.subr.bf16.mxu0 0
    %5219 = vmatpush1.bf16.msra.mxu0 %v5201
    %5220 = vmatprep.subr.bf16.mxu0 0
    %5221 = vmatpush1.bf16.msra.mxu0 %v5202
    %5222 = vmatprep.subr.bf16.mxu0 0
    %5223 = vmatpush1.bf16.msra.mxu0 %v5203
    %5224 = vmatprep.subr.bf16.mxu0 0
    %5225 = vmatpush1.bf16.msra.mxu0 %v5204
    %5226 = vmatprep.subr.bf16.mxu0 0
    %5227 = vmatpush1.bf16.msra.mxu0 %v5205
    %5228 = vmatprep.subr.bf16.mxu0 0
    %5229 = vmatpush1.bf16.msra.mxu0 %v5206
    %5230 = vmatprep.subr.bf16.mxu0 0
    %5231 = vmatpush1.bf16.msra.mxu0 %v5207
    %5232 = vmatprep.subr.bf16.mxu0 0
    %5233 = vmatpush1.bf16.msra.mxu0 0
    %5234 = vmatprep.subr.bf16.mxu0 0
    %5235 = vmatpush1.bf16.msra.mxu0 0
    %5236 = vmatprep.subr.bf16.mxu0 0
    %5237 = vmatpush1.bf16.msra.mxu0 0
    %5238 = vmatprep.subr.bf16.mxu0 0
    %5239 = vmatpush1.bf16.msra.mxu0 0
    %5240 = vmatprep.subr.bf16.mxu0 0
    %5241 = vmatpush1.bf16.msra.mxu0 0
    %5242 = vmatprep.subr.bf16.mxu0 0
    %5243 = vmatpush1.bf16.msra.mxu0 0
    %5244 = vmatprep.subr.bf16.mxu0 0
    %5245 = vmatpush1.bf16.msra.mxu0 0
    %5246 = vmatprep.subr.bf16.mxu0 0
    %5247 = vmatpush1.bf16.msra.mxu0 0
    %5248 = vmatprep.mubr.bf16.mxu0 0
    %5249 = vmatmul.mubr.bf16.gmra.mrb[0].mxu0 %v5143
    %v5250 = vpop.f32.mrb[0].mxu0
    %v5251 = vadd.f32 0.0, %v5250
    %v5252 = vpop.f32.mrb[0].mxu0
    %v5253 = vpop.f32.mrb[0].mxu0
    %v5254 = vadd.f32 0.0, %v5253
    %v5255 = vpop.f32.mrb[0].mxu0
    %5256 = vmatprep.mubr.bf16.mxu0 0
    %5257 = vmatmul.mubr.bf16.gmra.mrb[0].mxu0 %v5144
    %v5258 = vpop.f32.mrb[0].mxu0
    %v5259 = vadd.f32 0.0, %v5258
    %v5260 = vpop.f32.mrb[0].mxu0
    %v5261 = vpop.f32.mrb[0].mxu0
    %v5262 = vadd.f32 0.0, %v5261
    %v5263 = vpop.f32.mrb[0].mxu0
    %5264 = vmatprep.mubr.bf16.mxu0 0
    %5265 = vmatmul.mubr.bf16.gmra.mrb[0].mxu0 %v5145
    %v5266 = vpop.f32.mrb[0].mxu0
    %v5267 = vadd.f32 0.0, %v5266
    %v5268 = vpop.f32.mrb[0].mxu0
    %v5269 = vpop.f32.mrb[0].mxu0
    %v5270 = vadd.f32 0.0, %v5269
    %v5271 = vpop.f32.mrb[0].mxu0
    %5272 = vmatprep.mubr.bf16.mxu0 0
    %5273 = vmatmul.mubr.bf16.gmra.mrb[0].mxu0 %v5146
    %v5274 = vpop.f32.mrb[0].mxu0
    %v5275 = vadd.f32 0.0, %v5274
    %v5276 = vpop.f32.mrb[0].mxu0
    %v5277 = vpop.f32.mrb[0].mxu0
    %v5278 = vadd.f32 0.0, %v5277
    %v5279 = vpop.f32.mrb[0].mxu0
    %5280 = vmatprep.mubr.bf16.mxu0 0
    %5281 = vmatmul.mubr.bf16.gmra.mrb[0].mxu0 %v5147
    %v5282 = vpop.f32.mrb[0].mxu0
    %v5283 = vadd.f32 0.0, %v5282
    %v5284 = vpop.f32.mrb[0].mxu0
    %v5285 = vpop.f32.mrb[0].mxu0
    %v5286 = vadd.f32 0.0, %v5285
    %v5287 = vpop.f32.mrb[0].mxu0
    %5288 = vmatprep.mubr.bf16.mxu0 0
    %5289 = vmatmul.mubr.bf16.gmra.mrb[0].mxu0 %v5148
    %v5290 = vpop.f32.mrb[0].mxu0
    %v5291 = vadd.f32 0.0, %v5290
    %v5292 = vpop.f32.mrb[0].mxu0
    %v5293 = vpop.f32.mrb[0].mxu0
    %v5294 = vadd.f32 0.0, %v5293
    %v5295 = vpop.f32.mrb[0].mxu0
    %5296 = vmatprep.mubr.bf16.mxu0 0
    %5297 = vmatmul.mubr.bf16.gmra.mrb[0].mxu0 %v5149
    %v5298 = vpop.f32.mrb[0].mxu0
    %v5299 = vadd.f32 0.0, %v5298
    %v5300 = vpop.f32.mrb[0].mxu0
    %v5301 = vpop.f32.mrb[0].mxu0
    %v5302 = vadd.f32 0.0, %v5301
    %v5303 = vpop.f32.mrb[0].mxu0
    %5304 = vmatprep.mubr.bf16.mxu0 0
    %5305 = vmatmul.mubr.bf16.gmra.mrb[0].mxu0 %v5150
    %v5306 = vpop.f32.mrb[0].mxu0
    %v5307 = vadd.f32 0.0, %v5306
    %v5308 = vpop.f32.mrb[0].mxu0
    %v5309 = vpop.f32.mrb[0].mxu0
    %v5310 = vadd.f32 0.0, %v5309
    %v5311 = vpop.f32.mrb[0].mxu0
    %5312 = vdwg.mxu0
    %v5313 = vadd.f32 %v4740, %v5251
    %v5314 = vadd.f32 %v4741, %v5254
    %v5315 = vadd.f32 %v4742, %v5259
    %v5316 = vadd.f32 %v4743, %v5262
    %v5317 = vadd.f32 %v4744, %v5267
    %v5318 = vadd.f32 %v4745, %v5270
    %v5319 = vadd.f32 %v4746, %v5275
    %v5320 = vadd.f32 %v4747, %v5278
    %v5321 = vadd.f32 %v4748, %v5283
    %v5322 = vadd.f32 %v4749, %v5286
    %v5323 = vadd.f32 %v4750, %v5291
    %v5324 = vadd.f32 %v4751, %v5294
    %v5325 = vadd.f32 %v4752, %v5299
    %v5326 = vadd.f32 %v4753, %v5302
    %v5327 = vadd.f32 %v4754, %v5307
    %v5328 = vadd.f32 %v4755, %v5310
    %s5329 = scalar_lea.vmem [#allocation5], 2048
    %v5330 = vld [vmem:[%s5329] sm:$0xff]
    %v5331 = vld [vmem:[%s5329 + $0x8] sm:$0xff]
    %v5332 = vld [vmem:[%s5329 + $0x10] sm:$0xff]
    %v5333 = vld [vmem:[%s5329 + $0x18] sm:$0xff]
    %v5334 = vld [vmem:[%s5329 + $0x20] sm:$0xff]
    %v5335 = vld [vmem:[%s5329 + $0x28] sm:$0xff]
    %v5336 = vld [vmem:[%s5329 + $0x30] sm:$0xff]
    %v5337 = vld [vmem:[%s5329 + $0x38] sm:$0xff]
    %v5338 = vld [vmem:[%s5329 + $0x40] sm:$0xff]
    %v5339 = vld [vmem:[%s5329 + $0x48] sm:$0xff]
    %v5340 = vld [vmem:[%s5329 + $0x50] sm:$0xff]
    %v5341 = vld [vmem:[%s5329 + $0x58] sm:$0xff]
    %v5342 = vld [vmem:[%s5329 + $0x60] sm:$0xff]
    %v5343 = vld [vmem:[%s5329 + $0x68] sm:$0xff]
    %v5344 = vld [vmem:[%s5329 + $0x70] sm:$0xff]
    %v5345 = vld [vmem:[%s5329 + $0x78] sm:$0xff]
    %v5346 = vld [vmem:[%s5329 + $0x80] sm:$0xff]
    %v5347 = vld [vmem:[%s5329 + $0x88] sm:$0xff]
    %v5348 = vld [vmem:[%s5329 + $0x90] sm:$0xff]
    %v5349 = vld [vmem:[%s5329 + $0x98] sm:$0xff]
    %v5350 = vld [vmem:[%s5329 + $0xa0] sm:$0xff]
    %v5351 = vld [vmem:[%s5329 + $0xa8] sm:$0xff]
    %v5352 = vld [vmem:[%s5329 + $0xb0] sm:$0xff]
    %v5353 = vld [vmem:[%s5329 + $0xb8] sm:$0xff]
    %v5354 = vld [vmem:[%s5329 + $0xc0] sm:$0xff]
    %v5355 = vld [vmem:[%s5329 + $0xc8] sm:$0xff]
    %v5356 = vld [vmem:[%s5329 + $0xd0] sm:$0xff]
    %v5357 = vld [vmem:[%s5329 + $0xd8] sm:$0xff]
    %v5358 = vld [vmem:[%s5329 + $0xe0] sm:$0xff]
    %v5359 = vld [vmem:[%s5329 + $0xe8] sm:$0xff]
    %v5360 = vld [vmem:[%s5329 + $0xf0] sm:$0xff]
    %v5361 = vld [vmem:[%s5329 + $0xf8] sm:$0xff]
    %v5394 = vunpack.c.l.b16 %v5330
    %v5395 = vunpack.c.h.b16 %v5330
    %v5396 = vunpack.c.l.b16 %v5331
    %v5397 = vunpack.c.h.b16 %v5331
    %v5398 = vunpack.c.l.b16 %v5332
    %v5399 = vunpack.c.h.b16 %v5332
    %v5400 = vunpack.c.l.b16 %v5333
    %v5401 = vunpack.c.h.b16 %v5333
    %v5402 = vunpack.c.l.b16 %v5334
    %v5403 = vunpack.c.h.b16 %v5334
    %v5404 = vunpack.c.l.b16 %v5335
    %v5405 = vunpack.c.h.b16 %v5335
    %v5406 = vunpack.c.l.b16 %v5336
    %v5407 = vunpack.c.h.b16 %v5336
    %v5408 = vunpack.c.l.b16 %v5337
    %v5409 = vunpack.c.h.b16 %v5337
    %v5410 = vunpack.c.l.b16 %v5338
    %v5411 = vunpack.c.h.b16 %v5338
    %v5412 = vunpack.c.l.b16 %v5339
    %v5413 = vunpack.c.h.b16 %v5339
    %v5414 = vunpack.c.l.b16 %v5340
    %v5415 = vunpack.c.h.b16 %v5340
    %v5416 = vunpack.c.l.b16 %v5341
    %v5417 = vunpack.c.h.b16 %v5341
    %v5418 = vunpack.c.l.b16 %v5342
    %v5419 = vunpack.c.h.b16 %v5342
    %v5420 = vunpack.c.l.b16 %v5343
    %v5421 = vunpack.c.h.b16 %v5343
    %v5422 = vunpack.c.l.b16 %v5344
    %v5423 = vunpack.c.h.b16 %v5344
    %v5424 = vunpack.c.l.b16 %v5345
    %v5425 = vunpack.c.h.b16 %v5345
    %v5426 = vunpack.c.l.b16 %v5346
    %v5427 = vunpack.c.h.b16 %v5346
    %v5428 = vunpack.c.l.b16 %v5347
    %v5429 = vunpack.c.h.b16 %v5347
    %v5430 = vunpack.c.l.b16 %v5348
    %v5431 = vunpack.c.h.b16 %v5348
    %v5432 = vunpack.c.l.b16 %v5349
    %v5433 = vunpack.c.h.b16 %v5349
    %v5434 = vunpack.c.l.b16 %v5350
    %v5435 = vunpack.c.h.b16 %v5350
    %v5436 = vunpack.c.l.b16 %v5351
    %v5437 = vunpack.c.h.b16 %v5351
    %v5438 = vunpack.c.l.b16 %v5352
    %v5439 = vunpack.c.h.b16 %v5352
    %v5440 = vunpack.c.l.b16 %v5353
    %v5441 = vunpack.c.h.b16 %v5353
    %v5442 = vunpack.c.l.b16 %v5354
    %v5443 = vunpack.c.h.b16 %v5354
    %v5444 = vunpack.c.l.b16 %v5355
    %v5445 = vunpack.c.h.b16 %v5355
    %v5446 = vunpack.c.l.b16 %v5356
    %v5447 = vunpack.c.h.b16 %v5356
    %v5448 = vunpack.c.l.b16 %v5357
    %v5449 = vunpack.c.h.b16 %v5357
    %v5450 = vunpack.c.l.b16 %v5358
    %v5451 = vunpack.c.h.b16 %v5358
    %v5452 = vunpack.c.l.b16 %v5359
    %v5453 = vunpack.c.h.b16 %v5359
    %v5454 = vunpack.c.l.b16 %v5360
    %v5455 = vunpack.c.h.b16 %v5360
    %v5456 = vunpack.c.l.b16 %v5361
    %v5457 = vunpack.c.h.b16 %v5361
    %v5458 = vpack.c.b16 %v5398, %v5394
    %v5459 = vpack.c.b16 %v5399, %v5395
    %v5460 = vpack.c.b16 %v5400, %v5396
    %v5461 = vpack.c.b16 %v5401, %v5397
    %v5462 = vpack.c.b16 %v5406, %v5402
    %v5463 = vpack.c.b16 %v5407, %v5403
    %v5464 = vpack.c.b16 %v5408, %v5404
    %v5465 = vpack.c.b16 %v5409, %v5405
    %v5466 = vpack.c.b16 %v5414, %v5410
    %v5467 = vpack.c.b16 %v5415, %v5411
    %v5468 = vpack.c.b16 %v5416, %v5412
    %v5469 = vpack.c.b16 %v5417, %v5413
    %v5470 = vpack.c.b16 %v5422, %v5418
    %v5471 = vpack.c.b16 %v5423, %v5419
    %v5472 = vpack.c.b16 %v5424, %v5420
    %v5473 = vpack.c.b16 %v5425, %v5421
    %v5474 = vpack.c.b16 %v5430, %v5426
    %v5475 = vpack.c.b16 %v5431, %v5427
    %v5476 = vpack.c.b16 %v5432, %v5428
    %v5477 = vpack.c.b16 %v5433, %v5429
    %v5478 = vpack.c.b16 %v5438, %v5434
    %v5479 = vpack.c.b16 %v5439, %v5435
    %v5480 = vpack.c.b16 %v5440, %v5436
    %v5481 = vpack.c.b16 %v5441, %v5437
    %v5482 = vpack.c.b16 %v5446, %v5442
    %v5483 = vpack.c.b16 %v5447, %v5443
    %v5484 = vpack.c.b16 %v5448, %v5444
    %v5485 = vpack.c.b16 %v5449, %v5445
    %v5486 = vpack.c.b16 %v5454, %v5450
    %v5487 = vpack.c.b16 %v5455, %v5451
    %v5488 = vpack.c.b16 %v5456, %v5452
    %v5489 = vpack.c.b16 %v5457, %v5453
    %5522 = vmatprep.subr.bf16.mxu0 0
    %5523 = vmatpush1.bf16.msra.mxu0 %v907
    %5524 = vmatprep.subr.bf16.mxu0 0
    %5525 = vmatpush1.bf16.msra.mxu0 %v908
    %5526 = vmatprep.subr.bf16.mxu0 0
    %5527 = vmatpush1.bf16.msra.mxu0 %v909
    %5528 = vmatprep.subr.bf16.mxu0 0
    %5529 = vmatpush1.bf16.msra.mxu0 %v910
    %5530 = vmatprep.subr.bf16.mxu0 0
    %5531 = vmatpush1.bf16.msra.mxu0 %v911
    %5532 = vmatprep.subr.bf16.mxu0 0
    %5533 = vmatpush1.bf16.msra.mxu0 %v912
    %5534 = vmatprep.subr.bf16.mxu0 0
    %5535 = vmatpush1.bf16.msra.mxu0 %v913
    %5536 = vmatprep.subr.bf16.mxu0 0
    %5537 = vmatpush1.bf16.msra.mxu0 %v914
    %5538 = vmatprep.subr.bf16.mxu0 0
    %5539 = vmatpush1.bf16.msra.mxu0 %v915
    %5540 = vmatprep.subr.bf16.mxu0 0
    %5541 = vmatpush1.bf16.msra.mxu0 %v916
    %5542 = vmatprep.subr.bf16.mxu0 0
    %5543 = vmatpush1.bf16.msra.mxu0 %v917
    %5544 = vmatprep.subr.bf16.mxu0 0
    %5545 = vmatpush1.bf16.msra.mxu0 %v918
    %5546 = vmatprep.subr.bf16.mxu0 0
    %5547 = vmatpush1.bf16.msra.mxu0 %v919
    %5548 = vmatprep.subr.bf16.mxu0 0
    %5549 = vmatpush1.bf16.msra.mxu0 %v920
    %5550 = vmatprep.subr.bf16.mxu0 0
    %5551 = vmatpush1.bf16.msra.mxu0 %v921
    %5552 = vmatprep.subr.bf16.mxu0 0
    %5553 = vmatpush1.bf16.msra.mxu0 %v922
    %5554 = vmatprep.mubr.bf16.mxu0 %v5459
    %5555 = vmatmul.mubr.bf16.gmra.mrb[0].mxu0 %v5458
    %v5556 = vpop.f32.mrb[0].mxu0
    %v5557 = vadd.f32 0.0, %v5556
    %v5558 = vpop.f32.mrb[0].mxu0
    %v5559 = vpop.f32.mrb[0].mxu0
    %v5560 = vadd.f32 0.0, %v5559
    %v5561 = vpop.f32.mrb[0].mxu0
    %5562 = vmatprep.mubr.bf16.mxu0 %v5463
    %5563 = vmatmul.mubr.bf16.gmra.mrb[0].mxu0 %v5462
    %v5564 = vpop.f32.mrb[0].mxu0
    %v5565 = vadd.f32 0.0, %v5564
    %v5566 = vpop.f32.mrb[0].mxu0
    %v5567 = vpop.f32.mrb[0].mxu0
    %v5568 = vadd.f32 0.0, %v5567
    %v5569 = vpop.f32.mrb[0].mxu0
    %5570 = vmatprep.mubr.bf16.mxu0 %v5467
    %5571 = vmatmul.mubr.bf16.gmra.mrb[0].mxu0 %v5466
    %v5572 = vpop.f32.mrb[0].mxu0
    %v5573 = vadd.f32 0.0, %v5572
    %v5574 = vpop.f32.mrb[0].mxu0
    %v5575 = vpop.f32.mrb[0].mxu0
    %v5576 = vadd.f32 0.0, %v5575
    %v5577 = vpop.f32.mrb[0].mxu0
    %5578 = vmatprep.mubr.bf16.mxu0 %v5471
    %5579 = vmatmul.mubr.bf16.gmra.mrb[0].mxu0 %v5470
    %v5580 = vpop.f32.mrb[0].mxu0
    %v5581 = vadd.f32 0.0, %v5580
    %v5582 = vpop.f32.mrb[0].mxu0
    %v5583 = vpop.f32.mrb[0].mxu0
    %v5584 = vadd.f32 0.0, %v5583
    %v5585 = vpop.f32.mrb[0].mxu0
    %5586 = vmatprep.mubr.bf16.mxu0 %v5475
    %5587 = vmatmul.mubr.bf16.gmra.mrb[0].mxu0 %v5474
    %v5588 = vpop.f32.mrb[0].mxu0
    %v5589 = vadd.f32 0.0, %v5588
    %v5590 = vpop.f32.mrb[0].mxu0
    %v5591 = vpop.f32.mrb[0].mxu0
    %v5592 = vadd.f32 0.0, %v5591
    %v5593 = vpop.f32.mrb[0].mxu0
    %5594 = vmatprep.mubr.bf16.mxu0 %v5479
    %5595 = vmatmul.mubr.bf16.gmra.mrb[0].mxu0 %v5478
    %v5596 = vpop.f32.mrb[0].mxu0
    %v5597 = vadd.f32 0.0, %v5596
    %v5598 = vpop.f32.mrb[0].mxu0
    %v5599 = vpop.f32.mrb[0].mxu0
    %v5600 = vadd.f32 0.0, %v5599
    %v5601 = vpop.f32.mrb[0].mxu0
    %5602 = vmatprep.mubr.bf16.mxu0 %v5483
    %5603 = vmatmul.mubr.bf16.gmra.mrb[0].mxu0 %v5482
    %v5604 = vpop.f32.mrb[0].mxu0
    %v5605 = vadd.f32 0.0, %v5604
    %v5606 = vpop.f32.mrb[0].mxu0
    %v5607 = vpop.f32.mrb[0].mxu0
    %v5608 = vadd.f32 0.0, %v5607
    %v5609 = vpop.f32.mrb[0].mxu0
    %5610 = vmatprep.mubr.bf16.mxu0 %v5487
    %5611 = vmatmul.mubr.bf16.gmra.mrb[0].mxu0 %v5486
    %v5612 = vpop.f32.mrb[0].mxu0
    %v5613 = vadd.f32 0.0, %v5612
    %v5614 = vpop.f32.mrb[0].mxu0
    %v5615 = vpop.f32.mrb[0].mxu0
    %v5616 = vadd.f32 0.0, %v5615
    %v5617 = vpop.f32.mrb[0].mxu0
    %5618 = vdwg.mxu0
    %5619 = vmatprep.subr.bf16.mxu0 0
    %5620 = vmatpush1.bf16.msra.mxu0 %v923
    %5621 = vmatprep.subr.bf16.mxu0 0
    %5622 = vmatpush1.bf16.msra.mxu0 %v924
    %5623 = vmatprep.subr.bf16.mxu0 0
    %5624 = vmatpush1.bf16.msra.mxu0 %v925
    %5625 = vmatprep.subr.bf16.mxu0 0
    %5626 = vmatpush1.bf16.msra.mxu0 %v926
    %5627 = vmatprep.subr.bf16.mxu0 0
    %5628 = vmatpush1.bf16.msra.mxu0 %v927
    %5629 = vmatprep.subr.bf16.mxu0 0
    %5630 = vmatpush1.bf16.msra.mxu0 %v928
    %5631 = vmatprep.subr.bf16.mxu0 0
    %5632 = vmatpush1.bf16.msra.mxu0 %v929
    %5633 = vmatprep.subr.bf16.mxu0 0
    %5634 = vmatpush1.bf16.msra.mxu0 %v930
    %5635 = vmatprep.subr.bf16.mxu0 0
    %5636 = vmatpush1.bf16.msra.mxu0 %v931
    %5637 = vmatprep.subr.bf16.mxu0 0
    %5638 = vmatpush1.bf16.msra.mxu0 %v932
    %5639 = vmatprep.subr.bf16.mxu0 0
    %5640 = vmatpush1.bf16.msra.mxu0 %v933
    %5641 = vmatprep.subr.bf16.mxu0 0
    %5642 = vmatpush1.bf16.msra.mxu0 %v934
    %5643 = vmatprep.subr.bf16.mxu0 0
    %5644 = vmatpush1.bf16.msra.mxu0 %v935
    %5645 = vmatprep.subr.bf16.mxu0 0
    %5646 = vmatpush1.bf16.msra.mxu0 %v936
    %5647 = vmatprep.subr.bf16.mxu0 0
    %5648 = vmatpush1.bf16.msra.mxu0 %v937
    %5649 = vmatprep.subr.bf16.mxu0 0
    %5650 = vmatpush1.bf16.msra.mxu0 %v938
    %5651 = vmatprep.mubr.bf16.mxu0 %v5461
    %5652 = vmatmul.mubr.bf16.gmra.mrb[0].mxu0 %v5460
    %v5653 = vpop.f32.mrb[0].mxu0
    %v5654 = vadd.f32 %v5557, %v5653
    %v5655 = vpop.f32.mrb[0].mxu0
    %v5656 = vpop.f32.mrb[0].mxu0
    %v5657 = vadd.f32 %v5560, %v5656
    %v5658 = vpop.f32.mrb[0].mxu0
    %5659 = vmatprep.mubr.bf16.mxu0 %v5465
    %5660 = vmatmul.mubr.bf16.gmra.mrb[0].mxu0 %v5464
    %v5661 = vpop.f32.mrb[0].mxu0
    %v5662 = vadd.f32 %v5565, %v5661
    %v5663 = vpop.f32.mrb[0].mxu0
    %v5664 = vpop.f32.mrb[0].mxu0
    %v5665 = vadd.f32 %v5568, %v5664
    %v5666 = vpop.f32.mrb[0].mxu0
    %5667 = vmatprep.mubr.bf16.mxu0 %v5469
    %5668 = vmatmul.mubr.bf16.gmra.mrb[0].mxu0 %v5468
    %v5669 = vpop.f32.mrb[0].mxu0
    %v5670 = vadd.f32 %v5573, %v5669
    %v5671 = vpop.f32.mrb[0].mxu0
    %v5672 = vpop.f32.mrb[0].mxu0
    %v5673 = vadd.f32 %v5576, %v5672
    %v5674 = vpop.f32.mrb[0].mxu0
    %5675 = vmatprep.mubr.bf16.mxu0 %v5473
    %5676 = vmatmul.mubr.bf16.gmra.mrb[0].mxu0 %v5472
    %v5677 = vpop.f32.mrb[0].mxu0
    %v5678 = vadd.f32 %v5581, %v5677
    %v5679 = vpop.f32.mrb[0].mxu0
    %v5680 = vpop.f32.mrb[0].mxu0
    %v5681 = vadd.f32 %v5584, %v5680
    %v5682 = vpop.f32.mrb[0].mxu0
    %5683 = vmatprep.mubr.bf16.mxu0 %v5477
    %5684 = vmatmul.mubr.bf16.gmra.mrb[0].mxu0 %v5476
    %v5685 = vpop.f32.mrb[0].mxu0
    %v5686 = vadd.f32 %v5589, %v5685
    %v5687 = vpop.f32.mrb[0].mxu0
    %v5688 = vpop.f32.mrb[0].mxu0
    %v5689 = vadd.f32 %v5592, %v5688
    %v5690 = vpop.f32.mrb[0].mxu0
    %5691 = vmatprep.mubr.bf16.mxu0 %v5481
    %5692 = vmatmul.mubr.bf16.gmra.mrb[0].mxu0 %v5480
    %v5693 = vpop.f32.mrb[0].mxu0
    %v5694 = vadd.f32 %v5597, %v5693
    %v5695 = vpop.f32.mrb[0].mxu0
    %v5696 = vpop.f32.mrb[0].mxu0
    %v5697 = vadd.f32 %v5600, %v5696
    %v5698 = vpop.f32.mrb[0].mxu0
    %5699 = vmatprep.mubr.bf16.mxu0 %v5485
    %5700 = vmatmul.mubr.bf16.gmra.mrb[0].mxu0 %v5484
    %v5701 = vpop.f32.mrb[0].mxu0
    %v5702 = vadd.f32 %v5605, %v5701
    %v5703 = vpop.f32.mrb[0].mxu0
    %v5704 = vpop.f32.mrb[0].mxu0
    %v5705 = vadd.f32 %v5608, %v5704
    %v5706 = vpop.f32.mrb[0].mxu0
    %5707 = vmatprep.mubr.bf16.mxu0 %v5489
    %5708 = vmatmul.mubr.bf16.gmra.mrb[0].mxu0 %v5488
    %v5709 = vpop.f32.mrb[0].mxu0
    %v5710 = vadd.f32 %v5613, %v5709
    %v5711 = vpop.f32.mrb[0].mxu0
    %v5712 = vpop.f32.mrb[0].mxu0
    %v5713 = vadd.f32 %v5616, %v5712
    %v5714 = vpop.f32.mrb[0].mxu0
    %5715 = vdwg.mxu0
    %v5716 = vpack.c.bf16 %v5657, %v5654
    %v5717 = vpack.c.bf16 %v5665, %v5662
    %v5718 = vpack.c.bf16 %v5673, %v5670
    %v5719 = vpack.c.bf16 %v5681, %v5678
    %v5720 = vpack.c.bf16 %v5689, %v5686
    %v5721 = vpack.c.bf16 %v5697, %v5694
    %v5722 = vpack.c.bf16 %v5705, %v5702
    %v5723 = vpack.c.bf16 %v5713, %v5710
    %s5724 = scalar_lea.vmem [#allocation7], 512
    %v5725 = vld [vmem:[%s5724] sm:$0xf]
    %v5726 = vld [vmem:[%s5724 + $0x4] sm:$0xf]
    %v5727 = vld [vmem:[%s5724 + $0x8] sm:$0xf]
    %v5728 = vld [vmem:[%s5724 + $0xc] sm:$0xf]
    %v5729 = vld [vmem:[%s5724 + $0x10] sm:$0xf]
    %v5730 = vld [vmem:[%s5724 + $0x14] sm:$0xf]
    %v5731 = vld [vmem:[%s5724 + $0x18] sm:$0xf]
    %v5732 = vld [vmem:[%s5724 + $0x1c] sm:$0xf]
    %v5733 = vld [vmem:[%s5724 + $0x20] sm:$0xf]
    %v5734 = vld [vmem:[%s5724 + $0x24] sm:$0xf]
    %v5735 = vld [vmem:[%s5724 + $0x28] sm:$0xf]
    %v5736 = vld [vmem:[%s5724 + $0x2c] sm:$0xf]
    %v5737 = vld [vmem:[%s5724 + $0x30] sm:$0xf]
    %v5738 = vld [vmem:[%s5724 + $0x34] sm:$0xf]
    %v5739 = vld [vmem:[%s5724 + $0x38] sm:$0xf]
    %v5740 = vld [vmem:[%s5724 + $0x3c] sm:$0xf]
    %v5757 = vunpack.c.l.b16 %v5725
    %v5758 = vunpack.c.l.b16 %v5726
    %v5759 = vunpack.c.l.b16 %v5727
    %v5760 = vunpack.c.l.b16 %v5728
    %v5761 = vunpack.c.l.b16 %v5729
    %v5762 = vunpack.c.l.b16 %v5730
    %v5763 = vunpack.c.l.b16 %v5731
    %v5764 = vunpack.c.l.b16 %v5732
    %v5765 = vunpack.c.l.b16 %v5733
    %v5766 = vunpack.c.l.b16 %v5734
    %v5767 = vunpack.c.l.b16 %v5735
    %v5768 = vunpack.c.l.b16 %v5736
    %v5769 = vunpack.c.l.b16 %v5737
    %v5770 = vunpack.c.l.b16 %v5738
    %v5771 = vunpack.c.l.b16 %v5739
    %v5772 = vunpack.c.l.b16 %v5740
    %v5773 = vpack.c.b16 %v5758, %v5757
    %v5774 = vpack.c.b16 %v5760, %v5759
    %v5775 = vpack.c.b16 %v5762, %v5761
    %v5776 = vpack.c.b16 %v5764, %v5763
    %v5777 = vpack.c.b16 %v5766, %v5765
    %v5778 = vpack.c.b16 %v5768, %v5767
    %v5779 = vpack.c.b16 %v5770, %v5769
    %v5780 = vpack.c.b16 %v5772, %v5771
    %5789 = vmatprep.subr.bf16.mxu0 0
    %5790 = vmatpush1.bf16.msra.mxu0 %v5773
    %5791 = vmatprep.subr.bf16.mxu0 0
    %5792 = vmatpush1.bf16.msra.mxu0 %v5774
    %5793 = vmatprep.subr.bf16.mxu0 0
    %5794 = vmatpush1.bf16.msra.mxu0 %v5775
    %5795 = vmatprep.subr.bf16.mxu0 0
    %5796 = vmatpush1.bf16.msra.mxu0 %v5776
    %5797 = vmatprep.subr.bf16.mxu0 0
    %5798 = vmatpush1.bf16.msra.mxu0 %v5777
    %5799 = vmatprep.subr.bf16.mxu0 0
    %5800 = vmatpush1.bf16.msra.mxu0 %v5778
    %5801 = vmatprep.subr.bf16.mxu0 0
    %5802 = vmatpush1.bf16.msra.mxu0 %v5779
    %5803 = vmatprep.subr.bf16.mxu0 0
    %5804 = vmatpush1.bf16.msra.mxu0 %v5780
    %5805 = vmatprep.subr.bf16.mxu0 0
    %5806 = vmatpush1.bf16.msra.mxu0 0
    %5807 = vmatprep.subr.bf16.mxu0 0
    %5808 = vmatpush1.bf16.msra.mxu0 0
    %5809 = vmatprep.subr.bf16.mxu0 0
    %5810 = vmatpush1.bf16.msra.mxu0 0
    %5811 = vmatprep.subr.bf16.mxu0 0
    %5812 = vmatpush1.bf16.msra.mxu0 0
    %5813 = vmatprep.subr.bf16.mxu0 0
    %5814 = vmatpush1.bf16.msra.mxu0 0
    %5815 = vmatprep.subr.bf16.mxu0 0
    %5816 = vmatpush1.bf16.msra.mxu0 0
    %5817 = vmatprep.subr.bf16.mxu0 0
    %5818 = vmatpush1.bf16.msra.mxu0 0
    %5819 = vmatprep.subr.bf16.mxu0 0
    %5820 = vmatpush1.bf16.msra.mxu0 0
    %5821 = vmatprep.mubr.bf16.mxu0 0
    %5822 = vmatmul.mubr.bf16.gmra.mrb[0].mxu0 %v5716
    %v5823 = vpop.f32.mrb[0].mxu0
    %v5824 = vadd.f32 0.0, %v5823
    %v5825 = vpop.f32.mrb[0].mxu0
    %v5826 = vpop.f32.mrb[0].mxu0
    %v5827 = vadd.f32 0.0, %v5826
    %v5828 = vpop.f32.mrb[0].mxu0
    %5829 = vmatprep.mubr.bf16.mxu0 0
    %5830 = vmatmul.mubr.bf16.gmra.mrb[0].mxu0 %v5717
    %v5831 = vpop.f32.mrb[0].mxu0
    %v5832 = vadd.f32 0.0, %v5831
    %v5833 = vpop.f32.mrb[0].mxu0
    %v5834 = vpop.f32.mrb[0].mxu0
    %v5835 = vadd.f32 0.0, %v5834
    %v5836 = vpop.f32.mrb[0].mxu0
    %5837 = vmatprep.mubr.bf16.mxu0 0
    %5838 = vmatmul.mubr.bf16.gmra.mrb[0].mxu0 %v5718
    %v5839 = vpop.f32.mrb[0].mxu0
    %v5840 = vadd.f32 0.0, %v5839
    %v5841 = vpop.f32.mrb[0].mxu0
    %v5842 = vpop.f32.mrb[0].mxu0
    %v5843 = vadd.f32 0.0, %v5842
    %v5844 = vpop.f32.mrb[0].mxu0
    %5845 = vmatprep.mubr.bf16.mxu0 0
    %5846 = vmatmul.mubr.bf16.gmra.mrb[0].mxu0 %v5719
    %v5847 = vpop.f32.mrb[0].mxu0
    %v5848 = vadd.f32 0.0, %v5847
    %v5849 = vpop.f32.mrb[0].mxu0
    %v5850 = vpop.f32.mrb[0].mxu0
    %v5851 = vadd.f32 0.0, %v5850
    %v5852 = vpop.f32.mrb[0].mxu0
    %5853 = vmatprep.mubr.bf16.mxu0 0
    %5854 = vmatmul.mubr.bf16.gmra.mrb[0].mxu0 %v5720
    %v5855 = vpop.f32.mrb[0].mxu0
    %v5856 = vadd.f32 0.0, %v5855
    %v5857 = vpop.f32.mrb[0].mxu0
    %v5858 = vpop.f32.mrb[0].mxu0
    %v5859 = vadd.f32 0.0, %v5858
    %v5860 = vpop.f32.mrb[0].mxu0
    %5861 = vmatprep.mubr.bf16.mxu0 0
    %5862 = vmatmul.mubr.bf16.gmra.mrb[0].mxu0 %v5721
    %v5863 = vpop.f32.mrb[0].mxu0
    %v5864 = vadd.f32 0.0, %v5863
    %v5865 = vpop.f32.mrb[0].mxu0
    %v5866 = vpop.f32.mrb[0].mxu0
    %v5867 = vadd.f32 0.0, %v5866
    %v5868 = vpop.f32.mrb[0].mxu0
    %5869 = vmatprep.mubr.bf16.mxu0 0
    %5870 = vmatmul.mubr.bf16.gmra.mrb[0].mxu0 %v5722
    %v5871 = vpop.f32.mrb[0].mxu0
    %v5872 = vadd.f32 0.0, %v5871
    %v5873 = vpop.f32.mrb[0].mxu0
    %v5874 = vpop.f32.mrb[0].mxu0
    %v5875 = vadd.f32 0.0, %v5874
    %v5876 = vpop.f32.mrb[0].mxu0
    %5877 = vmatprep.mubr.bf16.mxu0 0
    %5878 = vmatmul.mubr.bf16.gmra.mrb[0].mxu0 %v5723
    %v5879 = vpop.f32.mrb[0].mxu0
    %v5880 = vadd.f32 0.0, %v5879
    %v5881 = vpop.f32.mrb[0].mxu0
    %v5882 = vpop.f32.mrb[0].mxu0
    %v5883 = vadd.f32 0.0, %v5882
    %v5884 = vpop.f32.mrb[0].mxu0
    %5885 = vdwg.mxu0
    %v5886 = vadd.f32 %v5313, %v5824
    %v5887 = vadd.f32 %v5314, %v5827
    %v5888 = vadd.f32 %v5315, %v5832
    %v5889 = vadd.f32 %v5316, %v5835
    %v5890 = vadd.f32 %v5317, %v5840
    %v5891 = vadd.f32 %v5318, %v5843
    %v5892 = vadd.f32 %v5319, %v5848
    %v5893 = vadd.f32 %v5320, %v5851
    %v5894 = vadd.f32 %v5321, %v5856
    %v5895 = vadd.f32 %v5322, %v5859
    %v5896 = vadd.f32 %v5323, %v5864
    %v5897 = vadd.f32 %v5324, %v5867
    %v5898 = vadd.f32 %v5325, %v5872
    %v5899 = vadd.f32 %v5326, %v5875
    %v5900 = vadd.f32 %v5327, %v5880
    %v5901 = vadd.f32 %v5328, %v5883
    %v5902 = vld [vmem:[#allocation8] sm:$0x1]
    %v5904 = vlaneseq
    %v5905 = vshrl.u32 %v5904, 7
    %v5906 = vsub.s32 0, %v5905
    %v5907 = vrot.slane %v5902, %v5906
    %v5909 = vadd.f32 %v5886, %v5907
    %v5910 = vadd.f32 %v5887, %v5907
    %v5911 = vadd.f32 %v5888, %v5907
    %v5912 = vadd.f32 %v5889, %v5907
    %v5913 = vadd.f32 %v5890, %v5907
    %v5914 = vadd.f32 %v5891, %v5907
    %v5915 = vadd.f32 %v5892, %v5907
    %v5916 = vadd.f32 %v5893, %v5907
    %v5917 = vadd.f32 %v5894, %v5907
    %v5918 = vadd.f32 %v5895, %v5907
    %v5919 = vadd.f32 %v5896, %v5907
    %v5920 = vadd.f32 %v5897, %v5907
    %v5921 = vadd.f32 %v5898, %v5907
    %v5922 = vadd.f32 %v5899, %v5907
    %v5923 = vadd.f32 %v5900, %v5907
    %v5924 = vadd.f32 %v5901, %v5907
    %vm5925 = vcmp.ge.f32.partialorder %v5909, 0.0
    %vm5926 = vcmp.ge.f32.partialorder %v5910, 0.0
    %vm5927 = vcmp.ge.f32.partialorder %v5911, 0.0
    %vm5928 = vcmp.ge.f32.partialorder %v5912, 0.0
    %vm5929 = vcmp.ge.f32.partialorder %v5913, 0.0
    %vm5930 = vcmp.ge.f32.partialorder %v5914, 0.0
    %vm5931 = vcmp.ge.f32.partialorder %v5915, 0.0
    %vm5932 = vcmp.ge.f32.partialorder %v5916, 0.0
    %vm5933 = vcmp.ge.f32.partialorder %v5917, 0.0
    %vm5934 = vcmp.ge.f32.partialorder %v5918, 0.0
    %vm5935 = vcmp.ge.f32.partialorder %v5919, 0.0
    %vm5936 = vcmp.ge.f32.partialorder %v5920, 0.0
    %vm5937 = vcmp.ge.f32.partialorder %v5921, 0.0
    %vm5938 = vcmp.ge.f32.partialorder %v5922, 0.0
    %vm5939 = vcmp.ge.f32.partialorder %v5923, 0.0
    %vm5940 = vcmp.ge.f32.partialorder %v5924, 0.0
    %v5941 = vmul.f32 %v5909, 0.01
    %v5942 = vmul.f32 %v5910, 0.01
    %v5943 = vmul.f32 %v5911, 0.01
    %v5944 = vmul.f32 %v5912, 0.01
    %v5945 = vmul.f32 %v5913, 0.01
    %v5946 = vmul.f32 %v5914, 0.01
    %v5947 = vmul.f32 %v5915, 0.01
    %v5948 = vmul.f32 %v5916, 0.01
    %v5949 = vmul.f32 %v5917, 0.01
    %v5950 = vmul.f32 %v5918, 0.01
    %v5951 = vmul.f32 %v5919, 0.01
    %v5952 = vmul.f32 %v5920, 0.01
    %v5953 = vmul.f32 %v5921, 0.01
    %v5954 = vmul.f32 %v5922, 0.01
    %v5955 = vmul.f32 %v5923, 0.01
    %v5956 = vmul.f32 %v5924, 0.01
    %v5957 = vsel %vm5925, %v5909, %v5941
    %v5958 = vsel %vm5926, %v5910, %v5942
    %v5959 = vsel %vm5927, %v5911, %v5943
    %v5960 = vsel %vm5928, %v5912, %v5944
    %v5961 = vsel %vm5929, %v5913, %v5945
    %v5962 = vsel %vm5930, %v5914, %v5946
    %v5963 = vsel %vm5931, %v5915, %v5947
    %v5964 = vsel %vm5932, %v5916, %v5948
    %v5965 = vsel %vm5933, %v5917, %v5949
    %v5966 = vsel %vm5934, %v5918, %v5950
    %v5967 = vsel %vm5935, %v5919, %v5951
    %v5968 = vsel %vm5936, %v5920, %v5952
    %v5969 = vsel %vm5937, %v5921, %v5953
    %v5970 = vsel %vm5938, %v5922, %v5954
    %v5971 = vsel %vm5939, %v5923, %v5955
    %v5972 = vsel %vm5940, %v5924, %v5956
    %v5973 = vadd.f32 %v5957, %v5958
    %v5974 = vadd.f32 %v5973, %v5959
    %v5975 = vadd.f32 %v5974, %v5960
    %v5976 = vadd.f32 %v5975, %v5961
    %v5977 = vadd.f32 %v5976, %v5962
    %v5978 = vadd.f32 %v5977, %v5963
    %v5979 = vadd.f32 %v5978, %v5964
    %v5980 = vadd.f32 %v5979, %v5965
    %v5981 = vadd.f32 %v5980, %v5966
    %v5982 = vadd.f32 %v5981, %v5967
    %v5983 = vadd.f32 %v5982, %v5968
    %v5984 = vadd.f32 %v5983, %v5969
    %v5985 = vadd.f32 %v5984, %v5970
    %v5986 = vadd.f32 %v5985, %v5971
    %v5987 = vadd.f32 %v5986, %v5972
    %v5988 = vrot.slane %v5987, 4
    %v5989 = vadd.f32 %v5987, %v5988
    %v5990 = vrot.slane %v5989, 2
    %v5991 = vadd.f32 %v5989, %v5990
    %v5992 = vrot.slane %v5991, 1
    %v5993 = vadd.f32 %v5991, %v5992
    %v5994 = vrcp.pop 128.0
    %v5995 = vmul.f32 %v5993, %v5994
    %v5996 = vsub.f32 %v5957, %v5995
    %v5997 = vsub.f32 %v5958, %v5995
    %v5998 = vsub.f32 %v5959, %v5995
    %v5999 = vsub.f32 %v5960, %v5995
    %v6000 = vsub.f32 %v5961, %v5995
    %v6001 = vsub.f32 %v5962, %v5995
    %v6002 = vsub.f32 %v5963, %v5995
    %v6003 = vsub.f32 %v5964, %v5995
    %v6004 = vsub.f32 %v5965, %v5995
    %v6005 = vsub.f32 %v5966, %v5995
    %v6006 = vsub.f32 %v5967, %v5995
    %v6007 = vsub.f32 %v5968, %v5995
    %v6008 = vsub.f32 %v5969, %v5995
    %v6009 = vsub.f32 %v5970, %v5995
    %v6010 = vsub.f32 %v5971, %v5995
    %v6011 = vsub.f32 %v5972, %v5995
    %v6012 = vmul.f32 %v5996, %v5996
    %v6013 = vmul.f32 %v5997, %v5997
    %v6014 = vmul.f32 %v5998, %v5998
    %v6015 = vmul.f32 %v5999, %v5999
    %v6016 = vmul.f32 %v6000, %v6000
    %v6017 = vmul.f32 %v6001, %v6001
    %v6018 = vmul.f32 %v6002, %v6002
    %v6019 = vmul.f32 %v6003, %v6003
    %v6020 = vmul.f32 %v6004, %v6004
    %v6021 = vmul.f32 %v6005, %v6005
    %v6022 = vmul.f32 %v6006, %v6006
    %v6023 = vmul.f32 %v6007, %v6007
    %v6024 = vmul.f32 %v6008, %v6008
    %v6025 = vmul.f32 %v6009, %v6009
    %v6026 = vmul.f32 %v6010, %v6010
    %v6027 = vmul.f32 %v6011, %v6011
    %v6028 = vadd.f32 %v6012, %v6013
    %v6029 = vadd.f32 %v6028, %v6014
    %v6030 = vadd.f32 %v6029, %v6015
    %v6031 = vadd.f32 %v6030, %v6016
    %v6032 = vadd.f32 %v6031, %v6017
    %v6033 = vadd.f32 %v6032, %v6018
    %v6034 = vadd.f32 %v6033, %v6019
    %v6035 = vadd.f32 %v6034, %v6020
    %v6036 = vadd.f32 %v6035, %v6021
    %v6037 = vadd.f32 %v6036, %v6022
    %v6038 = vadd.f32 %v6037, %v6023
    %v6039 = vadd.f32 %v6038, %v6024
    %v6040 = vadd.f32 %v6039, %v6025
    %v6041 = vadd.f32 %v6040, %v6026
    %v6042 = vadd.f32 %v6041, %v6027
    %v6043 = vrot.slane %v6042, 4
    %v6044 = vadd.f32 %v6042, %v6043
    %v6045 = vrot.slane %v6044, 2
    %v6046 = vadd.f32 %v6044, %v6045
    %v6047 = vrot.slane %v6046, 1
    %v6048 = vadd.f32 %v6046, %v6047
    %v6049 = vmul.f32 %v6048, %v5994
    %v6050 = vadd.f32 %v6049, 1e-05
    %v6051 = vrsqrt.pop %v6050
    %v6052 = vmul.f32 %v5996, %v6051
    %v6053 = vmul.f32 %v5997, %v6051
    %v6054 = vmul.f32 %v5998, %v6051
    %v6055 = vmul.f32 %v5999, %v6051
    %v6056 = vmul.f32 %v6000, %v6051
    %v6057 = vmul.f32 %v6001, %v6051
    %v6058 = vmul.f32 %v6002, %v6051
    %v6059 = vmul.f32 %v6003, %v6051
    %v6060 = vmul.f32 %v6004, %v6051
    %v6061 = vmul.f32 %v6005, %v6051
    %v6062 = vmul.f32 %v6006, %v6051
    %v6063 = vmul.f32 %v6007, %v6051
    %v6064 = vmul.f32 %v6008, %v6051
    %v6065 = vmul.f32 %v6009, %v6051
    %v6066 = vmul.f32 %v6010, %v6051
    %v6067 = vmul.f32 %v6011, %v6051
    %v6068 = vld [vmem:[#allocation10] sm:$0x1]
    %v6070 = vlaneseq
    %v6071 = vshrl.u32 %v6070, 7
    %v6072 = vsub.s32 0, %v6071
    %v6073 = vrot.slane %v6068, %v6072
    %v6075 = vmul.f32 %v6052, %v6073
    %v6076 = vmul.f32 %v6053, %v6073
    %v6077 = vmul.f32 %v6054, %v6073
    %v6078 = vmul.f32 %v6055, %v6073
    %v6079 = vmul.f32 %v6056, %v6073
    %v6080 = vmul.f32 %v6057, %v6073
    %v6081 = vmul.f32 %v6058, %v6073
    %v6082 = vmul.f32 %v6059, %v6073
    %v6083 = vmul.f32 %v6060, %v6073
    %v6084 = vmul.f32 %v6061, %v6073
    %v6085 = vmul.f32 %v6062, %v6073
    %v6086 = vmul.f32 %v6063, %v6073
    %v6087 = vmul.f32 %v6064, %v6073
    %v6088 = vmul.f32 %v6065, %v6073
    %v6089 = vmul.f32 %v6066, %v6073
    %v6090 = vmul.f32 %v6067, %v6073
    %v6091 = vld [vmem:[#allocation11] sm:$0x1]
    %v6093 = vlaneseq
    %v6094 = vshrl.u32 %v6093, 7
    %v6095 = vsub.s32 0, %v6094
    %v6096 = vrot.slane %v6091, %v6095
    %v6098 = vadd.f32 %v6075, %v6096
    %v6099 = vadd.f32 %v6076, %v6096
    %v6100 = vadd.f32 %v6077, %v6096
    %v6101 = vadd.f32 %v6078, %v6096
    %v6102 = vadd.f32 %v6079, %v6096
    %v6103 = vadd.f32 %v6080, %v6096
    %v6104 = vadd.f32 %v6081, %v6096
    %v6105 = vadd.f32 %v6082, %v6096
    %v6106 = vadd.f32 %v6083, %v6096
    %v6107 = vadd.f32 %v6084, %v6096
    %v6108 = vadd.f32 %v6085, %v6096
    %v6109 = vadd.f32 %v6086, %v6096
    %v6110 = vadd.f32 %v6087, %v6096
    %v6111 = vadd.f32 %v6088, %v6096
    %v6112 = vadd.f32 %v6089, %v6096
    %v6113 = vadd.f32 %v6090, %v6096
    %v6114 = vpack.c.bf16 %v6099, %v6098
    %v6115 = vpack.c.bf16 %v6101, %v6100
    %v6116 = vpack.c.bf16 %v6103, %v6102
    %v6117 = vpack.c.bf16 %v6105, %v6104
    %v6118 = vpack.c.bf16 %v6107, %v6106
    %v6119 = vpack.c.bf16 %v6109, %v6108
    %v6120 = vpack.c.bf16 %v6111, %v6110
    %v6121 = vpack.c.bf16 %v6113, %v6112
    %v6122 = vld [vmem:[#allocation13] sm:$0xf]
    %v6123 = vld [vmem:[#allocation13 + $0x4] sm:$0xf]
    %v6124 = vld [vmem:[#allocation13 + $0x8] sm:$0xf]
    %v6125 = vld [vmem:[#allocation13 + $0xc] sm:$0xf]
    %v6130 = vunpack.c.l.b16 %v6122
    %v6131 = vunpack.c.l.b16 %v6123
    %v6132 = vunpack.c.l.b16 %v6124
    %v6133 = vunpack.c.l.b16 %v6125
    %v6134 = vpack.c.b16 %v6131, %v6130
    %v6135 = vpack.c.b16 %v6133, %v6132
    %6138 = vmatprep.subr.bf16.mxu0 0
    %6139 = vmatpush1.bf16.msra.mxu0 %v6114
    %6140 = vmatprep.subr.bf16.mxu0 0
    %6141 = vmatpush1.bf16.msra.mxu0 %v6115
    %6142 = vmatprep.subr.bf16.mxu0 0
    %6143 = vmatpush1.bf16.msra.mxu0 %v6116
    %6144 = vmatprep.subr.bf16.mxu0 0
    %6145 = vmatpush1.bf16.msra.mxu0 %v6117
    %6146 = vmatprep.subr.bf16.mxu0 0
    %6147 = vmatpush1.bf16.msra.mxu0 %v6118
    %6148 = vmatprep.subr.bf16.mxu0 0
    %6149 = vmatpush1.bf16.msra.mxu0 %v6119
    %6150 = vmatprep.subr.bf16.mxu0 0
    %6151 = vmatpush1.bf16.msra.mxu0 %v6120
    %6152 = vmatprep.subr.bf16.mxu0 0
    %6153 = vmatpush1.bf16.msra.mxu0 %v6121
    %6154 = vmatprep.subr.bf16.mxu0 0
    %6155 = vmatpush1.bf16.msra.mxu0 0
    %6156 = vmatprep.subr.bf16.mxu0 0
    %6157 = vmatpush1.bf16.msra.mxu0 0
    %6158 = vmatprep.subr.bf16.mxu0 0
    %6159 = vmatpush1.bf16.msra.mxu0 0
    %6160 = vmatprep.subr.bf16.mxu0 0
    %6161 = vmatpush1.bf16.msra.mxu0 0
    %6162 = vmatprep.subr.bf16.mxu0 0
    %6163 = vmatpush1.bf16.msra.mxu0 0
    %6164 = vmatprep.subr.bf16.mxu0 0
    %6165 = vmatpush1.bf16.msra.mxu0 0
    %6166 = vmatprep.subr.bf16.mxu0 0
    %6167 = vmatpush1.bf16.msra.mxu0 0
    %6168 = vmatprep.subr.bf16.mxu0 0
    %6169 = vmatpush1.bf16.msra.mxu0 0
    %6170 = vmatprep.mubr.bf16.mxu0 0
    %6171 = vmatmul.mubr.bf16.gmra.mrb[0].mxu0 %v6134
    %v6172 = vpop.f32.mrb[0].mxu0
    %v6173 = vadd.f32 0.0, %v6172
    %v6174 = vpop.f32.mrb[0].mxu0
    %v6175 = vpop.f32.mrb[0].mxu0
    %v6176 = vadd.f32 0.0, %v6175
    %v6177 = vpop.f32.mrb[0].mxu0
    %6178 = vmatprep.mubr.bf16.mxu0 0
    %6179 = vmatmul.mubr.bf16.gmra.mrb[0].mxu0 %v6135
    %v6180 = vpop.f32.mrb[0].mxu0
    %v6181 = vadd.f32 0.0, %v6180
    %v6182 = vpop.f32.mrb[0].mxu0
    %v6183 = vpop.f32.mrb[0].mxu0
    %v6184 = vadd.f32 0.0, %v6183
    %v6185 = vpop.f32.mrb[0].mxu0
    %6186 = vdwg.mxu0
    %v6187 = vpack.c.bf16 %v6176, %v6173
    %v6188 = vpack.c.bf16 %v6184, %v6181
    %v6189 = vld [vmem:[#allocation14] sm:$0xf]
    %v6190 = vld [vmem:[#allocation14 + $0x4] sm:$0xf]
    %v6191 = vld [vmem:[#allocation14 + $0x8] sm:$0xf]
    %v6192 = vld [vmem:[#allocation14 + $0xc] sm:$0xf]
    %v6193 = vld [vmem:[#allocation14 + $0x10] sm:$0xf]
    %v6194 = vld [vmem:[#allocation14 + $0x14] sm:$0xf]
    %v6195 = vld [vmem:[#allocation14 + $0x18] sm:$0xf]
    %v6196 = vld [vmem:[#allocation14 + $0x1c] sm:$0xf]
    %v6197 = vld [vmem:[#allocation14 + $0x20] sm:$0xf]
    %v6198 = vld [vmem:[#allocation14 + $0x24] sm:$0xf]
    %v6199 = vld [vmem:[#allocation14 + $0x28] sm:$0xf]
    %v6200 = vld [vmem:[#allocation14 + $0x2c] sm:$0xf]
    %v6201 = vld [vmem:[#allocation14 + $0x30] sm:$0xf]
    %v6202 = vld [vmem:[#allocation14 + $0x34] sm:$0xf]
    %v6203 = vld [vmem:[#allocation14 + $0x38] sm:$0xf]
    %v6204 = vld [vmem:[#allocation14 + $0x3c] sm:$0xf]
    %s6205 = scalar_lea.vmem [#allocation13], 16
    %v6206 = vld [vmem:[%s6205] sm:$0xf]
    %v6207 = vld [vmem:[%s6205 + $0x4] sm:$0xf]
    %v6208 = vld [vmem:[%s6205 + $0x8] sm:$0xf]
    %v6209 = vld [vmem:[%s6205 + $0xc] sm:$0xf]
    %v6214 = vunpack.c.l.b16 %v6206
    %v6215 = vunpack.c.l.b16 %v6207
    %v6216 = vunpack.c.l.b16 %v6208
    %v6217 = vunpack.c.l.b16 %v6209
    %v6218 = vpack.c.b16 %v6215, %v6214
    %v6219 = vpack.c.b16 %v6217, %v6216
    %6222 = vmatprep.subr.bf16.mxu0 0
    %6223 = vmatpush1.bf16.msra.mxu0 %v6114
    %6224 = vmatprep.subr.bf16.mxu0 0
    %6225 = vmatpush1.bf16.msra.mxu0 %v6115
    %6226 = vmatprep.subr.bf16.mxu0 0
    %6227 = vmatpush1.bf16.msra.mxu0 %v6116
    %6228 = vmatprep.subr.bf16.mxu0 0
    %6229 = vmatpush1.bf16.msra.mxu0 %v6117
    %6230 = vmatprep.subr.bf16.mxu0 0
    %6231 = vmatpush1.bf16.msra.mxu0 %v6118
    %6232 = vmatprep.subr.bf16.mxu0 0
    %6233 = vmatpush1.bf16.msra.mxu0 %v6119
    %6234 = vmatprep.subr.bf16.mxu0 0
    %6235 = vmatpush1.bf16.msra.mxu0 %v6120
    %6236 = vmatprep.subr.bf16.mxu0 0
    %6237 = vmatpush1.bf16.msra.mxu0 %v6121
    %6238 = vmatprep.subr.bf16.mxu0 0
    %6239 = vmatpush1.bf16.msra.mxu0 0
    %6240 = vmatprep.subr.bf16.mxu0 0
    %6241 = vmatpush1.bf16.msra.mxu0 0
    %6242 = vmatprep.subr.bf16.mxu0 0
    %6243 = vmatpush1.bf16.msra.mxu0 0
    %6244 = vmatprep.subr.bf16.mxu0 0
    %6245 = vmatpush1.bf16.msra.mxu0 0
    %6246 = vmatprep.subr.bf16.mxu0 0
    %6247 = vmatpush1.bf16.msra.mxu0 0
    %6248 = vmatprep.subr.bf16.mxu0 0
    %6249 = vmatpush1.bf16.msra.mxu0 0
    %6250 = vmatprep.subr.bf16.mxu0 0
    %6251 = vmatpush1.bf16.msra.mxu0 0
    %6252 = vmatprep.subr.bf16.mxu0 0
    %6253 = vmatpush1.bf16.msra.mxu0 0
    %6254 = vmatprep.mubr.bf16.mxu0 0
    %6255 = vmatmul.mubr.bf16.gmra.mrb[0].mxu0 %v6218
    %v6256 = vpop.f32.mrb[0].mxu0
    %v6257 = vadd.f32 0.0, %v6256
    %v6258 = vpop.f32.mrb[0].mxu0
    %v6259 = vpop.f32.mrb[0].mxu0
    %v6260 = vadd.f32 0.0, %v6259
    %v6261 = vpop.f32.mrb[0].mxu0
    %6262 = vmatprep.mubr.bf16.mxu0 0
    %6263 = vmatmul.mubr.bf16.gmra.mrb[0].mxu0 %v6219
    %v6264 = vpop.f32.mrb[0].mxu0
    %v6265 = vadd.f32 0.0, %v6264
    %v6266 = vpop.f32.mrb[0].mxu0
    %v6267 = vpop.f32.mrb[0].mxu0
    %v6268 = vadd.f32 0.0, %v6267
    %v6269 = vpop.f32.mrb[0].mxu0
    %6270 = vdwg.mxu0
    %v6271 = vpack.c.bf16 %v6260, %v6257
    %v6272 = vpack.c.bf16 %v6268, %v6265
    %s6273 = scalar_lea.vmem [#allocation14], 64
    %v6274 = vld [vmem:[%s6273] sm:$0xf]
    %v6275 = vld [vmem:[%s6273 + $0x4] sm:$0xf]
    %v6276 = vld [vmem:[%s6273 + $0x8] sm:$0xf]
    %v6277 = vld [vmem:[%s6273 + $0xc] sm:$0xf]
    %v6278 = vld [vmem:[%s6273 + $0x10] sm:$0xf]
    %v6279 = vld [vmem:[%s6273 + $0x14] sm:$0xf]
    %v6280 = vld [vmem:[%s6273 + $0x18] sm:$0xf]
    %v6281 = vld [vmem:[%s6273 + $0x1c] sm:$0xf]
    %v6282 = vld [vmem:[%s6273 + $0x20] sm:$0xf]
    %v6283 = vld [vmem:[%s6273 + $0x24] sm:$0xf]
    %v6284 = vld [vmem:[%s6273 + $0x28] sm:$0xf]
    %v6285 = vld [vmem:[%s6273 + $0x2c] sm:$0xf]
    %v6286 = vld [vmem:[%s6273 + $0x30] sm:$0xf]
    %v6287 = vld [vmem:[%s6273 + $0x34] sm:$0xf]
    %v6288 = vld [vmem:[%s6273 + $0x38] sm:$0xf]
    %v6289 = vld [vmem:[%s6273 + $0x3c] sm:$0xf]
    %v6306 = vunpack.c.l.b16 %v6274
    %v6307 = vunpack.c.l.b16 %v6275
    %v6308 = vunpack.c.l.b16 %v6276
    %v6309 = vunpack.c.l.b16 %v6277
    %v6310 = vunpack.c.l.b16 %v6278
    %v6311 = vunpack.c.l.b16 %v6279
    %v6312 = vunpack.c.l.b16 %v6280
    %v6313 = vunpack.c.l.b16 %v6281
    %v6314 = vunpack.c.l.b16 %v6282
    %v6315 = vunpack.c.l.b16 %v6283
    %v6316 = vunpack.c.l.b16 %v6284
    %v6317 = vunpack.c.l.b16 %v6285
    %v6318 = vunpack.c.l.b16 %v6286
    %v6319 = vunpack.c.l.b16 %v6287
    %v6320 = vunpack.c.l.b16 %v6288
    %v6321 = vunpack.c.l.b16 %v6289
    %v6322 = vpack.c.b16 %v6307, %v6306
    %v6323 = vpack.c.b16 %v6309, %v6308
    %v6324 = vpack.c.b16 %v6311, %v6310
    %v6325 = vpack.c.b16 %v6313, %v6312
    %v6326 = vpack.c.b16 %v6315, %v6314
    %v6327 = vpack.c.b16 %v6317, %v6316
    %v6328 = vpack.c.b16 %v6319, %v6318
    %v6329 = vpack.c.b16 %v6321, %v6320
    %6338 = vmatprep.subr.bf16.mxu0 0
    %6339 = vmatpush1.bf16.msra.mxu0 %v6322
    %6340 = vmatprep.subr.bf16.mxu0 0
    %6341 = vmatpush1.bf16.msra.mxu0 %v6323
    %6342 = vmatprep.subr.bf16.mxu0 0
    %6343 = vmatpush1.bf16.msra.mxu0 %v6324
    %6344 = vmatprep.subr.bf16.mxu0 0
    %6345 = vmatpush1.bf16.msra.mxu0 %v6325
    %6346 = vmatprep.subr.bf16.mxu0 0
    %6347 = vmatpush1.bf16.msra.mxu0 %v6326
    %6348 = vmatprep.subr.bf16.mxu0 0
    %6349 = vmatpush1.bf16.msra.mxu0 %v6327
    %6350 = vmatprep.subr.bf16.mxu0 0
    %6351 = vmatpush1.bf16.msra.mxu0 %v6328
    %6352 = vmatprep.subr.bf16.mxu0 0
    %6353 = vmatpush1.bf16.msra.mxu0 %v6329
    %6354 = vmatprep.subr.bf16.mxu0 0
    %6355 = vmatpush1.bf16.msra.mxu0 0
    %6356 = vmatprep.subr.bf16.mxu0 0
    %6357 = vmatpush1.bf16.msra.mxu0 0
    %6358 = vmatprep.subr.bf16.mxu0 0
    %6359 = vmatpush1.bf16.msra.mxu0 0
    %6360 = vmatprep.subr.bf16.mxu0 0
    %6361 = vmatpush1.bf16.msra.mxu0 0
    %6362 = vmatprep.subr.bf16.mxu0 0
    %6363 = vmatpush1.bf16.msra.mxu0 0
    %6364 = vmatprep.subr.bf16.mxu0 0
    %6365 = vmatpush1.bf16.msra.mxu0 0
    %6366 = vmatprep.subr.bf16.mxu0 0
    %6367 = vmatpush1.bf16.msra.mxu0 0
    %6368 = vmatprep.subr.bf16.mxu0 0
    %6369 = vmatpush1.bf16.msra.mxu0 0
    %6370 = vmatprep.mubr.bf16.mxu0 0
    %6371 = vmatmul.mubr.bf16.gmra.mrb[0].mxu0 %v6271
    %v6372 = vpop.f32.mrb[0].mxu0
    %v6373 = vadd.f32 0.0, %v6372
    %v6374 = vpop.f32.mrb[0].mxu0
    %v6375 = vpop.f32.mrb[0].mxu0
    %v6376 = vadd.f32 0.0, %v6375
    %v6377 = vpop.f32.mrb[0].mxu0
    %6378 = vmatprep.mubr.bf16.mxu0 0
    %6379 = vmatmul.mubr.bf16.gmra.mrb[0].mxu0 %v6272
    %v6380 = vpop.f32.mrb[0].mxu0
    %v6381 = vadd.f32 0.0, %v6380
    %v6382 = vpop.f32.mrb[0].mxu0
    %v6383 = vpop.f32.mrb[0].mxu0
    %v6384 = vadd.f32 0.0, %v6383
    %v6385 = vpop.f32.mrb[0].mxu0
    %6386 = vdwg.mxu0
    %v6403 = vunpack.c.l.b16 %v6189
    %v6404 = vunpack.c.l.b16 %v6190
    %v6405 = vunpack.c.l.b16 %v6191
    %v6406 = vunpack.c.l.b16 %v6192
    %v6407 = vunpack.c.l.b16 %v6193
    %v6408 = vunpack.c.l.b16 %v6194
    %v6409 = vunpack.c.l.b16 %v6195
    %v6410 = vunpack.c.l.b16 %v6196
    %v6411 = vunpack.c.l.b16 %v6197
    %v6412 = vunpack.c.l.b16 %v6198
    %v6413 = vunpack.c.l.b16 %v6199
    %v6414 = vunpack.c.l.b16 %v6200
    %v6415 = vunpack.c.l.b16 %v6201
    %v6416 = vunpack.c.l.b16 %v6202
    %v6417 = vunpack.c.l.b16 %v6203
    %v6418 = vunpack.c.l.b16 %v6204
    %v6419 = vpack.c.b16 %v6404, %v6403
    %v6420 = vpack.c.b16 %v6406, %v6405
    %v6421 = vpack.c.b16 %v6408, %v6407
    %v6422 = vpack.c.b16 %v6410, %v6409
    %v6423 = vpack.c.b16 %v6412, %v6411
    %v6424 = vpack.c.b16 %v6414, %v6413
    %v6425 = vpack.c.b16 %v6416, %v6415
    %v6426 = vpack.c.b16 %v6418, %v6417
    %6435 = vmatprep.subr.bf16.mxu0 0
    %6436 = vmatpush1.bf16.msra.mxu0 %v6419
    %6437 = vmatprep.subr.bf16.mxu0 0
    %6438 = vmatpush1.bf16.msra.mxu0 %v6420
    %6439 = vmatprep.subr.bf16.mxu0 0
    %6440 = vmatpush1.bf16.msra.mxu0 %v6421
    %6441 = vmatprep.subr.bf16.mxu0 0
    %6442 = vmatpush1.bf16.msra.mxu0 %v6422
    %6443 = vmatprep.subr.bf16.mxu0 0
    %6444 = vmatpush1.bf16.msra.mxu0 %v6423
    %6445 = vmatprep.subr.bf16.mxu0 0
    %6446 = vmatpush1.bf16.msra.mxu0 %v6424
    %6447 = vmatprep.subr.bf16.mxu0 0
    %6448 = vmatpush1.bf16.msra.mxu0 %v6425
    %6449 = vmatprep.subr.bf16.mxu0 0
    %6450 = vmatpush1.bf16.msra.mxu0 %v6426
    %6451 = vmatprep.subr.bf16.mxu0 0
    %6452 = vmatpush1.bf16.msra.mxu0 0
    %6453 = vmatprep.subr.bf16.mxu0 0
    %6454 = vmatpush1.bf16.msra.mxu0 0
    %6455 = vmatprep.subr.bf16.mxu0 0
    %6456 = vmatpush1.bf16.msra.mxu0 0
    %6457 = vmatprep.subr.bf16.mxu0 0
    %6458 = vmatpush1.bf16.msra.mxu0 0
    %6459 = vmatprep.subr.bf16.mxu0 0
    %6460 = vmatpush1.bf16.msra.mxu0 0
    %6461 = vmatprep.subr.bf16.mxu0 0
    %6462 = vmatpush1.bf16.msra.mxu0 0
    %6463 = vmatprep.subr.bf16.mxu0 0
    %6464 = vmatpush1.bf16.msra.mxu0 0
    %6465 = vmatprep.subr.bf16.mxu0 0
    %6466 = vmatpush1.bf16.msra.mxu0 0
    %6467 = vmatprep.mubr.bf16.mxu0 0
    %6468 = vmatmul.mubr.bf16.gmra.mrb[0].mxu0 %v6187
    %v6469 = vpop.f32.mrb[0].mxu0
    %v6470 = vadd.f32 %v6373, %v6469
    %v6471 = vpop.f32.mrb[0].mxu0
    %v6472 = vpop.f32.mrb[0].mxu0
    %v6473 = vadd.f32 %v6376, %v6472
    %v6474 = vpop.f32.mrb[0].mxu0
    %6475 = vmatprep.mubr.bf16.mxu0 0
    %6476 = vmatmul.mubr.bf16.gmra.mrb[0].mxu0 %v6188
    %v6477 = vpop.f32.mrb[0].mxu0
    %v6478 = vadd.f32 %v6381, %v6477
    %v6479 = vpop.f32.mrb[0].mxu0
    %v6480 = vpop.f32.mrb[0].mxu0
    %v6481 = vadd.f32 %v6384, %v6480
    %v6482 = vpop.f32.mrb[0].mxu0
    %6483 = vdwg.mxu0
    %s6484 = scalar_lea.vmem [#allocation13], 32
    %v6485 = vld [vmem:[%s6484] sm:$0xf]
    %v6486 = vld [vmem:[%s6484 + $0x4] sm:$0xf]
    %v6487 = vld [vmem:[%s6484 + $0x8] sm:$0xf]
    %v6488 = vld [vmem:[%s6484 + $0xc] sm:$0xf]
    %v6493 = vunpack.c.l.b16 %v6485
    %v6494 = vunpack.c.l.b16 %v6486
    %v6495 = vunpack.c.l.b16 %v6487
    %v6496 = vunpack.c.l.b16 %v6488
    %v6497 = vpack.c.b16 %v6494, %v6493
    %v6498 = vpack.c.b16 %v6496, %v6495
    %6501 = vmatprep.subr.bf16.mxu0 0
    %6502 = vmatpush1.bf16.msra.mxu0 %v6114
    %6503 = vmatprep.subr.bf16.mxu0 0
    %6504 = vmatpush1.bf16.msra.mxu0 %v6115
    %6505 = vmatprep.subr.bf16.mxu0 0
    %6506 = vmatpush1.bf16.msra.mxu0 %v6116
    %6507 = vmatprep.subr.bf16.mxu0 0
    %6508 = vmatpush1.bf16.msra.mxu0 %v6117
    %6509 = vmatprep.subr.bf16.mxu0 0
    %6510 = vmatpush1.bf16.msra.mxu0 %v6118
    %6511 = vmatprep.subr.bf16.mxu0 0
    %6512 = vmatpush1.bf16.msra.mxu0 %v6119
    %6513 = vmatprep.subr.bf16.mxu0 0
    %6514 = vmatpush1.bf16.msra.mxu0 %v6120
    %6515 = vmatprep.subr.bf16.mxu0 0
    %6516 = vmatpush1.bf16.msra.mxu0 %v6121
    %6517 = vmatprep.subr.bf16.mxu0 0
    %6518 = vmatpush1.bf16.msra.mxu0 0
    %6519 = vmatprep.subr.bf16.mxu0 0
    %6520 = vmatpush1.bf16.msra.mxu0 0
    %6521 = vmatprep.subr.bf16.mxu0 0
    %6522 = vmatpush1.bf16.msra.mxu0 0
    %6523 = vmatprep.subr.bf16.mxu0 0
    %6524 = vmatpush1.bf16.msra.mxu0 0
    %6525 = vmatprep.subr.bf16.mxu0 0
    %6526 = vmatpush1.bf16.msra.mxu0 0
    %6527 = vmatprep.subr.bf16.mxu0 0
    %6528 = vmatpush1.bf16.msra.mxu0 0
    %6529 = vmatprep.subr.bf16.mxu0 0
    %6530 = vmatpush1.bf16.msra.mxu0 0
    %6531 = vmatprep.subr.bf16.mxu0 0
    %6532 = vmatpush1.bf16.msra.mxu0 0
    %6533 = vmatprep.mubr.bf16.mxu0 0
    %6534 = vmatmul.mubr.bf16.gmra.mrb[0].mxu0 %v6497
    %v6535 = vpop.f32.mrb[0].mxu0
    %v6536 = vadd.f32 0.0, %v6535
    %v6537 = vpop.f32.mrb[0].mxu0
    %v6538 = vpop.f32.mrb[0].mxu0
    %v6539 = vadd.f32 0.0, %v6538
    %v6540 = vpop.f32.mrb[0].mxu0
    %6541 = vmatprep.mubr.bf16.mxu0 0
    %6542 = vmatmul.mubr.bf16.gmra.mrb[0].mxu0 %v6498
    %v6543 = vpop.f32.mrb[0].mxu0
    %v6544 = vadd.f32 0.0, %v6543
    %v6545 = vpop.f32.mrb[0].mxu0
    %v6546 = vpop.f32.mrb[0].mxu0
    %v6547 = vadd.f32 0.0, %v6546
    %v6548 = vpop.f32.mrb[0].mxu0
    %6549 = vdwg.mxu0
    %v6550 = vpack.c.bf16 %v6539, %v6536
    %v6551 = vpack.c.bf16 %v6547, %v6544
    %s6552 = scalar_lea.vmem [#allocation14], 128
    %v6553 = vld [vmem:[%s6552] sm:$0xf]
    %v6554 = vld [vmem:[%s6552 + $0x4] sm:$0xf]
    %v6555 = vld [vmem:[%s6552 + $0x8] sm:$0xf]
    %v6556 = vld [vmem:[%s6552 + $0xc] sm:$0xf]
    %v6557 = vld [vmem:[%s6552 + $0x10] sm:$0xf]
    %v6558 = vld [vmem:[%s6552 + $0x14] sm:$0xf]
    %v6559 = vld [vmem:[%s6552 + $0x18] sm:$0xf]
    %v6560 = vld [vmem:[%s6552 + $0x1c] sm:$0xf]
    %v6561 = vld [vmem:[%s6552 + $0x20] sm:$0xf]
    %v6562 = vld [vmem:[%s6552 + $0x24] sm:$0xf]
    %v6563 = vld [vmem:[%s6552 + $0x28] sm:$0xf]
    %v6564 = vld [vmem:[%s6552 + $0x2c] sm:$0xf]
    %v6565 = vld [vmem:[%s6552 + $0x30] sm:$0xf]
    %v6566 = vld [vmem:[%s6552 + $0x34] sm:$0xf]
    %v6567 = vld [vmem:[%s6552 + $0x38] sm:$0xf]
    %v6568 = vld [vmem:[%s6552 + $0x3c] sm:$0xf]
    %v6585 = vunpack.c.l.b16 %v6553
    %v6586 = vunpack.c.l.b16 %v6554
    %v6587 = vunpack.c.l.b16 %v6555
    %v6588 = vunpack.c.l.b16 %v6556
    %v6589 = vunpack.c.l.b16 %v6557
    %v6590 = vunpack.c.l.b16 %v6558
    %v6591 = vunpack.c.l.b16 %v6559
    %v6592 = vunpack.c.l.b16 %v6560
    %v6593 = vunpack.c.l.b16 %v6561
    %v6594 = vunpack.c.l.b16 %v6562
    %v6595 = vunpack.c.l.b16 %v6563
    %v6596 = vunpack.c.l.b16 %v6564
    %v6597 = vunpack.c.l.b16 %v6565
    %v6598 = vunpack.c.l.b16 %v6566
    %v6599 = vunpack.c.l.b16 %v6567
    %v6600 = vunpack.c.l.b16 %v6568
    %v6601 = vpack.c.b16 %v6586, %v6585
    %v6602 = vpack.c.b16 %v6588, %v6587
    %v6603 = vpack.c.b16 %v6590, %v6589
    %v6604 = vpack.c.b16 %v6592, %v6591
    %v6605 = vpack.c.b16 %v6594, %v6593
    %v6606 = vpack.c.b16 %v6596, %v6595
    %v6607 = vpack.c.b16 %v6598, %v6597
    %v6608 = vpack.c.b16 %v6600, %v6599
    %6617 = vmatprep.subr.bf16.mxu0 0
    %6618 = vmatpush1.bf16.msra.mxu0 %v6601
    %6619 = vmatprep.subr.bf16.mxu0 0
    %6620 = vmatpush1.bf16.msra.mxu0 %v6602
    %6621 = vmatprep.subr.bf16.mxu0 0
    %6622 = vmatpush1.bf16.msra.mxu0 %v6603
    %6623 = vmatprep.subr.bf16.mxu0 0
    %6624 = vmatpush1.bf16.msra.mxu0 %v6604
    %6625 = vmatprep.subr.bf16.mxu0 0
    %6626 = vmatpush1.bf16.msra.mxu0 %v6605
    %6627 = vmatprep.subr.bf16.mxu0 0
    %6628 = vmatpush1.bf16.msra.mxu0 %v6606
    %6629 = vmatprep.subr.bf16.mxu0 0
    %6630 = vmatpush1.bf16.msra.mxu0 %v6607
    %6631 = vmatprep.subr.bf16.mxu0 0
    %6632 = vmatpush1.bf16.msra.mxu0 %v6608
    %6633 = vmatprep.subr.bf16.mxu0 0
    %6634 = vmatpush1.bf16.msra.mxu0 0
    %6635 = vmatprep.subr.bf16.mxu0 0
    %6636 = vmatpush1.bf16.msra.mxu0 0
    %6637 = vmatprep.subr.bf16.mxu0 0
    %6638 = vmatpush1.bf16.msra.mxu0 0
    %6639 = vmatprep.subr.bf16.mxu0 0
    %6640 = vmatpush1.bf16.msra.mxu0 0
    %6641 = vmatprep.subr.bf16.mxu0 0
    %6642 = vmatpush1.bf16.msra.mxu0 0
    %6643 = vmatprep.subr.bf16.mxu0 0
    %6644 = vmatpush1.bf16.msra.mxu0 0
    %6645 = vmatprep.subr.bf16.mxu0 0
    %6646 = vmatpush1.bf16.msra.mxu0 0
    %6647 = vmatprep.subr.bf16.mxu0 0
    %6648 = vmatpush1.bf16.msra.mxu0 0
    %6649 = vmatprep.mubr.bf16.mxu0 0
    %6650 = vmatmul.mubr.bf16.gmra.mrb[0].mxu0 %v6550
    %v6651 = vpop.f32.mrb[0].mxu0
    %v6652 = vadd.f32 0.0, %v6651
    %v6653 = vpop.f32.mrb[0].mxu0
    %v6654 = vpop.f32.mrb[0].mxu0
    %v6655 = vadd.f32 0.0, %v6654
    %v6656 = vpop.f32.mrb[0].mxu0
    %6657 = vmatprep.mubr.bf16.mxu0 0
    %6658 = vmatmul.mubr.bf16.gmra.mrb[0].mxu0 %v6551
    %v6659 = vpop.f32.mrb[0].mxu0
    %v6660 = vadd.f32 0.0, %v6659
    %v6661 = vpop.f32.mrb[0].mxu0
    %v6662 = vpop.f32.mrb[0].mxu0
    %v6663 = vadd.f32 0.0, %v6662
    %v6664 = vpop.f32.mrb[0].mxu0
    %6665 = vdwg.mxu0
    %v6666 = vadd.f32 %v6470, %v6652
    %v6667 = vadd.f32 %v6473, %v6655
    %v6668 = vadd.f32 %v6478, %v6660
    %v6669 = vadd.f32 %v6481, %v6663
    %s6670 = scalar_lea.vmem [#allocation13], 48
    %v6671 = vld [vmem:[%s6670] sm:$0xf]
    %v6672 = vld [vmem:[%s6670 + $0x4] sm:$0xf]
    %v6673 = vld [vmem:[%s6670 + $0x8] sm:$0xf]
    %v6674 = vld [vmem:[%s6670 + $0xc] sm:$0xf]
    %v6679 = vunpack.c.l.b16 %v6671
    %v6680 = vunpack.c.l.b16 %v6672
    %v6681 = vunpack.c.l.b16 %v6673
    %v6682 = vunpack.c.l.b16 %v6674
    %v6683 = vpack.c.b16 %v6680, %v6679
    %v6684 = vpack.c.b16 %v6682, %v6681
    %6687 = vmatprep.subr.bf16.mxu0 0
    %6688 = vmatpush1.bf16.msra.mxu0 %v6114
    %6689 = vmatprep.subr.bf16.mxu0 0
    %6690 = vmatpush1.bf16.msra.mxu0 %v6115
    %6691 = vmatprep.subr.bf16.mxu0 0
    %6692 = vmatpush1.bf16.msra.mxu0 %v6116
    %6693 = vmatprep.subr.bf16.mxu0 0
    %6694 = vmatpush1.bf16.msra.mxu0 %v6117
    %6695 = vmatprep.subr.bf16.mxu0 0
    %6696 = vmatpush1.bf16.msra.mxu0 %v6118
    %6697 = vmatprep.subr.bf16.mxu0 0
    %6698 = vmatpush1.bf16.msra.mxu0 %v6119
    %6699 = vmatprep.subr.bf16.mxu0 0
    %6700 = vmatpush1.bf16.msra.mxu0 %v6120
    %6701 = vmatprep.subr.bf16.mxu0 0
    %6702 = vmatpush1.bf16.msra.mxu0 %v6121
    %6703 = vmatprep.subr.bf16.mxu0 0
    %6704 = vmatpush1.bf16.msra.mxu0 0
    %6705 = vmatprep.subr.bf16.mxu0 0
    %6706 = vmatpush1.bf16.msra.mxu0 0
    %6707 = vmatprep.subr.bf16.mxu0 0
    %6708 = vmatpush1.bf16.msra.mxu0 0
    %6709 = vmatprep.subr.bf16.mxu0 0
    %6710 = vmatpush1.bf16.msra.mxu0 0
    %6711 = vmatprep.subr.bf16.mxu0 0
    %6712 = vmatpush1.bf16.msra.mxu0 0
    %6713 = vmatprep.subr.bf16.mxu0 0
    %6714 = vmatpush1.bf16.msra.mxu0 0
    %6715 = vmatprep.subr.bf16.mxu0 0
    %6716 = vmatpush1.bf16.msra.mxu0 0
    %6717 = vmatprep.subr.bf16.mxu0 0
    %6718 = vmatpush1.bf16.msra.mxu0 0
    %6719 = vmatprep.mubr.bf16.mxu0 0
    %6720 = vmatmul.mubr.bf16.gmra.mrb[0].mxu0 %v6683
    %v6721 = vpop.f32.mrb[0].mxu0
    %v6722 = vadd.f32 0.0, %v6721
    %v6723 = vpop.f32.mrb[0].mxu0
    %v6724 = vpop.f32.mrb[0].mxu0
    %v6725 = vadd.f32 0.0, %v6724
    %v6726 = vpop.f32.mrb[0].mxu0
    %6727 = vmatprep.mubr.bf16.mxu0 0
    %6728 = vmatmul.mubr.bf16.gmra.mrb[0].mxu0 %v6684
    %v6729 = vpop.f32.mrb[0].mxu0
    %v6730 = vadd.f32 0.0, %v6729
    %v6731 = vpop.f32.mrb[0].mxu0
    %v6732 = vpop.f32.mrb[0].mxu0
    %v6733 = vadd.f32 0.0, %v6732
    %v6734 = vpop.f32.mrb[0].mxu0
    %6735 = vdwg.mxu0
    %v6736 = vpack.c.bf16 %v6725, %v6722
    %v6737 = vpack.c.bf16 %v6733, %v6730
    %s6738 = scalar_lea.vmem [#allocation14], 192
    %v6739 = vld [vmem:[%s6738] sm:$0xf]
    %v6740 = vld [vmem:[%s6738 + $0x4] sm:$0xf]
    %v6741 = vld [vmem:[%s6738 + $0x8] sm:$0xf]
    %v6742 = vld [vmem:[%s6738 + $0xc] sm:$0xf]
    %v6743 = vld [vmem:[%s6738 + $0x10] sm:$0xf]
    %v6744 = vld [vmem:[%s6738 + $0x14] sm:$0xf]
    %v6745 = vld [vmem:[%s6738 + $0x18] sm:$0xf]
    %v6746 = vld [vmem:[%s6738 + $0x1c] sm:$0xf]
    %v6747 = vld [vmem:[%s6738 + $0x20] sm:$0xf]
    %v6748 = vld [vmem:[%s6738 + $0x24] sm:$0xf]
    %v6749 = vld [vmem:[%s6738 + $0x28] sm:$0xf]
    %v6750 = vld [vmem:[%s6738 + $0x2c] sm:$0xf]
    %v6751 = vld [vmem:[%s6738 + $0x30] sm:$0xf]
    %v6752 = vld [vmem:[%s6738 + $0x34] sm:$0xf]
    %v6753 = vld [vmem:[%s6738 + $0x38] sm:$0xf]
    %v6754 = vld [vmem:[%s6738 + $0x3c] sm:$0xf]
    %v6771 = vunpack.c.l.b16 %v6739
    %v6772 = vunpack.c.l.b16 %v6740
    %v6773 = vunpack.c.l.b16 %v6741
    %v6774 = vunpack.c.l.b16 %v6742
    %v6775 = vunpack.c.l.b16 %v6743
    %v6776 = vunpack.c.l.b16 %v6744
    %v6777 = vunpack.c.l.b16 %v6745
    %v6778 = vunpack.c.l.b16 %v6746
    %v6779 = vunpack.c.l.b16 %v6747
    %v6780 = vunpack.c.l.b16 %v6748
    %v6781 = vunpack.c.l.b16 %v6749
    %v6782 = vunpack.c.l.b16 %v6750
    %v6783 = vunpack.c.l.b16 %v6751
    %v6784 = vunpack.c.l.b16 %v6752
    %v6785 = vunpack.c.l.b16 %v6753
    %v6786 = vunpack.c.l.b16 %v6754
    %v6787 = vpack.c.b16 %v6772, %v6771
    %v6788 = vpack.c.b16 %v6774, %v6773
    %v6789 = vpack.c.b16 %v6776, %v6775
    %v6790 = vpack.c.b16 %v6778, %v6777
    %v6791 = vpack.c.b16 %v6780, %v6779
    %v6792 = vpack.c.b16 %v6782, %v6781
    %v6793 = vpack.c.b16 %v6784, %v6783
    %v6794 = vpack.c.b16 %v6786, %v6785
    %6803 = vmatprep.subr.bf16.mxu0 0
    %6804 = vmatpush1.bf16.msra.mxu0 %v6787
    %6805 = vmatprep.subr.bf16.mxu0 0
    %6806 = vmatpush1.bf16.msra.mxu0 %v6788
    %6807 = vmatprep.subr.bf16.mxu0 0
    %6808 = vmatpush1.bf16.msra.mxu0 %v6789
    %6809 = vmatprep.subr.bf16.mxu0 0
    %6810 = vmatpush1.bf16.msra.mxu0 %v6790
    %6811 = vmatprep.subr.bf16.mxu0 0
    %6812 = vmatpush1.bf16.msra.mxu0 %v6791
    %6813 = vmatprep.subr.bf16.mxu0 0
    %6814 = vmatpush1.bf16.msra.mxu0 %v6792
    %6815 = vmatprep.subr.bf16.mxu0 0
    %6816 = vmatpush1.bf16.msra.mxu0 %v6793
    %6817 = vmatprep.subr.bf16.mxu0 0
    %6818 = vmatpush1.bf16.msra.mxu0 %v6794
    %6819 = vmatprep.subr.bf16.mxu0 0
    %6820 = vmatpush1.bf16.msra.mxu0 0
    %6821 = vmatprep.subr.bf16.mxu0 0
    %6822 = vmatpush1.bf16.msra.mxu0 0
    %6823 = vmatprep.subr.bf16.mxu0 0
    %6824 = vmatpush1.bf16.msra.mxu0 0
    %6825 = vmatprep.subr.bf16.mxu0 0
    %6826 = vmatpush1.bf16.msra.mxu0 0
    %6827 = vmatprep.subr.bf16.mxu0 0
    %6828 = vmatpush1.bf16.msra.mxu0 0
    %6829 = vmatprep.subr.bf16.mxu0 0
    %6830 = vmatpush1.bf16.msra.mxu0 0
    %6831 = vmatprep.subr.bf16.mxu0 0
    %6832 = vmatpush1.bf16.msra.mxu0 0
    %6833 = vmatprep.subr.bf16.mxu0 0
    %6834 = vmatpush1.bf16.msra.mxu0 0
    %6835 = vmatprep.mubr.bf16.mxu0 0
    %6836 = vmatmul.mubr.bf16.gmra.mrb[0].mxu0 %v6736
    %v6837 = vpop.f32.mrb[0].mxu0
    %v6838 = vadd.f32 0.0, %v6837
    %v6839 = vpop.f32.mrb[0].mxu0
    %v6840 = vpop.f32.mrb[0].mxu0
    %v6841 = vadd.f32 0.0, %v6840
    %v6842 = vpop.f32.mrb[0].mxu0
    %6843 = vmatprep.mubr.bf16.mxu0 0
    %6844 = vmatmul.mubr.bf16.gmra.mrb[0].mxu0 %v6737
    %v6845 = vpop.f32.mrb[0].mxu0
    %v6846 = vadd.f32 0.0, %v6845
    %v6847 = vpop.f32.mrb[0].mxu0
    %v6848 = vpop.f32.mrb[0].mxu0
    %v6849 = vadd.f32 0.0, %v6848
    %v6850 = vpop.f32.mrb[0].mxu0
    %6851 = vdwg.mxu0
    %v6852 = vadd.f32 %v6666, %v6838
    %v6853 = vadd.f32 %v6667, %v6841
    %v6854 = vadd.f32 %v6668, %v6846
    %v6855 = vadd.f32 %v6669, %v6849
    %s6856 = scalar_lea.vmem [#allocation13], 64
    %v6857 = vld [vmem:[%s6856] sm:$0xf]
    %v6858 = vld [vmem:[%s6856 + $0x4] sm:$0xf]
    %v6859 = vld [vmem:[%s6856 + $0x8] sm:$0xf]
    %v6860 = vld [vmem:[%s6856 + $0xc] sm:$0xf]
    %v6865 = vunpack.c.l.b16 %v6857
    %v6866 = vunpack.c.l.b16 %v6858
    %v6867 = vunpack.c.l.b16 %v6859
    %v6868 = vunpack.c.l.b16 %v6860
    %v6869 = vpack.c.b16 %v6866, %v6865
    %v6870 = vpack.c.b16 %v6868, %v6867
    %6873 = vmatprep.subr.bf16.mxu0 0
    %6874 = vmatpush1.bf16.msra.mxu0 %v6114
    %6875 = vmatprep.subr.bf16.mxu0 0
    %6876 = vmatpush1.bf16.msra.mxu0 %v6115
    %6877 = vmatprep.subr.bf16.mxu0 0
    %6878 = vmatpush1.bf16.msra.mxu0 %v6116
    %6879 = vmatprep.subr.bf16.mxu0 0
    %6880 = vmatpush1.bf16.msra.mxu0 %v6117
    %6881 = vmatprep.subr.bf16.mxu0 0
    %6882 = vmatpush1.bf16.msra.mxu0 %v6118
    %6883 = vmatprep.subr.bf16.mxu0 0
    %6884 = vmatpush1.bf16.msra.mxu0 %v6119
    %6885 = vmatprep.subr.bf16.mxu0 0
    %6886 = vmatpush1.bf16.msra.mxu0 %v6120
    %6887 = vmatprep.subr.bf16.mxu0 0
    %6888 = vmatpush1.bf16.msra.mxu0 %v6121
    %6889 = vmatprep.subr.bf16.mxu0 0
    %6890 = vmatpush1.bf16.msra.mxu0 0
    %6891 = vmatprep.subr.bf16.mxu0 0
    %6892 = vmatpush1.bf16.msra.mxu0 0
    %6893 = vmatprep.subr.bf16.mxu0 0
    %6894 = vmatpush1.bf16.msra.mxu0 0
    %6895 = vmatprep.subr.bf16.mxu0 0
    %6896 = vmatpush1.bf16.msra.mxu0 0
    %6897 = vmatprep.subr.bf16.mxu0 0
    %6898 = vmatpush1.bf16.msra.mxu0 0
    %6899 = vmatprep.subr.bf16.mxu0 0
    %6900 = vmatpush1.bf16.msra.mxu0 0
    %6901 = vmatprep.subr.bf16.mxu0 0
    %6902 = vmatpush1.bf16.msra.mxu0 0
    %6903 = vmatprep.subr.bf16.mxu0 0
    %6904 = vmatpush1.bf16.msra.mxu0 0
    %6905 = vmatprep.mubr.bf16.mxu0 0
    %6906 = vmatmul.mubr.bf16.gmra.mrb[0].mxu0 %v6869
    %v6907 = vpop.f32.mrb[0].mxu0
    %v6908 = vadd.f32 0.0, %v6907
    %v6909 = vpop.f32.mrb[0].mxu0
    %v6910 = vpop.f32.mrb[0].mxu0
    %v6911 = vadd.f32 0.0, %v6910
    %v6912 = vpop.f32.mrb[0].mxu0
    %6913 = vmatprep.mubr.bf16.mxu0 0
    %6914 = vmatmul.mubr.bf16.gmra.mrb[0].mxu0 %v6870
    %v6915 = vpop.f32.mrb[0].mxu0
    %v6916 = vadd.f32 0.0, %v6915
    %v6917 = vpop.f32.mrb[0].mxu0
    %v6918 = vpop.f32.mrb[0].mxu0
    %v6919 = vadd.f32 0.0, %v6918
    %v6920 = vpop.f32.mrb[0].mxu0
    %6921 = vdwg.mxu0
    %v6922 = vpack.c.bf16 %v6911, %v6908
    %v6923 = vpack.c.bf16 %v6919, %v6916
    %s6924 = scalar_lea.vmem [#allocation14], 256
    %v6925 = vld [vmem:[%s6924] sm:$0xf]
    %v6926 = vld [vmem:[%s6924 + $0x4] sm:$0xf]
    %v6927 = vld [vmem:[%s6924 + $0x8] sm:$0xf]
    %v6928 = vld [vmem:[%s6924 + $0xc] sm:$0xf]
    %v6929 = vld [vmem:[%s6924 + $0x10] sm:$0xf]
    %v6930 = vld [vmem:[%s6924 + $0x14] sm:$0xf]
    %v6931 = vld [vmem:[%s6924 + $0x18] sm:$0xf]
    %v6932 = vld [vmem:[%s6924 + $0x1c] sm:$0xf]
    %v6933 = vld [vmem:[%s6924 + $0x20] sm:$0xf]
    %v6934 = vld [vmem:[%s6924 + $0x24] sm:$0xf]
    %v6935 = vld [vmem:[%s6924 + $0x28] sm:$0xf]
    %v6936 = vld [vmem:[%s6924 + $0x2c] sm:$0xf]
    %v6937 = vld [vmem:[%s6924 + $0x30] sm:$0xf]
    %v6938 = vld [vmem:[%s6924 + $0x34] sm:$0xf]
    %v6939 = vld [vmem:[%s6924 + $0x38] sm:$0xf]
    %v6940 = vld [vmem:[%s6924 + $0x3c] sm:$0xf]
    %v6957 = vunpack.c.l.b16 %v6925
    %v6958 = vunpack.c.l.b16 %v6926
    %v6959 = vunpack.c.l.b16 %v6927
    %v6960 = vunpack.c.l.b16 %v6928
    %v6961 = vunpack.c.l.b16 %v6929
    %v6962 = vunpack.c.l.b16 %v6930
    %v6963 = vunpack.c.l.b16 %v6931
    %v6964 = vunpack.c.l.b16 %v6932
    %v6965 = vunpack.c.l.b16 %v6933
    %v6966 = vunpack.c.l.b16 %v6934
    %v6967 = vunpack.c.l.b16 %v6935
    %v6968 = vunpack.c.l.b16 %v6936
    %v6969 = vunpack.c.l.b16 %v6937
    %v6970 = vunpack.c.l.b16 %v6938
    %v6971 = vunpack.c.l.b16 %v6939
    %v6972 = vunpack.c.l.b16 %v6940
    %v6973 = vpack.c.b16 %v6958, %v6957
    %v6974 = vpack.c.b16 %v6960, %v6959
    %v6975 = vpack.c.b16 %v6962, %v6961
    %v6976 = vpack.c.b16 %v6964, %v6963
    %v6977 = vpack.c.b16 %v6966, %v6965
    %v6978 = vpack.c.b16 %v6968, %v6967
    %v6979 = vpack.c.b16 %v6970, %v6969
    %v6980 = vpack.c.b16 %v6972, %v6971
    %6989 = vmatprep.subr.bf16.mxu0 0
    %6990 = vmatpush1.bf16.msra.mxu0 %v6973
    %6991 = vmatprep.subr.bf16.mxu0 0
    %6992 = vmatpush1.bf16.msra.mxu0 %v6974
    %6993 = vmatprep.subr.bf16.mxu0 0
    %6994 = vmatpush1.bf16.msra.mxu0 %v6975
    %6995 = vmatprep.subr.bf16.mxu0 0
    %6996 = vmatpush1.bf16.msra.mxu0 %v6976
    %6997 = vmatprep.subr.bf16.mxu0 0
    %6998 = vmatpush1.bf16.msra.mxu0 %v6977
    %6999 = vmatprep.subr.bf16.mxu0 0
    %7000 = vmatpush1.bf16.msra.mxu0 %v6978
    %7001 = vmatprep.subr.bf16.mxu0 0
    %7002 = vmatpush1.bf16.msra.mxu0 %v6979
    %7003 = vmatprep.subr.bf16.mxu0 0
    %7004 = vmatpush1.bf16.msra.mxu0 %v6980
    %7005 = vmatprep.subr.bf16.mxu0 0
    %7006 = vmatpush1.bf16.msra.mxu0 0
    %7007 = vmatprep.subr.bf16.mxu0 0
    %7008 = vmatpush1.bf16.msra.mxu0 0
    %7009 = vmatprep.subr.bf16.mxu0 0
    %7010 = vmatpush1.bf16.msra.mxu0 0
    %7011 = vmatprep.subr.bf16.mxu0 0
    %7012 = vmatpush1.bf16.msra.mxu0 0
    %7013 = vmatprep.subr.bf16.mxu0 0
    %7014 = vmatpush1.bf16.msra.mxu0 0
    %7015 = vmatprep.subr.bf16.mxu0 0
    %7016 = vmatpush1.bf16.msra.mxu0 0
    %7017 = vmatprep.subr.bf16.mxu0 0
    %7018 = vmatpush1.bf16.msra.mxu0 0
    %7019 = vmatprep.subr.bf16.mxu0 0
    %7020 = vmatpush1.bf16.msra.mxu0 0
    %7021 = vmatprep.mubr.bf16.mxu0 0
    %7022 = vmatmul.mubr.bf16.gmra.mrb[0].mxu0 %v6922
    %v7023 = vpop.f32.mrb[0].mxu0
    %v7024 = vadd.f32 0.0, %v7023
    %v7025 = vpop.f32.mrb[0].mxu0
    %v7026 = vpop.f32.mrb[0].mxu0
    %v7027 = vadd.f32 0.0, %v7026
    %v7028 = vpop.f32.mrb[0].mxu0
    %7029 = vmatprep.mubr.bf16.mxu0 0
    %7030 = vmatmul.mubr.bf16.gmra.mrb[0].mxu0 %v6923
    %v7031 = vpop.f32.mrb[0].mxu0
    %v7032 = vadd.f32 0.0, %v7031
    %v7033 = vpop.f32.mrb[0].mxu0
    %v7034 = vpop.f32.mrb[0].mxu0
    %v7035 = vadd.f32 0.0, %v7034
    %v7036 = vpop.f32.mrb[0].mxu0
    %7037 = vdwg.mxu0
    %v7038 = vadd.f32 %v6852, %v7024
    %v7039 = vadd.f32 %v6853, %v7027
    %v7040 = vadd.f32 %v6854, %v7032
    %v7041 = vadd.f32 %v6855, %v7035
    %s7042 = scalar_lea.vmem [#allocation13], 80
    %v7043 = vld [vmem:[%s7042] sm:$0xf]
    %v7044 = vld [vmem:[%s7042 + $0x4] sm:$0xf]
    %v7045 = vld [vmem:[%s7042 + $0x8] sm:$0xf]
    %v7046 = vld [vmem:[%s7042 + $0xc] sm:$0xf]
    %v7051 = vunpack.c.l.b16 %v7043
    %v7052 = vunpack.c.l.b16 %v7044
    %v7053 = vunpack.c.l.b16 %v7045
    %v7054 = vunpack.c.l.b16 %v7046
    %v7055 = vpack.c.b16 %v7052, %v7051
    %v7056 = vpack.c.b16 %v7054, %v7053
    %7059 = vmatprep.subr.bf16.mxu0 0
    %7060 = vmatpush1.bf16.msra.mxu0 %v6114
    %7061 = vmatprep.subr.bf16.mxu0 0
    %7062 = vmatpush1.bf16.msra.mxu0 %v6115
    %7063 = vmatprep.subr.bf16.mxu0 0
    %7064 = vmatpush1.bf16.msra.mxu0 %v6116
    %7065 = vmatprep.subr.bf16.mxu0 0
    %7066 = vmatpush1.bf16.msra.mxu0 %v6117
    %7067 = vmatprep.subr.bf16.mxu0 0
    %7068 = vmatpush1.bf16.msra.mxu0 %v6118
    %7069 = vmatprep.subr.bf16.mxu0 0
    %7070 = vmatpush1.bf16.msra.mxu0 %v6119
    %7071 = vmatprep.subr.bf16.mxu0 0
    %7072 = vmatpush1.bf16.msra.mxu0 %v6120
    %7073 = vmatprep.subr.bf16.mxu0 0
    %7074 = vmatpush1.bf16.msra.mxu0 %v6121
    %7075 = vmatprep.subr.bf16.mxu0 0
    %7076 = vmatpush1.bf16.msra.mxu0 0
    %7077 = vmatprep.subr.bf16.mxu0 0
    %7078 = vmatpush1.bf16.msra.mxu0 0
    %7079 = vmatprep.subr.bf16.mxu0 0
    %7080 = vmatpush1.bf16.msra.mxu0 0
    %7081 = vmatprep.subr.bf16.mxu0 0
    %7082 = vmatpush1.bf16.msra.mxu0 0
    %7083 = vmatprep.subr.bf16.mxu0 0
    %7084 = vmatpush1.bf16.msra.mxu0 0
    %7085 = vmatprep.subr.bf16.mxu0 0
    %7086 = vmatpush1.bf16.msra.mxu0 0
    %7087 = vmatprep.subr.bf16.mxu0 0
    %7088 = vmatpush1.bf16.msra.mxu0 0
    %7089 = vmatprep.subr.bf16.mxu0 0
    %7090 = vmatpush1.bf16.msra.mxu0 0
    %7091 = vmatprep.mubr.bf16.mxu0 0
    %7092 = vmatmul.mubr.bf16.gmra.mrb[0].mxu0 %v7055
    %v7093 = vpop.f32.mrb[0].mxu0
    %v7094 = vadd.f32 0.0, %v7093
    %v7095 = vpop.f32.mrb[0].mxu0
    %v7096 = vpop.f32.mrb[0].mxu0
    %v7097 = vadd.f32 0.0, %v7096
    %v7098 = vpop.f32.mrb[0].mxu0
    %7099 = vmatprep.mubr.bf16.mxu0 0
    %7100 = vmatmul.mubr.bf16.gmra.mrb[0].mxu0 %v7056
    %v7101 = vpop.f32.mrb[0].mxu0
    %v7102 = vadd.f32 0.0, %v7101
    %v7103 = vpop.f32.mrb[0].mxu0
    %v7104 = vpop.f32.mrb[0].mxu0
    %v7105 = vadd.f32 0.0, %v7104
    %v7106 = vpop.f32.mrb[0].mxu0
    %7107 = vdwg.mxu0
    %v7108 = vpack.c.bf16 %v7097, %v7094
    %v7109 = vpack.c.bf16 %v7105, %v7102
    %s7110 = scalar_lea.vmem [#allocation14], 320
    %v7111 = vld [vmem:[%s7110] sm:$0xf]
    %v7112 = vld [vmem:[%s7110 + $0x4] sm:$0xf]
    %v7113 = vld [vmem:[%s7110 + $0x8] sm:$0xf]
    %v7114 = vld [vmem:[%s7110 + $0xc] sm:$0xf]
    %v7115 = vld [vmem:[%s7110 + $0x10] sm:$0xf]
    %v7116 = vld [vmem:[%s7110 + $0x14] sm:$0xf]
    %v7117 = vld [vmem:[%s7110 + $0x18] sm:$0xf]
    %v7118 = vld [vmem:[%s7110 + $0x1c] sm:$0xf]
    %v7119 = vld [vmem:[%s7110 + $0x20] sm:$0xf]
    %v7120 = vld [vmem:[%s7110 + $0x24] sm:$0xf]
    %v7121 = vld [vmem:[%s7110 + $0x28] sm:$0xf]
    %v7122 = vld [vmem:[%s7110 + $0x2c] sm:$0xf]
    %v7123 = vld [vmem:[%s7110 + $0x30] sm:$0xf]
    %v7124 = vld [vmem:[%s7110 + $0x34] sm:$0xf]
    %v7125 = vld [vmem:[%s7110 + $0x38] sm:$0xf]
    %v7126 = vld [vmem:[%s7110 + $0x3c] sm:$0xf]
    %v7143 = vunpack.c.l.b16 %v7111
    %v7144 = vunpack.c.l.b16 %v7112
    %v7145 = vunpack.c.l.b16 %v7113
    %v7146 = vunpack.c.l.b16 %v7114
    %v7147 = vunpack.c.l.b16 %v7115
    %v7148 = vunpack.c.l.b16 %v7116
    %v7149 = vunpack.c.l.b16 %v7117
    %v7150 = vunpack.c.l.b16 %v7118
    %v7151 = vunpack.c.l.b16 %v7119
    %v7152 = vunpack.c.l.b16 %v7120
    %v7153 = vunpack.c.l.b16 %v7121
    %v7154 = vunpack.c.l.b16 %v7122
    %v7155 = vunpack.c.l.b16 %v7123
    %v7156 = vunpack.c.l.b16 %v7124
    %v7157 = vunpack.c.l.b16 %v7125
    %v7158 = vunpack.c.l.b16 %v7126
    %v7159 = vpack.c.b16 %v7144, %v7143
    %v7160 = vpack.c.b16 %v7146, %v7145
    %v7161 = vpack.c.b16 %v7148, %v7147
    %v7162 = vpack.c.b16 %v7150, %v7149
    %v7163 = vpack.c.b16 %v7152, %v7151
    %v7164 = vpack.c.b16 %v7154, %v7153
    %v7165 = vpack.c.b16 %v7156, %v7155
    %v7166 = vpack.c.b16 %v7158, %v7157
    %7175 = vmatprep.subr.bf16.mxu0 0
    %7176 = vmatpush1.bf16.msra.mxu0 %v7159
    %7177 = vmatprep.subr.bf16.mxu0 0
    %7178 = vmatpush1.bf16.msra.mxu0 %v7160
    %7179 = vmatprep.subr.bf16.mxu0 0
    %7180 = vmatpush1.bf16.msra.mxu0 %v7161
    %7181 = vmatprep.subr.bf16.mxu0 0
    %7182 = vmatpush1.bf16.msra.mxu0 %v7162
    %7183 = vmatprep.subr.bf16.mxu0 0
    %7184 = vmatpush1.bf16.msra.mxu0 %v7163
    %7185 = vmatprep.subr.bf16.mxu0 0
    %7186 = vmatpush1.bf16.msra.mxu0 %v7164
    %7187 = vmatprep.subr.bf16.mxu0 0
    %7188 = vmatpush1.bf16.msra.mxu0 %v7165
    %7189 = vmatprep.subr.bf16.mxu0 0
    %7190 = vmatpush1.bf16.msra.mxu0 %v7166
    %7191 = vmatprep.subr.bf16.mxu0 0
    %7192 = vmatpush1.bf16.msra.mxu0 0
    %7193 = vmatprep.subr.bf16.mxu0 0
    %7194 = vmatpush1.bf16.msra.mxu0 0
    %7195 = vmatprep.subr.bf16.mxu0 0
    %7196 = vmatpush1.bf16.msra.mxu0 0
    %7197 = vmatprep.subr.bf16.mxu0 0
    %7198 = vmatpush1.bf16.msra.mxu0 0
    %7199 = vmatprep.subr.bf16.mxu0 0
    %7200 = vmatpush1.bf16.msra.mxu0 0
    %7201 = vmatprep.subr.bf16.mxu0 0
    %7202 = vmatpush1.bf16.msra.mxu0 0
    %7203 = vmatprep.subr.bf16.mxu0 0
    %7204 = vmatpush1.bf16.msra.mxu0 0
    %7205 = vmatprep.subr.bf16.mxu0 0
    %7206 = vmatpush1.bf16.msra.mxu0 0
    %7207 = vmatprep.mubr.bf16.mxu0 0
    %7208 = vmatmul.mubr.bf16.gmra.mrb[0].mxu0 %v7108
    %v7209 = vpop.f32.mrb[0].mxu0
    %v7210 = vadd.f32 0.0, %v7209
    %v7211 = vpop.f32.mrb[0].mxu0
    %v7212 = vpop.f32.mrb[0].mxu0
    %v7213 = vadd.f32 0.0, %v7212
    %v7214 = vpop.f32.mrb[0].mxu0
    %7215 = vmatprep.mubr.bf16.mxu0 0
    %7216 = vmatmul.mubr.bf16.gmra.mrb[0].mxu0 %v7109
    %v7217 = vpop.f32.mrb[0].mxu0
    %v7218 = vadd.f32 0.0, %v7217
    %v7219 = vpop.f32.mrb[0].mxu0
    %v7220 = vpop.f32.mrb[0].mxu0
    %v7221 = vadd.f32 0.0, %v7220
    %v7222 = vpop.f32.mrb[0].mxu0
    %7223 = vdwg.mxu0
    %v7224 = vadd.f32 %v7038, %v7210
    %v7225 = vadd.f32 %v7039, %v7213
    %v7226 = vadd.f32 %v7040, %v7218
    %v7227 = vadd.f32 %v7041, %v7221
    %s7228 = scalar_lea.vmem [#allocation13], 96
    %v7229 = vld [vmem:[%s7228] sm:$0xf]
    %v7230 = vld [vmem:[%s7228 + $0x4] sm:$0xf]
    %v7231 = vld [vmem:[%s7228 + $0x8] sm:$0xf]
    %v7232 = vld [vmem:[%s7228 + $0xc] sm:$0xf]
    %v7237 = vunpack.c.l.b16 %v7229
    %v7238 = vunpack.c.l.b16 %v7230
    %v7239 = vunpack.c.l.b16 %v7231
    %v7240 = vunpack.c.l.b16 %v7232
    %v7241 = vpack.c.b16 %v7238, %v7237
    %v7242 = vpack.c.b16 %v7240, %v7239
    %7245 = vmatprep.subr.bf16.mxu0 0
    %7246 = vmatpush1.bf16.msra.mxu0 %v6114
    %7247 = vmatprep.subr.bf16.mxu0 0
    %7248 = vmatpush1.bf16.msra.mxu0 %v6115
    %7249 = vmatprep.subr.bf16.mxu0 0
    %7250 = vmatpush1.bf16.msra.mxu0 %v6116
    %7251 = vmatprep.subr.bf16.mxu0 0
    %7252 = vmatpush1.bf16.msra.mxu0 %v6117
    %7253 = vmatprep.subr.bf16.mxu0 0
    %7254 = vmatpush1.bf16.msra.mxu0 %v6118
    %7255 = vmatprep.subr.bf16.mxu0 0
    %7256 = vmatpush1.bf16.msra.mxu0 %v6119
    %7257 = vmatprep.subr.bf16.mxu0 0
    %7258 = vmatpush1.bf16.msra.mxu0 %v6120
    %7259 = vmatprep.subr.bf16.mxu0 0
    %7260 = vmatpush1.bf16.msra.mxu0 %v6121
    %7261 = vmatprep.subr.bf16.mxu0 0
    %7262 = vmatpush1.bf16.msra.mxu0 0
    %7263 = vmatprep.subr.bf16.mxu0 0
    %7264 = vmatpush1.bf16.msra.mxu0 0
    %7265 = vmatprep.subr.bf16.mxu0 0
    %7266 = vmatpush1.bf16.msra.mxu0 0
    %7267 = vmatprep.subr.bf16.mxu0 0
    %7268 = vmatpush1.bf16.msra.mxu0 0
    %7269 = vmatprep.subr.bf16.mxu0 0
    %7270 = vmatpush1.bf16.msra.mxu0 0
    %7271 = vmatprep.subr.bf16.mxu0 0
    %7272 = vmatpush1.bf16.msra.mxu0 0
    %7273 = vmatprep.subr.bf16.mxu0 0
    %7274 = vmatpush1.bf16.msra.mxu0 0
    %7275 = vmatprep.subr.bf16.mxu0 0
    %7276 = vmatpush1.bf16.msra.mxu0 0
    %7277 = vmatprep.mubr.bf16.mxu0 0
    %7278 = vmatmul.mubr.bf16.gmra.mrb[0].mxu0 %v7241
    %v7279 = vpop.f32.mrb[0].mxu0
    %v7280 = vadd.f32 0.0, %v7279
    %v7281 = vpop.f32.mrb[0].mxu0
    %v7282 = vpop.f32.mrb[0].mxu0
    %v7283 = vadd.f32 0.0, %v7282
    %v7284 = vpop.f32.mrb[0].mxu0
    %7285 = vmatprep.mubr.bf16.mxu0 0
    %7286 = vmatmul.mubr.bf16.gmra.mrb[0].mxu0 %v7242
    %v7287 = vpop.f32.mrb[0].mxu0
    %v7288 = vadd.f32 0.0, %v7287
    %v7289 = vpop.f32.mrb[0].mxu0
    %v7290 = vpop.f32.mrb[0].mxu0
    %v7291 = vadd.f32 0.0, %v7290
    %v7292 = vpop.f32.mrb[0].mxu0
    %7293 = vdwg.mxu0
    %v7294 = vpack.c.bf16 %v7283, %v7280
    %v7295 = vpack.c.bf16 %v7291, %v7288
    %s7296 = scalar_lea.vmem [#allocation14], 384
    %v7297 = vld [vmem:[%s7296] sm:$0xf]
    %v7298 = vld [vmem:[%s7296 + $0x4] sm:$0xf]
    %v7299 = vld [vmem:[%s7296 + $0x8] sm:$0xf]
    %v7300 = vld [vmem:[%s7296 + $0xc] sm:$0xf]
    %v7301 = vld [vmem:[%s7296 + $0x10] sm:$0xf]
    %v7302 = vld [vmem:[%s7296 + $0x14] sm:$0xf]
    %v7303 = vld [vmem:[%s7296 + $0x18] sm:$0xf]
    %v7304 = vld [vmem:[%s7296 + $0x1c] sm:$0xf]
    %v7305 = vld [vmem:[%s7296 + $0x20] sm:$0xf]
    %v7306 = vld [vmem:[%s7296 + $0x24] sm:$0xf]
    %v7307 = vld [vmem:[%s7296 + $0x28] sm:$0xf]
    %v7308 = vld [vmem:[%s7296 + $0x2c] sm:$0xf]
    %v7309 = vld [vmem:[%s7296 + $0x30] sm:$0xf]
    %v7310 = vld [vmem:[%s7296 + $0x34] sm:$0xf]
    %v7311 = vld [vmem:[%s7296 + $0x38] sm:$0xf]
    %v7312 = vld [vmem:[%s7296 + $0x3c] sm:$0xf]
    %v7329 = vunpack.c.l.b16 %v7297
    %v7330 = vunpack.c.l.b16 %v7298
    %v7331 = vunpack.c.l.b16 %v7299
    %v7332 = vunpack.c.l.b16 %v7300
    %v7333 = vunpack.c.l.b16 %v7301
    %v7334 = vunpack.c.l.b16 %v7302
    %v7335 = vunpack.c.l.b16 %v7303
    %v7336 = vunpack.c.l.b16 %v7304
    %v7337 = vunpack.c.l.b16 %v7305
    %v7338 = vunpack.c.l.b16 %v7306
    %v7339 = vunpack.c.l.b16 %v7307
    %v7340 = vunpack.c.l.b16 %v7308
    %v7341 = vunpack.c.l.b16 %v7309
    %v7342 = vunpack.c.l.b16 %v7310
    %v7343 = vunpack.c.l.b16 %v7311
    %v7344 = vunpack.c.l.b16 %v7312
    %v7345 = vpack.c.b16 %v7330, %v7329
    %v7346 = vpack.c.b16 %v7332, %v7331
    %v7347 = vpack.c.b16 %v7334, %v7333
    %v7348 = vpack.c.b16 %v7336, %v7335
    %v7349 = vpack.c.b16 %v7338, %v7337
    %v7350 = vpack.c.b16 %v7340, %v7339
    %v7351 = vpack.c.b16 %v7342, %v7341
    %v7352 = vpack.c.b16 %v7344, %v7343
    %7361 = vmatprep.subr.bf16.mxu0 0
    %7362 = vmatpush1.bf16.msra.mxu0 %v7345
    %7363 = vmatprep.subr.bf16.mxu0 0
    %7364 = vmatpush1.bf16.msra.mxu0 %v7346
    %7365 = vmatprep.subr.bf16.mxu0 0
    %7366 = vmatpush1.bf16.msra.mxu0 %v7347
    %7367 = vmatprep.subr.bf16.mxu0 0
    %7368 = vmatpush1.bf16.msra.mxu0 %v7348
    %7369 = vmatprep.subr.bf16.mxu0 0
    %7370 = vmatpush1.bf16.msra.mxu0 %v7349
    %7371 = vmatprep.subr.bf16.mxu0 0
    %7372 = vmatpush1.bf16.msra.mxu0 %v7350
    %7373 = vmatprep.subr.bf16.mxu0 0
    %7374 = vmatpush1.bf16.msra.mxu0 %v7351
    %7375 = vmatprep.subr.bf16.mxu0 0
    %7376 = vmatpush1.bf16.msra.mxu0 %v7352
    %7377 = vmatprep.subr.bf16.mxu0 0
    %7378 = vmatpush1.bf16.msra.mxu0 0
    %7379 = vmatprep.subr.bf16.mxu0 0
    %7380 = vmatpush1.bf16.msra.mxu0 0
    %7381 = vmatprep.subr.bf16.mxu0 0
    %7382 = vmatpush1.bf16.msra.mxu0 0
    %7383 = vmatprep.subr.bf16.mxu0 0
    %7384 = vmatpush1.bf16.msra.mxu0 0
    %7385 = vmatprep.subr.bf16.mxu0 0
    %7386 = vmatpush1.bf16.msra.mxu0 0
    %7387 = vmatprep.subr.bf16.mxu0 0
    %7388 = vmatpush1.bf16.msra.mxu0 0
    %7389 = vmatprep.subr.bf16.mxu0 0
    %7390 = vmatpush1.bf16.msra.mxu0 0
    %7391 = vmatprep.subr.bf16.mxu0 0
    %7392 = vmatpush1.bf16.msra.mxu0 0
    %7393 = vmatprep.mubr.bf16.mxu0 0
    %7394 = vmatmul.mubr.bf16.gmra.mrb[0].mxu0 %v7294
    %v7395 = vpop.f32.mrb[0].mxu0
    %v7396 = vadd.f32 0.0, %v7395
    %v7397 = vpop.f32.mrb[0].mxu0
    %v7398 = vpop.f32.mrb[0].mxu0
    %v7399 = vadd.f32 0.0, %v7398
    %v7400 = vpop.f32.mrb[0].mxu0
    %7401 = vmatprep.mubr.bf16.mxu0 0
    %7402 = vmatmul.mubr.bf16.gmra.mrb[0].mxu0 %v7295
    %v7403 = vpop.f32.mrb[0].mxu0
    %v7404 = vadd.f32 0.0, %v7403
    %v7405 = vpop.f32.mrb[0].mxu0
    %v7406 = vpop.f32.mrb[0].mxu0
    %v7407 = vadd.f32 0.0, %v7406
    %v7408 = vpop.f32.mrb[0].mxu0
    %7409 = vdwg.mxu0
    %v7410 = vadd.f32 %v7224, %v7396
    %v7411 = vadd.f32 %v7225, %v7399
    %v7412 = vadd.f32 %v7226, %v7404
    %v7413 = vadd.f32 %v7227, %v7407
    %s7414 = scalar_lea.vmem [#allocation13], 112
    %v7415 = vld [vmem:[%s7414] sm:$0xf]
    %v7416 = vld [vmem:[%s7414 + $0x4] sm:$0xf]
    %v7417 = vld [vmem:[%s7414 + $0x8] sm:$0xf]
    %v7418 = vld [vmem:[%s7414 + $0xc] sm:$0xf]
    %v7423 = vunpack.c.l.b16 %v7415
    %v7424 = vunpack.c.l.b16 %v7416
    %v7425 = vunpack.c.l.b16 %v7417
    %v7426 = vunpack.c.l.b16 %v7418
    %v7427 = vpack.c.b16 %v7424, %v7423
    %v7428 = vpack.c.b16 %v7426, %v7425
    %7431 = vmatprep.subr.bf16.mxu0 0
    %7432 = vmatpush1.bf16.msra.mxu0 %v6114
    %7433 = vmatprep.subr.bf16.mxu0 0
    %7434 = vmatpush1.bf16.msra.mxu0 %v6115
    %7435 = vmatprep.subr.bf16.mxu0 0
    %7436 = vmatpush1.bf16.msra.mxu0 %v6116
    %7437 = vmatprep.subr.bf16.mxu0 0
    %7438 = vmatpush1.bf16.msra.mxu0 %v6117
    %7439 = vmatprep.subr.bf16.mxu0 0
    %7440 = vmatpush1.bf16.msra.mxu0 %v6118
    %7441 = vmatprep.subr.bf16.mxu0 0
    %7442 = vmatpush1.bf16.msra.mxu0 %v6119
    %7443 = vmatprep.subr.bf16.mxu0 0
    %7444 = vmatpush1.bf16.msra.mxu0 %v6120
    %7445 = vmatprep.subr.bf16.mxu0 0
    %7446 = vmatpush1.bf16.msra.mxu0 %v6121
    %7447 = vmatprep.subr.bf16.mxu0 0
    %7448 = vmatpush1.bf16.msra.mxu0 0
    %7449 = vmatprep.subr.bf16.mxu0 0
    %7450 = vmatpush1.bf16.msra.mxu0 0
    %7451 = vmatprep.subr.bf16.mxu0 0
    %7452 = vmatpush1.bf16.msra.mxu0 0
    %7453 = vmatprep.subr.bf16.mxu0 0
    %7454 = vmatpush1.bf16.msra.mxu0 0
    %7455 = vmatprep.subr.bf16.mxu0 0
    %7456 = vmatpush1.bf16.msra.mxu0 0
    %7457 = vmatprep.subr.bf16.mxu0 0
    %7458 = vmatpush1.bf16.msra.mxu0 0
    %7459 = vmatprep.subr.bf16.mxu0 0
    %7460 = vmatpush1.bf16.msra.mxu0 0
    %7461 = vmatprep.subr.bf16.mxu0 0
    %7462 = vmatpush1.bf16.msra.mxu0 0
    %7463 = vmatprep.mubr.bf16.mxu0 0
    %7464 = vmatmul.mubr.bf16.gmra.mrb[0].mxu0 %v7427
    %v7465 = vpop.f32.mrb[0].mxu0
    %v7466 = vadd.f32 0.0, %v7465
    %v7467 = vpop.f32.mrb[0].mxu0
    %v7468 = vpop.f32.mrb[0].mxu0
    %v7469 = vadd.f32 0.0, %v7468
    %v7470 = vpop.f32.mrb[0].mxu0
    %7471 = vmatprep.mubr.bf16.mxu0 0
    %7472 = vmatmul.mubr.bf16.gmra.mrb[0].mxu0 %v7428
    %v7473 = vpop.f32.mrb[0].mxu0
    %v7474 = vadd.f32 0.0, %v7473
    %v7475 = vpop.f32.mrb[0].mxu0
    %v7476 = vpop.f32.mrb[0].mxu0
    %v7477 = vadd.f32 0.0, %v7476
    %v7478 = vpop.f32.mrb[0].mxu0
    %7479 = vdwg.mxu0
    %v7480 = vpack.c.bf16 %v7469, %v7466
    %v7481 = vpack.c.bf16 %v7477, %v7474
    %s7482 = scalar_lea.vmem [#allocation14], 448
    %v7483 = vld [vmem:[%s7482] sm:$0xf]
    %v7484 = vld [vmem:[%s7482 + $0x4] sm:$0xf]
    %v7485 = vld [vmem:[%s7482 + $0x8] sm:$0xf]
    %v7486 = vld [vmem:[%s7482 + $0xc] sm:$0xf]
    %v7487 = vld [vmem:[%s7482 + $0x10] sm:$0xf]
    %v7488 = vld [vmem:[%s7482 + $0x14] sm:$0xf]
    %v7489 = vld [vmem:[%s7482 + $0x18] sm:$0xf]
    %v7490 = vld [vmem:[%s7482 + $0x1c] sm:$0xf]
    %v7491 = vld [vmem:[%s7482 + $0x20] sm:$0xf]
    %v7492 = vld [vmem:[%s7482 + $0x24] sm:$0xf]
    %v7493 = vld [vmem:[%s7482 + $0x28] sm:$0xf]
    %v7494 = vld [vmem:[%s7482 + $0x2c] sm:$0xf]
    %v7495 = vld [vmem:[%s7482 + $0x30] sm:$0xf]
    %v7496 = vld [vmem:[%s7482 + $0x34] sm:$0xf]
    %v7497 = vld [vmem:[%s7482 + $0x38] sm:$0xf]
    %v7498 = vld [vmem:[%s7482 + $0x3c] sm:$0xf]
    %v7515 = vunpack.c.l.b16 %v7483
    %v7516 = vunpack.c.l.b16 %v7484
    %v7517 = vunpack.c.l.b16 %v7485
    %v7518 = vunpack.c.l.b16 %v7486
    %v7519 = vunpack.c.l.b16 %v7487
    %v7520 = vunpack.c.l.b16 %v7488
    %v7521 = vunpack.c.l.b16 %v7489
    %v7522 = vunpack.c.l.b16 %v7490
    %v7523 = vunpack.c.l.b16 %v7491
    %v7524 = vunpack.c.l.b16 %v7492
    %v7525 = vunpack.c.l.b16 %v7493
    %v7526 = vunpack.c.l.b16 %v7494
    %v7527 = vunpack.c.l.b16 %v7495
    %v7528 = vunpack.c.l.b16 %v7496
    %v7529 = vunpack.c.l.b16 %v7497
    %v7530 = vunpack.c.l.b16 %v7498
    %v7531 = vpack.c.b16 %v7516, %v7515
    %v7532 = vpack.c.b16 %v7518, %v7517
    %v7533 = vpack.c.b16 %v7520, %v7519
    %v7534 = vpack.c.b16 %v7522, %v7521
    %v7535 = vpack.c.b16 %v7524, %v7523
    %v7536 = vpack.c.b16 %v7526, %v7525
    %v7537 = vpack.c.b16 %v7528, %v7527
    %v7538 = vpack.c.b16 %v7530, %v7529
    %7547 = vmatprep.subr.bf16.mxu0 0
    %7548 = vmatpush1.bf16.msra.mxu0 %v7531
    %7549 = vmatprep.subr.bf16.mxu0 0
    %7550 = vmatpush1.bf16.msra.mxu0 %v7532
    %7551 = vmatprep.subr.bf16.mxu0 0
    %7552 = vmatpush1.bf16.msra.mxu0 %v7533
    %7553 = vmatprep.subr.bf16.mxu0 0
    %7554 = vmatpush1.bf16.msra.mxu0 %v7534
    %7555 = vmatprep.subr.bf16.mxu0 0
    %7556 = vmatpush1.bf16.msra.mxu0 %v7535
    %7557 = vmatprep.subr.bf16.mxu0 0
    %7558 = vmatpush1.bf16.msra.mxu0 %v7536
    %7559 = vmatprep.subr.bf16.mxu0 0
    %7560 = vmatpush1.bf16.msra.mxu0 %v7537
    %7561 = vmatprep.subr.bf16.mxu0 0
    %7562 = vmatpush1.bf16.msra.mxu0 %v7538
    %7563 = vmatprep.subr.bf16.mxu0 0
    %7564 = vmatpush1.bf16.msra.mxu0 0
    %7565 = vmatprep.subr.bf16.mxu0 0
    %7566 = vmatpush1.bf16.msra.mxu0 0
    %7567 = vmatprep.subr.bf16.mxu0 0
    %7568 = vmatpush1.bf16.msra.mxu0 0
    %7569 = vmatprep.subr.bf16.mxu0 0
    %7570 = vmatpush1.bf16.msra.mxu0 0
    %7571 = vmatprep.subr.bf16.mxu0 0
    %7572 = vmatpush1.bf16.msra.mxu0 0
    %7573 = vmatprep.subr.bf16.mxu0 0
    %7574 = vmatpush1.bf16.msra.mxu0 0
    %7575 = vmatprep.subr.bf16.mxu0 0
    %7576 = vmatpush1.bf16.msra.mxu0 0
    %7577 = vmatprep.subr.bf16.mxu0 0
    %7578 = vmatpush1.bf16.msra.mxu0 0
    %7579 = vmatprep.mubr.bf16.mxu0 0
    %7580 = vmatmul.mubr.bf16.gmra.mrb[0].mxu0 %v7480
    %v7581 = vpop.f32.mrb[0].mxu0
    %v7582 = vadd.f32 0.0, %v7581
    %v7583 = vpop.f32.mrb[0].mxu0
    %v7584 = vpop.f32.mrb[0].mxu0
    %v7585 = vadd.f32 0.0, %v7584
    %v7586 = vpop.f32.mrb[0].mxu0
    %7587 = vmatprep.mubr.bf16.mxu0 0
    %7588 = vmatmul.mubr.bf16.gmra.mrb[0].mxu0 %v7481
    %v7589 = vpop.f32.mrb[0].mxu0
    %v7590 = vadd.f32 0.0, %v7589
    %v7591 = vpop.f32.mrb[0].mxu0
    %v7592 = vpop.f32.mrb[0].mxu0
    %v7593 = vadd.f32 0.0, %v7592
    %v7594 = vpop.f32.mrb[0].mxu0
    %7595 = vdwg.mxu0
    %v7596 = vadd.f32 %v7410, %v7582
    %v7597 = vadd.f32 %v7411, %v7585
    %v7598 = vadd.f32 %v7412, %v7590
    %v7599 = vadd.f32 %v7413, %v7593
    %s7600 = scalar_lea.vmem [#allocation13], 128
    %v7601 = vld [vmem:[%s7600] sm:$0xf]
    %v7602 = vld [vmem:[%s7600 + $0x4] sm:$0xf]
    %v7603 = vld [vmem:[%s7600 + $0x8] sm:$0xf]
    %v7604 = vld [vmem:[%s7600 + $0xc] sm:$0xf]
    %v7609 = vunpack.c.l.b16 %v7601
    %v7610 = vunpack.c.l.b16 %v7602
    %v7611 = vunpack.c.l.b16 %v7603
    %v7612 = vunpack.c.l.b16 %v7604
    %v7613 = vpack.c.b16 %v7610, %v7609
    %v7614 = vpack.c.b16 %v7612, %v7611
    %7617 = vmatprep.subr.bf16.mxu0 0
    %7618 = vmatpush1.bf16.msra.mxu0 %v6114
    %7619 = vmatprep.subr.bf16.mxu0 0
    %7620 = vmatpush1.bf16.msra.mxu0 %v6115
    %7621 = vmatprep.subr.bf16.mxu0 0
    %7622 = vmatpush1.bf16.msra.mxu0 %v6116
    %7623 = vmatprep.subr.bf16.mxu0 0
    %7624 = vmatpush1.bf16.msra.mxu0 %v6117
    %7625 = vmatprep.subr.bf16.mxu0 0
    %7626 = vmatpush1.bf16.msra.mxu0 %v6118
    %7627 = vmatprep.subr.bf16.mxu0 0
    %7628 = vmatpush1.bf16.msra.mxu0 %v6119
    %7629 = vmatprep.subr.bf16.mxu0 0
    %7630 = vmatpush1.bf16.msra.mxu0 %v6120
    %7631 = vmatprep.subr.bf16.mxu0 0
    %7632 = vmatpush1.bf16.msra.mxu0 %v6121
    %7633 = vmatprep.subr.bf16.mxu0 0
    %7634 = vmatpush1.bf16.msra.mxu0 0
    %7635 = vmatprep.subr.bf16.mxu0 0
    %7636 = vmatpush1.bf16.msra.mxu0 0
    %7637 = vmatprep.subr.bf16.mxu0 0
    %7638 = vmatpush1.bf16.msra.mxu0 0
    %7639 = vmatprep.subr.bf16.mxu0 0
    %7640 = vmatpush1.bf16.msra.mxu0 0
    %7641 = vmatprep.subr.bf16.mxu0 0
    %7642 = vmatpush1.bf16.msra.mxu0 0
    %7643 = vmatprep.subr.bf16.mxu0 0
    %7644 = vmatpush1.bf16.msra.mxu0 0
    %7645 = vmatprep.subr.bf16.mxu0 0
    %7646 = vmatpush1.bf16.msra.mxu0 0
    %7647 = vmatprep.subr.bf16.mxu0 0
    %7648 = vmatpush1.bf16.msra.mxu0 0
    %7649 = vmatprep.mubr.bf16.mxu0 0
    %7650 = vmatmul.mubr.bf16.gmra.mrb[0].mxu0 %v7613
    %v7651 = vpop.f32.mrb[0].mxu0
    %v7652 = vadd.f32 0.0, %v7651
    %v7653 = vpop.f32.mrb[0].mxu0
    %v7654 = vpop.f32.mrb[0].mxu0
    %v7655 = vadd.f32 0.0, %v7654
    %v7656 = vpop.f32.mrb[0].mxu0
    %7657 = vmatprep.mubr.bf16.mxu0 0
    %7658 = vmatmul.mubr.bf16.gmra.mrb[0].mxu0 %v7614
    %v7659 = vpop.f32.mrb[0].mxu0
    %v7660 = vadd.f32 0.0, %v7659
    %v7661 = vpop.f32.mrb[0].mxu0
    %v7662 = vpop.f32.mrb[0].mxu0
    %v7663 = vadd.f32 0.0, %v7662
    %v7664 = vpop.f32.mrb[0].mxu0
    %7665 = vdwg.mxu0
    %v7666 = vpack.c.bf16 %v7655, %v7652
    %v7667 = vpack.c.bf16 %v7663, %v7660
    %s7668 = scalar_lea.vmem [#allocation14], 512
    %v7669 = vld [vmem:[%s7668] sm:$0xf]
    %v7670 = vld [vmem:[%s7668 + $0x4] sm:$0xf]
    %v7671 = vld [vmem:[%s7668 + $0x8] sm:$0xf]
    %v7672 = vld [vmem:[%s7668 + $0xc] sm:$0xf]
    %v7673 = vld [vmem:[%s7668 + $0x10] sm:$0xf]
    %v7674 = vld [vmem:[%s7668 + $0x14] sm:$0xf]
    %v7675 = vld [vmem:[%s7668 + $0x18] sm:$0xf]
    %v7676 = vld [vmem:[%s7668 + $0x1c] sm:$0xf]
    %v7677 = vld [vmem:[%s7668 + $0x20] sm:$0xf]
    %v7678 = vld [vmem:[%s7668 + $0x24] sm:$0xf]
    %v7679 = vld [vmem:[%s7668 + $0x28] sm:$0xf]
    %v7680 = vld [vmem:[%s7668 + $0x2c] sm:$0xf]
    %v7681 = vld [vmem:[%s7668 + $0x30] sm:$0xf]
    %v7682 = vld [vmem:[%s7668 + $0x34] sm:$0xf]
    %v7683 = vld [vmem:[%s7668 + $0x38] sm:$0xf]
    %v7684 = vld [vmem:[%s7668 + $0x3c] sm:$0xf]
    %v7701 = vunpack.c.l.b16 %v7669
    %v7702 = vunpack.c.l.b16 %v7670
    %v7703 = vunpack.c.l.b16 %v7671
    %v7704 = vunpack.c.l.b16 %v7672
    %v7705 = vunpack.c.l.b16 %v7673
    %v7706 = vunpack.c.l.b16 %v7674
    %v7707 = vunpack.c.l.b16 %v7675
    %v7708 = vunpack.c.l.b16 %v7676
    %v7709 = vunpack.c.l.b16 %v7677
    %v7710 = vunpack.c.l.b16 %v7678
    %v7711 = vunpack.c.l.b16 %v7679
    %v7712 = vunpack.c.l.b16 %v7680
    %v7713 = vunpack.c.l.b16 %v7681
    %v7714 = vunpack.c.l.b16 %v7682
    %v7715 = vunpack.c.l.b16 %v7683
    %v7716 = vunpack.c.l.b16 %v7684
    %v7717 = vpack.c.b16 %v7702, %v7701
    %v7718 = vpack.c.b16 %v7704, %v7703
    %v7719 = vpack.c.b16 %v7706, %v7705
    %v7720 = vpack.c.b16 %v7708, %v7707
    %v7721 = vpack.c.b16 %v7710, %v7709
    %v7722 = vpack.c.b16 %v7712, %v7711
    %v7723 = vpack.c.b16 %v7714, %v7713
    %v7724 = vpack.c.b16 %v7716, %v7715
    %7733 = vmatprep.subr.bf16.mxu0 0
    %7734 = vmatpush1.bf16.msra.mxu0 %v7717
    %7735 = vmatprep.subr.bf16.mxu0 0
    %7736 = vmatpush1.bf16.msra.mxu0 %v7718
    %7737 = vmatprep.subr.bf16.mxu0 0
    %7738 = vmatpush1.bf16.msra.mxu0 %v7719
    %7739 = vmatprep.subr.bf16.mxu0 0
    %7740 = vmatpush1.bf16.msra.mxu0 %v7720
    %7741 = vmatprep.subr.bf16.mxu0 0
    %7742 = vmatpush1.bf16.msra.mxu0 %v7721
    %7743 = vmatprep.subr.bf16.mxu0 0
    %7744 = vmatpush1.bf16.msra.mxu0 %v7722
    %7745 = vmatprep.subr.bf16.mxu0 0
    %7746 = vmatpush1.bf16.msra.mxu0 %v7723
    %7747 = vmatprep.subr.bf16.mxu0 0
    %7748 = vmatpush1.bf16.msra.mxu0 %v7724
    %7749 = vmatprep.subr.bf16.mxu0 0
    %7750 = vmatpush1.bf16.msra.mxu0 0
    %7751 = vmatprep.subr.bf16.mxu0 0
    %7752 = vmatpush1.bf16.msra.mxu0 0
    %7753 = vmatprep.subr.bf16.mxu0 0
    %7754 = vmatpush1.bf16.msra.mxu0 0
    %7755 = vmatprep.subr.bf16.mxu0 0
    %7756 = vmatpush1.bf16.msra.mxu0 0
    %7757 = vmatprep.subr.bf16.mxu0 0
    %7758 = vmatpush1.bf16.msra.mxu0 0
    %7759 = vmatprep.subr.bf16.mxu0 0
    %7760 = vmatpush1.bf16.msra.mxu0 0
    %7761 = vmatprep.subr.bf16.mxu0 0
    %7762 = vmatpush1.bf16.msra.mxu0 0
    %7763 = vmatprep.subr.bf16.mxu0 0
    %7764 = vmatpush1.bf16.msra.mxu0 0
    %7765 = vmatprep.mubr.bf16.mxu0 0
    %7766 = vmatmul.mubr.bf16.gmra.mrb[0].mxu0 %v7666
    %v7767 = vpop.f32.mrb[0].mxu0
    %v7768 = vadd.f32 0.0, %v7767
    %v7769 = vpop.f32.mrb[0].mxu0
    %v7770 = vpop.f32.mrb[0].mxu0
    %v7771 = vadd.f32 0.0, %v7770
    %v7772 = vpop.f32.mrb[0].mxu0
    %7773 = vmatprep.mubr.bf16.mxu0 0
    %7774 = vmatmul.mubr.bf16.gmra.mrb[0].mxu0 %v7667
    %v7775 = vpop.f32.mrb[0].mxu0
    %v7776 = vadd.f32 0.0, %v7775
    %v7777 = vpop.f32.mrb[0].mxu0
    %v7778 = vpop.f32.mrb[0].mxu0
    %v7779 = vadd.f32 0.0, %v7778
    %v7780 = vpop.f32.mrb[0].mxu0
    %7781 = vdwg.mxu0
    %v7782 = vadd.f32 %v7596, %v7768
    %v7783 = vadd.f32 %v7597, %v7771
    %v7784 = vadd.f32 %v7598, %v7776
    %v7785 = vadd.f32 %v7599, %v7779
    %v7786 = vld [vmem:[#allocation16] sm:$0x1]
    %v7788 = vlaneseq
    %v7789 = vshrl.u32 %v7788, 7
    %v7790 = vsub.s32 0, %v7789
    %v7791 = vrot.slane %v7786, %v7790
    %v7793 = vadd.f32 %v7782, %v7791
    %v7794 = vadd.f32 %v7783, %v7791
    %v7795 = vadd.f32 %v7784, %v7791
    %v7796 = vadd.f32 %v7785, %v7791
    %vm7797 = vcmp.ge.f32.partialorder %v7793, 0.0
    %vm7798 = vcmp.ge.f32.partialorder %v7794, 0.0
    %vm7799 = vcmp.ge.f32.partialorder %v7795, 0.0
    %vm7800 = vcmp.ge.f32.partialorder %v7796, 0.0
    %v7801 = vmul.f32 %v7793, 0.01
    %v7802 = vmul.f32 %v7794, 0.01
    %v7803 = vmul.f32 %v7795, 0.01
    %v7804 = vmul.f32 %v7796, 0.01
    %v7805 = vsel %vm7797, %v7793, %v7801
    %v7806 = vsel %vm7798, %v7794, %v7802
    %v7807 = vsel %vm7799, %v7795, %v7803
    %v7808 = vsel %vm7800, %v7796, %v7804
    %v7809 = vadd.f32 %v7805, %v7806
    %v7810 = vadd.f32 %v7809, %v7807
    %v7811 = vadd.f32 %v7810, %v7808
    %v7812 = vrot.slane %v7811, 4
    %v7813 = vadd.f32 %v7811, %v7812
    %v7814 = vrot.slane %v7813, 2
    %v7815 = vadd.f32 %v7813, %v7814
    %v7816 = vrot.slane %v7815, 1
    %v7817 = vadd.f32 %v7815, %v7816
    %v7818 = vrcp.pop 32.0
    %v7819 = vmul.f32 %v7817, %v7818
    %v7820 = vsub.f32 %v7805, %v7819
    %v7821 = vsub.f32 %v7806, %v7819
    %v7822 = vsub.f32 %v7807, %v7819
    %v7823 = vsub.f32 %v7808, %v7819
    %v7824 = vmul.f32 %v7820, %v7820
    %v7825 = vmul.f32 %v7821, %v7821
    %v7826 = vmul.f32 %v7822, %v7822
    %v7827 = vmul.f32 %v7823, %v7823
    %v7828 = vadd.f32 %v7824, %v7825
    %v7829 = vadd.f32 %v7828, %v7826
    %v7830 = vadd.f32 %v7829, %v7827
    %v7831 = vrot.slane %v7830, 4
    %v7832 = vadd.f32 %v7830, %v7831
    %v7833 = vrot.slane %v7832, 2
    %v7834 = vadd.f32 %v7832, %v7833
    %v7835 = vrot.slane %v7834, 1
    %v7836 = vadd.f32 %v7834, %v7835
    %v7837 = vmul.f32 %v7836, %v7818
    %v7838 = vadd.f32 %v7837, 1e-05
    %v7839 = vrsqrt.pop %v7838
    %v7840 = vmul.f32 %v7820, %v7839
    %v7841 = vmul.f32 %v7821, %v7839
    %v7842 = vmul.f32 %v7822, %v7839
    %v7843 = vmul.f32 %v7823, %v7839
    %v7844 = vld [vmem:[#allocation17] sm:$0x1]
    %v7846 = vlaneseq
    %v7847 = vshrl.u32 %v7846, 7
    %v7848 = vsub.s32 0, %v7847
    %v7849 = vrot.slane %v7844, %v7848
    %v7851 = vmul.f32 %v7840, %v7849
    %v7852 = vmul.f32 %v7841, %v7849
    %v7853 = vmul.f32 %v7842, %v7849
    %v7854 = vmul.f32 %v7843, %v7849
    %v7855 = vld [vmem:[#allocation19] sm:$0x1]
    %v7857 = vlaneseq
    %v7858 = vshrl.u32 %v7857, 7
    %v7859 = vsub.s32 0, %v7858
    %v7860 = vrot.slane %v7855, %v7859
    %v7862 = vadd.f32 %v7851, %v7860
    %v7863 = vadd.f32 %v7852, %v7860
    %v7864 = vadd.f32 %v7853, %v7860
    %v7865 = vadd.f32 %v7854, %v7860
    %v7866 = vpack.c.bf16 %v7863, %v7862
    %v7867 = vpack.c.bf16 %v7865, %v7864
    %v7868 = vld [vmem:[#allocation20] sm:$0xf]
    %vm7869 = vcmask 261120
    %v7871 = vsel %vm7869, %v7868, 0
    %7873 = vmatprep.subr.bf16.mxu0 0
    %7874 = vmatpush1.bf16.msra.mxu0 %v7866
    %7875 = vmatprep.subr.bf16.mxu0 0
    %7876 = vmatpush1.bf16.msra.mxu0 %v7867
    %7877 = vmatprep.subr.bf16.mxu0 0
    %7878 = vmatpush1.bf16.msra.mxu0 0
    %7879 = vmatprep.subr.bf16.mxu0 0
    %7880 = vmatpush1.bf16.msra.mxu0 0
    %7881 = vmatprep.subr.bf16.mxu0 0
    %7882 = vmatpush1.bf16.msra.mxu0 0
    %7883 = vmatprep.subr.bf16.mxu0 0
    %7884 = vmatpush1.bf16.msra.mxu0 0
    %7885 = vmatprep.subr.bf16.mxu0 0
    %7886 = vmatpush1.bf16.msra.mxu0 0
    %7887 = vmatprep.subr.bf16.mxu0 0
    %7888 = vmatpush1.bf16.msra.mxu0 0
    %7889 = vmatprep.subr.bf16.mxu0 0
    %7890 = vmatpush1.bf16.msra.mxu0 0
    %7891 = vmatprep.subr.bf16.mxu0 0
    %7892 = vmatpush1.bf16.msra.mxu0 0
    %7893 = vmatprep.subr.bf16.mxu0 0
    %7894 = vmatpush1.bf16.msra.mxu0 0
    %7895 = vmatprep.subr.bf16.mxu0 0
    %7896 = vmatpush1.bf16.msra.mxu0 0
    %7897 = vmatprep.subr.bf16.mxu0 0
    %7898 = vmatpush1.bf16.msra.mxu0 0
    %7899 = vmatprep.subr.bf16.mxu0 0
    %7900 = vmatpush1.bf16.msra.mxu0 0
    %7901 = vmatprep.subr.bf16.mxu0 0
    %7902 = vmatpush1.bf16.msra.mxu0 0
    %7903 = vmatprep.subr.bf16.mxu0 0
    %7904 = vmatpush1.bf16.msra.mxu0 0
    %7905 = vmatprep.mubr.bf16.mxu0 0
    %7906 = vmatmul.mubr.bf16.gmra.mrb[0].mxu0 %v7871
    %v7907 = vpop.f32.mrb[0].mxu0
    %v7908 = vadd.f32 0.0, %v7907
    %v7909 = vpop.f32.mrb[0].mxu0
    %v7910 = vpop.f32.mrb[0].mxu0
    %v7911 = vpop.f32.mrb[0].mxu0
    %7912 = vdwg.mxu0
    %v7913 = vpack.c.bf16 %v7908, %v7908
    %v7914 = vld [vmem:[#allocation22] sm:$0xf]
    %v7915 = vld [vmem:[#allocation22 + $0x4] sm:$0xf]
    %v7916 = vld [vmem:[#allocation22 + $0x8] sm:$0xf]
    %v7917 = vld [vmem:[#allocation22 + $0xc] sm:$0xf]
    %v7918 = vld [vmem:[#allocation22 + $0x10] sm:$0xf]
    %v7919 = vld [vmem:[#allocation22 + $0x14] sm:$0xf]
    %v7920 = vld [vmem:[#allocation22 + $0x18] sm:$0xf]
    %v7921 = vld [vmem:[#allocation22 + $0x1c] sm:$0xf]
    %v7922 = vld [vmem:[#allocation22 + $0x20] sm:$0xf]
    %v7923 = vld [vmem:[#allocation22 + $0x24] sm:$0xf]
    %v7924 = vld [vmem:[#allocation22 + $0x28] sm:$0xf]
    %v7925 = vld [vmem:[#allocation22 + $0x2c] sm:$0xf]
    %v7926 = vld [vmem:[#allocation22 + $0x30] sm:$0xf]
    %v7927 = vld [vmem:[#allocation22 + $0x34] sm:$0xf]
    %v7928 = vld [vmem:[#allocation22 + $0x38] sm:$0xf]
    %v7929 = vld [vmem:[#allocation22 + $0x3c] sm:$0xf]
    %s7930 = scalar_lea.vmem [#allocation20], 4
    %v7931 = vld [vmem:[%s7930] sm:$0xf]
    %v7933 = vsel %vm7869, %v7931, 0
    %7935 = vmatprep.subr.bf16.mxu0 0
    %7936 = vmatpush1.bf16.msra.mxu0 %v7866
    %7937 = vmatprep.subr.bf16.mxu0 0
    %7938 = vmatpush1.bf16.msra.mxu0 %v7867
    %7939 = vmatprep.subr.bf16.mxu0 0
    %7940 = vmatpush1.bf16.msra.mxu0 0
    %7941 = vmatprep.subr.bf16.mxu0 0
    %7942 = vmatpush1.bf16.msra.mxu0 0
    %7943 = vmatprep.subr.bf16.mxu0 0
    %7944 = vmatpush1.bf16.msra.mxu0 0
    %7945 = vmatprep.subr.bf16.mxu0 0
    %7946 = vmatpush1.bf16.msra.mxu0 0
    %7947 = vmatprep.subr.bf16.mxu0 0
    %7948 = vmatpush1.bf16.msra.mxu0 0
    %7949 = vmatprep.subr.bf16.mxu0 0
    %7950 = vmatpush1.bf16.msra.mxu0 0
    %7951 = vmatprep.subr.bf16.mxu0 0
    %7952 = vmatpush1.bf16.msra.mxu0 0
    %7953 = vmatprep.subr.bf16.mxu0 0
    %7954 = vmatpush1.bf16.msra.mxu0 0
    %7955 = vmatprep.subr.bf16.mxu0 0
    %7956 = vmatpush1.bf16.msra.mxu0 0
    %7957 = vmatprep.subr.bf16.mxu0 0
    %7958 = vmatpush1.bf16.msra.mxu0 0
    %7959 = vmatprep.subr.bf16.mxu0 0
    %7960 = vmatpush1.bf16.msra.mxu0 0
    %7961 = vmatprep.subr.bf16.mxu0 0
    %7962 = vmatpush1.bf16.msra.mxu0 0
    %7963 = vmatprep.subr.bf16.mxu0 0
    %7964 = vmatpush1.bf16.msra.mxu0 0
    %7965 = vmatprep.subr.bf16.mxu0 0
    %7966 = vmatpush1.bf16.msra.mxu0 0
    %7967 = vmatprep.mubr.bf16.mxu0 0
    %7968 = vmatmul.mubr.bf16.gmra.mrb[0].mxu0 %v7933
    %v7969 = vpop.f32.mrb[0].mxu0
    %v7970 = vadd.f32 0.0, %v7969
    %v7971 = vpop.f32.mrb[0].mxu0
    %v7972 = vpop.f32.mrb[0].mxu0
    %v7973 = vpop.f32.mrb[0].mxu0
    %7974 = vdwg.mxu0
    %v7975 = vpack.c.bf16 %v7970, %v7970
    %s7976 = scalar_lea.vmem [#allocation22], 64
    %v7977 = vld [vmem:[%s7976] sm:$0xf]
    %v7978 = vld [vmem:[%s7976 + $0x4] sm:$0xf]
    %v7979 = vld [vmem:[%s7976 + $0x8] sm:$0xf]
    %v7980 = vld [vmem:[%s7976 + $0xc] sm:$0xf]
    %v7981 = vld [vmem:[%s7976 + $0x10] sm:$0xf]
    %v7982 = vld [vmem:[%s7976 + $0x14] sm:$0xf]
    %v7983 = vld [vmem:[%s7976 + $0x18] sm:$0xf]
    %v7984 = vld [vmem:[%s7976 + $0x1c] sm:$0xf]
    %v7985 = vld [vmem:[%s7976 + $0x20] sm:$0xf]
    %v7986 = vld [vmem:[%s7976 + $0x24] sm:$0xf]
    %v7987 = vld [vmem:[%s7976 + $0x28] sm:$0xf]
    %v7988 = vld [vmem:[%s7976 + $0x2c] sm:$0xf]
    %v7989 = vld [vmem:[%s7976 + $0x30] sm:$0xf]
    %v7990 = vld [vmem:[%s7976 + $0x34] sm:$0xf]
    %v7991 = vld [vmem:[%s7976 + $0x38] sm:$0xf]
    %v7992 = vld [vmem:[%s7976 + $0x3c] sm:$0xf]
    %v8009 = vunpack.c.l.b16 %v7977
    %v8010 = vunpack.c.l.b16 %v7978
    %v8011 = vunpack.c.l.b16 %v7979
    %v8012 = vunpack.c.l.b16 %v7980
    %v8013 = vunpack.c.l.b16 %v7981
    %v8014 = vunpack.c.l.b16 %v7982
    %v8015 = vunpack.c.l.b16 %v7983
    %v8016 = vunpack.c.l.b16 %v7984
    %v8017 = vunpack.c.l.b16 %v7985
    %v8018 = vunpack.c.l.b16 %v7986
    %v8019 = vunpack.c.l.b16 %v7987
    %v8020 = vunpack.c.l.b16 %v7988
    %v8021 = vunpack.c.l.b16 %v7989
    %v8022 = vunpack.c.l.b16 %v7990
    %v8023 = vunpack.c.l.b16 %v7991
    %v8024 = vunpack.c.l.b16 %v7992
    %v8025 = vpack.c.b16 %v8010, %v8009
    %v8026 = vpack.c.b16 %v8012, %v8011
    %v8027 = vpack.c.b16 %v8014, %v8013
    %v8028 = vpack.c.b16 %v8016, %v8015
    %v8029 = vpack.c.b16 %v8018, %v8017
    %v8030 = vpack.c.b16 %v8020, %v8019
    %v8031 = vpack.c.b16 %v8022, %v8021
    %v8032 = vpack.c.b16 %v8024, %v8023
    %8041 = vmatprep.subr.bf16.mxu0 0
    %8042 = vmatpush1.bf16.msra.mxu0 %v8025
    %8043 = vmatprep.subr.bf16.mxu0 0
    %8044 = vmatpush1.bf16.msra.mxu0 %v8026
    %8045 = vmatprep.subr.bf16.mxu0 0
    %8046 = vmatpush1.bf16.msra.mxu0 %v8027
    %8047 = vmatprep.subr.bf16.mxu0 0
    %8048 = vmatpush1.bf16.msra.mxu0 %v8028
    %8049 = vmatprep.subr.bf16.mxu0 0
    %8050 = vmatpush1.bf16.msra.mxu0 %v8029
    %8051 = vmatprep.subr.bf16.mxu0 0
    %8052 = vmatpush1.bf16.msra.mxu0 %v8030
    %8053 = vmatprep.subr.bf16.mxu0 0
    %8054 = vmatpush1.bf16.msra.mxu0 %v8031
    %8055 = vmatprep.subr.bf16.mxu0 0
    %8056 = vmatpush1.bf16.msra.mxu0 %v8032
    %8057 = vmatprep.subr.bf16.mxu0 0
    %8058 = vmatpush1.bf16.msra.mxu0 0
    %8059 = vmatprep.subr.bf16.mxu0 0
    %8060 = vmatpush1.bf16.msra.mxu0 0
    %8061 = vmatprep.subr.bf16.mxu0 0
    %8062 = vmatpush1.bf16.msra.mxu0 0
    %8063 = vmatprep.subr.bf16.mxu0 0
    %8064 = vmatpush1.bf16.msra.mxu0 0
    %8065 = vmatprep.subr.bf16.mxu0 0
    %8066 = vmatpush1.bf16.msra.mxu0 0
    %8067 = vmatprep.subr.bf16.mxu0 0
    %8068 = vmatpush1.bf16.msra.mxu0 0
    %8069 = vmatprep.subr.bf16.mxu0 0
    %8070 = vmatpush1.bf16.msra.mxu0 0
    %8071 = vmatprep.subr.bf16.mxu0 0
    %8072 = vmatpush1.bf16.msra.mxu0 0
    %8073 = vmatprep.mubr.bf16.mxu0 0
    %8074 = vmatmul.mubr.bf16.gmra.mrb[0].mxu0 %v7975
    %v8075 = vpop.f32.mrb[0].mxu0
    %v8076 = vadd.f32 0.0, %v8075
    %v8077 = vpop.f32.mrb[0].mxu0
    %v8078 = vpop.f32.mrb[0].mxu0
    %v8079 = vpop.f32.mrb[0].mxu0
    %8080 = vdwg.mxu0
    %v8097 = vunpack.c.l.b16 %v7914
    %v8098 = vunpack.c.l.b16 %v7915
    %v8099 = vunpack.c.l.b16 %v7916
    %v8100 = vunpack.c.l.b16 %v7917
    %v8101 = vunpack.c.l.b16 %v7918
    %v8102 = vunpack.c.l.b16 %v7919
    %v8103 = vunpack.c.l.b16 %v7920
    %v8104 = vunpack.c.l.b16 %v7921
    %v8105 = vunpack.c.l.b16 %v7922
    %v8106 = vunpack.c.l.b16 %v7923
    %v8107 = vunpack.c.l.b16 %v7924
    %v8108 = vunpack.c.l.b16 %v7925
    %v8109 = vunpack.c.l.b16 %v7926
    %v8110 = vunpack.c.l.b16 %v7927
    %v8111 = vunpack.c.l.b16 %v7928
    %v8112 = vunpack.c.l.b16 %v7929
    %v8113 = vpack.c.b16 %v8098, %v8097
    %v8114 = vpack.c.b16 %v8100, %v8099
    %v8115 = vpack.c.b16 %v8102, %v8101
    %v8116 = vpack.c.b16 %v8104, %v8103
    %v8117 = vpack.c.b16 %v8106, %v8105
    %v8118 = vpack.c.b16 %v8108, %v8107
    %v8119 = vpack.c.b16 %v8110, %v8109
    %v8120 = vpack.c.b16 %v8112, %v8111
    %8129 = vmatprep.subr.bf16.mxu0 0
    %8130 = vmatpush1.bf16.msra.mxu0 %v8113
    %8131 = vmatprep.subr.bf16.mxu0 0
    %8132 = vmatpush1.bf16.msra.mxu0 %v8114
    %8133 = vmatprep.subr.bf16.mxu0 0
    %8134 = vmatpush1.bf16.msra.mxu0 %v8115
    %8135 = vmatprep.subr.bf16.mxu0 0
    %8136 = vmatpush1.bf16.msra.mxu0 %v8116
    %8137 = vmatprep.subr.bf16.mxu0 0
    %8138 = vmatpush1.bf16.msra.mxu0 %v8117
    %8139 = vmatprep.subr.bf16.mxu0 0
    %8140 = vmatpush1.bf16.msra.mxu0 %v8118
    %8141 = vmatprep.subr.bf16.mxu0 0
    %8142 = vmatpush1.bf16.msra.mxu0 %v8119
    %8143 = vmatprep.subr.bf16.mxu0 0
    %8144 = vmatpush1.bf16.msra.mxu0 %v8120
    %8145 = vmatprep.subr.bf16.mxu0 0
    %8146 = vmatpush1.bf16.msra.mxu0 0
    %8147 = vmatprep.subr.bf16.mxu0 0
    %8148 = vmatpush1.bf16.msra.mxu0 0
    %8149 = vmatprep.subr.bf16.mxu0 0
    %8150 = vmatpush1.bf16.msra.mxu0 0
    %8151 = vmatprep.subr.bf16.mxu0 0
    %8152 = vmatpush1.bf16.msra.mxu0 0
    %8153 = vmatprep.subr.bf16.mxu0 0
    %8154 = vmatpush1.bf16.msra.mxu0 0
    %8155 = vmatprep.subr.bf16.mxu0 0
    %8156 = vmatpush1.bf16.msra.mxu0 0
    %8157 = vmatprep.subr.bf16.mxu0 0
    %8158 = vmatpush1.bf16.msra.mxu0 0
    %8159 = vmatprep.subr.bf16.mxu0 0
    %8160 = vmatpush1.bf16.msra.mxu0 0
    %8161 = vmatprep.mubr.bf16.mxu0 0
    %8162 = vmatmul.mubr.bf16.gmra.mrb[0].mxu0 %v7913
    %v8163 = vpop.f32.mrb[0].mxu0
    %v8164 = vadd.f32 %v8076, %v8163
    %v8165 = vpop.f32.mrb[0].mxu0
    %v8166 = vpop.f32.mrb[0].mxu0
    %v8167 = vpop.f32.mrb[0].mxu0
    %8168 = vdwg.mxu0
    %s8169 = scalar_lea.vmem [#allocation20], 8
    %v8170 = vld [vmem:[%s8169] sm:$0xf]
    %v8172 = vsel %vm7869, %v8170, 0
    %8174 = vmatprep.subr.bf16.mxu0 0
    %8175 = vmatpush1.bf16.msra.mxu0 %v7866
    %8176 = vmatprep.subr.bf16.mxu0 0
    %8177 = vmatpush1.bf16.msra.mxu0 %v7867
    %8178 = vmatprep.subr.bf16.mxu0 0
    %8179 = vmatpush1.bf16.msra.mxu0 0
    %8180 = vmatprep.subr.bf16.mxu0 0
    %8181 = vmatpush1.bf16.msra.mxu0 0
    %8182 = vmatprep.subr.bf16.mxu0 0
    %8183 = vmatpush1.bf16.msra.mxu0 0
    %8184 = vmatprep.subr.bf16.mxu0 0
    %8185 = vmatpush1.bf16.msra.mxu0 0
    %8186 = vmatprep.subr.bf16.mxu0 0
    %8187 = vmatpush1.bf16.msra.mxu0 0
    %8188 = vmatprep.subr.bf16.mxu0 0
    %8189 = vmatpush1.bf16.msra.mxu0 0
    %8190 = vmatprep.subr.bf16.mxu0 0
    %8191 = vmatpush1.bf16.msra.mxu0 0
    %8192 = vmatprep.subr.bf16.mxu0 0
    %8193 = vmatpush1.bf16.msra.mxu0 0
    %8194 = vmatprep.subr.bf16.mxu0 0
    %8195 = vmatpush1.bf16.msra.mxu0 0
    %8196 = vmatprep.subr.bf16.mxu0 0
    %8197 = vmatpush1.bf16.msra.mxu0 0
    %8198 = vmatprep.subr.bf16.mxu0 0
    %8199 = vmatpush1.bf16.msra.mxu0 0
    %8200 = vmatprep.subr.bf16.mxu0 0
    %8201 = vmatpush1.bf16.msra.mxu0 0
    %8202 = vmatprep.subr.bf16.mxu0 0
    %8203 = vmatpush1.bf16.msra.mxu0 0
    %8204 = vmatprep.subr.bf16.mxu0 0
    %8205 = vmatpush1.bf16.msra.mxu0 0
    %8206 = vmatprep.mubr.bf16.mxu0 0
    %8207 = vmatmul.mubr.bf16.gmra.mrb[0].mxu0 %v8172
    %v8208 = vpop.f32.mrb[0].mxu0
    %v8209 = vadd.f32 0.0, %v8208
    %v8210 = vpop.f32.mrb[0].mxu0
    %v8211 = vpop.f32.mrb[0].mxu0
    %v8212 = vpop.f32.mrb[0].mxu0
    %8213 = vdwg.mxu0
    %v8214 = vpack.c.bf16 %v8209, %v8209
    %s8215 = scalar_lea.vmem [#allocation22], 128
    %v8216 = vld [vmem:[%s8215] sm:$0xf]
    %v8217 = vld [vmem:[%s8215 + $0x4] sm:$0xf]
    %v8218 = vld [vmem:[%s8215 + $0x8] sm:$0xf]
    %v8219 = vld [vmem:[%s8215 + $0xc] sm:$0xf]
    %v8220 = vld [vmem:[%s8215 + $0x10] sm:$0xf]
    %v8221 = vld [vmem:[%s8215 + $0x14] sm:$0xf]
    %v8222 = vld [vmem:[%s8215 + $0x18] sm:$0xf]
    %v8223 = vld [vmem:[%s8215 + $0x1c] sm:$0xf]
    %v8224 = vld [vmem:[%s8215 + $0x20] sm:$0xf]
    %v8225 = vld [vmem:[%s8215 + $0x24] sm:$0xf]
    %v8226 = vld [vmem:[%s8215 + $0x28] sm:$0xf]
    %v8227 = vld [vmem:[%s8215 + $0x2c] sm:$0xf]
    %v8228 = vld [vmem:[%s8215 + $0x30] sm:$0xf]
    %v8229 = vld [vmem:[%s8215 + $0x34] sm:$0xf]
    %v8230 = vld [vmem:[%s8215 + $0x38] sm:$0xf]
    %v8231 = vld [vmem:[%s8215 + $0x3c] sm:$0xf]
    %v8248 = vunpack.c.l.b16 %v8216
    %v8249 = vunpack.c.l.b16 %v8217
    %v8250 = vunpack.c.l.b16 %v8218
    %v8251 = vunpack.c.l.b16 %v8219
    %v8252 = vunpack.c.l.b16 %v8220
    %v8253 = vunpack.c.l.b16 %v8221
    %v8254 = vunpack.c.l.b16 %v8222
    %v8255 = vunpack.c.l.b16 %v8223
    %v8256 = vunpack.c.l.b16 %v8224
    %v8257 = vunpack.c.l.b16 %v8225
    %v8258 = vunpack.c.l.b16 %v8226
    %v8259 = vunpack.c.l.b16 %v8227
    %v8260 = vunpack.c.l.b16 %v8228
    %v8261 = vunpack.c.l.b16 %v8229
    %v8262 = vunpack.c.l.b16 %v8230
    %v8263 = vunpack.c.l.b16 %v8231
    %v8264 = vpack.c.b16 %v8249, %v8248
    %v8265 = vpack.c.b16 %v8251, %v8250
    %v8266 = vpack.c.b16 %v8253, %v8252
    %v8267 = vpack.c.b16 %v8255, %v8254
    %v8268 = vpack.c.b16 %v8257, %v8256
    %v8269 = vpack.c.b16 %v8259, %v8258
    %v8270 = vpack.c.b16 %v8261, %v8260
    %v8271 = vpack.c.b16 %v8263, %v8262
    %8280 = vmatprep.subr.bf16.mxu0 0
    %8281 = vmatpush1.bf16.msra.mxu0 %v8264
    %8282 = vmatprep.subr.bf16.mxu0 0
    %8283 = vmatpush1.bf16.msra.mxu0 %v8265
    %8284 = vmatprep.subr.bf16.mxu0 0
    %8285 = vmatpush1.bf16.msra.mxu0 %v8266
    %8286 = vmatprep.subr.bf16.mxu0 0
    %8287 = vmatpush1.bf16.msra.mxu0 %v8267
    %8288 = vmatprep.subr.bf16.mxu0 0
    %8289 = vmatpush1.bf16.msra.mxu0 %v8268
    %8290 = vmatprep.subr.bf16.mxu0 0
    %8291 = vmatpush1.bf16.msra.mxu0 %v8269
    %8292 = vmatprep.subr.bf16.mxu0 0
    %8293 = vmatpush1.bf16.msra.mxu0 %v8270
    %8294 = vmatprep.subr.bf16.mxu0 0
    %8295 = vmatpush1.bf16.msra.mxu0 %v8271
    %8296 = vmatprep.subr.bf16.mxu0 0
    %8297 = vmatpush1.bf16.msra.mxu0 0
    %8298 = vmatprep.subr.bf16.mxu0 0
    %8299 = vmatpush1.bf16.msra.mxu0 0
    %8300 = vmatprep.subr.bf16.mxu0 0
    %8301 = vmatpush1.bf16.msra.mxu0 0
    %8302 = vmatprep.subr.bf16.mxu0 0
    %8303 = vmatpush1.bf16.msra.mxu0 0
    %8304 = vmatprep.subr.bf16.mxu0 0
    %8305 = vmatpush1.bf16.msra.mxu0 0
    %8306 = vmatprep.subr.bf16.mxu0 0
    %8307 = vmatpush1.bf16.msra.mxu0 0
    %8308 = vmatprep.subr.bf16.mxu0 0
    %8309 = vmatpush1.bf16.msra.mxu0 0
    %8310 = vmatprep.subr.bf16.mxu0 0
    %8311 = vmatpush1.bf16.msra.mxu0 0
    %8312 = vmatprep.mubr.bf16.mxu0 0
    %8313 = vmatmul.mubr.bf16.gmra.mrb[0].mxu0 %v8214
    %v8314 = vpop.f32.mrb[0].mxu0
    %v8315 = vadd.f32 0.0, %v8314
    %v8316 = vpop.f32.mrb[0].mxu0
    %v8317 = vpop.f32.mrb[0].mxu0
    %v8318 = vpop.f32.mrb[0].mxu0
    %8319 = vdwg.mxu0
    %v8320 = vadd.f32 %v8164, %v8315
    %s8321 = scalar_lea.vmem [#allocation20], 12
    %v8322 = vld [vmem:[%s8321] sm:$0xf]
    %v8324 = vsel %vm7869, %v8322, 0
    %8326 = vmatprep.subr.bf16.mxu0 0
    %8327 = vmatpush1.bf16.msra.mxu0 %v7866
    %8328 = vmatprep.subr.bf16.mxu0 0
    %8329 = vmatpush1.bf16.msra.mxu0 %v7867
    %8330 = vmatprep.subr.bf16.mxu0 0
    %8331 = vmatpush1.bf16.msra.mxu0 0
    %8332 = vmatprep.subr.bf16.mxu0 0
    %8333 = vmatpush1.bf16.msra.mxu0 0
    %8334 = vmatprep.subr.bf16.mxu0 0
    %8335 = vmatpush1.bf16.msra.mxu0 0
    %8336 = vmatprep.subr.bf16.mxu0 0
    %8337 = vmatpush1.bf16.msra.mxu0 0
    %8338 = vmatprep.subr.bf16.mxu0 0
    %8339 = vmatpush1.bf16.msra.mxu0 0
    %8340 = vmatprep.subr.bf16.mxu0 0
    %8341 = vmatpush1.bf16.msra.mxu0 0
    %8342 = vmatprep.subr.bf16.mxu0 0
    %8343 = vmatpush1.bf16.msra.mxu0 0
    %8344 = vmatprep.subr.bf16.mxu0 0
    %8345 = vmatpush1.bf16.msra.mxu0 0
    %8346 = vmatprep.subr.bf16.mxu0 0
    %8347 = vmatpush1.bf16.msra.mxu0 0
    %8348 = vmatprep.subr.bf16.mxu0 0
    %8349 = vmatpush1.bf16.msra.mxu0 0
    %8350 = vmatprep.subr.bf16.mxu0 0
    %8351 = vmatpush1.bf16.msra.mxu0 0
    %8352 = vmatprep.subr.bf16.mxu0 0
    %8353 = vmatpush1.bf16.msra.mxu0 0
    %8354 = vmatprep.subr.bf16.mxu0 0
    %8355 = vmatpush1.bf16.msra.mxu0 0
    %8356 = vmatprep.subr.bf16.mxu0 0
    %8357 = vmatpush1.bf16.msra.mxu0 0
    %8358 = vmatprep.mubr.bf16.mxu0 0
    %8359 = vmatmul.mubr.bf16.gmra.mrb[0].mxu0 %v8324
    %v8360 = vpop.f32.mrb[0].mxu0
    %v8361 = vadd.f32 0.0, %v8360
    %v8362 = vpop.f32.mrb[0].mxu0
    %v8363 = vpop.f32.mrb[0].mxu0
    %v8364 = vpop.f32.mrb[0].mxu0
    %8365 = vdwg.mxu0
    %v8366 = vpack.c.bf16 %v8361, %v8361
    %s8367 = scalar_lea.vmem [#allocation22], 192
    %v8368 = vld [vmem:[%s8367] sm:$0xf]
    %v8369 = vld [vmem:[%s8367 + $0x4] sm:$0xf]
    %v8370 = vld [vmem:[%s8367 + $0x8] sm:$0xf]
    %v8371 = vld [vmem:[%s8367 + $0xc] sm:$0xf]
    %v8372 = vld [vmem:[%s8367 + $0x10] sm:$0xf]
    %v8373 = vld [vmem:[%s8367 + $0x14] sm:$0xf]
    %v8374 = vld [vmem:[%s8367 + $0x18] sm:$0xf]
    %v8375 = vld [vmem:[%s8367 + $0x1c] sm:$0xf]
    %v8376 = vld [vmem:[%s8367 + $0x20] sm:$0xf]
    %v8377 = vld [vmem:[%s8367 + $0x24] sm:$0xf]
    %v8378 = vld [vmem:[%s8367 + $0x28] sm:$0xf]
    %v8379 = vld [vmem:[%s8367 + $0x2c] sm:$0xf]
    %v8380 = vld [vmem:[%s8367 + $0x30] sm:$0xf]
    %v8381 = vld [vmem:[%s8367 + $0x34] sm:$0xf]
    %v8382 = vld [vmem:[%s8367 + $0x38] sm:$0xf]
    %v8383 = vld [vmem:[%s8367 + $0x3c] sm:$0xf]
    %v8400 = vunpack.c.l.b16 %v8368
    %v8401 = vunpack.c.l.b16 %v8369
    %v8402 = vunpack.c.l.b16 %v8370
    %v8403 = vunpack.c.l.b16 %v8371
    %v8404 = vunpack.c.l.b16 %v8372
    %v8405 = vunpack.c.l.b16 %v8373
    %v8406 = vunpack.c.l.b16 %v8374
    %v8407 = vunpack.c.l.b16 %v8375
    %v8408 = vunpack.c.l.b16 %v8376
    %v8409 = vunpack.c.l.b16 %v8377
    %v8410 = vunpack.c.l.b16 %v8378
    %v8411 = vunpack.c.l.b16 %v8379
    %v8412 = vunpack.c.l.b16 %v8380
    %v8413 = vunpack.c.l.b16 %v8381
    %v8414 = vunpack.c.l.b16 %v8382
    %v8415 = vunpack.c.l.b16 %v8383
    %v8416 = vpack.c.b16 %v8401, %v8400
    %v8417 = vpack.c.b16 %v8403, %v8402
    %v8418 = vpack.c.b16 %v8405, %v8404
    %v8419 = vpack.c.b16 %v8407, %v8406
    %v8420 = vpack.c.b16 %v8409, %v8408
    %v8421 = vpack.c.b16 %v8411, %v8410
    %v8422 = vpack.c.b16 %v8413, %v8412
    %v8423 = vpack.c.b16 %v8415, %v8414
    %8432 = vmatprep.subr.bf16.mxu0 0
    %8433 = vmatpush1.bf16.msra.mxu0 %v8416
    %8434 = vmatprep.subr.bf16.mxu0 0
    %8435 = vmatpush1.bf16.msra.mxu0 %v8417
    %8436 = vmatprep.subr.bf16.mxu0 0
    %8437 = vmatpush1.bf16.msra.mxu0 %v8418
    %8438 = vmatprep.subr.bf16.mxu0 0
    %8439 = vmatpush1.bf16.msra.mxu0 %v8419
    %8440 = vmatprep.subr.bf16.mxu0 0
    %8441 = vmatpush1.bf16.msra.mxu0 %v8420
    %8442 = vmatprep.subr.bf16.mxu0 0
    %8443 = vmatpush1.bf16.msra.mxu0 %v8421
    %8444 = vmatprep.subr.bf16.mxu0 0
    %8445 = vmatpush1.bf16.msra.mxu0 %v8422
    %8446 = vmatprep.subr.bf16.mxu0 0
    %8447 = vmatpush1.bf16.msra.mxu0 %v8423
    %8448 = vmatprep.subr.bf16.mxu0 0
    %8449 = vmatpush1.bf16.msra.mxu0 0
    %8450 = vmatprep.subr.bf16.mxu0 0
    %8451 = vmatpush1.bf16.msra.mxu0 0
    %8452 = vmatprep.subr.bf16.mxu0 0
    %8453 = vmatpush1.bf16.msra.mxu0 0
    %8454 = vmatprep.subr.bf16.mxu0 0
    %8455 = vmatpush1.bf16.msra.mxu0 0
    %8456 = vmatprep.subr.bf16.mxu0 0
    %8457 = vmatpush1.bf16.msra.mxu0 0
    %8458 = vmatprep.subr.bf16.mxu0 0
    %8459 = vmatpush1.bf16.msra.mxu0 0
    %8460 = vmatprep.subr.bf16.mxu0 0
    %8461 = vmatpush1.bf16.msra.mxu0 0
    %8462 = vmatprep.subr.bf16.mxu0 0
    %8463 = vmatpush1.bf16.msra.mxu0 0
    %8464 = vmatprep.mubr.bf16.mxu0 0
    %8465 = vmatmul.mubr.bf16.gmra.mrb[0].mxu0 %v8366
    %v8466 = vpop.f32.mrb[0].mxu0
    %v8467 = vadd.f32 0.0, %v8466
    %v8468 = vpop.f32.mrb[0].mxu0
    %v8469 = vpop.f32.mrb[0].mxu0
    %v8470 = vpop.f32.mrb[0].mxu0
    %8471 = vdwg.mxu0
    %v8472 = vadd.f32 %v8320, %v8467
    %s8473 = scalar_lea.vmem [#allocation20], 16
    %v8474 = vld [vmem:[%s8473] sm:$0xf]
    %v8476 = vsel %vm7869, %v8474, 0
    %8478 = vmatprep.subr.bf16.mxu0 0
    %8479 = vmatpush1.bf16.msra.mxu0 %v7866
    %8480 = vmatprep.subr.bf16.mxu0 0
    %8481 = vmatpush1.bf16.msra.mxu0 %v7867
    %8482 = vmatprep.subr.bf16.mxu0 0
    %8483 = vmatpush1.bf16.msra.mxu0 0
    %8484 = vmatprep.subr.bf16.mxu0 0
    %8485 = vmatpush1.bf16.msra.mxu0 0
    %8486 = vmatprep.subr.bf16.mxu0 0
    %8487 = vmatpush1.bf16.msra.mxu0 0
    %8488 = vmatprep.subr.bf16.mxu0 0
    %8489 = vmatpush1.bf16.msra.mxu0 0
    %8490 = vmatprep.subr.bf16.mxu0 0
    %8491 = vmatpush1.bf16.msra.mxu0 0
    %8492 = vmatprep.subr.bf16.mxu0 0
    %8493 = vmatpush1.bf16.msra.mxu0 0
    %8494 = vmatprep.subr.bf16.mxu0 0
    %8495 = vmatpush1.bf16.msra.mxu0 0
    %8496 = vmatprep.subr.bf16.mxu0 0
    %8497 = vmatpush1.bf16.msra.mxu0 0
    %8498 = vmatprep.subr.bf16.mxu0 0
    %8499 = vmatpush1.bf16.msra.mxu0 0
    %8500 = vmatprep.subr.bf16.mxu0 0
    %8501 = vmatpush1.bf16.msra.mxu0 0
    %8502 = vmatprep.subr.bf16.mxu0 0
    %8503 = vmatpush1.bf16.msra.mxu0 0
    %8504 = vmatprep.subr.bf16.mxu0 0
    %8505 = vmatpush1.bf16.msra.mxu0 0
    %8506 = vmatprep.subr.bf16.mxu0 0
    %8507 = vmatpush1.bf16.msra.mxu0 0
    %8508 = vmatprep.subr.bf16.mxu0 0
    %8509 = vmatpush1.bf16.msra.mxu0 0
    %8510 = vmatprep.mubr.bf16.mxu0 0
    %8511 = vmatmul.mubr.bf16.gmra.mrb[0].mxu0 %v8476
    %v8512 = vpop.f32.mrb[0].mxu0
    %v8513 = vadd.f32 0.0, %v8512
    %v8514 = vpop.f32.mrb[0].mxu0
    %v8515 = vpop.f32.mrb[0].mxu0
    %v8516 = vpop.f32.mrb[0].mxu0
    %8517 = vdwg.mxu0
    %v8518 = vpack.c.bf16 %v8513, %v8513
    %s8519 = scalar_lea.vmem [#allocation22], 256
    %v8520 = vld [vmem:[%s8519] sm:$0xf]
    %v8521 = vld [vmem:[%s8519 + $0x4] sm:$0xf]
    %v8522 = vld [vmem:[%s8519 + $0x8] sm:$0xf]
    %v8523 = vld [vmem:[%s8519 + $0xc] sm:$0xf]
    %v8524 = vld [vmem:[%s8519 + $0x10] sm:$0xf]
    %v8525 = vld [vmem:[%s8519 + $0x14] sm:$0xf]
    %v8526 = vld [vmem:[%s8519 + $0x18] sm:$0xf]
    %v8527 = vld [vmem:[%s8519 + $0x1c] sm:$0xf]
    %v8528 = vld [vmem:[%s8519 + $0x20] sm:$0xf]
    %v8529 = vld [vmem:[%s8519 + $0x24] sm:$0xf]
    %v8530 = vld [vmem:[%s8519 + $0x28] sm:$0xf]
    %v8531 = vld [vmem:[%s8519 + $0x2c] sm:$0xf]
    %v8532 = vld [vmem:[%s8519 + $0x30] sm:$0xf]
    %v8533 = vld [vmem:[%s8519 + $0x34] sm:$0xf]
    %v8534 = vld [vmem:[%s8519 + $0x38] sm:$0xf]
    %v8535 = vld [vmem:[%s8519 + $0x3c] sm:$0xf]
    %v8552 = vunpack.c.l.b16 %v8520
    %v8553 = vunpack.c.l.b16 %v8521
    %v8554 = vunpack.c.l.b16 %v8522
    %v8555 = vunpack.c.l.b16 %v8523
    %v8556 = vunpack.c.l.b16 %v8524
    %v8557 = vunpack.c.l.b16 %v8525
    %v8558 = vunpack.c.l.b16 %v8526
    %v8559 = vunpack.c.l.b16 %v8527
    %v8560 = vunpack.c.l.b16 %v8528
    %v8561 = vunpack.c.l.b16 %v8529
    %v8562 = vunpack.c.l.b16 %v8530
    %v8563 = vunpack.c.l.b16 %v8531
    %v8564 = vunpack.c.l.b16 %v8532
    %v8565 = vunpack.c.l.b16 %v8533
    %v8566 = vunpack.c.l.b16 %v8534
    %v8567 = vunpack.c.l.b16 %v8535
    %v8568 = vpack.c.b16 %v8553, %v8552
    %v8569 = vpack.c.b16 %v8555, %v8554
    %v8570 = vpack.c.b16 %v8557, %v8556
    %v8571 = vpack.c.b16 %v8559, %v8558
    %v8572 = vpack.c.b16 %v8561, %v8560
    %v8573 = vpack.c.b16 %v8563, %v8562
    %v8574 = vpack.c.b16 %v8565, %v8564
    %v8575 = vpack.c.b16 %v8567, %v8566
    %8584 = vmatprep.subr.bf16.mxu0 0
    %8585 = vmatpush1.bf16.msra.mxu0 %v8568
    %8586 = vmatprep.subr.bf16.mxu0 0
    %8587 = vmatpush1.bf16.msra.mxu0 %v8569
    %8588 = vmatprep.subr.bf16.mxu0 0
    %8589 = vmatpush1.bf16.msra.mxu0 %v8570
    %8590 = vmatprep.subr.bf16.mxu0 0
    %8591 = vmatpush1.bf16.msra.mxu0 %v8571
    %8592 = vmatprep.subr.bf16.mxu0 0
    %8593 = vmatpush1.bf16.msra.mxu0 %v8572
    %8594 = vmatprep.subr.bf16.mxu0 0
    %8595 = vmatpush1.bf16.msra.mxu0 %v8573
    %8596 = vmatprep.subr.bf16.mxu0 0
    %8597 = vmatpush1.bf16.msra.mxu0 %v8574
    %8598 = vmatprep.subr.bf16.mxu0 0
    %8599 = vmatpush1.bf16.msra.mxu0 %v8575
    %8600 = vmatprep.subr.bf16.mxu0 0
    %8601 = vmatpush1.bf16.msra.mxu0 0
    %8602 = vmatprep.subr.bf16.mxu0 0
    %8603 = vmatpush1.bf16.msra.mxu0 0
    %8604 = vmatprep.subr.bf16.mxu0 0
    %8605 = vmatpush1.bf16.msra.mxu0 0
    %8606 = vmatprep.subr.bf16.mxu0 0
    %8607 = vmatpush1.bf16.msra.mxu0 0
    %8608 = vmatprep.subr.bf16.mxu0 0
    %8609 = vmatpush1.bf16.msra.mxu0 0
    %8610 = vmatprep.subr.bf16.mxu0 0
    %8611 = vmatpush1.bf16.msra.mxu0 0
    %8612 = vmatprep.subr.bf16.mxu0 0
    %8613 = vmatpush1.bf16.msra.mxu0 0
    %8614 = vmatprep.subr.bf16.mxu0 0
    %8615 = vmatpush1.bf16.msra.mxu0 0
    %8616 = vmatprep.mubr.bf16.mxu0 0
    %8617 = vmatmul.mubr.bf16.gmra.mrb[0].mxu0 %v8518
    %v8618 = vpop.f32.mrb[0].mxu0
    %v8619 = vadd.f32 0.0, %v8618
    %v8620 = vpop.f32.mrb[0].mxu0
    %v8621 = vpop.f32.mrb[0].mxu0
    %v8622 = vpop.f32.mrb[0].mxu0
    %8623 = vdwg.mxu0
    %v8624 = vadd.f32 %v8472, %v8619
    %s8625 = scalar_lea.vmem [#allocation20], 20
    %v8626 = vld [vmem:[%s8625] sm:$0xf]
    %v8628 = vsel %vm7869, %v8626, 0
    %8630 = vmatprep.subr.bf16.mxu0 0
    %8631 = vmatpush1.bf16.msra.mxu0 %v7866
    %8632 = vmatprep.subr.bf16.mxu0 0
    %8633 = vmatpush1.bf16.msra.mxu0 %v7867
    %8634 = vmatprep.subr.bf16.mxu0 0
    %8635 = vmatpush1.bf16.msra.mxu0 0
    %8636 = vmatprep.subr.bf16.mxu0 0
    %8637 = vmatpush1.bf16.msra.mxu0 0
    %8638 = vmatprep.subr.bf16.mxu0 0
    %8639 = vmatpush1.bf16.msra.mxu0 0
    %8640 = vmatprep.subr.bf16.mxu0 0
    %8641 = vmatpush1.bf16.msra.mxu0 0
    %8642 = vmatprep.subr.bf16.mxu0 0
    %8643 = vmatpush1.bf16.msra.mxu0 0
    %8644 = vmatprep.subr.bf16.mxu0 0
    %8645 = vmatpush1.bf16.msra.mxu0 0
    %8646 = vmatprep.subr.bf16.mxu0 0
    %8647 = vmatpush1.bf16.msra.mxu0 0
    %8648 = vmatprep.subr.bf16.mxu0 0
    %8649 = vmatpush1.bf16.msra.mxu0 0
    %8650 = vmatprep.subr.bf16.mxu0 0
    %8651 = vmatpush1.bf16.msra.mxu0 0
    %8652 = vmatprep.subr.bf16.mxu0 0
    %8653 = vmatpush1.bf16.msra.mxu0 0
    %8654 = vmatprep.subr.bf16.mxu0 0
    %8655 = vmatpush1.bf16.msra.mxu0 0
    %8656 = vmatprep.subr.bf16.mxu0 0
    %8657 = vmatpush1.bf16.msra.mxu0 0
    %8658 = vmatprep.subr.bf16.mxu0 0
    %8659 = vmatpush1.bf16.msra.mxu0 0
    %8660 = vmatprep.subr.bf16.mxu0 0
    %8661 = vmatpush1.bf16.msra.mxu0 0
    %8662 = vmatprep.mubr.bf16.mxu0 0
    %8663 = vmatmul.mubr.bf16.gmra.mrb[0].mxu0 %v8628
    %v8664 = vpop.f32.mrb[0].mxu0
    %v8665 = vadd.f32 0.0, %v8664
    %v8666 = vpop.f32.mrb[0].mxu0
    %v8667 = vpop.f32.mrb[0].mxu0
    %v8668 = vpop.f32.mrb[0].mxu0
    %8669 = vdwg.mxu0
    %v8670 = vpack.c.bf16 %v8665, %v8665
    %s8671 = scalar_lea.vmem [#allocation22], 320
    %v8672 = vld [vmem:[%s8671] sm:$0xf]
    %v8673 = vld [vmem:[%s8671 + $0x4] sm:$0xf]
    %v8674 = vld [vmem:[%s8671 + $0x8] sm:$0xf]
    %v8675 = vld [vmem:[%s8671 + $0xc] sm:$0xf]
    %v8676 = vld [vmem:[%s8671 + $0x10] sm:$0xf]
    %v8677 = vld [vmem:[%s8671 + $0x14] sm:$0xf]
    %v8678 = vld [vmem:[%s8671 + $0x18] sm:$0xf]
    %v8679 = vld [vmem:[%s8671 + $0x1c] sm:$0xf]
    %v8680 = vld [vmem:[%s8671 + $0x20] sm:$0xf]
    %v8681 = vld [vmem:[%s8671 + $0x24] sm:$0xf]
    %v8682 = vld [vmem:[%s8671 + $0x28] sm:$0xf]
    %v8683 = vld [vmem:[%s8671 + $0x2c] sm:$0xf]
    %v8684 = vld [vmem:[%s8671 + $0x30] sm:$0xf]
    %v8685 = vld [vmem:[%s8671 + $0x34] sm:$0xf]
    %v8686 = vld [vmem:[%s8671 + $0x38] sm:$0xf]
    %v8687 = vld [vmem:[%s8671 + $0x3c] sm:$0xf]
    %v8704 = vunpack.c.l.b16 %v8672
    %v8705 = vunpack.c.l.b16 %v8673
    %v8706 = vunpack.c.l.b16 %v8674
    %v8707 = vunpack.c.l.b16 %v8675
    %v8708 = vunpack.c.l.b16 %v8676
    %v8709 = vunpack.c.l.b16 %v8677
    %v8710 = vunpack.c.l.b16 %v8678
    %v8711 = vunpack.c.l.b16 %v8679
    %v8712 = vunpack.c.l.b16 %v8680
    %v8713 = vunpack.c.l.b16 %v8681
    %v8714 = vunpack.c.l.b16 %v8682
    %v8715 = vunpack.c.l.b16 %v8683
    %v8716 = vunpack.c.l.b16 %v8684
    %v8717 = vunpack.c.l.b16 %v8685
    %v8718 = vunpack.c.l.b16 %v8686
    %v8719 = vunpack.c.l.b16 %v8687
    %v8720 = vpack.c.b16 %v8705, %v8704
    %v8721 = vpack.c.b16 %v8707, %v8706
    %v8722 = vpack.c.b16 %v8709, %v8708
    %v8723 = vpack.c.b16 %v8711, %v8710
    %v8724 = vpack.c.b16 %v8713, %v8712
    %v8725 = vpack.c.b16 %v8715, %v8714
    %v8726 = vpack.c.b16 %v8717, %v8716
    %v8727 = vpack.c.b16 %v8719, %v8718
    %8736 = vmatprep.subr.bf16.mxu0 0
    %8737 = vmatpush1.bf16.msra.mxu0 %v8720
    %8738 = vmatprep.subr.bf16.mxu0 0
    %8739 = vmatpush1.bf16.msra.mxu0 %v8721
    %8740 = vmatprep.subr.bf16.mxu0 0
    %8741 = vmatpush1.bf16.msra.mxu0 %v8722
    %8742 = vmatprep.subr.bf16.mxu0 0
    %8743 = vmatpush1.bf16.msra.mxu0 %v8723
    %8744 = vmatprep.subr.bf16.mxu0 0
    %8745 = vmatpush1.bf16.msra.mxu0 %v8724
    %8746 = vmatprep.subr.bf16.mxu0 0
    %8747 = vmatpush1.bf16.msra.mxu0 %v8725
    %8748 = vmatprep.subr.bf16.mxu0 0
    %8749 = vmatpush1.bf16.msra.mxu0 %v8726
    %8750 = vmatprep.subr.bf16.mxu0 0
    %8751 = vmatpush1.bf16.msra.mxu0 %v8727
    %8752 = vmatprep.subr.bf16.mxu0 0
    %8753 = vmatpush1.bf16.msra.mxu0 0
    %8754 = vmatprep.subr.bf16.mxu0 0
    %8755 = vmatpush1.bf16.msra.mxu0 0
    %8756 = vmatprep.subr.bf16.mxu0 0
    %8757 = vmatpush1.bf16.msra.mxu0 0
    %8758 = vmatprep.subr.bf16.mxu0 0
    %8759 = vmatpush1.bf16.msra.mxu0 0
    %8760 = vmatprep.subr.bf16.mxu0 0
    %8761 = vmatpush1.bf16.msra.mxu0 0
    %8762 = vmatprep.subr.bf16.mxu0 0
    %8763 = vmatpush1.bf16.msra.mxu0 0
    %8764 = vmatprep.subr.bf16.mxu0 0
    %8765 = vmatpush1.bf16.msra.mxu0 0
    %8766 = vmatprep.subr.bf16.mxu0 0
    %8767 = vmatpush1.bf16.msra.mxu0 0
    %8768 = vmatprep.mubr.bf16.mxu0 0
    %8769 = vmatmul.mubr.bf16.gmra.mrb[0].mxu0 %v8670
    %v8770 = vpop.f32.mrb[0].mxu0
    %v8771 = vadd.f32 0.0, %v8770
    %v8772 = vpop.f32.mrb[0].mxu0
    %v8773 = vpop.f32.mrb[0].mxu0
    %v8774 = vpop.f32.mrb[0].mxu0
    %8775 = vdwg.mxu0
    %v8776 = vadd.f32 %v8624, %v8771
    %s8777 = scalar_lea.vmem [#allocation20], 24
    %v8778 = vld [vmem:[%s8777] sm:$0xf]
    %v8780 = vsel %vm7869, %v8778, 0
    %8782 = vmatprep.subr.bf16.mxu0 0
    %8783 = vmatpush1.bf16.msra.mxu0 %v7866
    %8784 = vmatprep.subr.bf16.mxu0 0
    %8785 = vmatpush1.bf16.msra.mxu0 %v7867
    %8786 = vmatprep.subr.bf16.mxu0 0
    %8787 = vmatpush1.bf16.msra.mxu0 0
    %8788 = vmatprep.subr.bf16.mxu0 0
    %8789 = vmatpush1.bf16.msra.mxu0 0
    %8790 = vmatprep.subr.bf16.mxu0 0
    %8791 = vmatpush1.bf16.msra.mxu0 0
    %8792 = vmatprep.subr.bf16.mxu0 0
    %8793 = vmatpush1.bf16.msra.mxu0 0
    %8794 = vmatprep.subr.bf16.mxu0 0
    %8795 = vmatpush1.bf16.msra.mxu0 0
    %8796 = vmatprep.subr.bf16.mxu0 0
    %8797 = vmatpush1.bf16.msra.mxu0 0
    %8798 = vmatprep.subr.bf16.mxu0 0
    %8799 = vmatpush1.bf16.msra.mxu0 0
    %8800 = vmatprep.subr.bf16.mxu0 0
    %8801 = vmatpush1.bf16.msra.mxu0 0
    %8802 = vmatprep.subr.bf16.mxu0 0
    %8803 = vmatpush1.bf16.msra.mxu0 0
    %8804 = vmatprep.subr.bf16.mxu0 0
    %8805 = vmatpush1.bf16.msra.mxu0 0
    %8806 = vmatprep.subr.bf16.mxu0 0
    %8807 = vmatpush1.bf16.msra.mxu0 0
    %8808 = vmatprep.subr.bf16.mxu0 0
    %8809 = vmatpush1.bf16.msra.mxu0 0
    %8810 = vmatprep.subr.bf16.mxu0 0
    %8811 = vmatpush1.bf16.msra.mxu0 0
    %8812 = vmatprep.subr.bf16.mxu0 0
    %8813 = vmatpush1.bf16.msra.mxu0 0
    %8814 = vmatprep.mubr.bf16.mxu0 0
    %8815 = vmatmul.mubr.bf16.gmra.mrb[0].mxu0 %v8780
    %v8816 = vpop.f32.mrb[0].mxu0
    %v8817 = vadd.f32 0.0, %v8816
    %v8818 = vpop.f32.mrb[0].mxu0
    %v8819 = vpop.f32.mrb[0].mxu0
    %v8820 = vpop.f32.mrb[0].mxu0
    %8821 = vdwg.mxu0
    %v8822 = vpack.c.bf16 %v8817, %v8817
    %s8823 = scalar_lea.vmem [#allocation22], 384
    %v8824 = vld [vmem:[%s8823] sm:$0xf]
    %v8825 = vld [vmem:[%s8823 + $0x4] sm:$0xf]
    %v8826 = vld [vmem:[%s8823 + $0x8] sm:$0xf]
    %v8827 = vld [vmem:[%s8823 + $0xc] sm:$0xf]
    %v8828 = vld [vmem:[%s8823 + $0x10] sm:$0xf]
    %v8829 = vld [vmem:[%s8823 + $0x14] sm:$0xf]
    %v8830 = vld [vmem:[%s8823 + $0x18] sm:$0xf]
    %v8831 = vld [vmem:[%s8823 + $0x1c] sm:$0xf]
    %v8832 = vld [vmem:[%s8823 + $0x20] sm:$0xf]
    %v8833 = vld [vmem:[%s8823 + $0x24] sm:$0xf]
    %v8834 = vld [vmem:[%s8823 + $0x28] sm:$0xf]
    %v8835 = vld [vmem:[%s8823 + $0x2c] sm:$0xf]
    %v8836 = vld [vmem:[%s8823 + $0x30] sm:$0xf]
    %v8837 = vld [vmem:[%s8823 + $0x34] sm:$0xf]
    %v8838 = vld [vmem:[%s8823 + $0x38] sm:$0xf]
    %v8839 = vld [vmem:[%s8823 + $0x3c] sm:$0xf]
    %v8856 = vunpack.c.l.b16 %v8824
    %v8857 = vunpack.c.l.b16 %v8825
    %v8858 = vunpack.c.l.b16 %v8826
    %v8859 = vunpack.c.l.b16 %v8827
    %v8860 = vunpack.c.l.b16 %v8828
    %v8861 = vunpack.c.l.b16 %v8829
    %v8862 = vunpack.c.l.b16 %v8830
    %v8863 = vunpack.c.l.b16 %v8831
    %v8864 = vunpack.c.l.b16 %v8832
    %v8865 = vunpack.c.l.b16 %v8833
    %v8866 = vunpack.c.l.b16 %v8834
    %v8867 = vunpack.c.l.b16 %v8835
    %v8868 = vunpack.c.l.b16 %v8836
    %v8869 = vunpack.c.l.b16 %v8837
    %v8870 = vunpack.c.l.b16 %v8838
    %v8871 = vunpack.c.l.b16 %v8839
    %v8872 = vpack.c.b16 %v8857, %v8856
    %v8873 = vpack.c.b16 %v8859, %v8858
    %v8874 = vpack.c.b16 %v8861, %v8860
    %v8875 = vpack.c.b16 %v8863, %v8862
    %v8876 = vpack.c.b16 %v8865, %v8864
    %v8877 = vpack.c.b16 %v8867, %v8866
    %v8878 = vpack.c.b16 %v8869, %v8868
    %v8879 = vpack.c.b16 %v8871, %v8870
    %8888 = vmatprep.subr.bf16.mxu0 0
    %8889 = vmatpush1.bf16.msra.mxu0 %v8872
    %8890 = vmatprep.subr.bf16.mxu0 0
    %8891 = vmatpush1.bf16.msra.mxu0 %v8873
    %8892 = vmatprep.subr.bf16.mxu0 0
    %8893 = vmatpush1.bf16.msra.mxu0 %v8874
    %8894 = vmatprep.subr.bf16.mxu0 0
    %8895 = vmatpush1.bf16.msra.mxu0 %v8875
    %8896 = vmatprep.subr.bf16.mxu0 0
    %8897 = vmatpush1.bf16.msra.mxu0 %v8876
    %8898 = vmatprep.subr.bf16.mxu0 0
    %8899 = vmatpush1.bf16.msra.mxu0 %v8877
    %8900 = vmatprep.subr.bf16.mxu0 0
    %8901 = vmatpush1.bf16.msra.mxu0 %v8878
    %8902 = vmatprep.subr.bf16.mxu0 0
    %8903 = vmatpush1.bf16.msra.mxu0 %v8879
    %8904 = vmatprep.subr.bf16.mxu0 0
    %8905 = vmatpush1.bf16.msra.mxu0 0
    %8906 = vmatprep.subr.bf16.mxu0 0
    %8907 = vmatpush1.bf16.msra.mxu0 0
    %8908 = vmatprep.subr.bf16.mxu0 0
    %8909 = vmatpush1.bf16.msra.mxu0 0
    %8910 = vmatprep.subr.bf16.mxu0 0
    %8911 = vmatpush1.bf16.msra.mxu0 0
    %8912 = vmatprep.subr.bf16.mxu0 0
    %8913 = vmatpush1.bf16.msra.mxu0 0
    %8914 = vmatprep.subr.bf16.mxu0 0
    %8915 = vmatpush1.bf16.msra.mxu0 0
    %8916 = vmatprep.subr.bf16.mxu0 0
    %8917 = vmatpush1.bf16.msra.mxu0 0
    %8918 = vmatprep.subr.bf16.mxu0 0
    %8919 = vmatpush1.bf16.msra.mxu0 0
    %8920 = vmatprep.mubr.bf16.mxu0 0
    %8921 = vmatmul.mubr.bf16.gmra.mrb[0].mxu0 %v8822
    %v8922 = vpop.f32.mrb[0].mxu0
    %v8923 = vadd.f32 0.0, %v8922
    %v8924 = vpop.f32.mrb[0].mxu0
    %v8925 = vpop.f32.mrb[0].mxu0
    %v8926 = vpop.f32.mrb[0].mxu0
    %8927 = vdwg.mxu0
    %v8928 = vadd.f32 %v8776, %v8923
    %s8929 = scalar_lea.vmem [#allocation20], 28
    %v8930 = vld [vmem:[%s8929] sm:$0xf]
    %v8932 = vsel %vm7869, %v8930, 0
    %8934 = vmatprep.subr.bf16.mxu0 0
    %8935 = vmatpush1.bf16.msra.mxu0 %v7866
    %8936 = vmatprep.subr.bf16.mxu0 0
    %8937 = vmatpush1.bf16.msra.mxu0 %v7867
    %8938 = vmatprep.subr.bf16.mxu0 0
    %8939 = vmatpush1.bf16.msra.mxu0 0
    %8940 = vmatprep.subr.bf16.mxu0 0
    %8941 = vmatpush1.bf16.msra.mxu0 0
    %8942 = vmatprep.subr.bf16.mxu0 0
    %8943 = vmatpush1.bf16.msra.mxu0 0
    %8944 = vmatprep.subr.bf16.mxu0 0
    %8945 = vmatpush1.bf16.msra.mxu0 0
    %8946 = vmatprep.subr.bf16.mxu0 0
    %8947 = vmatpush1.bf16.msra.mxu0 0
    %8948 = vmatprep.subr.bf16.mxu0 0
    %8949 = vmatpush1.bf16.msra.mxu0 0
    %8950 = vmatprep.subr.bf16.mxu0 0
    %8951 = vmatpush1.bf16.msra.mxu0 0
    %8952 = vmatprep.subr.bf16.mxu0 0
    %8953 = vmatpush1.bf16.msra.mxu0 0
    %8954 = vmatprep.subr.bf16.mxu0 0
    %8955 = vmatpush1.bf16.msra.mxu0 0
    %8956 = vmatprep.subr.bf16.mxu0 0
    %8957 = vmatpush1.bf16.msra.mxu0 0
    %8958 = vmatprep.subr.bf16.mxu0 0
    %8959 = vmatpush1.bf16.msra.mxu0 0
    %8960 = vmatprep.subr.bf16.mxu0 0
    %8961 = vmatpush1.bf16.msra.mxu0 0
    %8962 = vmatprep.subr.bf16.mxu0 0
    %8963 = vmatpush1.bf16.msra.mxu0 0
    %8964 = vmatprep.subr.bf16.mxu0 0
    %8965 = vmatpush1.bf16.msra.mxu0 0
    %8966 = vmatprep.mubr.bf16.mxu0 0
    %8967 = vmatmul.mubr.bf16.gmra.mrb[0].mxu0 %v8932
    %v8968 = vpop.f32.mrb[0].mxu0
    %v8969 = vadd.f32 0.0, %v8968
    %v8970 = vpop.f32.mrb[0].mxu0
    %v8971 = vpop.f32.mrb[0].mxu0
    %v8972 = vpop.f32.mrb[0].mxu0
    %8973 = vdwg.mxu0
    %v8974 = vpack.c.bf16 %v8969, %v8969
    %s8975 = scalar_lea.vmem [#allocation22], 448
    %v8976 = vld [vmem:[%s8975] sm:$0xf]
    %v8977 = vld [vmem:[%s8975 + $0x4] sm:$0xf]
    %v8978 = vld [vmem:[%s8975 + $0x8] sm:$0xf]
    %v8979 = vld [vmem:[%s8975 + $0xc] sm:$0xf]
    %v8980 = vld [vmem:[%s8975 + $0x10] sm:$0xf]
    %v8981 = vld [vmem:[%s8975 + $0x14] sm:$0xf]
    %v8982 = vld [vmem:[%s8975 + $0x18] sm:$0xf]
    %v8983 = vld [vmem:[%s8975 + $0x1c] sm:$0xf]
    %v8984 = vld [vmem:[%s8975 + $0x20] sm:$0xf]
    %v8985 = vld [vmem:[%s8975 + $0x24] sm:$0xf]
    %v8986 = vld [vmem:[%s8975 + $0x28] sm:$0xf]
    %v8987 = vld [vmem:[%s8975 + $0x2c] sm:$0xf]
    %v8988 = vld [vmem:[%s8975 + $0x30] sm:$0xf]
    %v8989 = vld [vmem:[%s8975 + $0x34] sm:$0xf]
    %v8990 = vld [vmem:[%s8975 + $0x38] sm:$0xf]
    %v8991 = vld [vmem:[%s8975 + $0x3c] sm:$0xf]
    %v9008 = vunpack.c.l.b16 %v8976
    %v9009 = vunpack.c.l.b16 %v8977
    %v9010 = vunpack.c.l.b16 %v8978
    %v9011 = vunpack.c.l.b16 %v8979
    %v9012 = vunpack.c.l.b16 %v8980
    %v9013 = vunpack.c.l.b16 %v8981
    %v9014 = vunpack.c.l.b16 %v8982
    %v9015 = vunpack.c.l.b16 %v8983
    %v9016 = vunpack.c.l.b16 %v8984
    %v9017 = vunpack.c.l.b16 %v8985
    %v9018 = vunpack.c.l.b16 %v8986
    %v9019 = vunpack.c.l.b16 %v8987
    %v9020 = vunpack.c.l.b16 %v8988
    %v9021 = vunpack.c.l.b16 %v8989
    %v9022 = vunpack.c.l.b16 %v8990
    %v9023 = vunpack.c.l.b16 %v8991
    %v9024 = vpack.c.b16 %v9009, %v9008
    %v9025 = vpack.c.b16 %v9011, %v9010
    %v9026 = vpack.c.b16 %v9013, %v9012
    %v9027 = vpack.c.b16 %v9015, %v9014
    %v9028 = vpack.c.b16 %v9017, %v9016
    %v9029 = vpack.c.b16 %v9019, %v9018
    %v9030 = vpack.c.b16 %v9021, %v9020
    %v9031 = vpack.c.b16 %v9023, %v9022
    %9040 = vmatprep.subr.bf16.mxu0 0
    %9041 = vmatpush1.bf16.msra.mxu0 %v9024
    %9042 = vmatprep.subr.bf16.mxu0 0
    %9043 = vmatpush1.bf16.msra.mxu0 %v9025
    %9044 = vmatprep.subr.bf16.mxu0 0
    %9045 = vmatpush1.bf16.msra.mxu0 %v9026
    %9046 = vmatprep.subr.bf16.mxu0 0
    %9047 = vmatpush1.bf16.msra.mxu0 %v9027
    %9048 = vmatprep.subr.bf16.mxu0 0
    %9049 = vmatpush1.bf16.msra.mxu0 %v9028
    %9050 = vmatprep.subr.bf16.mxu0 0
    %9051 = vmatpush1.bf16.msra.mxu0 %v9029
    %9052 = vmatprep.subr.bf16.mxu0 0
    %9053 = vmatpush1.bf16.msra.mxu0 %v9030
    %9054 = vmatprep.subr.bf16.mxu0 0
    %9055 = vmatpush1.bf16.msra.mxu0 %v9031
    %9056 = vmatprep.subr.bf16.mxu0 0
    %9057 = vmatpush1.bf16.msra.mxu0 0
    %9058 = vmatprep.subr.bf16.mxu0 0
    %9059 = vmatpush1.bf16.msra.mxu0 0
    %9060 = vmatprep.subr.bf16.mxu0 0
    %9061 = vmatpush1.bf16.msra.mxu0 0
    %9062 = vmatprep.subr.bf16.mxu0 0
    %9063 = vmatpush1.bf16.msra.mxu0 0
    %9064 = vmatprep.subr.bf16.mxu0 0
    %9065 = vmatpush1.bf16.msra.mxu0 0
    %9066 = vmatprep.subr.bf16.mxu0 0
    %9067 = vmatpush1.bf16.msra.mxu0 0
    %9068 = vmatprep.subr.bf16.mxu0 0
    %9069 = vmatpush1.bf16.msra.mxu0 0
    %9070 = vmatprep.subr.bf16.mxu0 0
    %9071 = vmatpush1.bf16.msra.mxu0 0
    %9072 = vmatprep.mubr.bf16.mxu0 0
    %9073 = vmatmul.mubr.bf16.gmra.mrb[0].mxu0 %v8974
    %v9074 = vpop.f32.mrb[0].mxu0
    %v9075 = vadd.f32 0.0, %v9074
    %v9076 = vpop.f32.mrb[0].mxu0
    %v9077 = vpop.f32.mrb[0].mxu0
    %v9078 = vpop.f32.mrb[0].mxu0
    %9079 = vdwg.mxu0
    %v9080 = vadd.f32 %v8928, %v9075
    %s9081 = scalar_lea.vmem [#allocation20], 32
    %v9082 = vld [vmem:[%s9081] sm:$0xf]
    %v9084 = vsel %vm7869, %v9082, 0
    %9086 = vmatprep.subr.bf16.mxu0 0
    %9087 = vmatpush1.bf16.msra.mxu0 %v7866
    %9088 = vmatprep.subr.bf16.mxu0 0
    %9089 = vmatpush1.bf16.msra.mxu0 %v7867
    %9090 = vmatprep.subr.bf16.mxu0 0
    %9091 = vmatpush1.bf16.msra.mxu0 0
    %9092 = vmatprep.subr.bf16.mxu0 0
    %9093 = vmatpush1.bf16.msra.mxu0 0
    %9094 = vmatprep.subr.bf16.mxu0 0
    %9095 = vmatpush1.bf16.msra.mxu0 0
    %9096 = vmatprep.subr.bf16.mxu0 0
    %9097 = vmatpush1.bf16.msra.mxu0 0
    %9098 = vmatprep.subr.bf16.mxu0 0
    %9099 = vmatpush1.bf16.msra.mxu0 0
    %9100 = vmatprep.subr.bf16.mxu0 0
    %9101 = vmatpush1.bf16.msra.mxu0 0
    %9102 = vmatprep.subr.bf16.mxu0 0
    %9103 = vmatpush1.bf16.msra.mxu0 0
    %9104 = vmatprep.subr.bf16.mxu0 0
    %9105 = vmatpush1.bf16.msra.mxu0 0
    %9106 = vmatprep.subr.bf16.mxu0 0
    %9107 = vmatpush1.bf16.msra.mxu0 0
    %9108 = vmatprep.subr.bf16.mxu0 0
    %9109 = vmatpush1.bf16.msra.mxu0 0
    %9110 = vmatprep.subr.bf16.mxu0 0
    %9111 = vmatpush1.bf16.msra.mxu0 0
    %9112 = vmatprep.subr.bf16.mxu0 0
    %9113 = vmatpush1.bf16.msra.mxu0 0
    %9114 = vmatprep.subr.bf16.mxu0 0
    %9115 = vmatpush1.bf16.msra.mxu0 0
    %9116 = vmatprep.subr.bf16.mxu0 0
    %9117 = vmatpush1.bf16.msra.mxu0 0
    %9118 = vmatprep.mubr.bf16.mxu0 0
    %9119 = vmatmul.mubr.bf16.gmra.mrb[0].mxu0 %v9084
    %v9120 = vpop.f32.mrb[0].mxu0
    %v9121 = vadd.f32 0.0, %v9120
    %v9122 = vpop.f32.mrb[0].mxu0
    %v9123 = vpop.f32.mrb[0].mxu0
    %v9124 = vpop.f32.mrb[0].mxu0
    %9125 = vdwg.mxu0
    %v9126 = vpack.c.bf16 %v9121, %v9121
    %s9127 = scalar_lea.vmem [#allocation22], 512
    %v9128 = vld [vmem:[%s9127] sm:$0xf]
    %v9129 = vld [vmem:[%s9127 + $0x4] sm:$0xf]
    %v9130 = vld [vmem:[%s9127 + $0x8] sm:$0xf]
    %v9131 = vld [vmem:[%s9127 + $0xc] sm:$0xf]
    %v9132 = vld [vmem:[%s9127 + $0x10] sm:$0xf]
    %v9133 = vld [vmem:[%s9127 + $0x14] sm:$0xf]
    %v9134 = vld [vmem:[%s9127 + $0x18] sm:$0xf]
    %v9135 = vld [vmem:[%s9127 + $0x1c] sm:$0xf]
    %v9136 = vld [vmem:[%s9127 + $0x20] sm:$0xf]
    %v9137 = vld [vmem:[%s9127 + $0x24] sm:$0xf]
    %v9138 = vld [vmem:[%s9127 + $0x28] sm:$0xf]
    %v9139 = vld [vmem:[%s9127 + $0x2c] sm:$0xf]
    %v9140 = vld [vmem:[%s9127 + $0x30] sm:$0xf]
    %v9141 = vld [vmem:[%s9127 + $0x34] sm:$0xf]
    %v9142 = vld [vmem:[%s9127 + $0x38] sm:$0xf]
    %v9143 = vld [vmem:[%s9127 + $0x3c] sm:$0xf]
    %v9160 = vunpack.c.l.b16 %v9128
    %v9161 = vunpack.c.l.b16 %v9129
    %v9162 = vunpack.c.l.b16 %v9130
    %v9163 = vunpack.c.l.b16 %v9131
    %v9164 = vunpack.c.l.b16 %v9132
    %v9165 = vunpack.c.l.b16 %v9133
    %v9166 = vunpack.c.l.b16 %v9134
    %v9167 = vunpack.c.l.b16 %v9135
    %v9168 = vunpack.c.l.b16 %v9136
    %v9169 = vunpack.c.l.b16 %v9137
    %v9170 = vunpack.c.l.b16 %v9138
    %v9171 = vunpack.c.l.b16 %v9139
    %v9172 = vunpack.c.l.b16 %v9140
    %v9173 = vunpack.c.l.b16 %v9141
    %v9174 = vunpack.c.l.b16 %v9142
    %v9175 = vunpack.c.l.b16 %v9143
    %v9176 = vpack.c.b16 %v9161, %v9160
    %v9177 = vpack.c.b16 %v9163, %v9162
    %v9178 = vpack.c.b16 %v9165, %v9164
    %v9179 = vpack.c.b16 %v9167, %v9166
    %v9180 = vpack.c.b16 %v9169, %v9168
    %v9181 = vpack.c.b16 %v9171, %v9170
    %v9182 = vpack.c.b16 %v9173, %v9172
    %v9183 = vpack.c.b16 %v9175, %v9174
    %9192 = vmatprep.subr.bf16.mxu0 0
    %9193 = vmatpush1.bf16.msra.mxu0 %v9176
    %9194 = vmatprep.subr.bf16.mxu0 0
    %9195 = vmatpush1.bf16.msra.mxu0 %v9177
    %9196 = vmatprep.subr.bf16.mxu0 0
    %9197 = vmatpush1.bf16.msra.mxu0 %v9178
    %9198 = vmatprep.subr.bf16.mxu0 0
    %9199 = vmatpush1.bf16.msra.mxu0 %v9179
    %9200 = vmatprep.subr.bf16.mxu0 0
    %9201 = vmatpush1.bf16.msra.mxu0 %v9180
    %9202 = vmatprep.subr.bf16.mxu0 0
    %9203 = vmatpush1.bf16.msra.mxu0 %v9181
    %9204 = vmatprep.subr.bf16.mxu0 0
    %9205 = vmatpush1.bf16.msra.mxu0 %v9182
    %9206 = vmatprep.subr.bf16.mxu0 0
    %9207 = vmatpush1.bf16.msra.mxu0 %v9183
    %9208 = vmatprep.subr.bf16.mxu0 0
    %9209 = vmatpush1.bf16.msra.mxu0 0
    %9210 = vmatprep.subr.bf16.mxu0 0
    %9211 = vmatpush1.bf16.msra.mxu0 0
    %9212 = vmatprep.subr.bf16.mxu0 0
    %9213 = vmatpush1.bf16.msra.mxu0 0
    %9214 = vmatprep.subr.bf16.mxu0 0
    %9215 = vmatpush1.bf16.msra.mxu0 0
    %9216 = vmatprep.subr.bf16.mxu0 0
    %9217 = vmatpush1.bf16.msra.mxu0 0
    %9218 = vmatprep.subr.bf16.mxu0 0
    %9219 = vmatpush1.bf16.msra.mxu0 0
    %9220 = vmatprep.subr.bf16.mxu0 0
    %9221 = vmatpush1.bf16.msra.mxu0 0
    %9222 = vmatprep.subr.bf16.mxu0 0
    %9223 = vmatpush1.bf16.msra.mxu0 0
    %9224 = vmatprep.mubr.bf16.mxu0 0
    %9225 = vmatmul.mubr.bf16.gmra.mrb[0].mxu0 %v9126
    %v9226 = vpop.f32.mrb[0].mxu0
    %v9227 = vadd.f32 0.0, %v9226
    %v9228 = vpop.f32.mrb[0].mxu0
    %v9229 = vpop.f32.mrb[0].mxu0
    %v9230 = vpop.f32.mrb[0].mxu0
    %9231 = vdwg.mxu0
    %v9232 = vadd.f32 %v9080, %v9227
    %v9233 = vld [vmem:[#allocation23] sm:$0x1]
    %v9235 = vlaneseq
    %v9236 = vshrl.u32 %v9235, 7
    %v9237 = vsub.s32 0, %v9236
    %v9238 = vrot.slane %v9233, %v9237
    %v9240 = vadd.f32 %v9232, %v9238
    %vm9241 = vcmp.ge.f32.partialorder %v9240, 0.0
    %v9242 = vmul.f32 %v9240, 0.01
    %v9243 = vsel %vm9241, %v9240, %v9242
    %v9244 = vrot.slane %v9243, 4
    %v9245 = vadd.f32 %v9243, %v9244
    %v9246 = vrot.slane %v9245, 2
    %v9247 = vadd.f32 %v9245, %v9246
    %v9248 = vrot.slane %v9247, 1
    %v9249 = vadd.f32 %v9247, %v9248
    %v9250 = vrcp.pop 8.0
    %v9251 = vmul.f32 %v9249, %v9250
    %v9252 = vsub.f32 %v9243, %v9251
    %v9253 = vmul.f32 %v9252, %v9252
    %v9254 = vrot.slane %v9253, 4
    %v9255 = vadd.f32 %v9253, %v9254
    %v9256 = vrot.slane %v9255, 2
    %v9257 = vadd.f32 %v9255, %v9256
    %v9258 = vrot.slane %v9257, 1
    %v9259 = vadd.f32 %v9257, %v9258
    %v9260 = vmul.f32 %v9259, %v9250
    %v9261 = vadd.f32 %v9260, 1e-05
    %v9262 = vrsqrt.pop %v9261
    %v9263 = vmul.f32 %v9252, %v9262
    %v9264 = vld [vmem:[#allocation25] sm:$0x1]
    %v9266 = vlaneseq
    %v9267 = vshrl.u32 %v9266, 7
    %v9268 = vsub.s32 0, %v9267
    %v9269 = vrot.slane %v9264, %v9268
    %v9271 = vmul.f32 %v9263, %v9269
    %v9272 = vld [vmem:[#allocation26] sm:$0x1]
    %v9274 = vlaneseq
    %v9275 = vshrl.u32 %v9274, 7
    %v9276 = vsub.s32 0, %v9275
    %v9277 = vrot.slane %v9272, %v9276
    %v9279 = vadd.f32 %v9271, %v9277
    %v9280 = vpack.c.bf16 %v9279, %v9279
    %s9281 = scalar_lea.vmem %s33, 4
    %v9282 = vld [vmem:[%s9281] sm:$0x1]
    %vm9283 = vcmask 64512
    %v9285 = vsel %vm9283, %v9282, 0
    %vm9287 = vcmask 1043456
    %v9289 = vsel %vm9287, %v9280, 0
    %9291 = vmatprep.subr.bf16.mxu0 0
    %9292 = vmatpush1.bf16.msra.mxu0 %v9289
    %9293 = vmatprep.subr.bf16.mxu0 0
    %9294 = vmatpush1.bf16.msra.mxu0 0
    %9295 = vmatprep.subr.bf16.mxu0 0
    %9296 = vmatpush1.bf16.msra.mxu0 0
    %9297 = vmatprep.subr.bf16.mxu0 0
    %9298 = vmatpush1.bf16.msra.mxu0 0
    %9299 = vmatprep.subr.bf16.mxu0 0
    %9300 = vmatpush1.bf16.msra.mxu0 0
    %9301 = vmatprep.subr.bf16.mxu0 0
    %9302 = vmatpush1.bf16.msra.mxu0 0
    %9303 = vmatprep.subr.bf16.mxu0 0
    %9304 = vmatpush1.bf16.msra.mxu0 0
    %9305 = vmatprep.subr.bf16.mxu0 0
    %9306 = vmatpush1.bf16.msra.mxu0 0
    %9307 = vmatprep.subr.bf16.mxu0 0
    %9308 = vmatpush1.bf16.msra.mxu0 0
    %9309 = vmatprep.subr.bf16.mxu0 0
    %9310 = vmatpush1.bf16.msra.mxu0 0
    %9311 = vmatprep.subr.bf16.mxu0 0
    %9312 = vmatpush1.bf16.msra.mxu0 0
    %9313 = vmatprep.subr.bf16.mxu0 0
    %9314 = vmatpush1.bf16.msra.mxu0 0
    %9315 = vmatprep.subr.bf16.mxu0 0
    %9316 = vmatpush1.bf16.msra.mxu0 0
    %9317 = vmatprep.subr.bf16.mxu0 0
    %9318 = vmatpush1.bf16.msra.mxu0 0
    %9319 = vmatprep.subr.bf16.mxu0 0
    %9320 = vmatpush1.bf16.msra.mxu0 0
    %9321 = vmatprep.subr.bf16.mxu0 0
    %9322 = vmatpush1.bf16.msra.mxu0 0
    %9323 = vmatprep.mubr.bf16.mxu0 0
    %9324 = vmatmul.mubr.bf16.gmra.mrb[0].mxu0 %v9285
    %v9325 = vpop.f32.mrb[0].mxu0
    %v9326 = vadd.f32 0.0, %v9325
    %v9327 = vpop.f32.mrb[0].mxu0
    %v9328 = vpop.f32.mrb[0].mxu0
    %v9329 = vpop.f32.mrb[0].mxu0
    %9330 = vdwg.mxu0
    %v9331 = vpack.c.bf16 %v9326, %v9326
    %s9332 = scalar_lea.vmem %s35, 256
    %v9333 = vld [vmem:[%s9332] sm:$0xf]
    %v9334 = vld [vmem:[%s9332 + $0x4] sm:$0xf]
    %v9335 = vld [vmem:[%s9332 + $0x8] sm:$0xf]
    %v9336 = vld [vmem:[%s9332 + $0xc] sm:$0xf]
    %v9337 = vld [vmem:[%s9332 + $0x10] sm:$0xf]
    %v9338 = vld [vmem:[%s9332 + $0x14] sm:$0xf]
    %v9339 = vld [vmem:[%s9332 + $0x18] sm:$0xf]
    %v9340 = vld [vmem:[%s9332 + $0x1c] sm:$0xf]
    %v9341 = vld [vmem:[%s9332 + $0x20] sm:$0xf]
    %v9342 = vld [vmem:[%s9332 + $0x24] sm:$0xf]
    %v9343 = vld [vmem:[%s9332 + $0x28] sm:$0xf]
    %v9344 = vld [vmem:[%s9332 + $0x2c] sm:$0xf]
    %v9345 = vld [vmem:[%s9332 + $0x30] sm:$0xf]
    %v9346 = vld [vmem:[%s9332 + $0x34] sm:$0xf]
    %v9347 = vld [vmem:[%s9332 + $0x38] sm:$0xf]
    %v9348 = vld [vmem:[%s9332 + $0x3c] sm:$0xf]
    %s9349 = scalar_lea.vmem %s33, 5
    %v9350 = vld [vmem:[%s9349] sm:$0x1]
    %v9352 = vsel %vm9283, %v9350, 0
    %9354 = vmatprep.subr.bf16.mxu0 0
    %9355 = vmatpush1.bf16.msra.mxu0 %v9289
    %9356 = vmatprep.subr.bf16.mxu0 0
    %9357 = vmatpush1.bf16.msra.mxu0 0
    %9358 = vmatprep.subr.bf16.mxu0 0
    %9359 = vmatpush1.bf16.msra.mxu0 0
    %9360 = vmatprep.subr.bf16.mxu0 0
    %9361 = vmatpush1.bf16.msra.mxu0 0
    %9362 = vmatprep.subr.bf16.mxu0 0
    %9363 = vmatpush1.bf16.msra.mxu0 0
    %9364 = vmatprep.subr.bf16.mxu0 0
    %9365 = vmatpush1.bf16.msra.mxu0 0
    %9366 = vmatprep.subr.bf16.mxu0 0
    %9367 = vmatpush1.bf16.msra.mxu0 0
    %9368 = vmatprep.subr.bf16.mxu0 0
    %9369 = vmatpush1.bf16.msra.mxu0 0
    %9370 = vmatprep.subr.bf16.mxu0 0
    %9371 = vmatpush1.bf16.msra.mxu0 0
    %9372 = vmatprep.subr.bf16.mxu0 0
    %9373 = vmatpush1.bf16.msra.mxu0 0
    %9374 = vmatprep.subr.bf16.mxu0 0
    %9375 = vmatpush1.bf16.msra.mxu0 0
    %9376 = vmatprep.subr.bf16.mxu0 0
    %9377 = vmatpush1.bf16.msra.mxu0 0
    %9378 = vmatprep.subr.bf16.mxu0 0
    %9379 = vmatpush1.bf16.msra.mxu0 0
    %9380 = vmatprep.subr.bf16.mxu0 0
    %9381 = vmatpush1.bf16.msra.mxu0 0
    %9382 = vmatprep.subr.bf16.mxu0 0
    %9383 = vmatpush1.bf16.msra.mxu0 0
    %9384 = vmatprep.subr.bf16.mxu0 0
    %9385 = vmatpush1.bf16.msra.mxu0 0
    %9386 = vmatprep.mubr.bf16.mxu0 0
    %9387 = vmatmul.mubr.bf16.gmra.mrb[0].mxu0 %v9352
    %v9388 = vpop.f32.mrb[0].mxu0
    %v9389 = vadd.f32 0.0, %v9388
    %v9390 = vpop.f32.mrb[0].mxu0
    %v9391 = vpop.f32.mrb[0].mxu0
    %v9392 = vpop.f32.mrb[0].mxu0
    %9393 = vdwg.mxu0
    %v9394 = vpack.c.bf16 %v9389, %v9389
    %s9395 = scalar_lea.vmem %s35, 320
    %v9396 = vld [vmem:[%s9395] sm:$0xf]
    %v9397 = vld [vmem:[%s9395 + $0x4] sm:$0xf]
    %v9398 = vld [vmem:[%s9395 + $0x8] sm:$0xf]
    %v9399 = vld [vmem:[%s9395 + $0xc] sm:$0xf]
    %v9400 = vld [vmem:[%s9395 + $0x10] sm:$0xf]
    %v9401 = vld [vmem:[%s9395 + $0x14] sm:$0xf]
    %v9402 = vld [vmem:[%s9395 + $0x18] sm:$0xf]
    %v9403 = vld [vmem:[%s9395 + $0x1c] sm:$0xf]
    %v9404 = vld [vmem:[%s9395 + $0x20] sm:$0xf]
    %v9405 = vld [vmem:[%s9395 + $0x24] sm:$0xf]
    %v9406 = vld [vmem:[%s9395 + $0x28] sm:$0xf]
    %v9407 = vld [vmem:[%s9395 + $0x2c] sm:$0xf]
    %v9408 = vld [vmem:[%s9395 + $0x30] sm:$0xf]
    %v9409 = vld [vmem:[%s9395 + $0x34] sm:$0xf]
    %v9410 = vld [vmem:[%s9395 + $0x38] sm:$0xf]
    %v9411 = vld [vmem:[%s9395 + $0x3c] sm:$0xf]
    %v9428 = vunpack.c.l.b16 %v9396
    %v9429 = vunpack.c.l.b16 %v9397
    %v9430 = vunpack.c.l.b16 %v9398
    %v9431 = vunpack.c.l.b16 %v9399
    %v9432 = vunpack.c.l.b16 %v9400
    %v9433 = vunpack.c.l.b16 %v9401
    %v9434 = vunpack.c.l.b16 %v9402
    %v9435 = vunpack.c.l.b16 %v9403
    %v9436 = vunpack.c.l.b16 %v9404
    %v9437 = vunpack.c.l.b16 %v9405
    %v9438 = vunpack.c.l.b16 %v9406
    %v9439 = vunpack.c.l.b16 %v9407
    %v9440 = vunpack.c.l.b16 %v9408
    %v9441 = vunpack.c.l.b16 %v9409
    %v9442 = vunpack.c.l.b16 %v9410
    %v9443 = vunpack.c.l.b16 %v9411
    %v9444 = vpack.c.b16 %v9429, %v9428
    %v9445 = vpack.c.b16 %v9431, %v9430
    %v9446 = vpack.c.b16 %v9433, %v9432
    %v9447 = vpack.c.b16 %v9435, %v9434
    %v9448 = vpack.c.b16 %v9437, %v9436
    %v9449 = vpack.c.b16 %v9439, %v9438
    %v9450 = vpack.c.b16 %v9441, %v9440
    %v9451 = vpack.c.b16 %v9443, %v9442
    %9460 = vmatprep.subr.bf16.mxu0 0
    %9461 = vmatpush1.bf16.msra.mxu0 %v9444
    %9462 = vmatprep.subr.bf16.mxu0 0
    %9463 = vmatpush1.bf16.msra.mxu0 %v9445
    %9464 = vmatprep.subr.bf16.mxu0 0
    %9465 = vmatpush1.bf16.msra.mxu0 %v9446
    %9466 = vmatprep.subr.bf16.mxu0 0
    %9467 = vmatpush1.bf16.msra.mxu0 %v9447
    %9468 = vmatprep.subr.bf16.mxu0 0
    %9469 = vmatpush1.bf16.msra.mxu0 %v9448
    %9470 = vmatprep.subr.bf16.mxu0 0
    %9471 = vmatpush1.bf16.msra.mxu0 %v9449
    %9472 = vmatprep.subr.bf16.mxu0 0
    %9473 = vmatpush1.bf16.msra.mxu0 %v9450
    %9474 = vmatprep.subr.bf16.mxu0 0
    %9475 = vmatpush1.bf16.msra.mxu0 %v9451
    %9476 = vmatprep.subr.bf16.mxu0 0
    %9477 = vmatpush1.bf16.msra.mxu0 0
    %9478 = vmatprep.subr.bf16.mxu0 0
    %9479 = vmatpush1.bf16.msra.mxu0 0
    %9480 = vmatprep.subr.bf16.mxu0 0
    %9481 = vmatpush1.bf16.msra.mxu0 0
    %9482 = vmatprep.subr.bf16.mxu0 0
    %9483 = vmatpush1.bf16.msra.mxu0 0
    %9484 = vmatprep.subr.bf16.mxu0 0
    %9485 = vmatpush1.bf16.msra.mxu0 0
    %9486 = vmatprep.subr.bf16.mxu0 0
    %9487 = vmatpush1.bf16.msra.mxu0 0
    %9488 = vmatprep.subr.bf16.mxu0 0
    %9489 = vmatpush1.bf16.msra.mxu0 0
    %9490 = vmatprep.subr.bf16.mxu0 0
    %9491 = vmatpush1.bf16.msra.mxu0 0
    %9492 = vmatprep.mubr.bf16.mxu0 0
    %9493 = vmatmul.mubr.bf16.gmra.mrb[0].mxu0 %v9394
    %v9494 = vpop.f32.mrb[0].mxu0
    %v9495 = vadd.f32 0.0, %v9494
    %v9496 = vpop.f32.mrb[0].mxu0
    %v9497 = vpop.f32.mrb[0].mxu0
    %v9498 = vpop.f32.mrb[0].mxu0
    %9499 = vdwg.mxu0
    %v9516 = vunpack.c.l.b16 %v9333
    %v9517 = vunpack.c.l.b16 %v9334
    %v9518 = vunpack.c.l.b16 %v9335
    %v9519 = vunpack.c.l.b16 %v9336
    %v9520 = vunpack.c.l.b16 %v9337
    %v9521 = vunpack.c.l.b16 %v9338
    %v9522 = vunpack.c.l.b16 %v9339
    %v9523 = vunpack.c.l.b16 %v9340
    %v9524 = vunpack.c.l.b16 %v9341
    %v9525 = vunpack.c.l.b16 %v9342
    %v9526 = vunpack.c.l.b16 %v9343
    %v9527 = vunpack.c.l.b16 %v9344
    %v9528 = vunpack.c.l.b16 %v9345
    %v9529 = vunpack.c.l.b16 %v9346
    %v9530 = vunpack.c.l.b16 %v9347
    %v9531 = vunpack.c.l.b16 %v9348
    %v9532 = vpack.c.b16 %v9517, %v9516
    %v9533 = vpack.c.b16 %v9519, %v9518
    %v9534 = vpack.c.b16 %v9521, %v9520
    %v9535 = vpack.c.b16 %v9523, %v9522
    %v9536 = vpack.c.b16 %v9525, %v9524
    %v9537 = vpack.c.b16 %v9527, %v9526
    %v9538 = vpack.c.b16 %v9529, %v9528
    %v9539 = vpack.c.b16 %v9531, %v9530
    %9548 = vmatprep.subr.bf16.mxu0 0
    %9549 = vmatpush1.bf16.msra.mxu0 %v9532
    %9550 = vmatprep.subr.bf16.mxu0 0
    %9551 = vmatpush1.bf16.msra.mxu0 %v9533
    %9552 = vmatprep.subr.bf16.mxu0 0
    %9553 = vmatpush1.bf16.msra.mxu0 %v9534
    %9554 = vmatprep.subr.bf16.mxu0 0
    %9555 = vmatpush1.bf16.msra.mxu0 %v9535
    %9556 = vmatprep.subr.bf16.mxu0 0
    %9557 = vmatpush1.bf16.msra.mxu0 %v9536
    %9558 = vmatprep.subr.bf16.mxu0 0
    %9559 = vmatpush1.bf16.msra.mxu0 %v9537
    %9560 = vmatprep.subr.bf16.mxu0 0
    %9561 = vmatpush1.bf16.msra.mxu0 %v9538
    %9562 = vmatprep.subr.bf16.mxu0 0
    %9563 = vmatpush1.bf16.msra.mxu0 %v9539
    %9564 = vmatprep.subr.bf16.mxu0 0
    %9565 = vmatpush1.bf16.msra.mxu0 0
    %9566 = vmatprep.subr.bf16.mxu0 0
    %9567 = vmatpush1.bf16.msra.mxu0 0
    %9568 = vmatprep.subr.bf16.mxu0 0
    %9569 = vmatpush1.bf16.msra.mxu0 0
    %9570 = vmatprep.subr.bf16.mxu0 0
    %9571 = vmatpush1.bf16.msra.mxu0 0
    %9572 = vmatprep.subr.bf16.mxu0 0
    %9573 = vmatpush1.bf16.msra.mxu0 0
    %9574 = vmatprep.subr.bf16.mxu0 0
    %9575 = vmatpush1.bf16.msra.mxu0 0
    %9576 = vmatprep.subr.bf16.mxu0 0
    %9577 = vmatpush1.bf16.msra.mxu0 0
    %9578 = vmatprep.subr.bf16.mxu0 0
    %9579 = vmatpush1.bf16.msra.mxu0 0
    %9580 = vmatprep.mubr.bf16.mxu0 0
    %9581 = vmatmul.mubr.bf16.gmra.mrb[0].mxu0 %v9331
    %v9582 = vpop.f32.mrb[0].mxu0
    %v9583 = vadd.f32 %v9495, %v9582
    %v9584 = vpop.f32.mrb[0].mxu0
    %v9585 = vpop.f32.mrb[0].mxu0
    %v9586 = vpop.f32.mrb[0].mxu0
    %9587 = vdwg.mxu0
    %s9588 = scalar_lea.vmem %s33, 7
    %v9589 = vld [vmem:[%s9588] sm:$0x1]
    %v9591 = vsel %vm9283, %v9589, 0
    %9593 = vmatprep.subr.bf16.mxu0 0
    %9594 = vmatpush1.bf16.msra.mxu0 %v9289
    %9595 = vmatprep.subr.bf16.mxu0 0
    %9596 = vmatpush1.bf16.msra.mxu0 0
    %9597 = vmatprep.subr.bf16.mxu0 0
    %9598 = vmatpush1.bf16.msra.mxu0 0
    %9599 = vmatprep.subr.bf16.mxu0 0
    %9600 = vmatpush1.bf16.msra.mxu0 0
    %9601 = vmatprep.subr.bf16.mxu0 0
    %9602 = vmatpush1.bf16.msra.mxu0 0
    %9603 = vmatprep.subr.bf16.mxu0 0
    %9604 = vmatpush1.bf16.msra.mxu0 0
    %9605 = vmatprep.subr.bf16.mxu0 0
    %9606 = vmatpush1.bf16.msra.mxu0 0
    %9607 = vmatprep.subr.bf16.mxu0 0
    %9608 = vmatpush1.bf16.msra.mxu0 0
    %9609 = vmatprep.subr.bf16.mxu0 0
    %9610 = vmatpush1.bf16.msra.mxu0 0
    %9611 = vmatprep.subr.bf16.mxu0 0
    %9612 = vmatpush1.bf16.msra.mxu0 0
    %9613 = vmatprep.subr.bf16.mxu0 0
    %9614 = vmatpush1.bf16.msra.mxu0 0
    %9615 = vmatprep.subr.bf16.mxu0 0
    %9616 = vmatpush1.bf16.msra.mxu0 0
    %9617 = vmatprep.subr.bf16.mxu0 0
    %9618 = vmatpush1.bf16.msra.mxu0 0
    %9619 = vmatprep.subr.bf16.mxu0 0
    %9620 = vmatpush1.bf16.msra.mxu0 0
    %9621 = vmatprep.subr.bf16.mxu0 0
    %9622 = vmatpush1.bf16.msra.mxu0 0
    %9623 = vmatprep.subr.bf16.mxu0 0
    %9624 = vmatpush1.bf16.msra.mxu0 0
    %9625 = vmatprep.mubr.bf16.mxu0 0
    %9626 = vmatmul.mubr.bf16.gmra.mrb[0].mxu0 %v9591
    %v9627 = vpop.f32.mrb[0].mxu0
    %v9628 = vadd.f32 0.0, %v9627
    %v9629 = vpop.f32.mrb[0].mxu0
    %v9630 = vpop.f32.mrb[0].mxu0
    %v9631 = vpop.f32.mrb[0].mxu0
    %9632 = vdwg.mxu0
    %v9633 = vpack.c.bf16 %v9628, %v9628
    %s9634 = scalar_lea.vmem %s35, 448
    %v9635 = vld [vmem:[%s9634] sm:$0xf]
    %v9636 = vld [vmem:[%s9634 + $0x4] sm:$0xf]
    %v9637 = vld [vmem:[%s9634 + $0x8] sm:$0xf]
    %v9638 = vld [vmem:[%s9634 + $0xc] sm:$0xf]
    %v9639 = vld [vmem:[%s9634 + $0x10] sm:$0xf]
    %v9640 = vld [vmem:[%s9634 + $0x14] sm:$0xf]
    %v9641 = vld [vmem:[%s9634 + $0x18] sm:$0xf]
    %v9642 = vld [vmem:[%s9634 + $0x1c] sm:$0xf]
    %v9643 = vld [vmem:[%s9634 + $0x20] sm:$0xf]
    %v9644 = vld [vmem:[%s9634 + $0x24] sm:$0xf]
    %v9645 = vld [vmem:[%s9634 + $0x28] sm:$0xf]
    %v9646 = vld [vmem:[%s9634 + $0x2c] sm:$0xf]
    %v9647 = vld [vmem:[%s9634 + $0x30] sm:$0xf]
    %v9648 = vld [vmem:[%s9634 + $0x34] sm:$0xf]
    %v9649 = vld [vmem:[%s9634 + $0x38] sm:$0xf]
    %v9650 = vld [vmem:[%s9634 + $0x3c] sm:$0xf]
    %v9667 = vunpack.c.l.b16 %v9635
    %v9668 = vunpack.c.l.b16 %v9636
    %v9669 = vunpack.c.l.b16 %v9637
    %v9670 = vunpack.c.l.b16 %v9638
    %v9671 = vunpack.c.l.b16 %v9639
    %v9672 = vunpack.c.l.b16 %v9640
    %v9673 = vunpack.c.l.b16 %v9641
    %v9674 = vunpack.c.l.b16 %v9642
    %v9675 = vunpack.c.l.b16 %v9643
    %v9676 = vunpack.c.l.b16 %v9644
    %v9677 = vunpack.c.l.b16 %v9645
    %v9678 = vunpack.c.l.b16 %v9646
    %v9679 = vunpack.c.l.b16 %v9647
    %v9680 = vunpack.c.l.b16 %v9648
    %v9681 = vunpack.c.l.b16 %v9649
    %v9682 = vunpack.c.l.b16 %v9650
    %v9683 = vpack.c.b16 %v9668, %v9667
    %v9684 = vpack.c.b16 %v9670, %v9669
    %v9685 = vpack.c.b16 %v9672, %v9671
    %v9686 = vpack.c.b16 %v9674, %v9673
    %v9687 = vpack.c.b16 %v9676, %v9675
    %v9688 = vpack.c.b16 %v9678, %v9677
    %v9689 = vpack.c.b16 %v9680, %v9679
    %v9690 = vpack.c.b16 %v9682, %v9681
    %9699 = vmatprep.subr.bf16.mxu0 0
    %9700 = vmatpush1.bf16.msra.mxu0 %v9683
    %9701 = vmatprep.subr.bf16.mxu0 0
    %9702 = vmatpush1.bf16.msra.mxu0 %v9684
    %9703 = vmatprep.subr.bf16.mxu0 0
    %9704 = vmatpush1.bf16.msra.mxu0 %v9685
    %9705 = vmatprep.subr.bf16.mxu0 0
    %9706 = vmatpush1.bf16.msra.mxu0 %v9686
    %9707 = vmatprep.subr.bf16.mxu0 0
    %9708 = vmatpush1.bf16.msra.mxu0 %v9687
    %9709 = vmatprep.subr.bf16.mxu0 0
    %9710 = vmatpush1.bf16.msra.mxu0 %v9688
    %9711 = vmatprep.subr.bf16.mxu0 0
    %9712 = vmatpush1.bf16.msra.mxu0 %v9689
    %9713 = vmatprep.subr.bf16.mxu0 0
    %9714 = vmatpush1.bf16.msra.mxu0 %v9690
    %9715 = vmatprep.subr.bf16.mxu0 0
    %9716 = vmatpush1.bf16.msra.mxu0 0
    %9717 = vmatprep.subr.bf16.mxu0 0
    %9718 = vmatpush1.bf16.msra.mxu0 0
    %9719 = vmatprep.subr.bf16.mxu0 0
    %9720 = vmatpush1.bf16.msra.mxu0 0
    %9721 = vmatprep.subr.bf16.mxu0 0
    %9722 = vmatpush1.bf16.msra.mxu0 0
    %9723 = vmatprep.subr.bf16.mxu0 0
    %9724 = vmatpush1.bf16.msra.mxu0 0
    %9725 = vmatprep.subr.bf16.mxu0 0
    %9726 = vmatpush1.bf16.msra.mxu0 0
    %9727 = vmatprep.subr.bf16.mxu0 0
    %9728 = vmatpush1.bf16.msra.mxu0 0
    %9729 = vmatprep.subr.bf16.mxu0 0
    %9730 = vmatpush1.bf16.msra.mxu0 0
    %9731 = vmatprep.mubr.bf16.mxu0 0
    %9732 = vmatmul.mubr.bf16.gmra.mrb[0].mxu0 %v9633
    %v9733 = vpop.f32.mrb[0].mxu0
    %v9734 = vadd.f32 0.0, %v9733
    %v9735 = vpop.f32.mrb[0].mxu0
    %v9736 = vpop.f32.mrb[0].mxu0
    %v9737 = vpop.f32.mrb[0].mxu0
    %9738 = vdwg.mxu0
    %v9739 = vadd.f32 %v9583, %v9734
    %s9740 = scalar_lea.vmem %s33, 8
    %v9741 = vld [vmem:[%s9740] sm:$0x1]
    %v9743 = vsel %vm9283, %v9741, 0
    %9745 = vmatprep.subr.bf16.mxu0 0
    %9746 = vmatpush1.bf16.msra.mxu0 %v9289
    %9747 = vmatprep.subr.bf16.mxu0 0
    %9748 = vmatpush1.bf16.msra.mxu0 0
    %9749 = vmatprep.subr.bf16.mxu0 0
    %9750 = vmatpush1.bf16.msra.mxu0 0
    %9751 = vmatprep.subr.bf16.mxu0 0
    %9752 = vmatpush1.bf16.msra.mxu0 0
    %9753 = vmatprep.subr.bf16.mxu0 0
    %9754 = vmatpush1.bf16.msra.mxu0 0
    %9755 = vmatprep.subr.bf16.mxu0 0
    %9756 = vmatpush1.bf16.msra.mxu0 0
    %9757 = vmatprep.subr.bf16.mxu0 0
    %9758 = vmatpush1.bf16.msra.mxu0 0
    %9759 = vmatprep.subr.bf16.mxu0 0
    %9760 = vmatpush1.bf16.msra.mxu0 0
    %9761 = vmatprep.subr.bf16.mxu0 0
    %9762 = vmatpush1.bf16.msra.mxu0 0
    %9763 = vmatprep.subr.bf16.mxu0 0
    %9764 = vmatpush1.bf16.msra.mxu0 0
    %9765 = vmatprep.subr.bf16.mxu0 0
    %9766 = vmatpush1.bf16.msra.mxu0 0
    %9767 = vmatprep.subr.bf16.mxu0 0
    %9768 = vmatpush1.bf16.msra.mxu0 0
    %9769 = vmatprep.subr.bf16.mxu0 0
    %9770 = vmatpush1.bf16.msra.mxu0 0
    %9771 = vmatprep.subr.bf16.mxu0 0
    %9772 = vmatpush1.bf16.msra.mxu0 0
    %9773 = vmatprep.subr.bf16.mxu0 0
    %9774 = vmatpush1.bf16.msra.mxu0 0
    %9775 = vmatprep.subr.bf16.mxu0 0
    %9776 = vmatpush1.bf16.msra.mxu0 0
    %9777 = vmatprep.mubr.bf16.mxu0 0
    %9778 = vmatmul.mubr.bf16.gmra.mrb[0].mxu0 %v9743
    %v9779 = vpop.f32.mrb[0].mxu0
    %v9780 = vadd.f32 0.0, %v9779
    %v9781 = vpop.f32.mrb[0].mxu0
    %v9782 = vpop.f32.mrb[0].mxu0
    %v9783 = vpop.f32.mrb[0].mxu0
    %9784 = vdwg.mxu0
    %v9785 = vpack.c.bf16 %v9780, %v9780
    %s9786 = scalar_lea.vmem %s35, 512
    %v9787 = vld [vmem:[%s9786] sm:$0xf]
    %v9788 = vld [vmem:[%s9786 + $0x4] sm:$0xf]
    %v9789 = vld [vmem:[%s9786 + $0x8] sm:$0xf]
    %v9790 = vld [vmem:[%s9786 + $0xc] sm:$0xf]
    %v9791 = vld [vmem:[%s9786 + $0x10] sm:$0xf]
    %v9792 = vld [vmem:[%s9786 + $0x14] sm:$0xf]
    %v9793 = vld [vmem:[%s9786 + $0x18] sm:$0xf]
    %v9794 = vld [vmem:[%s9786 + $0x1c] sm:$0xf]
    %v9795 = vld [vmem:[%s9786 + $0x20] sm:$0xf]
    %v9796 = vld [vmem:[%s9786 + $0x24] sm:$0xf]
    %v9797 = vld [vmem:[%s9786 + $0x28] sm:$0xf]
    %v9798 = vld [vmem:[%s9786 + $0x2c] sm:$0xf]
    %v9799 = vld [vmem:[%s9786 + $0x30] sm:$0xf]
    %v9800 = vld [vmem:[%s9786 + $0x34] sm:$0xf]
    %v9801 = vld [vmem:[%s9786 + $0x38] sm:$0xf]
    %v9802 = vld [vmem:[%s9786 + $0x3c] sm:$0xf]
    %v9819 = vunpack.c.l.b16 %v9787
    %v9820 = vunpack.c.l.b16 %v9788
    %v9821 = vunpack.c.l.b16 %v9789
    %v9822 = vunpack.c.l.b16 %v9790
    %v9823 = vunpack.c.l.b16 %v9791
    %v9824 = vunpack.c.l.b16 %v9792
    %v9825 = vunpack.c.l.b16 %v9793
    %v9826 = vunpack.c.l.b16 %v9794
    %v9827 = vunpack.c.l.b16 %v9795
    %v9828 = vunpack.c.l.b16 %v9796
    %v9829 = vunpack.c.l.b16 %v9797
    %v9830 = vunpack.c.l.b16 %v9798
    %v9831 = vunpack.c.l.b16 %v9799
    %v9832 = vunpack.c.l.b16 %v9800
    %v9833 = vunpack.c.l.b16 %v9801
    %v9834 = vunpack.c.l.b16 %v9802
    %v9835 = vpack.c.b16 %v9820, %v9819
    %v9836 = vpack.c.b16 %v9822, %v9821
    %v9837 = vpack.c.b16 %v9824, %v9823
    %v9838 = vpack.c.b16 %v9826, %v9825
    %v9839 = vpack.c.b16 %v9828, %v9827
    %v9840 = vpack.c.b16 %v9830, %v9829
    %v9841 = vpack.c.b16 %v9832, %v9831
    %v9842 = vpack.c.b16 %v9834, %v9833
    %9851 = vmatprep.subr.bf16.mxu0 0
    %9852 = vmatpush1.bf16.msra.mxu0 %v9835
    %9853 = vmatprep.subr.bf16.mxu0 0
    %9854 = vmatpush1.bf16.msra.mxu0 %v9836
    %9855 = vmatprep.subr.bf16.mxu0 0
    %9856 = vmatpush1.bf16.msra.mxu0 %v9837
    %9857 = vmatprep.subr.bf16.mxu0 0
    %9858 = vmatpush1.bf16.msra.mxu0 %v9838
    %9859 = vmatprep.subr.bf16.mxu0 0
    %9860 = vmatpush1.bf16.msra.mxu0 %v9839
    %9861 = vmatprep.subr.bf16.mxu0 0
    %9862 = vmatpush1.bf16.msra.mxu0 %v9840
    %9863 = vmatprep.subr.bf16.mxu0 0
    %9864 = vmatpush1.bf16.msra.mxu0 %v9841
    %9865 = vmatprep.subr.bf16.mxu0 0
    %9866 = vmatpush1.bf16.msra.mxu0 %v9842
    %9867 = vmatprep.subr.bf16.mxu0 0
    %9868 = vmatpush1.bf16.msra.mxu0 0
    %9869 = vmatprep.subr.bf16.mxu0 0
    %9870 = vmatpush1.bf16.msra.mxu0 0
    %9871 = vmatprep.subr.bf16.mxu0 0
    %9872 = vmatpush1.bf16.msra.mxu0 0
    %9873 = vmatprep.subr.bf16.mxu0 0
    %9874 = vmatpush1.bf16.msra.mxu0 0
    %9875 = vmatprep.subr.bf16.mxu0 0
    %9876 = vmatpush1.bf16.msra.mxu0 0
    %9877 = vmatprep.subr.bf16.mxu0 0
    %9878 = vmatpush1.bf16.msra.mxu0 0
    %9879 = vmatprep.subr.bf16.mxu0 0
    %9880 = vmatpush1.bf16.msra.mxu0 0
    %9881 = vmatprep.subr.bf16.mxu0 0
    %9882 = vmatpush1.bf16.msra.mxu0 0
    %9883 = vmatprep.mubr.bf16.mxu0 0
    %9884 = vmatmul.mubr.bf16.gmra.mrb[0].mxu0 %v9785
    %v9885 = vpop.f32.mrb[0].mxu0
    %v9886 = vadd.f32 0.0, %v9885
    %v9887 = vpop.f32.mrb[0].mxu0
    %v9888 = vpop.f32.mrb[0].mxu0
    %v9889 = vpop.f32.mrb[0].mxu0
    %9890 = vdwg.mxu0
    %v9891 = vadd.f32 %v9739, %v9886
    %v9892 = vld [vmem:[#allocation28] sm:$0x1]
    %v9894 = vlaneseq
    %v9895 = vshrl.u32 %v9894, 7
    %v9896 = vsub.s32 0, %v9895
    %v9897 = vrot.slane %v9892, %v9896
    %v9899 = vadd.f32 %v9891, %v9897
    %vm9900 = vcmp.ge.f32.partialorder %v9899, 0.0
    %v9901 = vmul.f32 %v9899, 0.01
    %v9902 = vsel %vm9900, %v9899, %v9901
    %vm9903 = vcmask 517120
    %v9904 = vsel %vm9903, %v9902, 0.0
    %v9905 = vrot.slane %v9904, 4
    %v9906 = vadd.f32 %v9904, %v9905
    %v9907 = vrot.slane %v9906, 2
    %v9908 = vadd.f32 %v9906, %v9907
    %v9909 = vrot.slane %v9908, 1
    %v9910 = vadd.f32 %v9908, %v9909
    %v9911 = vrcp.pop 2.0
    %v9912 = vmul.f32 %v9910, %v9911
    %v9913 = vsub.f32 %v9902, %v9912
    %v9914 = vmul.f32 %v9913, %v9913
    %v9915 = vsel %vm9903, %v9914, 0.0
    %v9916 = vrot.slane %v9915, 4
    %v9917 = vadd.f32 %v9915, %v9916
    %v9918 = vrot.slane %v9917, 2
    %v9919 = vadd.f32 %v9917, %v9918
    %v9920 = vrot.slane %v9919, 1
    %v9921 = vadd.f32 %v9919, %v9920
    %v9922 = vmul.f32 %v9921, %v9911
    %v9923 = vadd.f32 %v9922, 1e-05
    %v9924 = vrsqrt.pop %v9923
    %v9925 = vmul.f32 %v9913, %v9924
    %v9926 = vld [vmem:[#allocation29] sm:$0x1]
    %v9928 = vlaneseq
    %v9929 = vshrl.u32 %v9928, 7
    %v9930 = vsub.s32 0, %v9929
    %v9931 = vrot.slane %v9926, %v9930
    %v9933 = vmul.f32 %v9925, %v9931
    %v9934 = vld [vmem:[#allocation31] sm:$0x1]
    %v9936 = vlaneseq
    %v9937 = vshrl.u32 %v9936, 7
    %v9938 = vsub.s32 0, %v9937
    %v9939 = vrot.slane %v9934, %v9938
    %v9941 = vadd.f32 %v9933, %v9939
    %v9942 = vpack.c.bf16 %v9941, %v9941
    %v9943 = vld [vmem:[#allocation32] sm:$0xf]
    %v9944 = vld [vmem:[#allocation32 + $0x4] sm:$0xf]
    %v9945 = vld [vmem:[#allocation32 + $0x8] sm:$0xf]
    %v9946 = vld [vmem:[#allocation32 + $0xc] sm:$0xf]
    %v9947 = vld [vmem:[#allocation32 + $0x10] sm:$0xf]
    %v9948 = vld [vmem:[#allocation32 + $0x14] sm:$0xf]
    %v9949 = vld [vmem:[#allocation32 + $0x18] sm:$0xf]
    %v9950 = vld [vmem:[#allocation32 + $0x1c] sm:$0xf]
    %v9951 = vld [vmem:[#allocation34] sm:$0x1]
    %v9953 = vlaneseq
    %v9954 = vshrl.u32 %v9953, 7
    %v9955 = vsub.s32 0, %v9954
    %v9956 = vrot.slane %v9951, %v9955
    %v9966 = vunpack.c.l.b16 %v9943
    %v9967 = vunpack.c.l.b16 %v9944
    %v9968 = vunpack.c.l.b16 %v9945
    %v9969 = vunpack.c.l.b16 %v9946
    %v9970 = vunpack.c.l.b16 %v9947
    %v9971 = vunpack.c.l.b16 %v9948
    %v9972 = vunpack.c.l.b16 %v9949
    %v9973 = vunpack.c.l.b16 %v9950
    %v9974 = vpack.c.b16 %v9967, %v9966
    %v9975 = vpack.c.b16 %v9969, %v9968
    %v9976 = vpack.c.b16 %v9971, %v9970
    %v9977 = vpack.c.b16 %v9973, %v9972
    %vm9982 = vcmask 523264
    %v9984 = vsel %vm9982, %v9942, 0
    %9986 = vmatprep.subr.bf16.mxu0 0
    %9987 = vmatpush1.bf16.msra.mxu0 %v9974
    %9988 = vmatprep.subr.bf16.mxu0 0
    %9989 = vmatpush1.bf16.msra.mxu0 %v9975
    %9990 = vmatprep.subr.bf16.mxu0 0
    %9991 = vmatpush1.bf16.msra.mxu0 %v9976
    %9992 = vmatprep.subr.bf16.mxu0 0
    %9993 = vmatpush1.bf16.msra.mxu0 %v9977
    %9994 = vmatprep.subr.bf16.mxu0 0
    %9995 = vmatpush1.bf16.msra.mxu0 0
    %9996 = vmatprep.subr.bf16.mxu0 0
    %9997 = vmatpush1.bf16.msra.mxu0 0
    %9998 = vmatprep.subr.bf16.mxu0 0
    %9999 = vmatpush1.bf16.msra.mxu0 0
    %10000 = vmatprep.subr.bf16.mxu0 0
    %10001 = vmatpush1.bf16.msra.mxu0 0
    %10002 = vmatprep.subr.bf16.mxu0 0
    %10003 = vmatpush1.bf16.msra.mxu0 0
    %10004 = vmatprep.subr.bf16.mxu0 0
    %10005 = vmatpush1.bf16.msra.mxu0 0
    %10006 = vmatprep.subr.bf16.mxu0 0
    %10007 = vmatpush1.bf16.msra.mxu0 0
    %10008 = vmatprep.subr.bf16.mxu0 0
    %10009 = vmatpush1.bf16.msra.mxu0 0
    %10010 = vmatprep.subr.bf16.mxu0 0
    %10011 = vmatpush1.bf16.msra.mxu0 0
    %10012 = vmatprep.subr.bf16.mxu0 0
    %10013 = vmatpush1.bf16.msra.mxu0 0
    %10014 = vmatprep.subr.bf16.mxu0 0
    %10015 = vmatpush1.bf16.msra.mxu0 0
    %10016 = vmatprep.subr.bf16.mxu0 0
    %10017 = vmatpush1.bf16.msra.mxu0 0
    %10018 = vmatprep.mubr.bf16.mxu0 0
    %10019 = vmatmul.mubr.bf16.gmra.mrb[0].mxu0 %v9984
    %v10020 = vpop.f32.mrb[0].mxu0
    %v10021 = vadd.f32 %v9956, %v10020
    %v10022 = vpop.f32.mrb[0].mxu0
    %v10023 = vpop.f32.mrb[0].mxu0
    %v10024 = vpop.f32.mrb[0].mxu0
    %10025 = vdwg.mxu0
    %vm10026 = vcmp.ge.f32.partialorder %v10021, 0.0
    %v10027 = vmul.f32 %v10021, 0.01
    %v10028 = vsel %vm10026, %v10021, %v10027
    %v10029 = vsel %vm9903, %v10028, 0.0
    %v10030 = vrot.slane %v10029, 4
    %v10031 = vadd.f32 %v10029, %v10030
    %v10032 = vrot.slane %v10031, 2
    %v10033 = vadd.f32 %v10031, %v10032
    %v10034 = vrot.slane %v10033, 1
    %v10035 = vadd.f32 %v10033, %v10034
    %v10036 = vmul.f32 %v10035, %v9911
    %v10037 = vsub.f32 %v10028, %v10036
    %v10038 = vmul.f32 %v10037, %v10037
    %v10039 = vsel %vm9903, %v10038, 0.0
    %v10040 = vrot.slane %v10039, 4
    %v10041 = vadd.f32 %v10039, %v10040
    %v10042 = vrot.slane %v10041, 2
    %v10043 = vadd.f32 %v10041, %v10042
    %v10044 = vrot.slane %v10043, 1
    %v10045 = vadd.f32 %v10043, %v10044
    %v10046 = vmul.f32 %v10045, %v9911
    %v10047 = vadd.f32 %v10046, 1e-05
    %v10048 = vrsqrt.pop %v10047
    %v10049 = vmul.f32 %v10037, %v10048
    %v10050 = vld [vmem:[#allocation35] sm:$0x1]
    %v10052 = vlaneseq
    %v10053 = vshrl.u32 %v10052, 7
    %v10054 = vsub.s32 0, %v10053
    %v10055 = vrot.slane %v10050, %v10054
    %v10057 = vmul.f32 %v10049, %v10055
    %v10058 = vld [vmem:[#allocation37] sm:$0x1]
    %v10060 = vlaneseq
    %v10061 = vshrl.u32 %v10060, 7
    %v10062 = vsub.s32 0, %v10061
    %v10063 = vrot.slane %v10058, %v10062
    %v10065 = vadd.f32 %v10057, %v10063
    %v10066 = vpack.c.bf16 %v10065, %v10065
    %v10067 = vld [vmem:[#allocation38] sm:$0xf]
    %v10068 = vld [vmem:[#allocation38 + $0x4] sm:$0xf]
    %v10069 = vld [vmem:[#allocation38 + $0x8] sm:$0xf]
    %v10070 = vld [vmem:[#allocation38 + $0xc] sm:$0xf]
    %v10071 = vld [vmem:[#allocation38 + $0x10] sm:$0xf]
    %v10072 = vld [vmem:[#allocation38 + $0x14] sm:$0xf]
    %v10073 = vld [vmem:[#allocation38 + $0x18] sm:$0xf]
    %v10074 = vld [vmem:[#allocation38 + $0x1c] sm:$0xf]
    %v10075 = vld [vmem:[#allocation40] sm:$0x1]
    %v10077 = vlaneseq
    %v10078 = vshrl.u32 %v10077, 7
    %v10079 = vsub.s32 0, %v10078
    %v10080 = vrot.slane %v10075, %v10079
    %v10090 = vunpack.c.l.b16 %v10067
    %v10091 = vunpack.c.l.b16 %v10068
    %v10092 = vunpack.c.l.b16 %v10069
    %v10093 = vunpack.c.l.b16 %v10070
    %v10094 = vunpack.c.l.b16 %v10071
    %v10095 = vunpack.c.l.b16 %v10072
    %v10096 = vunpack.c.l.b16 %v10073
    %v10097 = vunpack.c.l.b16 %v10074
    %v10098 = vpack.c.b16 %v10091, %v10090
    %v10099 = vpack.c.b16 %v10093, %v10092
    %v10100 = vpack.c.b16 %v10095, %v10094
    %v10101 = vpack.c.b16 %v10097, %v10096
    %v10107 = vsel %vm9982, %v10066, 0
    %10109 = vmatprep.subr.bf16.mxu0 0
    %10110 = vmatpush1.bf16.msra.mxu0 %v10098
    %10111 = vmatprep.subr.bf16.mxu0 0
    %10112 = vmatpush1.bf16.msra.mxu0 %v10099
    %10113 = vmatprep.subr.bf16.mxu0 0
    %10114 = vmatpush1.bf16.msra.mxu0 %v10100
    %10115 = vmatprep.subr.bf16.mxu0 0
    %10116 = vmatpush1.bf16.msra.mxu0 %v10101
    %10117 = vmatprep.subr.bf16.mxu0 0
    %10118 = vmatpush1.bf16.msra.mxu0 0
    %10119 = vmatprep.subr.bf16.mxu0 0
    %10120 = vmatpush1.bf16.msra.mxu0 0
    %10121 = vmatprep.subr.bf16.mxu0 0
    %10122 = vmatpush1.bf16.msra.mxu0 0
    %10123 = vmatprep.subr.bf16.mxu0 0
    %10124 = vmatpush1.bf16.msra.mxu0 0
    %10125 = vmatprep.subr.bf16.mxu0 0
    %10126 = vmatpush1.bf16.msra.mxu0 0
    %10127 = vmatprep.subr.bf16.mxu0 0
    %10128 = vmatpush1.bf16.msra.mxu0 0
    %10129 = vmatprep.subr.bf16.mxu0 0
    %10130 = vmatpush1.bf16.msra.mxu0 0
    %10131 = vmatprep.subr.bf16.mxu0 0
    %10132 = vmatpush1.bf16.msra.mxu0 0
    %10133 = vmatprep.subr.bf16.mxu0 0
    %10134 = vmatpush1.bf16.msra.mxu0 0
    %10135 = vmatprep.subr.bf16.mxu0 0
    %10136 = vmatpush1.bf16.msra.mxu0 0
    %10137 = vmatprep.subr.bf16.mxu0 0
    %10138 = vmatpush1.bf16.msra.mxu0 0
    %10139 = vmatprep.subr.bf16.mxu0 0
    %10140 = vmatpush1.bf16.msra.mxu0 0
    %10141 = vmatprep.mubr.bf16.mxu0 0
    %10142 = vmatmul.mubr.bf16.gmra.mrb[0].mxu0 %v10107
    %v10143 = vpop.f32.mrb[0].mxu0
    %v10144 = vadd.f32 %v10080, %v10143
    %v10145 = vpop.f32.mrb[0].mxu0
    %v10146 = vpop.f32.mrb[0].mxu0
    %v10147 = vpop.f32.mrb[0].mxu0
    %10148 = vdwg.mxu0
    %vm10149 = vcmp.ge.f32.partialorder %v10144, 0.0
    %v10150 = vmul.f32 %v10144, 0.01
    %v10151 = vsel %vm10149, %v10144, %v10150
    %v10152 = vsel %vm9903, %v10151, 0.0
    %v10153 = vrot.slane %v10152, 4
    %v10154 = vadd.f32 %v10152, %v10153
    %v10155 = vrot.slane %v10154, 2
    %v10156 = vadd.f32 %v10154, %v10155
    %v10157 = vrot.slane %v10156, 1
    %v10158 = vadd.f32 %v10156, %v10157
    %v10159 = vmul.f32 %v10158, %v9911
    %v10160 = vsub.f32 %v10151, %v10159
    %v10161 = vmul.f32 %v10160, %v10160
    %v10162 = vsel %vm9903, %v10161, 0.0
    %v10163 = vrot.slane %v10162, 4
    %v10164 = vadd.f32 %v10162, %v10163
    %v10165 = vrot.slane %v10164, 2
    %v10166 = vadd.f32 %v10164, %v10165
    %v10167 = vrot.slane %v10166, 1
    %v10168 = vadd.f32 %v10166, %v10167
    %v10169 = vmul.f32 %v10168, %v9911
    %v10170 = vadd.f32 %v10169, 1e-05
    %v10171 = vrsqrt.pop %v10170
    %v10172 = vmul.f32 %v10160, %v10171
    %v10173 = vld [vmem:[#allocation41] sm:$0x1]
    %v10175 = vlaneseq
    %v10176 = vshrl.u32 %v10175, 7
    %v10177 = vsub.s32 0, %v10176
    %v10178 = vrot.slane %v10173, %v10177
    %v10180 = vmul.f32 %v10172, %v10178
    %v10181 = vld [vmem:[#allocation43] sm:$0x1]
    %v10183 = vlaneseq
    %v10184 = vshrl.u32 %v10183, 7
    %v10185 = vsub.s32 0, %v10184
    %v10186 = vrot.slane %v10181, %v10185
    %v10188 = vadd.f32 %v10180, %v10186
    %v10189 = vpack.c.bf16 %v10188, %v10188
    %v10190 = vld [vmem:[#allocation44] sm:$0xf]
    %v10191 = vld [vmem:[#allocation44 + $0x4] sm:$0xf]
    %v10192 = vld [vmem:[#allocation44 + $0x8] sm:$0xf]
    %v10193 = vld [vmem:[#allocation44 + $0xc] sm:$0xf]
    %v10194 = vld [vmem:[#allocation44 + $0x10] sm:$0xf]
    %v10195 = vld [vmem:[#allocation44 + $0x14] sm:$0xf]
    %v10196 = vld [vmem:[#allocation44 + $0x18] sm:$0xf]
    %v10197 = vld [vmem:[#allocation44 + $0x1c] sm:$0xf]
    %v10198 = vld [vmem:[#allocation46] sm:$0x1]
    %v10200 = vlaneseq
    %v10201 = vshrl.u32 %v10200, 7
    %v10202 = vsub.s32 0, %v10201
    %v10203 = vrot.slane %v10198, %v10202
    %v10213 = vunpack.c.l.b16 %v10190
    %v10214 = vunpack.c.l.b16 %v10191
    %v10215 = vunpack.c.l.b16 %v10192
    %v10216 = vunpack.c.l.b16 %v10193
    %v10217 = vunpack.c.l.b16 %v10194
    %v10218 = vunpack.c.l.b16 %v10195
    %v10219 = vunpack.c.l.b16 %v10196
    %v10220 = vunpack.c.l.b16 %v10197
    %v10221 = vpack.c.b16 %v10214, %v10213
    %v10222 = vpack.c.b16 %v10216, %v10215
    %v10223 = vpack.c.b16 %v10218, %v10217
    %v10224 = vpack.c.b16 %v10220, %v10219
    %v10230 = vsel %vm9982, %v10189, 0
    %10232 = vmatprep.subr.bf16.mxu0 0
    %10233 = vmatpush1.bf16.msra.mxu0 %v10221
    %10234 = vmatprep.subr.bf16.mxu0 0
    %10235 = vmatpush1.bf16.msra.mxu0 %v10222
    %10236 = vmatprep.subr.bf16.mxu0 0
    %10237 = vmatpush1.bf16.msra.mxu0 %v10223
    %10238 = vmatprep.subr.bf16.mxu0 0
    %10239 = vmatpush1.bf16.msra.mxu0 %v10224
    %10240 = vmatprep.subr.bf16.mxu0 0
    %10241 = vmatpush1.bf16.msra.mxu0 0
    %10242 = vmatprep.subr.bf16.mxu0 0
    %10243 = vmatpush1.bf16.msra.mxu0 0
    %10244 = vmatprep.subr.bf16.mxu0 0
    %10245 = vmatpush1.bf16.msra.mxu0 0
    %10246 = vmatprep.subr.bf16.mxu0 0
    %10247 = vmatpush1.bf16.msra.mxu0 0
    %10248 = vmatprep.subr.bf16.mxu0 0
    %10249 = vmatpush1.bf16.msra.mxu0 0
    %10250 = vmatprep.subr.bf16.mxu0 0
    %10251 = vmatpush1.bf16.msra.mxu0 0
    %10252 = vmatprep.subr.bf16.mxu0 0
    %10253 = vmatpush1.bf16.msra.mxu0 0
    %10254 = vmatprep.subr.bf16.mxu0 0
    %10255 = vmatpush1.bf16.msra.mxu0 0
    %10256 = vmatprep.subr.bf16.mxu0 0
    %10257 = vmatpush1.bf16.msra.mxu0 0
    %10258 = vmatprep.subr.bf16.mxu0 0
    %10259 = vmatpush1.bf16.msra.mxu0 0
    %10260 = vmatprep.subr.bf16.mxu0 0
    %10261 = vmatpush1.bf16.msra.mxu0 0
    %10262 = vmatprep.subr.bf16.mxu0 0
    %10263 = vmatpush1.bf16.msra.mxu0 0
    %10264 = vmatprep.mubr.bf16.mxu0 0
    %10265 = vmatmul.mubr.bf16.gmra.mrb[0].mxu0 %v10230
    %v10266 = vpop.f32.mrb[0].mxu0
    %v10267 = vadd.f32 %v10203, %v10266
    %v10268 = vpop.f32.mrb[0].mxu0
    %v10269 = vpop.f32.mrb[0].mxu0
    %v10270 = vpop.f32.mrb[0].mxu0
    %10271 = vdwg.mxu0
    %10272 = vst.msk [vmem:[#allocation50] sm:$0x3] %vm9903, %v10267
    %vm10273 = vcmp.ge.f32.partialorder %v10267, 0.0
    %v10274 = vmul.f32 %v10267, 0.01
    %v10275 = vsel %vm10273, %v10267, %v10274
    %v10276 = vpack.c.bf16 %v10275, %v10275
    %v10277 = vld [vmem:[#allocation47] sm:$0xf]
    %v10278 = vld [vmem:[#allocation47 + $0x4] sm:$0xf]
    %v10279 = vld [vmem:[#allocation47 + $0x8] sm:$0xf]
    %v10280 = vld [vmem:[#allocation47 + $0xc] sm:$0xf]
    %v10281 = vld [vmem:[#allocation47 + $0x10] sm:$0xf]
    %v10282 = vld [vmem:[#allocation47 + $0x14] sm:$0xf]
    %v10283 = vld [vmem:[#allocation47 + $0x18] sm:$0xf]
    %v10284 = vld [vmem:[#allocation47 + $0x1c] sm:$0xf]
    %v10285 = vld [vmem:[#allocation49] sm:$0x1]
    %v10287 = vlaneseq
    %v10288 = vshrl.u32 %v10287, 7
    %v10289 = vsub.s32 0, %v10288
    %v10290 = vrot.slane %v10285, %v10289
    %v10300 = vunpack.c.l.b16 %v10277
    %v10301 = vunpack.c.l.b16 %v10278
    %v10302 = vunpack.c.l.b16 %v10279
    %v10303 = vunpack.c.l.b16 %v10280
    %v10304 = vunpack.c.l.b16 %v10281
    %v10305 = vunpack.c.l.b16 %v10282
    %v10306 = vunpack.c.l.b16 %v10283
    %v10307 = vunpack.c.l.b16 %v10284
    %v10308 = vpack.c.b16 %v10301, %v10300
    %v10309 = vpack.c.b16 %v10303, %v10302
    %v10310 = vpack.c.b16 %v10305, %v10304
    %v10311 = vpack.c.b16 %v10307, %v10306
    %v10317 = vsel %vm9982, %v10276, 0
    %10319 = vmatprep.subr.bf16.mxu0 0
    %10320 = vmatpush1.bf16.msra.mxu0 %v10308
    %10321 = vmatprep.subr.bf16.mxu0 0
    %10322 = vmatpush1.bf16.msra.mxu0 %v10309
    %10323 = vmatprep.subr.bf16.mxu0 0
    %10324 = vmatpush1.bf16.msra.mxu0 %v10310
    %10325 = vmatprep.subr.bf16.mxu0 0
    %10326 = vmatpush1.bf16.msra.mxu0 %v10311
    %10327 = vmatprep.subr.bf16.mxu0 0
    %10328 = vmatpush1.bf16.msra.mxu0 0
    %10329 = vmatprep.subr.bf16.mxu0 0
    %10330 = vmatpush1.bf16.msra.mxu0 0
    %10331 = vmatprep.subr.bf16.mxu0 0
    %10332 = vmatpush1.bf16.msra.mxu0 0
    %10333 = vmatprep.subr.bf16.mxu0 0
    %10334 = vmatpush1.bf16.msra.mxu0 0
    %10335 = vmatprep.subr.bf16.mxu0 0
    %10336 = vmatpush1.bf16.msra.mxu0 0
    %10337 = vmatprep.subr.bf16.mxu0 0
    %10338 = vmatpush1.bf16.msra.mxu0 0
    %10339 = vmatprep.subr.bf16.mxu0 0
    %10340 = vmatpush1.bf16.msra.mxu0 0
    %10341 = vmatprep.subr.bf16.mxu0 0
    %10342 = vmatpush1.bf16.msra.mxu0 0
    %10343 = vmatprep.subr.bf16.mxu0 0
    %10344 = vmatpush1.bf16.msra.mxu0 0
    %10345 = vmatprep.subr.bf16.mxu0 0
    %10346 = vmatpush1.bf16.msra.mxu0 0
    %10347 = vmatprep.subr.bf16.mxu0 0
    %10348 = vmatpush1.bf16.msra.mxu0 0
    %10349 = vmatprep.subr.bf16.mxu0 0
    %10350 = vmatpush1.bf16.msra.mxu0 0
    %10351 = vmatprep.mubr.bf16.mxu0 0
    %10352 = vmatmul.mubr.bf16.gmra.mrb[0].mxu0 %v10317
    %v10353 = vpop.f32.mrb[0].mxu0
    %v10354 = vadd.f32 %v10290, %v10353
    %v10355 = vpop.f32.mrb[0].mxu0
    %v10356 = vpop.f32.mrb[0].mxu0
    %v10357 = vpop.f32.mrb[0].mxu0
    %10358 = vdwg.mxu0
    %v10359 = vxor.u32 %v10354, 2147483648
    %v10360 = vmul.f32 %v10359, 1.442695
    %v10361 = vpow.pop %v10360
    %v10362 = vadd.f32 %v10361, 1.0
    %v10363 = vrcp.pop %v10362
    %v10364 = vmul.f32 1.0, %v10363
    %10365 = vst [vmem:[#allocation51] sm:$0x3] %v10364
    // Predicated region
    $region258: #{tpu_custom_call.1} parent=1 // pred_check
      _
    $region259: #{tpu_custom_call.1} parent=1 // pred_check_branch
      %10367 = sbr.rel (0) target = $region261
    $region260: #{tpu_custom_call.1} parent=1 // pred_region
      %s10369 = ssub.s32 32, 32
      %10370 = vsyncadd [#allocation4], %s10369
      %s10372 = sshll.u32 [#allocation50], 4
      %s10373 = int_to_ptr.vmem [resolvable:$true] %s10372
      %10375 = dma.vmem_to_hbm [thread:$0]  %s10373, 32, %s67, [#allocation4]
    $region261: #{tpu_custom_call.1} parent=1 // pred_fallthru
      _
    // Predicated region
    $region262: #{tpu_custom_call.1} parent=1 // pred_check
      _
    $region263: #{tpu_custom_call.1} parent=1 // pred_check_branch
      %10377 = sbr.rel (0) target = $region265
    $region264: #{tpu_custom_call.1} parent=1 // pred_region
      %s10379 = ssub.s32 32, 32
      %10380 = vsyncadd [#allocation52], %s10379
      %s10382 = sshll.u32 [#allocation51], 4
      %s10383 = int_to_ptr.vmem [resolvable:$true] %s10382
      %10385 = dma.vmem_to_hbm [thread:$0]  %s10383, 32, %s69, [#allocation52]
    $region265: #{tpu_custom_call.1} parent=1 // pred_fallthru
      _
    // Predicated region
    $region266: #{tpu_custom_call.1} parent=1 // pred_check
      _
    $region267: #{tpu_custom_call.1} parent=1 // pred_check_branch
      %10387 = sbr.rel (0) target = $region269
    $region268: #{tpu_custom_call.1} parent=1 // pred_region
      %10388 = dma.done [#allocation4], 32
    $region269: #{tpu_custom_call.1} parent=1 // pred_fallthru
      _
    // Predicated region
    $region270: #{tpu_custom_call.1} parent=1 // pred_check
      _
    $region271: #{tpu_custom_call.1} parent=1 // pred_check_branch
      %10390 = sbr.rel (0) target = $region273
    $region272: #{tpu_custom_call.1} parent=1 // pred_region
      %10391 = dma.done [#allocation52], 32
    $region273: #{tpu_custom_call.1} parent=1 // pred_fallthru
      _
    %10392 = vsyncpa [#allocation3], 1
    %10393 = vsyncpa [#allocation6], 1
    %10394 = vsyncpa [#allocation9], 1
    %10395 = vsyncpa [#allocation12], 1
    %10396 = vsyncpa [#allocation15], 1
    %10397 = vsyncpa [#allocation18], 1
    %10398 = vsyncpa [#allocation21], 1
    %10399 = vsyncpa [#allocation24], 1
    %10400 = vsyncpa [#allocation27], 1
    %10401 = vsyncpa [#allocation30], 1
    %10402 = vsyncpa [#allocation33], 1
    %10403 = vsyncpa [#allocation36], 1
    %10404 = vsyncpa [#allocation39], 1
    %10405 = vsyncpa [#allocation42], 1
    %10406 = vsyncpa [#allocation45], 1
    %10407 = vsyncpa [#allocation48], 1
    %10408 = vsyncpa [#allocation4], 1
    %10409 = vsyncpa [#allocation52], 1

</llo_original>
